<compile_context>
chip_gen: v6e
topology: v6e:2x2x1
jax: 0.10.0
libtpu: 0.0.40
codegen_flags: <defaults>
</compile_context>

<pallas_src>
import functools

import jax
import jax.numpy as jnp
from jax import lax
from jax.experimental import pallas as pl
from jax.experimental.pallas import tpu as pltpu

KH = KW = 7          # kernel_size = 7
PAD = KH // 2        # padding = 3


def _gelu_tanh(x):
    # TODO(synk): PyTorch nn.GELU() defaults to the exact erf form; the tanh
    # approximation is used so the activation lowers cleanly to the TPU EUP
    # (max deviation ~1e-3). The in-script reference uses the same formula.
    c = 0.7978845608028654  # sqrt(2/pi)
    return 0.5 * x * (1.0 + jnp.tanh(c * (x + 0.044715 * x * x * x)))


def conv_ffn_kernel(x_cur_ref, x_top_ref, x_bot_ref,
                    w_dw_ref, b_dw_ref, w1_ref, b1_ref, w2_ref, b2_ref,
                    o_ref, xpad_scr, *, rows):
    """One (batch, H-tile) step.

    x_cur_ref : (1, TH, W, C)     current H-tile of the unpadded NHWC input
    x_top_ref : (1, HALO, W, C)   block just above the tile (halo source)
    x_bot_ref : (1, HALO, W, C)   block just below the tile (halo source)
    w_dw_ref  : (KH, KW, C)       depthwise weights, BN scale pre-folded (f32)
    b_dw_ref  : (1, C)            folded BN shift (f32)
    w1_ref    : (C, F)            fc1 1x1-conv weights (bf16 or f32)
    b1_ref    : (1, F)            fc1 bias (f32)
    w2_ref    : (F, Cout)         fc2 1x1-conv weights (bf16 or f32)
    b2_ref    : (1, Cout)         fc2 bias (f32)
    o_ref     : (1, TH, W, Cout)  output tile
    xpad_scr  : (TH+6, W+6, C)    f32 VMEM scratch: zero-padded input tile
    rows      : static row-strip height for register-resident accumulation
    """
    i = pl.program_id(1)
    n_h = pl.num_programs(1)
    _, TH, W, C = x_cur_ref.shape
    HALO = x_top_ref.shape[1]
    Cout = o_ref.shape[3]

    # ---- left/right zero pad columns: written once per image (the scratch
    #      persists across the sequential H-tile axis), not every step. --------
    @pl.when(i == 0)
    def _():
        xpad_scr[:, :PAD, :] = jnp.zeros((TH + 2 * PAD, PAD, C), jnp.float32)
        xpad_scr[:, PAD + W:, :] = jnp.zeros((TH + 2 * PAD, PAD, C), jnp.float32)

    # ---- center rows (bf16->f32 cast fused into this copy) -------------------
    xpad_scr[PAD:PAD + TH, PAD:PAD + W, :] = x_cur_ref[0].astype(jnp.float32)

    # ---- 3-row halos from the 4-row neighbour blocks (zeros at image edges) --
    @pl.when(i == 0)
    def _():
        xpad_scr[:PAD, PAD:PAD + W, :] = jnp.zeros((PAD, W, C), jnp.float32)

    @pl.when(i > 0)
    def _():
        xpad_scr[:PAD, PAD:PAD + W, :] = (
            x_top_ref[0, HALO - PAD:, :, :].astype(jnp.float32))

    @pl.when(i == n_h - 1)
    def _():
        xpad_scr[PAD + TH:, PAD:PAD + W, :] = jnp.zeros((PAD, W, C), jnp.float32)

    @pl.when(i < n_h - 1)
    def _():
        xpad_scr[PAD + TH:, PAD:PAD + W, :] = (
            x_bot_ref[0, :PAD, :, :].astype(jnp.float32))

    # ---- depthwise 7x7 conv (+ folded BN) in row strips (acc stays in vregs),
    #      followed by the two 1x1 convs on the MXU for that strip. ------------
    for r0 in range(0, TH, rows):
        acc = None
        for kw in range(KW):
            # One misaligned (sublane) slice per (strip, kw) instead of per tap;
            # the kh slices below are leading-dim slices (free).
            slab = xpad_scr[r0:r0 + rows + 2 * PAD, kw:kw + W, :]   # (rows+6, W, C)
            for kh in range(KH):
                term = slab[kh:kh + rows] * w_dw_ref[kh, kw, :]
                acc = term if acc is None else acc + term           # first tap inits
        y = acc + b_dw_ref[...]                                     # (rows, W, C) f32

        # 1x1 convs == per-pixel matmuls over channels. Operands are cast to the
        # weight dtype (bf16 by default -> native MXU rate); accumulation is f32.
        # (reshape merges rows into the sublane dim; W is lane-free, cheap for
        #  W % 8 == 0 and still correct otherwise.)
        y2 = y.reshape(rows * W, C).astype(w1_ref.dtype)
        h = jnp.dot(y2, w1_ref[...], preferred_element_type=jnp.float32) + b1_ref[...]
        h = _gelu_tanh(h)
        z = jnp.dot(h.astype(w2_ref.dtype), w2_ref[...],
                    preferred_element_type=jnp.float32) + b2_ref[...]
        o_ref[0, r0:r0 + rows] = z.reshape(rows, W, Cout).astype(o_ref.dtype)


def _vmem_limit_bytes():
    """Generation-aware VMEM cap: ~48 MiB on v7x (64 MiB physical), ~96 MiB on
    v5e/v6e (128 MiB physical)."""
    cap = 128 * 1024 * 1024
    try:
        cap = int(getattr(pltpu.get_tpu_info(), "vmem_capacity_bytes", cap))
    except Exception:
        pass
    return int(min(cap * 3 // 4, 96 * 1024 * 1024))


def conv_ffn_forward(x_nchw, dw_weight, bn_gamma, bn_beta, bn_mean, bn_var,
                     fc1_w, fc1_b, fc2_w, fc2_b, *, bn_eps=1e-5,
                     tile_h=32, rows_per_strip=8, mxu_dtype=jnp.bfloat16):
    """ConvFFN forward. x_nchw: (N, C, H, W); dw_weight: (C, 1, 7, 7);
    fc1_w: (F, C, 1, 1); fc1_b: (F,); fc2_w: (Cout, F, 1, 1); fc2_b: (Cout,).

    tile_h: rows per grid step (re-derive smaller on v7x's 64 MiB VMEM).
    mxu_dtype: dtype of the 1x1-conv matmul operands (f32 accumulation always).
    """
    N, C, H, W = x_nchw.shape
    F = fc1_w.shape[0]
    Cout = fc2_w.shape[0]

    # TODO(synk): drop this transpose pair if the surrounding model runs NHWC.
    x = jnp.transpose(x_nchw, (0, 2, 3, 1))                         # NCHW -> NHWC

    # Fold eval-mode BatchNorm into the depthwise conv (exact linear fold).
    scale = bn_gamma / jnp.sqrt(bn_var + bn_eps)                    # (C,)
    shift = bn_beta - bn_mean * scale                               # (C,)
    w_dw = (jnp.transpose(dw_weight[:, 0, :, :], (1, 2, 0))
            * scale).astype(jnp.float32)                            # (7,7,C) f32
    b_dw = shift.reshape(1, C).astype(jnp.float32)                  # (1,C)  f32
    # 1x1-conv weights: bf16 operands -> native MXU rate; biases stay f32.
    w1 = jnp.transpose(fc1_w[:, :, 0, 0], (1, 0)).astype(mxu_dtype)   # (C,F)
    b1 = fc1_b.reshape(1, F).astype(jnp.float32)
    w2 = jnp.transpose(fc2_w[:, :, 0, 0], (1, 0)).astype(mxu_dtype)   # (F,Cout)
    b2 = fc2_b.reshape(1, Cout).astype(jnp.float32)

    # ---- H tiling: tile_h rows per step, 4-row halo source blocks.  H is
    #      zero-padded in the wrapper to a multiple of tile_h (equivalent to
    #      the conv's own zero padding; extra output rows are dropped). --------
    HALO = 4                      # leading dim of the halo block: not (8,128)-constrained
    tile_h = max(HALO, (int(tile_h) // HALO) * HALO)
    tile_h = min(tile_h, ((H + HALO - 1) // HALO) * HALO)           # don't tile past H
    H_pad = ((H + tile_h - 1) // tile_h) * tile_h
    if H_pad != H:
        x = jnp.pad(x, ((0, 0), (0, H_pad - H), (0, 0), (0, 0)))
    n_h = H_pad // tile_h
    hpb = tile_h // HALO          # halo blocks per H-tile
    n_halo = H_pad // HALO

    # Row-strip height for register-resident depthwise accumulation.
    rows = max(1, min(int(rows_per_strip), tile_h))
    while tile_h % rows:
        rows -= 1

    in_specs = [
        pl.BlockSpec((1, tile_h, W, C), lambda n, i: (n, i, 0, 0)),
        pl.BlockSpec((1, HALO, W, C),
                     lambda n, i: (n, jnp.maximum(i * hpb - 1, 0), 0, 0)),
        pl.BlockSpec((1, HALO, W, C),
                     lambda n, i: (n, jnp.minimum((i + 1) * hpb, n_halo - 1), 0, 0)),
        pl.BlockSpec((KH, KW, C), lambda n, i: (0, 0, 0)),
        pl.BlockSpec((1, C), lambda n, i: (0, 0)),
        pl.BlockSpec((C, F), lambda n, i: (0, 0)),
        pl.BlockSpec((1, F), lambda n, i: (0, 0)),
        pl.BlockSpec((F, Cout), lambda n, i: (0, 0)),
        pl.BlockSpec((1, Cout), lambda n, i: (0, 0)),
    ]
    # TODO(synk): for Cout < 128 the output is not lane-dense; production configs
    # should keep C/F/Cout multiples of 128.
    out_spec = pl.BlockSpec((1, tile_h, W, Cout), lambda n, i: (n, i, 0, 0))

    out_nhwc = pl.pallas_call(
        functools.partial(conv_ffn_kernel, rows=rows),
        out_shape=jax.ShapeDtypeStruct((N, H_pad, W, Cout), x.dtype),
        grid_spec=pltpu.PrefetchScalarGridSpec(
            num_scalar_prefetch=0,
            grid=(N, n_h),
            in_specs=in_specs,
            out_specs=out_spec,
            scratch_shapes=[
                # f32 padded-input scratch; cast from the input dtype is fused
                # into the assembly copies above.
                pltpu.VMEM((tile_h + 2 * PAD, W + 2 * PAD, C), jnp.float32),
            ],
        ),
        compiler_params=pltpu.CompilerParams(
            # The H-tile axis must stay sequential per core: the scratch's zero
            # pad columns are written only at i == 0 and reused for i > 0.
            dimension_semantics=("parallel", "arbitrary"),
            vmem_limit_bytes=_vmem_limit_bytes(),
        ),
    )(x, x, x, w_dw, b_dw, w1, b1, w2, b2)

    if H_pad != H:
        out_nhwc = out_nhwc[:, :H]
    return jnp.transpose(out_nhwc, (0, 3, 1, 2))                    # NHWC -> NCHW


if __name__ == "__main__":
    # Small shapes consistent with the module: out_channels == in_channels
    # (fc1 consumes the depthwise-conv output); H chosen so both the multi-tile
    # halo path (tile_h=8 -> 3 tiles) and the multi-strip path are exercised.
    N, C, H, W = 2, 16, 24, 24
    F_hidden = 32
    Cout = C

    keys = jax.random.split(jax.random.PRNGKey(0), 10)
    x = jax.random.normal(keys[0], (N, C, H, W), jnp.float32)
    dw_w = 0.2 * jax.random.normal(keys[1], (C, 1, KH, KW), jnp.float32)
    bn_gamma = 1.0 + 0.1 * jax.random.normal(keys[2], (C,), jnp.float32)
    bn_beta = 0.1 * jax.random.normal(keys[3], (C,), jnp.float32)
    bn_mean = 0.1 * jax.random.normal(keys[4], (C,), jnp.float32)
    bn_var = jax.random.uniform(keys[5], (C,), jnp.float32, 0.5, 1.5)
    fc1_w = 0.3 * jax.random.normal(keys[6], (F_hidden, C, 1, 1), jnp.float32)
    fc1_b = 0.1 * jax.random.normal(keys[7], (F_hidden,), jnp.float32)
    fc2_w = 0.3 * jax.random.normal(keys[8], (Cout, F_hidden, 1, 1), jnp.float32)
    fc2_b = 0.1 * jax.random.normal(keys[9], (Cout,), jnp.float32)

    args = (x, dw_w, bn_gamma, bn_beta, bn_mean, bn_var, fc1_w, fc1_b, fc2_w, fc2_b)

    # Exact-precision path (f32 MXU operands) with small explicit tiles:
    # exercises multi-tile halo assembly + the row-strip loop.
    out_exact = jax.block_until_ready(
        conv_ffn_forward(*args, tile_h=8, rows_per_strip=4, mxu_dtype=jnp.float32))
    # Default fast path: bf16 MXU operands with f32 accumulation, auto tile.
    out_fast = jax.block_until_ready(conv_ffn_forward(*args))

    # ---- pure-JAX reference (eval-mode BN, same tanh-GELU) ----
    y = lax.conv_general_dilated(
        x, dw_w, (1, 1), [(PAD, PAD), (PAD, PAD)],
        dimension_numbers=("NCHW", "OIHW", "NCHW"), feature_group_count=C,
        precision=lax.Precision.HIGHEST)
    y = (y - bn_mean.reshape(1, C, 1, 1)) / jnp.sqrt(bn_var.reshape(1, C, 1, 1) + 1e-5)
    y = y * bn_gamma.reshape(1, C, 1, 1) + bn_beta.reshape(1, C, 1, 1)
    h = jnp.einsum("nchw,fc->nfhw", y, fc1_w[:, :, 0, 0],
                   precision=lax.Precision.HIGHEST) + fc1_b.reshape(1, F_hidden, 1, 1)
    h = _gelu_tanh(h)
    ref = jnp.einsum("nfhw,of->nohw", h, fc2_w[:, :, 0, 0],
                     precision=lax.Precision.HIGHEST) + fc2_b.reshape(1, Cout, 1, 1)

    assert out_exact.shape == (N, Cout, H, W)
    assert out_fast.shape == (N, Cout, H, W)
    # f32 path: tight; bf16-operand path: loose (bf16 rounding of matmul operands).
    assert jnp.allclose(out_exact, ref, atol=1e-2, rtol=1e-2)
    assert jnp.allclose(out_fast, ref, atol=5e-2, rtol=5e-2)
    print("KERNEL_OK")
</pallas_src>

<mosaic_0001>
module attributes {stable_mosaic.version = 11 : i64} {
  func.func @conv_ffn_kernel(%arg0: i32, %arg1: i32, %arg2: memref<1x8x24x16xf32, #tpu.memory_space<vmem>>, %arg3: memref<1x4x24x16xf32, #tpu.memory_space<vmem>>, %arg4: memref<1x4x24x16xf32, #tpu.memory_space<vmem>>, %arg5: memref<7x7x16xf32, #tpu.memory_space<vmem>>, %arg6: memref<1x16xf32, #tpu.memory_space<vmem>>, %arg7: memref<16x32xf32, #tpu.memory_space<vmem>>, %arg8: memref<1x32xf32, #tpu.memory_space<vmem>>, %arg9: memref<32x16xf32, #tpu.memory_space<vmem>>, %arg10: memref<1x16xf32, #tpu.memory_space<vmem>>, %arg11: memref<1x8x24x16xf32, #tpu.memory_space<vmem>>, %arg12: memref<14x30x16xf32, #tpu.memory_space<vmem>>) attributes {dimension_semantics = [#tpu.dimension_semantics<parallel>, #tpu.dimension_semantics<arbitrary>], iteration_bounds = array<i64: 2, 3>, scalar_prefetch = 0 : i64, scratch_operands = 1 : i64, tpu.core_type = #tpu.core_type<tc>, window_params = [{transform_indices = @transform_0, window_bounds = array<i64: 1, 8, 24, 16>}, {transform_indices = @transform_1, window_bounds = array<i64: 1, 4, 24, 16>}, {transform_indices = @transform_2, window_bounds = array<i64: 1, 4, 24, 16>}, {pipeline_mode = #tpu.pipeline_mode<synchronous>, transform_indices = @transform_3, window_bounds = array<i64: 7, 7, 16>}, {pipeline_mode = #tpu.pipeline_mode<synchronous>, transform_indices = @transform_4, window_bounds = array<i64: 1, 16>}, {pipeline_mode = #tpu.pipeline_mode<synchronous>, transform_indices = @transform_5, window_bounds = array<i64: 16, 32>}, {pipeline_mode = #tpu.pipeline_mode<synchronous>, transform_indices = @transform_6, window_bounds = array<i64: 1, 32>}, {pipeline_mode = #tpu.pipeline_mode<synchronous>, transform_indices = @transform_7, window_bounds = array<i64: 32, 16>}, {pipeline_mode = #tpu.pipeline_mode<synchronous>, transform_indices = @transform_8, window_bounds = array<i64: 1, 16>}, {transform_indices = @transform_9, window_bounds = array<i64: 1, 8, 24, 16>}]} {
    %c0_i32 = arith.constant 0 : i32
    %0 = arith.cmpi eq, %arg1, %c0_i32 : i32
    %1 = arith.extui %0 : i1 to i32
    %c0_i32_0 = arith.constant 0 : i32
    %2 = arith.cmpi ne, %1, %c0_i32_0 : i32
    scf.if %2 {
      %cst_383 = arith.constant 0.000000e+00 : f32
      %780 = vector.broadcast %cst_383 : f32 to vector<14x3x16xf32>
      %c0_384 = arith.constant 0 : index
      %c0_385 = arith.constant 0 : index
      %c0_386 = arith.constant 0 : index
      %781 = vector.load %arg12[%c0_384, %c0_385, %c0_386] : memref<14x30x16xf32, #tpu.memory_space<vmem>>, vector<14x3x16xf32>
      tpu.vector_store %arg12[%c0_384, %c0_385, %c0_386], %780 {strides = array<i32>} : memref<14x30x16xf32, #tpu.memory_space<vmem>>, vector<14x3x16xf32>,
      %cst_387 = arith.constant 0.000000e+00 : f32
      %782 = vector.broadcast %cst_387 : f32 to vector<14x3x16xf32>
      %c0_388 = arith.constant 0 : index
      %c27 = arith.constant 27 : index
      %c0_389 = arith.constant 0 : index
      %783 = vector.load %arg12[%c0_388, %c27, %c0_389] : memref<14x30x16xf32, #tpu.memory_space<vmem>>, vector<14x3x16xf32>
      tpu.vector_store %arg12[%c0_388, %c27, %c0_389], %782 {strides = array<i32>} : memref<14x30x16xf32, #tpu.memory_space<vmem>>, vector<14x3x16xf32>,
    } else {
    }
    %c0 = arith.constant 0 : index
    %c0_1 = arith.constant 0 : index
    %c0_2 = arith.constant 0 : index
    %c0_3 = arith.constant 0 : index
    %3 = vector.load %arg2[%c0, %c0_1, %c0_2, %c0_3] : memref<1x8x24x16xf32, #tpu.memory_space<vmem>>, vector<1x8x24x16xf32>
    %4 = vector.shape_cast %3 : vector<1x8x24x16xf32> to vector<8x24x16xf32>
    %c3 = arith.constant 3 : index
    %c3_4 = arith.constant 3 : index
    %c0_5 = arith.constant 0 : index
    %5 = vector.load %arg12[%c3, %c3_4, %c0_5] : memref<14x30x16xf32, #tpu.memory_space<vmem>>, vector<8x24x16xf32>
    tpu.vector_store %arg12[%c3, %c3_4, %c0_5], %4 {strides = array<i32>} : memref<14x30x16xf32, #tpu.memory_space<vmem>>, vector<8x24x16xf32>,
    %c0_i32_6 = arith.constant 0 : i32
    %6 = arith.cmpi eq, %arg1, %c0_i32_6 : i32
    %7 = arith.extui %6 : i1 to i32
    %c0_i32_7 = arith.constant 0 : i32
    %8 = arith.cmpi ne, %7, %c0_i32_7 : i32
    scf.if %8 {
      %cst_383 = arith.constant 0.000000e+00 : f32
      %780 = vector.broadcast %cst_383 : f32 to vector<3x24x16xf32>
      %c0_384 = arith.constant 0 : index
      %c3_385 = arith.constant 3 : index
      %c0_386 = arith.constant 0 : index
      %781 = vector.load %arg12[%c0_384, %c3_385, %c0_386] : memref<14x30x16xf32, #tpu.memory_space<vmem>>, vector<3x24x16xf32>
      tpu.vector_store %arg12[%c0_384, %c3_385, %c0_386], %780 {strides = array<i32>} : memref<14x30x16xf32, #tpu.memory_space<vmem>>, vector<3x24x16xf32>,
    } else {
    }
    %c0_i32_8 = arith.constant 0 : i32
    %9 = arith.cmpi sgt, %arg1, %c0_i32_8 : i32
    %10 = arith.extui %9 : i1 to i32
    %c0_i32_9 = arith.constant 0 : i32
    %11 = arith.cmpi ne, %10, %c0_i32_9 : i32
    scf.if %11 {
      %c0_383 = arith.constant 0 : index
      %c1_384 = arith.constant 1 : index
      %c0_385 = arith.constant 0 : index
      %c0_386 = arith.constant 0 : index
      %780 = vector.load %arg3[%c0_383, %c1_384, %c0_385, %c0_386] : memref<1x4x24x16xf32, #tpu.memory_space<vmem>>, vector<1x3x24x16xf32>
      %781 = vector.shape_cast %780 : vector<1x3x24x16xf32> to vector<3x24x16xf32>
      %c0_387 = arith.constant 0 : index
      %c3_388 = arith.constant 3 : index
      %c0_389 = arith.constant 0 : index
      %782 = vector.load %arg12[%c0_387, %c3_388, %c0_389] : memref<14x30x16xf32, #tpu.memory_space<vmem>>, vector<3x24x16xf32>
      tpu.vector_store %arg12[%c0_387, %c3_388, %c0_389], %781 {strides = array<i32>} : memref<14x30x16xf32, #tpu.memory_space<vmem>>, vector<3x24x16xf32>,
    } else {
    }
    %c2_i32 = arith.constant 2 : i32
    %12 = arith.cmpi eq, %arg1, %c2_i32 : i32
    %13 = arith.extui %12 : i1 to i32
    %c0_i32_10 = arith.constant 0 : i32
    %14 = arith.cmpi ne, %13, %c0_i32_10 : i32
    scf.if %14 {
      %cst_383 = arith.constant 0.000000e+00 : f32
      %780 = vector.broadcast %cst_383 : f32 to vector<3x24x16xf32>
      %c11 = arith.constant 11 : index
      %c3_384 = arith.constant 3 : index
      %c0_385 = arith.constant 0 : index
      %781 = vector.load %arg12[%c11, %c3_384, %c0_385] : memref<14x30x16xf32, #tpu.memory_space<vmem>>, vector<3x24x16xf32>
      tpu.vector_store %arg12[%c11, %c3_384, %c0_385], %780 {strides = array<i32>} : memref<14x30x16xf32, #tpu.memory_space<vmem>>, vector<3x24x16xf32>,
    } else {
    }
    %c2_i32_11 = arith.constant 2 : i32
    %15 = arith.cmpi slt, %arg1, %c2_i32_11 : i32
    %16 = arith.extui %15 : i1 to i32
    %c0_i32_12 = arith.constant 0 : i32
    %17 = arith.cmpi ne, %16, %c0_i32_12 : i32
    scf.if %17 {
      %c0_383 = arith.constant 0 : index
      %c0_384 = arith.constant 0 : index
      %c0_385 = arith.constant 0 : index
      %c0_386 = arith.constant 0 : index
      %780 = vector.load %arg4[%c0_383, %c0_384, %c0_385, %c0_386] : memref<1x4x24x16xf32, #tpu.memory_space<vmem>>, vector<1x3x24x16xf32>
      %781 = vector.shape_cast %780 : vector<1x3x24x16xf32> to vector<3x24x16xf32>
      %c11 = arith.constant 11 : index
      %c3_387 = arith.constant 3 : index
      %c0_388 = arith.constant 0 : index
      %782 = vector.load %arg12[%c11, %c3_387, %c0_388] : memref<14x30x16xf32, #tpu.memory_space<vmem>>, vector<3x24x16xf32>
      tpu.vector_store %arg12[%c11, %c3_387, %c0_388], %781 {strides = array<i32>} : memref<14x30x16xf32, #tpu.memory_space<vmem>>, vector<3x24x16xf32>,
    } else {
    }
    %c0_13 = arith.constant 0 : index
    %c0_14 = arith.constant 0 : index
    %c0_15 = arith.constant 0 : index
    %18 = vector.load %arg12[%c0_13, %c0_14, %c0_15] : memref<14x30x16xf32, #tpu.memory_space<vmem>>, vector<10x24x16xf32>
    %19 = vector.extract_strided_slice %18 {offsets = [0, 0, 0], sizes = [4, 24, 16], strides = [1, 1, 1]} : vector<10x24x16xf32> to vector<4x24x16xf32>
    %c0_16 = arith.constant 0 : index
    %c0_17 = arith.constant 0 : index
    %c0_18 = arith.constant 0 : index
    %20 = vector.load %arg5[%c0_16, %c0_17, %c0_18] : memref<7x7x16xf32, #tpu.memory_space<vmem>>, vector<1x1x16xf32>
    %21 = vector.shape_cast %20 : vector<1x1x16xf32> to vector<16xf32>
    %22 = vector.shape_cast %21 : vector<16xf32> to vector<1x1x16xf32>
    %23 = vector.broadcast %22 : vector<1x1x16xf32> to vector<4x24x16xf32>
    %24 = arith.mulf %19, %23 : vector<4x24x16xf32>
    %25 = vector.extract_strided_slice %18 {offsets = [1, 0, 0], sizes = [4, 24, 16], strides = [1, 1, 1]} : vector<10x24x16xf32> to vector<4x24x16xf32>
    %c1 = arith.constant 1 : index
    %c0_19 = arith.constant 0 : index
    %c0_20 = arith.constant 0 : index
    %26 = vector.load %arg5[%c1, %c0_19, %c0_20] : memref<7x7x16xf32, #tpu.memory_space<vmem>>, vector<1x1x16xf32>
    %27 = vector.shape_cast %26 : vector<1x1x16xf32> to vector<16xf32>
    %28 = vector.shape_cast %27 : vector<16xf32> to vector<1x1x16xf32>
    %29 = vector.broadcast %28 : vector<1x1x16xf32> to vector<4x24x16xf32>
    %30 = arith.mulf %25, %29 : vector<4x24x16xf32>
    %31 = arith.addf %24, %30 : vector<4x24x16xf32>
    %32 = vector.extract_strided_slice %18 {offsets = [2, 0, 0], sizes = [4, 24, 16], strides = [1, 1, 1]} : vector<10x24x16xf32> to vector<4x24x16xf32>
    %c2 = arith.constant 2 : index
    %c0_21 = arith.constant 0 : index
    %c0_22 = arith.constant 0 : index
    %33 = vector.load %arg5[%c2, %c0_21, %c0_22] : memref<7x7x16xf32, #tpu.memory_space<vmem>>, vector<1x1x16xf32>
    %34 = vector.shape_cast %33 : vector<1x1x16xf32> to vector<16xf32>
    %35 = vector.shape_cast %34 : vector<16xf32> to vector<1x1x16xf32>
    %36 = vector.broadcast %35 : vector<1x1x16xf32> to vector<4x24x16xf32>
    %37 = arith.mulf %32, %36 : vector<4x24x16xf32>
    %38 = arith.addf %31, %37 : vector<4x24x16xf32>
    %39 = vector.extract_strided_slice %18 {offsets = [3, 0, 0], sizes = [4, 24, 16], strides = [1, 1, 1]} : vector<10x24x16xf32> to vector<4x24x16xf32>
    %c3_23 = arith.constant 3 : index
    %c0_24 = arith.constant 0 : index
    %c0_25 = arith.constant 0 : index
    %40 = vector.load %arg5[%c3_23, %c0_24, %c0_25] : memref<7x7x16xf32, #tpu.memory_space<vmem>>, vector<1x1x16xf32>
    %41 = vector.shape_cast %40 : vector<1x1x16xf32> to vector<16xf32>
    %42 = vector.shape_cast %41 : vector<16xf32> to vector<1x1x16xf32>
    %43 = vector.broadcast %42 : vector<1x1x16xf32> to vector<4x24x16xf32>
    %44 = arith.mulf %39, %43 : vector<4x24x16xf32>
    %45 = arith.addf %38, %44 : vector<4x24x16xf32>
    %46 = vector.extract_strided_slice %18 {offsets = [4, 0, 0], sizes = [4, 24, 16], strides = [1, 1, 1]} : vector<10x24x16xf32> to vector<4x24x16xf32>
    %c4 = arith.constant 4 : index
    %c0_26 = arith.constant 0 : index
    %c0_27 = arith.constant 0 : index
    %47 = vector.load %arg5[%c4, %c0_26, %c0_27] : memref<7x7x16xf32, #tpu.memory_space<vmem>>, vector<1x1x16xf32>
    %48 = vector.shape_cast %47 : vector<1x1x16xf32> to vector<16xf32>
    %49 = vector.shape_cast %48 : vector<16xf32> to vector<1x1x16xf32>
    %50 = vector.broadcast %49 : vector<1x1x16xf32> to vector<4x24x16xf32>
    %51 = arith.mulf %46, %50 : vector<4x24x16xf32>
    %52 = arith.addf %45, %51 : vector<4x24x16xf32>
    %53 = vector.extract_strided_slice %18 {offsets = [5, 0, 0], sizes = [4, 24, 16], strides = [1, 1, 1]} : vector<10x24x16xf32> to vector<4x24x16xf32>
    %c5 = arith.constant 5 : index
    %c0_28 = arith.constant 0 : index
    %c0_29 = arith.constant 0 : index
    %54 = vector.load %arg5[%c5, %c0_28, %c0_29] : memref<7x7x16xf32, #tpu.memory_space<vmem>>, vector<1x1x16xf32>
    %55 = vector.shape_cast %54 : vector<1x1x16xf32> to vector<16xf32>
    %56 = vector.shape_cast %55 : vector<16xf32> to vector<1x1x16xf32>
    %57 = vector.broadcast %56 : vector<1x1x16xf32> to vector<4x24x16xf32>
    %58 = arith.mulf %53, %57 : vector<4x24x16xf32>
    %59 = arith.addf %52, %58 : vector<4x24x16xf32>
    %60 = vector.extract_strided_slice %18 {offsets = [6, 0, 0], sizes = [4, 24, 16], strides = [1, 1, 1]} : vector<10x24x16xf32> to vector<4x24x16xf32>
    %c6 = arith.constant 6 : index
    %c0_30 = arith.constant 0 : index
    %c0_31 = arith.constant 0 : index
    %61 = vector.load %arg5[%c6, %c0_30, %c0_31] : memref<7x7x16xf32, #tpu.memory_space<vmem>>, vector<1x1x16xf32>
    %62 = vector.shape_cast %61 : vector<1x1x16xf32> to vector<16xf32>
    %63 = vector.shape_cast %62 : vector<16xf32> to vector<1x1x16xf32>
    %64 = vector.broadcast %63 : vector<1x1x16xf32> to vector<4x24x16xf32>
    %65 = arith.mulf %60, %64 : vector<4x24x16xf32>
    %66 = arith.addf %59, %65 : vector<4x24x16xf32>
    %c0_32 = arith.constant 0 : index
    %c1_33 = arith.constant 1 : index
    %c0_34 = arith.constant 0 : index
    %67 = vector.load %arg12[%c0_32, %c1_33, %c0_34] : memref<14x30x16xf32, #tpu.memory_space<vmem>>, vector<10x24x16xf32>
    %68 = vector.extract_strided_slice %67 {offsets = [0, 0, 0], sizes = [4, 24, 16], strides = [1, 1, 1]} : vector<10x24x16xf32> to vector<4x24x16xf32>
    %c0_35 = arith.constant 0 : index
    %c1_36 = arith.constant 1 : index
    %c0_37 = arith.constant 0 : index
    %69 = vector.load %arg5[%c0_35, %c1_36, %c0_37] : memref<7x7x16xf32, #tpu.memory_space<vmem>>, vector<1x1x16xf32>
    %70 = vector.shape_cast %69 : vector<1x1x16xf32> to vector<16xf32>
    %71 = vector.shape_cast %70 : vector<16xf32> to vector<1x1x16xf32>
    %72 = vector.broadcast %71 : vector<1x1x16xf32> to vector<4x24x16xf32>
    %73 = arith.mulf %68, %72 : vector<4x24x16xf32>
    %74 = arith.addf %66, %73 : vector<4x24x16xf32>
    %75 = vector.extract_strided_slice %67 {offsets = [1, 0, 0], sizes = [4, 24, 16], strides = [1, 1, 1]} : vector<10x24x16xf32> to vector<4x24x16xf32>
    %c1_38 = arith.constant 1 : index
    %c1_39 = arith.constant 1 : index
    %c0_40 = arith.constant 0 : index
    %76 = vector.load %arg5[%c1_38, %c1_39, %c0_40] : memref<7x7x16xf32, #tpu.memory_space<vmem>>, vector<1x1x16xf32>
    %77 = vector.shape_cast %76 : vector<1x1x16xf32> to vector<16xf32>
    %78 = vector.shape_cast %77 : vector<16xf32> to vector<1x1x16xf32>
    %79 = vector.broadcast %78 : vector<1x1x16xf32> to vector<4x24x16xf32>
    %80 = arith.mulf %75, %79 : vector<4x24x16xf32>
    %81 = arith.addf %74, %80 : vector<4x24x16xf32>
    %82 = vector.extract_strided_slice %67 {offsets = [2, 0, 0], sizes = [4, 24, 16], strides = [1, 1, 1]} : vector<10x24x16xf32> to vector<4x24x16xf32>
    %c2_41 = arith.constant 2 : index
    %c1_42 = arith.constant 1 : index
    %c0_43 = arith.constant 0 : index
    %83 = vector.load %arg5[%c2_41, %c1_42, %c0_43] : memref<7x7x16xf32, #tpu.memory_space<vmem>>, vector<1x1x16xf32>
    %84 = vector.shape_cast %83 : vector<1x1x16xf32> to vector<16xf32>
    %85 = vector.shape_cast %84 : vector<16xf32> to vector<1x1x16xf32>
    %86 = vector.broadcast %85 : vector<1x1x16xf32> to vector<4x24x16xf32>
    %87 = arith.mulf %82, %86 : vector<4x24x16xf32>
    %88 = arith.addf %81, %87 : vector<4x24x16xf32>
    %89 = vector.extract_strided_slice %67 {offsets = [3, 0, 0], sizes = [4, 24, 16], strides = [1, 1, 1]} : vector<10x24x16xf32> to vector<4x24x16xf32>
    %c3_44 = arith.constant 3 : index
    %c1_45 = arith.constant 1 : index
    %c0_46 = arith.constant 0 : index
    %90 = vector.load %arg5[%c3_44, %c1_45, %c0_46] : memref<7x7x16xf32, #tpu.memory_space<vmem>>, vector<1x1x16xf32>
    %91 = vector.shape_cast %90 : vector<1x1x16xf32> to vector<16xf32>
    %92 = vector.shape_cast %91 : vector<16xf32> to vector<1x1x16xf32>
    %93 = vector.broadcast %92 : vector<1x1x16xf32> to vector<4x24x16xf32>
    %94 = arith.mulf %89, %93 : vector<4x24x16xf32>
    %95 = arith.addf %88, %94 : vector<4x24x16xf32>
    %96 = vector.extract_strided_slice %67 {offsets = [4, 0, 0], sizes = [4, 24, 16], strides = [1, 1, 1]} : vector<10x24x16xf32> to vector<4x24x16xf32>
    %c4_47 = arith.constant 4 : index
    %c1_48 = arith.constant 1 : index
    %c0_49 = arith.constant 0 : index
    %97 = vector.load %arg5[%c4_47, %c1_48, %c0_49] : memref<7x7x16xf32, #tpu.memory_space<vmem>>, vector<1x1x16xf32>
    %98 = vector.shape_cast %97 : vector<1x1x16xf32> to vector<16xf32>
    %99 = vector.shape_cast %98 : vector<16xf32> to vector<1x1x16xf32>
    %100 = vector.broadcast %99 : vector<1x1x16xf32> to vector<4x24x16xf32>
    %101 = arith.mulf %96, %100 : vector<4x24x16xf32>
    %102 = arith.addf %95, %101 : vector<4x24x16xf32>
    %103 = vector.extract_strided_slice %67 {offsets = [5, 0, 0], sizes = [4, 24, 16], strides = [1, 1, 1]} : vector<10x24x16xf32> to vector<4x24x16xf32>
    %c5_50 = arith.constant 5 : index
    %c1_51 = arith.constant 1 : index
    %c0_52 = arith.constant 0 : index
    %104 = vector.load %arg5[%c5_50, %c1_51, %c0_52] : memref<7x7x16xf32, #tpu.memory_space<vmem>>, vector<1x1x16xf32>
    %105 = vector.shape_cast %104 : vector<1x1x16xf32> to vector<16xf32>
    %106 = vector.shape_cast %105 : vector<16xf32> to vector<1x1x16xf32>
    %107 = vector.broadcast %106 : vector<1x1x16xf32> to vector<4x24x16xf32>
    %108 = arith.mulf %103, %107 : vector<4x24x16xf32>
    %109 = arith.addf %102, %108 : vector<4x24x16xf32>
    %110 = vector.extract_strided_slice %67 {offsets = [6, 0, 0], sizes = [4, 24, 16], strides = [1, 1, 1]} : vector<10x24x16xf32> to vector<4x24x16xf32>
    %c6_53 = arith.constant 6 : index
    %c1_54 = arith.constant 1 : index
    %c0_55 = arith.constant 0 : index
    %111 = vector.load %arg5[%c6_53, %c1_54, %c0_55] : memref<7x7x16xf32, #tpu.memory_space<vmem>>, vector<1x1x16xf32>
    %112 = vector.shape_cast %111 : vector<1x1x16xf32> to vector<16xf32>
    %113 = vector.shape_cast %112 : vector<16xf32> to vector<1x1x16xf32>
    %114 = vector.broadcast %113 : vector<1x1x16xf32> to vector<4x24x16xf32>
    %115 = arith.mulf %110, %114 : vector<4x24x16xf32>
    %116 = arith.addf %109, %115 : vector<4x24x16xf32>
    %c0_56 = arith.constant 0 : index
    %c2_57 = arith.constant 2 : index
    %c0_58 = arith.constant 0 : index
    %117 = vector.load %arg12[%c0_56, %c2_57, %c0_58] : memref<14x30x16xf32, #tpu.memory_space<vmem>>, vector<10x24x16xf32>
    %118 = vector.extract_strided_slice %117 {offsets = [0, 0, 0], sizes = [4, 24, 16], strides = [1, 1, 1]} : vector<10x24x16xf32> to vector<4x24x16xf32>
    %c0_59 = arith.constant 0 : index
    %c2_60 = arith.constant 2 : index
    %c0_61 = arith.constant 0 : index
    %119 = vector.load %arg5[%c0_59, %c2_60, %c0_61] : memref<7x7x16xf32, #tpu.memory_space<vmem>>, vector<1x1x16xf32>
    %120 = vector.shape_cast %119 : vector<1x1x16xf32> to vector<16xf32>
    %121 = vector.shape_cast %120 : vector<16xf32> to vector<1x1x16xf32>
    %122 = vector.broadcast %121 : vector<1x1x16xf32> to vector<4x24x16xf32>
    %123 = arith.mulf %118, %122 : vector<4x24x16xf32>
    %124 = arith.addf %116, %123 : vector<4x24x16xf32>
    %125 = vector.extract_strided_slice %117 {offsets = [1, 0, 0], sizes = [4, 24, 16], strides = [1, 1, 1]} : vector<10x24x16xf32> to vector<4x24x16xf32>
    %c1_62 = arith.constant 1 : index
    %c2_63 = arith.constant 2 : index
    %c0_64 = arith.constant 0 : index
    %126 = vector.load %arg5[%c1_62, %c2_63, %c0_64] : memref<7x7x16xf32, #tpu.memory_space<vmem>>, vector<1x1x16xf32>
    %127 = vector.shape_cast %126 : vector<1x1x16xf32> to vector<16xf32>
    %128 = vector.shape_cast %127 : vector<16xf32> to vector<1x1x16xf32>
    %129 = vector.broadcast %128 : vector<1x1x16xf32> to vector<4x24x16xf32>
    %130 = arith.mulf %125, %129 : vector<4x24x16xf32>
    %131 = arith.addf %124, %130 : vector<4x24x16xf32>
    %132 = vector.extract_strided_slice %117 {offsets = [2, 0, 0], sizes = [4, 24, 16], strides = [1, 1, 1]} : vector<10x24x16xf32> to vector<4x24x16xf32>
    %c2_65 = arith.constant 2 : index
    %c2_66 = arith.constant 2 : index
    %c0_67 = arith.constant 0 : index
    %133 = vector.load %arg5[%c2_65, %c2_66, %c0_67] : memref<7x7x16xf32, #tpu.memory_space<vmem>>, vector<1x1x16xf32>
    %134 = vector.shape_cast %133 : vector<1x1x16xf32> to vector<16xf32>
    %135 = vector.shape_cast %134 : vector<16xf32> to vector<1x1x16xf32>
    %136 = vector.broadcast %135 : vector<1x1x16xf32> to vector<4x24x16xf32>
    %137 = arith.mulf %132, %136 : vector<4x24x16xf32>
    %138 = arith.addf %131, %137 : vector<4x24x16xf32>
    %139 = vector.extract_strided_slice %117 {offsets = [3, 0, 0], sizes = [4, 24, 16], strides = [1, 1, 1]} : vector<10x24x16xf32> to vector<4x24x16xf32>
    %c3_68 = arith.constant 3 : index
    %c2_69 = arith.constant 2 : index
    %c0_70 = arith.constant 0 : index
    %140 = vector.load %arg5[%c3_68, %c2_69, %c0_70] : memref<7x7x16xf32, #tpu.memory_space<vmem>>, vector<1x1x16xf32>
    %141 = vector.shape_cast %140 : vector<1x1x16xf32> to vector<16xf32>
    %142 = vector.shape_cast %141 : vector<16xf32> to vector<1x1x16xf32>
    %143 = vector.broadcast %142 : vector<1x1x16xf32> to vector<4x24x16xf32>
    %144 = arith.mulf %139, %143 : vector<4x24x16xf32>
    %145 = arith.addf %138, %144 : vector<4x24x16xf32>
    %146 = vector.extract_strided_slice %117 {offsets = [4, 0, 0], sizes = [4, 24, 16], strides = [1, 1, 1]} : vector<10x24x16xf32> to vector<4x24x16xf32>
    %c4_71 = arith.constant 4 : index
    %c2_72 = arith.constant 2 : index
    %c0_73 = arith.constant 0 : index
    %147 = vector.load %arg5[%c4_71, %c2_72, %c0_73] : memref<7x7x16xf32, #tpu.memory_space<vmem>>, vector<1x1x16xf32>
    %148 = vector.shape_cast %147 : vector<1x1x16xf32> to vector<16xf32>
    %149 = vector.shape_cast %148 : vector<16xf32> to vector<1x1x16xf32>
    %150 = vector.broadcast %149 : vector<1x1x16xf32> to vector<4x24x16xf32>
    %151 = arith.mulf %146, %150 : vector<4x24x16xf32>
    %152 = arith.addf %145, %151 : vector<4x24x16xf32>
    %153 = vector.extract_strided_slice %117 {offsets = [5, 0, 0], sizes = [4, 24, 16], strides = [1, 1, 1]} : vector<10x24x16xf32> to vector<4x24x16xf32>
    %c5_74 = arith.constant 5 : index
    %c2_75 = arith.constant 2 : index
    %c0_76 = arith.constant 0 : index
    %154 = vector.load %arg5[%c5_74, %c2_75, %c0_76] : memref<7x7x16xf32, #tpu.memory_space<vmem>>, vector<1x1x16xf32>
    %155 = vector.shape_cast %154 : vector<1x1x16xf32> to vector<16xf32>
    %156 = vector.shape_cast %155 : vector<16xf32> to vector<1x1x16xf32>
    %157 = vector.broadcast %156 : vector<1x1x16xf32> to vector<4x24x16xf32>
    %158 = arith.mulf %153, %157 : vector<4x24x16xf32>
    %159 = arith.addf %152, %158 : vector<4x24x16xf32>
    %160 = vector.extract_strided_slice %117 {offsets = [6, 0, 0], sizes = [4, 24, 16], strides = [1, 1, 1]} : vector<10x24x16xf32> to vector<4x24x16xf32>
    %c6_77 = arith.constant 6 : index
    %c2_78 = arith.constant 2 : index
    %c0_79 = arith.constant 0 : index
    %161 = vector.load %arg5[%c6_77, %c2_78, %c0_79] : memref<7x7x16xf32, #tpu.memory_space<vmem>>, vector<1x1x16xf32>
    %162 = vector.shape_cast %161 : vector<1x1x16xf32> to vector<16xf32>
    %163 = vector.shape_cast %162 : vector<16xf32> to vector<1x1x16xf32>
    %164 = vector.broadcast %163 : vector<1x1x16xf32> to vector<4x24x16xf32>
    %165 = arith.mulf %160, %164 : vector<4x24x16xf32>
    %166 = arith.addf %159, %165 : vector<4x24x16xf32>
    %c0_80 = arith.constant 0 : index
    %c3_81 = arith.constant 3 : index
    %c0_82 = arith.constant 0 : index
    %167 = vector.load %arg12[%c0_80, %c3_81, %c0_82] : memref<14x30x16xf32, #tpu.memory_space<vmem>>, vector<10x24x16xf32>
    %168 = vector.extract_strided_slice %167 {offsets = [0, 0, 0], sizes = [4, 24, 16], strides = [1, 1, 1]} : vector<10x24x16xf32> to vector<4x24x16xf32>
    %c0_83 = arith.constant 0 : index
    %c3_84 = arith.constant 3 : index
    %c0_85 = arith.constant 0 : index
    %169 = vector.load %arg5[%c0_83, %c3_84, %c0_85] : memref<7x7x16xf32, #tpu.memory_space<vmem>>, vector<1x1x16xf32>
    %170 = vector.shape_cast %169 : vector<1x1x16xf32> to vector<16xf32>
    %171 = vector.shape_cast %170 : vector<16xf32> to vector<1x1x16xf32>
    %172 = vector.broadcast %171 : vector<1x1x16xf32> to vector<4x24x16xf32>
    %173 = arith.mulf %168, %172 : vector<4x24x16xf32>
    %174 = arith.addf %166, %173 : vector<4x24x16xf32>
    %175 = vector.extract_strided_slice %167 {offsets = [1, 0, 0], sizes = [4, 24, 16], strides = [1, 1, 1]} : vector<10x24x16xf32> to vector<4x24x16xf32>
    %c1_86 = arith.constant 1 : index
    %c3_87 = arith.constant 3 : index
    %c0_88 = arith.constant 0 : index
    %176 = vector.load %arg5[%c1_86, %c3_87, %c0_88] : memref<7x7x16xf32, #tpu.memory_space<vmem>>, vector<1x1x16xf32>
    %177 = vector.shape_cast %176 : vector<1x1x16xf32> to vector<16xf32>
    %178 = vector.shape_cast %177 : vector<16xf32> to vector<1x1x16xf32>
    %179 = vector.broadcast %178 : vector<1x1x16xf32> to vector<4x24x16xf32>
    %180 = arith.mulf %175, %179 : vector<4x24x16xf32>
    %181 = arith.addf %174, %180 : vector<4x24x16xf32>
    %182 = vector.extract_strided_slice %167 {offsets = [2, 0, 0], sizes = [4, 24, 16], strides = [1, 1, 1]} : vector<10x24x16xf32> to vector<4x24x16xf32>
    %c2_89 = arith.constant 2 : index
    %c3_90 = arith.constant 3 : index
    %c0_91 = arith.constant 0 : index
    %183 = vector.load %arg5[%c2_89, %c3_90, %c0_91] : memref<7x7x16xf32, #tpu.memory_space<vmem>>, vector<1x1x16xf32>
    %184 = vector.shape_cast %183 : vector<1x1x16xf32> to vector<16xf32>
    %185 = vector.shape_cast %184 : vector<16xf32> to vector<1x1x16xf32>
    %186 = vector.broadcast %185 : vector<1x1x16xf32> to vector<4x24x16xf32>
    %187 = arith.mulf %182, %186 : vector<4x24x16xf32>
    %188 = arith.addf %181, %187 : vector<4x24x16xf32>
    %189 = vector.extract_strided_slice %167 {offsets = [3, 0, 0], sizes = [4, 24, 16], strides = [1, 1, 1]} : vector<10x24x16xf32> to vector<4x24x16xf32>
    %c3_92 = arith.constant 3 : index
    %c3_93 = arith.constant 3 : index
    %c0_94 = arith.constant 0 : index
    %190 = vector.load %arg5[%c3_92, %c3_93, %c0_94] : memref<7x7x16xf32, #tpu.memory_space<vmem>>, vector<1x1x16xf32>
    %191 = vector.shape_cast %190 : vector<1x1x16xf32> to vector<16xf32>
    %192 = vector.shape_cast %191 : vector<16xf32> to vector<1x1x16xf32>
    %193 = vector.broadcast %192 : vector<1x1x16xf32> to vector<4x24x16xf32>
    %194 = arith.mulf %189, %193 : vector<4x24x16xf32>
    %195 = arith.addf %188, %194 : vector<4x24x16xf32>
    %196 = vector.extract_strided_slice %167 {offsets = [4, 0, 0], sizes = [4, 24, 16], strides = [1, 1, 1]} : vector<10x24x16xf32> to vector<4x24x16xf32>
    %c4_95 = arith.constant 4 : index
    %c3_96 = arith.constant 3 : index
    %c0_97 = arith.constant 0 : index
    %197 = vector.load %arg5[%c4_95, %c3_96, %c0_97] : memref<7x7x16xf32, #tpu.memory_space<vmem>>, vector<1x1x16xf32>
    %198 = vector.shape_cast %197 : vector<1x1x16xf32> to vector<16xf32>
    %199 = vector.shape_cast %198 : vector<16xf32> to vector<1x1x16xf32>
    %200 = vector.broadcast %199 : vector<1x1x16xf32> to vector<4x24x16xf32>
    %201 = arith.mulf %196, %200 : vector<4x24x16xf32>
    %202 = arith.addf %195, %201 : vector<4x24x16xf32>
    %203 = vector.extract_strided_slice %167 {offsets = [5, 0, 0], sizes = [4, 24, 16], strides = [1, 1, 1]} : vector<10x24x16xf32> to vector<4x24x16xf32>
    %c5_98 = arith.constant 5 : index
    %c3_99 = arith.constant 3 : index
    %c0_100 = arith.constant 0 : index
    %204 = vector.load %arg5[%c5_98, %c3_99, %c0_100] : memref<7x7x16xf32, #tpu.memory_space<vmem>>, vector<1x1x16xf32>
    %205 = vector.shape_cast %204 : vector<1x1x16xf32> to vector<16xf32>
    %206 = vector.shape_cast %205 : vector<16xf32> to vector<1x1x16xf32>
    %207 = vector.broadcast %206 : vector<1x1x16xf32> to vector<4x24x16xf32>
    %208 = arith.mulf %203, %207 : vector<4x24x16xf32>
    %209 = arith.addf %202, %208 : vector<4x24x16xf32>
    %210 = vector.extract_strided_slice %167 {offsets = [6, 0, 0], sizes = [4, 24, 16], strides = [1, 1, 1]} : vector<10x24x16xf32> to vector<4x24x16xf32>
    %c6_101 = arith.constant 6 : index
    %c3_102 = arith.constant 3 : index
    %c0_103 = arith.constant 0 : index
    %211 = vector.load %arg5[%c6_101, %c3_102, %c0_103] : memref<7x7x16xf32, #tpu.memory_space<vmem>>, vector<1x1x16xf32>
    %212 = vector.shape_cast %211 : vector<1x1x16xf32> to vector<16xf32>
    %213 = vector.shape_cast %212 : vector<16xf32> to vector<1x1x16xf32>
    %214 = vector.broadcast %213 : vector<1x1x16xf32> to vector<4x24x16xf32>
    %215 = arith.mulf %210, %214 : vector<4x24x16xf32>
    %216 = arith.addf %209, %215 : vector<4x24x16xf32>
    %c0_104 = arith.constant 0 : index
    %c4_105 = arith.constant 4 : index
    %c0_106 = arith.constant 0 : index
    %217 = vector.load %arg12[%c0_104, %c4_105, %c0_106] : memref<14x30x16xf32, #tpu.memory_space<vmem>>, vector<10x24x16xf32>
    %218 = vector.extract_strided_slice %217 {offsets = [0, 0, 0], sizes = [4, 24, 16], strides = [1, 1, 1]} : vector<10x24x16xf32> to vector<4x24x16xf32>
    %c0_107 = arith.constant 0 : index
    %c4_108 = arith.constant 4 : index
    %c0_109 = arith.constant 0 : index
    %219 = vector.load %arg5[%c0_107, %c4_108, %c0_109] : memref<7x7x16xf32, #tpu.memory_space<vmem>>, vector<1x1x16xf32>
    %220 = vector.shape_cast %219 : vector<1x1x16xf32> to vector<16xf32>
    %221 = vector.shape_cast %220 : vector<16xf32> to vector<1x1x16xf32>
    %222 = vector.broadcast %221 : vector<1x1x16xf32> to vector<4x24x16xf32>
    %223 = arith.mulf %218, %222 : vector<4x24x16xf32>
    %224 = arith.addf %216, %223 : vector<4x24x16xf32>
    %225 = vector.extract_strided_slice %217 {offsets = [1, 0, 0], sizes = [4, 24, 16], strides = [1, 1, 1]} : vector<10x24x16xf32> to vector<4x24x16xf32>
    %c1_110 = arith.constant 1 : index
    %c4_111 = arith.constant 4 : index
    %c0_112 = arith.constant 0 : index
    %226 = vector.load %arg5[%c1_110, %c4_111, %c0_112] : memref<7x7x16xf32, #tpu.memory_space<vmem>>, vector<1x1x16xf32>
    %227 = vector.shape_cast %226 : vector<1x1x16xf32> to vector<16xf32>
    %228 = vector.shape_cast %227 : vector<16xf32> to vector<1x1x16xf32>
    %229 = vector.broadcast %228 : vector<1x1x16xf32> to vector<4x24x16xf32>
    %230 = arith.mulf %225, %229 : vector<4x24x16xf32>
    %231 = arith.addf %224, %230 : vector<4x24x16xf32>
    %232 = vector.extract_strided_slice %217 {offsets = [2, 0, 0], sizes = [4, 24, 16], strides = [1, 1, 1]} : vector<10x24x16xf32> to vector<4x24x16xf32>
    %c2_113 = arith.constant 2 : index
    %c4_114 = arith.constant 4 : index
    %c0_115 = arith.constant 0 : index
    %233 = vector.load %arg5[%c2_113, %c4_114, %c0_115] : memref<7x7x16xf32, #tpu.memory_space<vmem>>, vector<1x1x16xf32>
    %234 = vector.shape_cast %233 : vector<1x1x16xf32> to vector<16xf32>
    %235 = vector.shape_cast %234 : vector<16xf32> to vector<1x1x16xf32>
    %236 = vector.broadcast %235 : vector<1x1x16xf32> to vector<4x24x16xf32>
    %237 = arith.mulf %232, %236 : vector<4x24x16xf32>
    %238 = arith.addf %231, %237 : vector<4x24x16xf32>
    %239 = vector.extract_strided_slice %217 {offsets = [3, 0, 0], sizes = [4, 24, 16], strides = [1, 1, 1]} : vector<10x24x16xf32> to vector<4x24x16xf32>
    %c3_116 = arith.constant 3 : index
    %c4_117 = arith.constant 4 : index
    %c0_118 = arith.constant 0 : index
    %240 = vector.load %arg5[%c3_116, %c4_117, %c0_118] : memref<7x7x16xf32, #tpu.memory_space<vmem>>, vector<1x1x16xf32>
    %241 = vector.shape_cast %240 : vector<1x1x16xf32> to vector<16xf32>
    %242 = vector.shape_cast %241 : vector<16xf32> to vector<1x1x16xf32>
    %243 = vector.broadcast %242 : vector<1x1x16xf32> to vector<4x24x16xf32>
    %244 = arith.mulf %239, %243 : vector<4x24x16xf32>
    %245 = arith.addf %238, %244 : vector<4x24x16xf32>
    %246 = vector.extract_strided_slice %217 {offsets = [4, 0, 0], sizes = [4, 24, 16], strides = [1, 1, 1]} : vector<10x24x16xf32> to vector<4x24x16xf32>
    %c4_119 = arith.constant 4 : index
    %c4_120 = arith.constant 4 : index
    %c0_121 = arith.constant 0 : index
    %247 = vector.load %arg5[%c4_119, %c4_120, %c0_121] : memref<7x7x16xf32, #tpu.memory_space<vmem>>, vector<1x1x16xf32>
    %248 = vector.shape_cast %247 : vector<1x1x16xf32> to vector<16xf32>
    %249 = vector.shape_cast %248 : vector<16xf32> to vector<1x1x16xf32>
    %250 = vector.broadcast %249 : vector<1x1x16xf32> to vector<4x24x16xf32>
    %251 = arith.mulf %246, %250 : vector<4x24x16xf32>
    %252 = arith.addf %245, %251 : vector<4x24x16xf32>
    %253 = vector.extract_strided_slice %217 {offsets = [5, 0, 0], sizes = [4, 24, 16], strides = [1, 1, 1]} : vector<10x24x16xf32> to vector<4x24x16xf32>
    %c5_122 = arith.constant 5 : index
    %c4_123 = arith.constant 4 : index
    %c0_124 = arith.constant 0 : index
    %254 = vector.load %arg5[%c5_122, %c4_123, %c0_124] : memref<7x7x16xf32, #tpu.memory_space<vmem>>, vector<1x1x16xf32>
    %255 = vector.shape_cast %254 : vector<1x1x16xf32> to vector<16xf32>
    %256 = vector.shape_cast %255 : vector<16xf32> to vector<1x1x16xf32>
    %257 = vector.broadcast %256 : vector<1x1x16xf32> to vector<4x24x16xf32>
    %258 = arith.mulf %253, %257 : vector<4x24x16xf32>
    %259 = arith.addf %252, %258 : vector<4x24x16xf32>
    %260 = vector.extract_strided_slice %217 {offsets = [6, 0, 0], sizes = [4, 24, 16], strides = [1, 1, 1]} : vector<10x24x16xf32> to vector<4x24x16xf32>
    %c6_125 = arith.constant 6 : index
    %c4_126 = arith.constant 4 : index
    %c0_127 = arith.constant 0 : index
    %261 = vector.load %arg5[%c6_125, %c4_126, %c0_127] : memref<7x7x16xf32, #tpu.memory_space<vmem>>, vector<1x1x16xf32>
    %262 = vector.shape_cast %261 : vector<1x1x16xf32> to vector<16xf32>
    %263 = vector.shape_cast %262 : vector<16xf32> to vector<1x1x16xf32>
    %264 = vector.broadcast %263 : vector<1x1x16xf32> to vector<4x24x16xf32>
    %265 = arith.mulf %260, %264 : vector<4x24x16xf32>
    %266 = arith.addf %259, %265 : vector<4x24x16xf32>
    %c0_128 = arith.constant 0 : index
    %c5_129 = arith.constant 5 : index
    %c0_130 = arith.constant 0 : index
    %267 = vector.load %arg12[%c0_128, %c5_129, %c0_130] : memref<14x30x16xf32, #tpu.memory_space<vmem>>, vector<10x24x16xf32>
    %268 = vector.extract_strided_slice %267 {offsets = [0, 0, 0], sizes = [4, 24, 16], strides = [1, 1, 1]} : vector<10x24x16xf32> to vector<4x24x16xf32>
    %c0_131 = arith.constant 0 : index
    %c5_132 = arith.constant 5 : index
    %c0_133 = arith.constant 0 : index
    %269 = vector.load %arg5[%c0_131, %c5_132, %c0_133] : memref<7x7x16xf32, #tpu.memory_space<vmem>>, vector<1x1x16xf32>
    %270 = vector.shape_cast %269 : vector<1x1x16xf32> to vector<16xf32>
    %271 = vector.shape_cast %270 : vector<16xf32> to vector<1x1x16xf32>
    %272 = vector.broadcast %271 : vector<1x1x16xf32> to vector<4x24x16xf32>
    %273 = arith.mulf %268, %272 : vector<4x24x16xf32>
    %274 = arith.addf %266, %273 : vector<4x24x16xf32>
    %275 = vector.extract_strided_slice %267 {offsets = [1, 0, 0], sizes = [4, 24, 16], strides = [1, 1, 1]} : vector<10x24x16xf32> to vector<4x24x16xf32>
    %c1_134 = arith.constant 1 : index
    %c5_135 = arith.constant 5 : index
    %c0_136 = arith.constant 0 : index
    %276 = vector.load %arg5[%c1_134, %c5_135, %c0_136] : memref<7x7x16xf32, #tpu.memory_space<vmem>>, vector<1x1x16xf32>
    %277 = vector.shape_cast %276 : vector<1x1x16xf32> to vector<16xf32>
    %278 = vector.shape_cast %277 : vector<16xf32> to vector<1x1x16xf32>
    %279 = vector.broadcast %278 : vector<1x1x16xf32> to vector<4x24x16xf32>
    %280 = arith.mulf %275, %279 : vector<4x24x16xf32>
    %281 = arith.addf %274, %280 : vector<4x24x16xf32>
    %282 = vector.extract_strided_slice %267 {offsets = [2, 0, 0], sizes = [4, 24, 16], strides = [1, 1, 1]} : vector<10x24x16xf32> to vector<4x24x16xf32>
    %c2_137 = arith.constant 2 : index
    %c5_138 = arith.constant 5 : index
    %c0_139 = arith.constant 0 : index
    %283 = vector.load %arg5[%c2_137, %c5_138, %c0_139] : memref<7x7x16xf32, #tpu.memory_space<vmem>>, vector<1x1x16xf32>
    %284 = vector.shape_cast %283 : vector<1x1x16xf32> to vector<16xf32>
    %285 = vector.shape_cast %284 : vector<16xf32> to vector<1x1x16xf32>
    %286 = vector.broadcast %285 : vector<1x1x16xf32> to vector<4x24x16xf32>
    %287 = arith.mulf %282, %286 : vector<4x24x16xf32>
    %288 = arith.addf %281, %287 : vector<4x24x16xf32>
    %289 = vector.extract_strided_slice %267 {offsets = [3, 0, 0], sizes = [4, 24, 16], strides = [1, 1, 1]} : vector<10x24x16xf32> to vector<4x24x16xf32>
    %c3_140 = arith.constant 3 : index
    %c5_141 = arith.constant 5 : index
    %c0_142 = arith.constant 0 : index
    %290 = vector.load %arg5[%c3_140, %c5_141, %c0_142] : memref<7x7x16xf32, #tpu.memory_space<vmem>>, vector<1x1x16xf32>
    %291 = vector.shape_cast %290 : vector<1x1x16xf32> to vector<16xf32>
    %292 = vector.shape_cast %291 : vector<16xf32> to vector<1x1x16xf32>
    %293 = vector.broadcast %292 : vector<1x1x16xf32> to vector<4x24x16xf32>
    %294 = arith.mulf %289, %293 : vector<4x24x16xf32>
    %295 = arith.addf %288, %294 : vector<4x24x16xf32>
    %296 = vector.extract_strided_slice %267 {offsets = [4, 0, 0], sizes = [4, 24, 16], strides = [1, 1, 1]} : vector<10x24x16xf32> to vector<4x24x16xf32>
    %c4_143 = arith.constant 4 : index
    %c5_144 = arith.constant 5 : index
    %c0_145 = arith.constant 0 : index
    %297 = vector.load %arg5[%c4_143, %c5_144, %c0_145] : memref<7x7x16xf32, #tpu.memory_space<vmem>>, vector<1x1x16xf32>
    %298 = vector.shape_cast %297 : vector<1x1x16xf32> to vector<16xf32>
    %299 = vector.shape_cast %298 : vector<16xf32> to vector<1x1x16xf32>
    %300 = vector.broadcast %299 : vector<1x1x16xf32> to vector<4x24x16xf32>
    %301 = arith.mulf %296, %300 : vector<4x24x16xf32>
    %302 = arith.addf %295, %301 : vector<4x24x16xf32>
    %303 = vector.extract_strided_slice %267 {offsets = [5, 0, 0], sizes = [4, 24, 16], strides = [1, 1, 1]} : vector<10x24x16xf32> to vector<4x24x16xf32>
    %c5_146 = arith.constant 5 : index
    %c5_147 = arith.constant 5 : index
    %c0_148 = arith.constant 0 : index
    %304 = vector.load %arg5[%c5_146, %c5_147, %c0_148] : memref<7x7x16xf32, #tpu.memory_space<vmem>>, vector<1x1x16xf32>
    %305 = vector.shape_cast %304 : vector<1x1x16xf32> to vector<16xf32>
    %306 = vector.shape_cast %305 : vector<16xf32> to vector<1x1x16xf32>
    %307 = vector.broadcast %306 : vector<1x1x16xf32> to vector<4x24x16xf32>
    %308 = arith.mulf %303, %307 : vector<4x24x16xf32>
    %309 = arith.addf %302, %308 : vector<4x24x16xf32>
    %310 = vector.extract_strided_slice %267 {offsets = [6, 0, 0], sizes = [4, 24, 16], strides = [1, 1, 1]} : vector<10x24x16xf32> to vector<4x24x16xf32>
    %c6_149 = arith.constant 6 : index
    %c5_150 = arith.constant 5 : index
    %c0_151 = arith.constant 0 : index
    %311 = vector.load %arg5[%c6_149, %c5_150, %c0_151] : memref<7x7x16xf32, #tpu.memory_space<vmem>>, vector<1x1x16xf32>
    %312 = vector.shape_cast %311 : vector<1x1x16xf32> to vector<16xf32>
    %313 = vector.shape_cast %312 : vector<16xf32> to vector<1x1x16xf32>
    %314 = vector.broadcast %313 : vector<1x1x16xf32> to vector<4x24x16xf32>
    %315 = arith.mulf %310, %314 : vector<4x24x16xf32>
    %316 = arith.addf %309, %315 : vector<4x24x16xf32>
    %c0_152 = arith.constant 0 : index
    %c6_153 = arith.constant 6 : index
    %c0_154 = arith.constant 0 : index
    %317 = vector.load %arg12[%c0_152, %c6_153, %c0_154] : memref<14x30x16xf32, #tpu.memory_space<vmem>>, vector<10x24x16xf32>
    %318 = vector.extract_strided_slice %317 {offsets = [0, 0, 0], sizes = [4, 24, 16], strides = [1, 1, 1]} : vector<10x24x16xf32> to vector<4x24x16xf32>
    %c0_155 = arith.constant 0 : index
    %c6_156 = arith.constant 6 : index
    %c0_157 = arith.constant 0 : index
    %319 = vector.load %arg5[%c0_155, %c6_156, %c0_157] : memref<7x7x16xf32, #tpu.memory_space<vmem>>, vector<1x1x16xf32>
    %320 = vector.shape_cast %319 : vector<1x1x16xf32> to vector<16xf32>
    %321 = vector.shape_cast %320 : vector<16xf32> to vector<1x1x16xf32>
    %322 = vector.broadcast %321 : vector<1x1x16xf32> to vector<4x24x16xf32>
    %323 = arith.mulf %318, %322 : vector<4x24x16xf32>
    %324 = arith.addf %316, %323 : vector<4x24x16xf32>
    %325 = vector.extract_strided_slice %317 {offsets = [1, 0, 0], sizes = [4, 24, 16], strides = [1, 1, 1]} : vector<10x24x16xf32> to vector<4x24x16xf32>
    %c1_158 = arith.constant 1 : index
    %c6_159 = arith.constant 6 : index
    %c0_160 = arith.constant 0 : index
    %326 = vector.load %arg5[%c1_158, %c6_159, %c0_160] : memref<7x7x16xf32, #tpu.memory_space<vmem>>, vector<1x1x16xf32>
    %327 = vector.shape_cast %326 : vector<1x1x16xf32> to vector<16xf32>
    %328 = vector.shape_cast %327 : vector<16xf32> to vector<1x1x16xf32>
    %329 = vector.broadcast %328 : vector<1x1x16xf32> to vector<4x24x16xf32>
    %330 = arith.mulf %325, %329 : vector<4x24x16xf32>
    %331 = arith.addf %324, %330 : vector<4x24x16xf32>
    %332 = vector.extract_strided_slice %317 {offsets = [2, 0, 0], sizes = [4, 24, 16], strides = [1, 1, 1]} : vector<10x24x16xf32> to vector<4x24x16xf32>
    %c2_161 = arith.constant 2 : index
    %c6_162 = arith.constant 6 : index
    %c0_163 = arith.constant 0 : index
    %333 = vector.load %arg5[%c2_161, %c6_162, %c0_163] : memref<7x7x16xf32, #tpu.memory_space<vmem>>, vector<1x1x16xf32>
    %334 = vector.shape_cast %333 : vector<1x1x16xf32> to vector<16xf32>
    %335 = vector.shape_cast %334 : vector<16xf32> to vector<1x1x16xf32>
    %336 = vector.broadcast %335 : vector<1x1x16xf32> to vector<4x24x16xf32>
    %337 = arith.mulf %332, %336 : vector<4x24x16xf32>
    %338 = arith.addf %331, %337 : vector<4x24x16xf32>
    %339 = vector.extract_strided_slice %317 {offsets = [3, 0, 0], sizes = [4, 24, 16], strides = [1, 1, 1]} : vector<10x24x16xf32> to vector<4x24x16xf32>
    %c3_164 = arith.constant 3 : index
    %c6_165 = arith.constant 6 : index
    %c0_166 = arith.constant 0 : index
    %340 = vector.load %arg5[%c3_164, %c6_165, %c0_166] : memref<7x7x16xf32, #tpu.memory_space<vmem>>, vector<1x1x16xf32>
    %341 = vector.shape_cast %340 : vector<1x1x16xf32> to vector<16xf32>
    %342 = vector.shape_cast %341 : vector<16xf32> to vector<1x1x16xf32>
    %343 = vector.broadcast %342 : vector<1x1x16xf32> to vector<4x24x16xf32>
    %344 = arith.mulf %339, %343 : vector<4x24x16xf32>
    %345 = arith.addf %338, %344 : vector<4x24x16xf32>
    %346 = vector.extract_strided_slice %317 {offsets = [4, 0, 0], sizes = [4, 24, 16], strides = [1, 1, 1]} : vector<10x24x16xf32> to vector<4x24x16xf32>
    %c4_167 = arith.constant 4 : index
    %c6_168 = arith.constant 6 : index
    %c0_169 = arith.constant 0 : index
    %347 = vector.load %arg5[%c4_167, %c6_168, %c0_169] : memref<7x7x16xf32, #tpu.memory_space<vmem>>, vector<1x1x16xf32>
    %348 = vector.shape_cast %347 : vector<1x1x16xf32> to vector<16xf32>
    %349 = vector.shape_cast %348 : vector<16xf32> to vector<1x1x16xf32>
    %350 = vector.broadcast %349 : vector<1x1x16xf32> to vector<4x24x16xf32>
    %351 = arith.mulf %346, %350 : vector<4x24x16xf32>
    %352 = arith.addf %345, %351 : vector<4x24x16xf32>
    %353 = vector.extract_strided_slice %317 {offsets = [5, 0, 0], sizes = [4, 24, 16], strides = [1, 1, 1]} : vector<10x24x16xf32> to vector<4x24x16xf32>
    %c5_170 = arith.constant 5 : index
    %c6_171 = arith.constant 6 : index
    %c0_172 = arith.constant 0 : index
    %354 = vector.load %arg5[%c5_170, %c6_171, %c0_172] : memref<7x7x16xf32, #tpu.memory_space<vmem>>, vector<1x1x16xf32>
    %355 = vector.shape_cast %354 : vector<1x1x16xf32> to vector<16xf32>
    %356 = vector.shape_cast %355 : vector<16xf32> to vector<1x1x16xf32>
    %357 = vector.broadcast %356 : vector<1x1x16xf32> to vector<4x24x16xf32>
    %358 = arith.mulf %353, %357 : vector<4x24x16xf32>
    %359 = arith.addf %352, %358 : vector<4x24x16xf32>
    %360 = vector.extract_strided_slice %317 {offsets = [6, 0, 0], sizes = [4, 24, 16], strides = [1, 1, 1]} : vector<10x24x16xf32> to vector<4x24x16xf32>
    %c6_173 = arith.constant 6 : index
    %c6_174 = arith.constant 6 : index
    %c0_175 = arith.constant 0 : index
    %361 = vector.load %arg5[%c6_173, %c6_174, %c0_175] : memref<7x7x16xf32, #tpu.memory_space<vmem>>, vector<1x1x16xf32>
    %362 = vector.shape_cast %361 : vector<1x1x16xf32> to vector<16xf32>
    %363 = vector.shape_cast %362 : vector<16xf32> to vector<1x1x16xf32>
    %364 = vector.broadcast %363 : vector<1x1x16xf32> to vector<4x24x16xf32>
    %365 = arith.mulf %360, %364 : vector<4x24x16xf32>
    %366 = arith.addf %359, %365 : vector<4x24x16xf32>
    %c0_176 = arith.constant 0 : index
    %c0_177 = arith.constant 0 : index
    %367 = vector.load %arg6[%c0_176, %c0_177] : memref<1x16xf32, #tpu.memory_space<vmem>>, vector<1x16xf32>
    %368 = vector.shape_cast %367 : vector<1x16xf32> to vector<1x1x16xf32>
    %369 = vector.broadcast %368 : vector<1x1x16xf32> to vector<4x24x16xf32>
    %370 = arith.addf %366, %369 : vector<4x24x16xf32>
    %371 = vector.shape_cast %370 : vector<4x24x16xf32> to vector<96x16xf32>
    %c0_178 = arith.constant 0 : index
    %c0_179 = arith.constant 0 : index
    %372 = vector.load %arg7[%c0_178, %c0_179] : memref<16x32xf32, #tpu.memory_space<vmem>>, vector<16x32xf32>
    %cst = arith.constant dense<0.000000e+00> : vector<96x32xf32>
    %373 = tpu.matmul %371, %372, %cst {dimension_numbers = #tpu.dot_dimension_numbers<[1], [0], [0], [1], [0, 0, 1, 1], [], []>} : vector<96x16xf32>, vector<16x32xf32>, vector<96x32xf32> -> vector<96x32xf32>
    %c0_180 = arith.constant 0 : index
    %c0_181 = arith.constant 0 : index
    %374 = vector.load %arg8[%c0_180, %c0_181] : memref<1x32xf32, #tpu.memory_space<vmem>>, vector<1x32xf32>
    %375 = vector.broadcast %374 : vector<1x32xf32> to vector<96x32xf32>
    %376 = arith.addf %373, %375 : vector<96x32xf32>
    %cst_182 = arith.constant 5.000000e-01 : f32
    %377 = vector.broadcast %cst_182 : f32 to vector<96x32xf32>
    %378 = arith.mulf %377, %376 : vector<96x32xf32>
    %cst_183 = arith.constant 4.471500e-02 : f32
    %379 = vector.broadcast %cst_183 : f32 to vector<96x32xf32>
    %380 = arith.mulf %379, %376 : vector<96x32xf32>
    %381 = arith.mulf %380, %376 : vector<96x32xf32>
    %382 = arith.mulf %381, %376 : vector<96x32xf32>
    %383 = arith.addf %376, %382 : vector<96x32xf32>
    %cst_184 = arith.constant 0.797884583 : f32
    %384 = vector.broadcast %cst_184 : f32 to vector<96x32xf32>
    %385 = arith.mulf %384, %383 : vector<96x32xf32>
    %386 = math.tanh %385 : vector<96x32xf32>
    %cst_185 = arith.constant 1.000000e+00 : f32
    %387 = vector.broadcast %cst_185 : f32 to vector<96x32xf32>
    %388 = arith.addf %387, %386 : vector<96x32xf32>
    %389 = arith.mulf %378, %388 : vector<96x32xf32>
    %c0_186 = arith.constant 0 : index
    %c0_187 = arith.constant 0 : index
    %390 = vector.load %arg9[%c0_186, %c0_187] : memref<32x16xf32, #tpu.memory_space<vmem>>, vector<32x16xf32>
    %cst_188 = arith.constant dense<0.000000e+00> : vector<96x16xf32>
    %391 = tpu.matmul %389, %390, %cst_188 {dimension_numbers = #tpu.dot_dimension_numbers<[1], [0], [0], [1], [0, 0, 1, 1], [], []>} : vector<96x32xf32>, vector<32x16xf32>, vector<96x16xf32> -> vector<96x16xf32>
    %c0_189 = arith.constant 0 : index
    %c0_190 = arith.constant 0 : index
    %392 = vector.load %arg10[%c0_189, %c0_190] : memref<1x16xf32, #tpu.memory_space<vmem>>, vector<1x16xf32>
    %393 = vector.broadcast %392 : vector<1x16xf32> to vector<96x16xf32>
    %394 = arith.addf %391, %393 : vector<96x16xf32>
    %395 = vector.shape_cast %394 : vector<96x16xf32> to vector<4x24x16xf32>
    %c0_191 = arith.constant 0 : index
    %c0_192 = arith.constant 0 : index
    %c0_193 = arith.constant 0 : index
    %c0_194 = arith.constant 0 : index
    %396 = vector.load %arg11[%c0_191, %c0_192, %c0_193, %c0_194] : memref<1x8x24x16xf32, #tpu.memory_space<vmem>>, vector<1x4x24x16xf32>
    %397 = vector.shape_cast %396 : vector<1x4x24x16xf32> to vector<4x24x16xf32>
    %398 = vector.shape_cast %395 : vector<4x24x16xf32> to vector<1x4x24x16xf32>
    tpu.vector_store %arg11[%c0_191, %c0_192, %c0_193, %c0_194], %398 {strides = array<i32>} : memref<1x8x24x16xf32, #tpu.memory_space<vmem>>, vector<1x4x24x16xf32>,
    %c4_195 = arith.constant 4 : index
    %c0_196 = arith.constant 0 : index
    %c0_197 = arith.constant 0 : index
    %399 = vector.load %arg12[%c4_195, %c0_196, %c0_197] : memref<14x30x16xf32, #tpu.memory_space<vmem>>, vector<10x24x16xf32>
    %400 = vector.extract_strided_slice %399 {offsets = [0, 0, 0], sizes = [4, 24, 16], strides = [1, 1, 1]} : vector<10x24x16xf32> to vector<4x24x16xf32>
    %c0_198 = arith.constant 0 : index
    %c0_199 = arith.constant 0 : index
    %c0_200 = arith.constant 0 : index
    %401 = vector.load %arg5[%c0_198, %c0_199, %c0_200] : memref<7x7x16xf32, #tpu.memory_space<vmem>>, vector<1x1x16xf32>
    %402 = vector.shape_cast %401 : vector<1x1x16xf32> to vector<16xf32>
    %403 = vector.shape_cast %402 : vector<16xf32> to vector<1x1x16xf32>
    %404 = vector.broadcast %403 : vector<1x1x16xf32> to vector<4x24x16xf32>
    %405 = arith.mulf %400, %404 : vector<4x24x16xf32>
    %406 = vector.extract_strided_slice %399 {offsets = [1, 0, 0], sizes = [4, 24, 16], strides = [1, 1, 1]} : vector<10x24x16xf32> to vector<4x24x16xf32>
    %c1_201 = arith.constant 1 : index
    %c0_202 = arith.constant 0 : index
    %c0_203 = arith.constant 0 : index
    %407 = vector.load %arg5[%c1_201, %c0_202, %c0_203] : memref<7x7x16xf32, #tpu.memory_space<vmem>>, vector<1x1x16xf32>
    %408 = vector.shape_cast %407 : vector<1x1x16xf32> to vector<16xf32>
    %409 = vector.shape_cast %408 : vector<16xf32> to vector<1x1x16xf32>
    %410 = vector.broadcast %409 : vector<1x1x16xf32> to vector<4x24x16xf32>
    %411 = arith.mulf %406, %410 : vector<4x24x16xf32>
    %412 = arith.addf %405, %411 : vector<4x24x16xf32>
    %413 = vector.extract_strided_slice %399 {offsets = [2, 0, 0], sizes = [4, 24, 16], strides = [1, 1, 1]} : vector<10x24x16xf32> to vector<4x24x16xf32>
    %c2_204 = arith.constant 2 : index
    %c0_205 = arith.constant 0 : index
    %c0_206 = arith.constant 0 : index
    %414 = vector.load %arg5[%c2_204, %c0_205, %c0_206] : memref<7x7x16xf32, #tpu.memory_space<vmem>>, vector<1x1x16xf32>
    %415 = vector.shape_cast %414 : vector<1x1x16xf32> to vector<16xf32>
    %416 = vector.shape_cast %415 : vector<16xf32> to vector<1x1x16xf32>
    %417 = vector.broadcast %416 : vector<1x1x16xf32> to vector<4x24x16xf32>
    %418 = arith.mulf %413, %417 : vector<4x24x16xf32>
    %419 = arith.addf %412, %418 : vector<4x24x16xf32>
    %420 = vector.extract_strided_slice %399 {offsets = [3, 0, 0], sizes = [4, 24, 16], strides = [1, 1, 1]} : vector<10x24x16xf32> to vector<4x24x16xf32>
    %c3_207 = arith.constant 3 : index
    %c0_208 = arith.constant 0 : index
    %c0_209 = arith.constant 0 : index
    %421 = vector.load %arg5[%c3_207, %c0_208, %c0_209] : memref<7x7x16xf32, #tpu.memory_space<vmem>>, vector<1x1x16xf32>
    %422 = vector.shape_cast %421 : vector<1x1x16xf32> to vector<16xf32>
    %423 = vector.shape_cast %422 : vector<16xf32> to vector<1x1x16xf32>
    %424 = vector.broadcast %423 : vector<1x1x16xf32> to vector<4x24x16xf32>
    %425 = arith.mulf %420, %424 : vector<4x24x16xf32>
    %426 = arith.addf %419, %425 : vector<4x24x16xf32>
    %427 = vector.extract_strided_slice %399 {offsets = [4, 0, 0], sizes = [4, 24, 16], strides = [1, 1, 1]} : vector<10x24x16xf32> to vector<4x24x16xf32>
    %c4_210 = arith.constant 4 : index
    %c0_211 = arith.constant 0 : index
    %c0_212 = arith.constant 0 : index
    %428 = vector.load %arg5[%c4_210, %c0_211, %c0_212] : memref<7x7x16xf32, #tpu.memory_space<vmem>>, vector<1x1x16xf32>
    %429 = vector.shape_cast %428 : vector<1x1x16xf32> to vector<16xf32>
    %430 = vector.shape_cast %429 : vector<16xf32> to vector<1x1x16xf32>
    %431 = vector.broadcast %430 : vector<1x1x16xf32> to vector<4x24x16xf32>
    %432 = arith.mulf %427, %431 : vector<4x24x16xf32>
    %433 = arith.addf %426, %432 : vector<4x24x16xf32>
    %434 = vector.extract_strided_slice %399 {offsets = [5, 0, 0], sizes = [4, 24, 16], strides = [1, 1, 1]} : vector<10x24x16xf32> to vector<4x24x16xf32>
    %c5_213 = arith.constant 5 : index
    %c0_214 = arith.constant 0 : index
    %c0_215 = arith.constant 0 : index
    %435 = vector.load %arg5[%c5_213, %c0_214, %c0_215] : memref<7x7x16xf32, #tpu.memory_space<vmem>>, vector<1x1x16xf32>
    %436 = vector.shape_cast %435 : vector<1x1x16xf32> to vector<16xf32>
    %437 = vector.shape_cast %436 : vector<16xf32> to vector<1x1x16xf32>
    %438 = vector.broadcast %437 : vector<1x1x16xf32> to vector<4x24x16xf32>
    %439 = arith.mulf %434, %438 : vector<4x24x16xf32>
    %440 = arith.addf %433, %439 : vector<4x24x16xf32>
    %441 = vector.extract_strided_slice %399 {offsets = [6, 0, 0], sizes = [4, 24, 16], strides = [1, 1, 1]} : vector<10x24x16xf32> to vector<4x24x16xf32>
    %c6_216 = arith.constant 6 : index
    %c0_217 = arith.constant 0 : index
    %c0_218 = arith.constant 0 : index
    %442 = vector.load %arg5[%c6_216, %c0_217, %c0_218] : memref<7x7x16xf32, #tpu.memory_space<vmem>>, vector<1x1x16xf32>
    %443 = vector.shape_cast %442 : vector<1x1x16xf32> to vector<16xf32>
    %444 = vector.shape_cast %443 : vector<16xf32> to vector<1x1x16xf32>
    %445 = vector.broadcast %444 : vector<1x1x16xf32> to vector<4x24x16xf32>
    %446 = arith.mulf %441, %445 : vector<4x24x16xf32>
    %447 = arith.addf %440, %446 : vector<4x24x16xf32>
    %c4_219 = arith.constant 4 : index
    %c1_220 = arith.constant 1 : index
    %c0_221 = arith.constant 0 : index
    %448 = vector.load %arg12[%c4_219, %c1_220, %c0_221] : memref<14x30x16xf32, #tpu.memory_space<vmem>>, vector<10x24x16xf32>
    %449 = vector.extract_strided_slice %448 {offsets = [0, 0, 0], sizes = [4, 24, 16], strides = [1, 1, 1]} : vector<10x24x16xf32> to vector<4x24x16xf32>
    %c0_222 = arith.constant 0 : index
    %c1_223 = arith.constant 1 : index
    %c0_224 = arith.constant 0 : index
    %450 = vector.load %arg5[%c0_222, %c1_223, %c0_224] : memref<7x7x16xf32, #tpu.memory_space<vmem>>, vector<1x1x16xf32>
    %451 = vector.shape_cast %450 : vector<1x1x16xf32> to vector<16xf32>
    %452 = vector.shape_cast %451 : vector<16xf32> to vector<1x1x16xf32>
    %453 = vector.broadcast %452 : vector<1x1x16xf32> to vector<4x24x16xf32>
    %454 = arith.mulf %449, %453 : vector<4x24x16xf32>
    %455 = arith.addf %447, %454 : vector<4x24x16xf32>
    %456 = vector.extract_strided_slice %448 {offsets = [1, 0, 0], sizes = [4, 24, 16], strides = [1, 1, 1]} : vector<10x24x16xf32> to vector<4x24x16xf32>
    %c1_225 = arith.constant 1 : index
    %c1_226 = arith.constant 1 : index
    %c0_227 = arith.constant 0 : index
    %457 = vector.load %arg5[%c1_225, %c1_226, %c0_227] : memref<7x7x16xf32, #tpu.memory_space<vmem>>, vector<1x1x16xf32>
    %458 = vector.shape_cast %457 : vector<1x1x16xf32> to vector<16xf32>
    %459 = vector.shape_cast %458 : vector<16xf32> to vector<1x1x16xf32>
    %460 = vector.broadcast %459 : vector<1x1x16xf32> to vector<4x24x16xf32>
    %461 = arith.mulf %456, %460 : vector<4x24x16xf32>
    %462 = arith.addf %455, %461 : vector<4x24x16xf32>
    %463 = vector.extract_strided_slice %448 {offsets = [2, 0, 0], sizes = [4, 24, 16], strides = [1, 1, 1]} : vector<10x24x16xf32> to vector<4x24x16xf32>
    %c2_228 = arith.constant 2 : index
    %c1_229 = arith.constant 1 : index
    %c0_230 = arith.constant 0 : index
    %464 = vector.load %arg5[%c2_228, %c1_229, %c0_230] : memref<7x7x16xf32, #tpu.memory_space<vmem>>, vector<1x1x16xf32>
    %465 = vector.shape_cast %464 : vector<1x1x16xf32> to vector<16xf32>
    %466 = vector.shape_cast %465 : vector<16xf32> to vector<1x1x16xf32>
    %467 = vector.broadcast %466 : vector<1x1x16xf32> to vector<4x24x16xf32>
    %468 = arith.mulf %463, %467 : vector<4x24x16xf32>
    %469 = arith.addf %462, %468 : vector<4x24x16xf32>
    %470 = vector.extract_strided_slice %448 {offsets = [3, 0, 0], sizes = [4, 24, 16], strides = [1, 1, 1]} : vector<10x24x16xf32> to vector<4x24x16xf32>
    %c3_231 = arith.constant 3 : index
    %c1_232 = arith.constant 1 : index
    %c0_233 = arith.constant 0 : index
    %471 = vector.load %arg5[%c3_231, %c1_232, %c0_233] : memref<7x7x16xf32, #tpu.memory_space<vmem>>, vector<1x1x16xf32>
    %472 = vector.shape_cast %471 : vector<1x1x16xf32> to vector<16xf32>
    %473 = vector.shape_cast %472 : vector<16xf32> to vector<1x1x16xf32>
    %474 = vector.broadcast %473 : vector<1x1x16xf32> to vector<4x24x16xf32>
    %475 = arith.mulf %470, %474 : vector<4x24x16xf32>
    %476 = arith.addf %469, %475 : vector<4x24x16xf32>
    %477 = vector.extract_strided_slice %448 {offsets = [4, 0, 0], sizes = [4, 24, 16], strides = [1, 1, 1]} : vector<10x24x16xf32> to vector<4x24x16xf32>
    %c4_234 = arith.constant 4 : index
    %c1_235 = arith.constant 1 : index
    %c0_236 = arith.constant 0 : index
    %478 = vector.load %arg5[%c4_234, %c1_235, %c0_236] : memref<7x7x16xf32, #tpu.memory_space<vmem>>, vector<1x1x16xf32>
    %479 = vector.shape_cast %478 : vector<1x1x16xf32> to vector<16xf32>
    %480 = vector.shape_cast %479 : vector<16xf32> to vector<1x1x16xf32>
    %481 = vector.broadcast %480 : vector<1x1x16xf32> to vector<4x24x16xf32>
    %482 = arith.mulf %477, %481 : vector<4x24x16xf32>
    %483 = arith.addf %476, %482 : vector<4x24x16xf32>
    %484 = vector.extract_strided_slice %448 {offsets = [5, 0, 0], sizes = [4, 24, 16], strides = [1, 1, 1]} : vector<10x24x16xf32> to vector<4x24x16xf32>
    %c5_237 = arith.constant 5 : index
    %c1_238 = arith.constant 1 : index
    %c0_239 = arith.constant 0 : index
    %485 = vector.load %arg5[%c5_237, %c1_238, %c0_239] : memref<7x7x16xf32, #tpu.memory_space<vmem>>, vector<1x1x16xf32>
    %486 = vector.shape_cast %485 : vector<1x1x16xf32> to vector<16xf32>
    %487 = vector.shape_cast %486 : vector<16xf32> to vector<1x1x16xf32>
    %488 = vector.broadcast %487 : vector<1x1x16xf32> to vector<4x24x16xf32>
    %489 = arith.mulf %484, %488 : vector<4x24x16xf32>
    %490 = arith.addf %483, %489 : vector<4x24x16xf32>
    %491 = vector.extract_strided_slice %448 {offsets = [6, 0, 0], sizes = [4, 24, 16], strides = [1, 1, 1]} : vector<10x24x16xf32> to vector<4x24x16xf32>
    %c6_240 = arith.constant 6 : index
    %c1_241 = arith.constant 1 : index
    %c0_242 = arith.constant 0 : index
    %492 = vector.load %arg5[%c6_240, %c1_241, %c0_242] : memref<7x7x16xf32, #tpu.memory_space<vmem>>, vector<1x1x16xf32>
    %493 = vector.shape_cast %492 : vector<1x1x16xf32> to vector<16xf32>
    %494 = vector.shape_cast %493 : vector<16xf32> to vector<1x1x16xf32>
    %495 = vector.broadcast %494 : vector<1x1x16xf32> to vector<4x24x16xf32>
    %496 = arith.mulf %491, %495 : vector<4x24x16xf32>
    %497 = arith.addf %490, %496 : vector<4x24x16xf32>
    %c4_243 = arith.constant 4 : index
    %c2_244 = arith.constant 2 : index
    %c0_245 = arith.constant 0 : index
    %498 = vector.load %arg12[%c4_243, %c2_244, %c0_245] : memref<14x30x16xf32, #tpu.memory_space<vmem>>, vector<10x24x16xf32>
    %499 = vector.extract_strided_slice %498 {offsets = [0, 0, 0], sizes = [4, 24, 16], strides = [1, 1, 1]} : vector<10x24x16xf32> to vector<4x24x16xf32>
    %c0_246 = arith.constant 0 : index
    %c2_247 = arith.constant 2 : index
    %c0_248 = arith.constant 0 : index
    %500 = vector.load %arg5[%c0_246, %c2_247, %c0_248] : memref<7x7x16xf32, #tpu.memory_space<vmem>>, vector<1x1x16xf32>
    %501 = vector.shape_cast %500 : vector<1x1x16xf32> to vector<16xf32>
    %502 = vector.shape_cast %501 : vector<16xf32> to vector<1x1x16xf32>
    %503 = vector.broadcast %502 : vector<1x1x16xf32> to vector<4x24x16xf32>
    %504 = arith.mulf %499, %503 : vector<4x24x16xf32>
    %505 = arith.addf %497, %504 : vector<4x24x16xf32>
    %506 = vector.extract_strided_slice %498 {offsets = [1, 0, 0], sizes = [4, 24, 16], strides = [1, 1, 1]} : vector<10x24x16xf32> to vector<4x24x16xf32>
    %c1_249 = arith.constant 1 : index
    %c2_250 = arith.constant 2 : index
    %c0_251 = arith.constant 0 : index
    %507 = vector.load %arg5[%c1_249, %c2_250, %c0_251] : memref<7x7x16xf32, #tpu.memory_space<vmem>>, vector<1x1x16xf32>
    %508 = vector.shape_cast %507 : vector<1x1x16xf32> to vector<16xf32>
    %509 = vector.shape_cast %508 : vector<16xf32> to vector<1x1x16xf32>
    %510 = vector.broadcast %509 : vector<1x1x16xf32> to vector<4x24x16xf32>
    %511 = arith.mulf %506, %510 : vector<4x24x16xf32>
    %512 = arith.addf %505, %511 : vector<4x24x16xf32>
    %513 = vector.extract_strided_slice %498 {offsets = [2, 0, 0], sizes = [4, 24, 16], strides = [1, 1, 1]} : vector<10x24x16xf32> to vector<4x24x16xf32>
    %c2_252 = arith.constant 2 : index
    %c2_253 = arith.constant 2 : index
    %c0_254 = arith.constant 0 : index
    %514 = vector.load %arg5[%c2_252, %c2_253, %c0_254] : memref<7x7x16xf32, #tpu.memory_space<vmem>>, vector<1x1x16xf32>
    %515 = vector.shape_cast %514 : vector<1x1x16xf32> to vector<16xf32>
    %516 = vector.shape_cast %515 : vector<16xf32> to vector<1x1x16xf32>
    %517 = vector.broadcast %516 : vector<1x1x16xf32> to vector<4x24x16xf32>
    %518 = arith.mulf %513, %517 : vector<4x24x16xf32>
    %519 = arith.addf %512, %518 : vector<4x24x16xf32>
    %520 = vector.extract_strided_slice %498 {offsets = [3, 0, 0], sizes = [4, 24, 16], strides = [1, 1, 1]} : vector<10x24x16xf32> to vector<4x24x16xf32>
    %c3_255 = arith.constant 3 : index
    %c2_256 = arith.constant 2 : index
    %c0_257 = arith.constant 0 : index
    %521 = vector.load %arg5[%c3_255, %c2_256, %c0_257] : memref<7x7x16xf32, #tpu.memory_space<vmem>>, vector<1x1x16xf32>
    %522 = vector.shape_cast %521 : vector<1x1x16xf32> to vector<16xf32>
    %523 = vector.shape_cast %522 : vector<16xf32> to vector<1x1x16xf32>
    %524 = vector.broadcast %523 : vector<1x1x16xf32> to vector<4x24x16xf32>
    %525 = arith.mulf %520, %524 : vector<4x24x16xf32>
    %526 = arith.addf %519, %525 : vector<4x24x16xf32>
    %527 = vector.extract_strided_slice %498 {offsets = [4, 0, 0], sizes = [4, 24, 16], strides = [1, 1, 1]} : vector<10x24x16xf32> to vector<4x24x16xf32>
    %c4_258 = arith.constant 4 : index
    %c2_259 = arith.constant 2 : index
    %c0_260 = arith.constant 0 : index
    %528 = vector.load %arg5[%c4_258, %c2_259, %c0_260] : memref<7x7x16xf32, #tpu.memory_space<vmem>>, vector<1x1x16xf32>
    %529 = vector.shape_cast %528 : vector<1x1x16xf32> to vector<16xf32>
    %530 = vector.shape_cast %529 : vector<16xf32> to vector<1x1x16xf32>
    %531 = vector.broadcast %530 : vector<1x1x16xf32> to vector<4x24x16xf32>
    %532 = arith.mulf %527, %531 : vector<4x24x16xf32>
    %533 = arith.addf %526, %532 : vector<4x24x16xf32>
    %534 = vector.extract_strided_slice %498 {offsets = [5, 0, 0], sizes = [4, 24, 16], strides = [1, 1, 1]} : vector<10x24x16xf32> to vector<4x24x16xf32>
    %c5_261 = arith.constant 5 : index
    %c2_262 = arith.constant 2 : index
    %c0_263 = arith.constant 0 : index
    %535 = vector.load %arg5[%c5_261, %c2_262, %c0_263] : memref<7x7x16xf32, #tpu.memory_space<vmem>>, vector<1x1x16xf32>
    %536 = vector.shape_cast %535 : vector<1x1x16xf32> to vector<16xf32>
    %537 = vector.shape_cast %536 : vector<16xf32> to vector<1x1x16xf32>
    %538 = vector.broadcast %537 : vector<1x1x16xf32> to vector<4x24x16xf32>
    %539 = arith.mulf %534, %538 : vector<4x24x16xf32>
    %540 = arith.addf %533, %539 : vector<4x24x16xf32>
    %541 = vector.extract_strided_slice %498 {offsets = [6, 0, 0], sizes = [4, 24, 16], strides = [1, 1, 1]} : vector<10x24x16xf32> to vector<4x24x16xf32>
    %c6_264 = arith.constant 6 : index
    %c2_265 = arith.constant 2 : index
    %c0_266 = arith.constant 0 : index
    %542 = vector.load %arg5[%c6_264, %c2_265, %c0_266] : memref<7x7x16xf32, #tpu.memory_space<vmem>>, vector<1x1x16xf32>
    %543 = vector.shape_cast %542 : vector<1x1x16xf32> to vector<16xf32>
    %544 = vector.shape_cast %543 : vector<16xf32> to vector<1x1x16xf32>
    %545 = vector.broadcast %544 : vector<1x1x16xf32> to vector<4x24x16xf32>
    %546 = arith.mulf %541, %545 : vector<4x24x16xf32>
    %547 = arith.addf %540, %546 : vector<4x24x16xf32>
    %c4_267 = arith.constant 4 : index
    %c3_268 = arith.constant 3 : index
    %c0_269 = arith.constant 0 : index
    %548 = vector.load %arg12[%c4_267, %c3_268, %c0_269] : memref<14x30x16xf32, #tpu.memory_space<vmem>>, vector<10x24x16xf32>
    %549 = vector.extract_strided_slice %548 {offsets = [0, 0, 0], sizes = [4, 24, 16], strides = [1, 1, 1]} : vector<10x24x16xf32> to vector<4x24x16xf32>
    %c0_270 = arith.constant 0 : index
    %c3_271 = arith.constant 3 : index
    %c0_272 = arith.constant 0 : index
    %550 = vector.load %arg5[%c0_270, %c3_271, %c0_272] : memref<7x7x16xf32, #tpu.memory_space<vmem>>, vector<1x1x16xf32>
    %551 = vector.shape_cast %550 : vector<1x1x16xf32> to vector<16xf32>
    %552 = vector.shape_cast %551 : vector<16xf32> to vector<1x1x16xf32>
    %553 = vector.broadcast %552 : vector<1x1x16xf32> to vector<4x24x16xf32>
    %554 = arith.mulf %549, %553 : vector<4x24x16xf32>
    %555 = arith.addf %547, %554 : vector<4x24x16xf32>
    %556 = vector.extract_strided_slice %548 {offsets = [1, 0, 0], sizes = [4, 24, 16], strides = [1, 1, 1]} : vector<10x24x16xf32> to vector<4x24x16xf32>
    %c1_273 = arith.constant 1 : index
    %c3_274 = arith.constant 3 : index
    %c0_275 = arith.constant 0 : index
    %557 = vector.load %arg5[%c1_273, %c3_274, %c0_275] : memref<7x7x16xf32, #tpu.memory_space<vmem>>, vector<1x1x16xf32>
    %558 = vector.shape_cast %557 : vector<1x1x16xf32> to vector<16xf32>
    %559 = vector.shape_cast %558 : vector<16xf32> to vector<1x1x16xf32>
    %560 = vector.broadcast %559 : vector<1x1x16xf32> to vector<4x24x16xf32>
    %561 = arith.mulf %556, %560 : vector<4x24x16xf32>
    %562 = arith.addf %555, %561 : vector<4x24x16xf32>
    %563 = vector.extract_strided_slice %548 {offsets = [2, 0, 0], sizes = [4, 24, 16], strides = [1, 1, 1]} : vector<10x24x16xf32> to vector<4x24x16xf32>
    %c2_276 = arith.constant 2 : index
    %c3_277 = arith.constant 3 : index
    %c0_278 = arith.constant 0 : index
    %564 = vector.load %arg5[%c2_276, %c3_277, %c0_278] : memref<7x7x16xf32, #tpu.memory_space<vmem>>, vector<1x1x16xf32>
    %565 = vector.shape_cast %564 : vector<1x1x16xf32> to vector<16xf32>
    %566 = vector.shape_cast %565 : vector<16xf32> to vector<1x1x16xf32>
    %567 = vector.broadcast %566 : vector<1x1x16xf32> to vector<4x24x16xf32>
    %568 = arith.mulf %563, %567 : vector<4x24x16xf32>
    %569 = arith.addf %562, %568 : vector<4x24x16xf32>
    %570 = vector.extract_strided_slice %548 {offsets = [3, 0, 0], sizes = [4, 24, 16], strides = [1, 1, 1]} : vector<10x24x16xf32> to vector<4x24x16xf32>
    %c3_279 = arith.constant 3 : index
    %c3_280 = arith.constant 3 : index
    %c0_281 = arith.constant 0 : index
    %571 = vector.load %arg5[%c3_279, %c3_280, %c0_281] : memref<7x7x16xf32, #tpu.memory_space<vmem>>, vector<1x1x16xf32>
    %572 = vector.shape_cast %571 : vector<1x1x16xf32> to vector<16xf32>
    %573 = vector.shape_cast %572 : vector<16xf32> to vector<1x1x16xf32>
    %574 = vector.broadcast %573 : vector<1x1x16xf32> to vector<4x24x16xf32>
    %575 = arith.mulf %570, %574 : vector<4x24x16xf32>
    %576 = arith.addf %569, %575 : vector<4x24x16xf32>
    %577 = vector.extract_strided_slice %548 {offsets = [4, 0, 0], sizes = [4, 24, 16], strides = [1, 1, 1]} : vector<10x24x16xf32> to vector<4x24x16xf32>
    %c4_282 = arith.constant 4 : index
    %c3_283 = arith.constant 3 : index
    %c0_284 = arith.constant 0 : index
    %578 = vector.load %arg5[%c4_282, %c3_283, %c0_284] : memref<7x7x16xf32, #tpu.memory_space<vmem>>, vector<1x1x16xf32>
    %579 = vector.shape_cast %578 : vector<1x1x16xf32> to vector<16xf32>
    %580 = vector.shape_cast %579 : vector<16xf32> to vector<1x1x16xf32>
    %581 = vector.broadcast %580 : vector<1x1x16xf32> to vector<4x24x16xf32>
    %582 = arith.mulf %577, %581 : vector<4x24x16xf32>
    %583 = arith.addf %576, %582 : vector<4x24x16xf32>
    %584 = vector.extract_strided_slice %548 {offsets = [5, 0, 0], sizes = [4, 24, 16], strides = [1, 1, 1]} : vector<10x24x16xf32> to vector<4x24x16xf32>
    %c5_285 = arith.constant 5 : index
    %c3_286 = arith.constant 3 : index
    %c0_287 = arith.constant 0 : index
    %585 = vector.load %arg5[%c5_285, %c3_286, %c0_287] : memref<7x7x16xf32, #tpu.memory_space<vmem>>, vector<1x1x16xf32>
    %586 = vector.shape_cast %585 : vector<1x1x16xf32> to vector<16xf32>
    %587 = vector.shape_cast %586 : vector<16xf32> to vector<1x1x16xf32>
    %588 = vector.broadcast %587 : vector<1x1x16xf32> to vector<4x24x16xf32>
    %589 = arith.mulf %584, %588 : vector<4x24x16xf32>
    %590 = arith.addf %583, %589 : vector<4x24x16xf32>
    %591 = vector.extract_strided_slice %548 {offsets = [6, 0, 0], sizes = [4, 24, 16], strides = [1, 1, 1]} : vector<10x24x16xf32> to vector<4x24x16xf32>
    %c6_288 = arith.constant 6 : index
    %c3_289 = arith.constant 3 : index
    %c0_290 = arith.constant 0 : index
    %592 = vector.load %arg5[%c6_288, %c3_289, %c0_290] : memref<7x7x16xf32, #tpu.memory_space<vmem>>, vector<1x1x16xf32>
    %593 = vector.shape_cast %592 : vector<1x1x16xf32> to vector<16xf32>
    %594 = vector.shape_cast %593 : vector<16xf32> to vector<1x1x16xf32>
    %595 = vector.broadcast %594 : vector<1x1x16xf32> to vector<4x24x16xf32>
    %596 = arith.mulf %591, %595 : vector<4x24x16xf32>
    %597 = arith.addf %590, %596 : vector<4x24x16xf32>
    %c4_291 = arith.constant 4 : index
    %c4_292 = arith.constant 4 : index
    %c0_293 = arith.constant 0 : index
    %598 = vector.load %arg12[%c4_291, %c4_292, %c0_293] : memref<14x30x16xf32, #tpu.memory_space<vmem>>, vector<10x24x16xf32>
    %599 = vector.extract_strided_slice %598 {offsets = [0, 0, 0], sizes = [4, 24, 16], strides = [1, 1, 1]} : vector<10x24x16xf32> to vector<4x24x16xf32>
    %c0_294 = arith.constant 0 : index
    %c4_295 = arith.constant 4 : index
    %c0_296 = arith.constant 0 : index
    %600 = vector.load %arg5[%c0_294, %c4_295, %c0_296] : memref<7x7x16xf32, #tpu.memory_space<vmem>>, vector<1x1x16xf32>
    %601 = vector.shape_cast %600 : vector<1x1x16xf32> to vector<16xf32>
    %602 = vector.shape_cast %601 : vector<16xf32> to vector<1x1x16xf32>
    %603 = vector.broadcast %602 : vector<1x1x16xf32> to vector<4x24x16xf32>
    %604 = arith.mulf %599, %603 : vector<4x24x16xf32>
    %605 = arith.addf %597, %604 : vector<4x24x16xf32>
    %606 = vector.extract_strided_slice %598 {offsets = [1, 0, 0], sizes = [4, 24, 16], strides = [1, 1, 1]} : vector<10x24x16xf32> to vector<4x24x16xf32>
    %c1_297 = arith.constant 1 : index
    %c4_298 = arith.constant 4 : index
    %c0_299 = arith.constant 0 : index
    %607 = vector.load %arg5[%c1_297, %c4_298, %c0_299] : memref<7x7x16xf32, #tpu.memory_space<vmem>>, vector<1x1x16xf32>
    %608 = vector.shape_cast %607 : vector<1x1x16xf32> to vector<16xf32>
    %609 = vector.shape_cast %608 : vector<16xf32> to vector<1x1x16xf32>
    %610 = vector.broadcast %609 : vector<1x1x16xf32> to vector<4x24x16xf32>
    %611 = arith.mulf %606, %610 : vector<4x24x16xf32>
    %612 = arith.addf %605, %611 : vector<4x24x16xf32>
    %613 = vector.extract_strided_slice %598 {offsets = [2, 0, 0], sizes = [4, 24, 16], strides = [1, 1, 1]} : vector<10x24x16xf32> to vector<4x24x16xf32>
    %c2_300 = arith.constant 2 : index
    %c4_301 = arith.constant 4 : index
    %c0_302 = arith.constant 0 : index
    %614 = vector.load %arg5[%c2_300, %c4_301, %c0_302] : memref<7x7x16xf32, #tpu.memory_space<vmem>>, vector<1x1x16xf32>
    %615 = vector.shape_cast %614 : vector<1x1x16xf32> to vector<16xf32>
    %616 = vector.shape_cast %615 : vector<16xf32> to vector<1x1x16xf32>
    %617 = vector.broadcast %616 : vector<1x1x16xf32> to vector<4x24x16xf32>
    %618 = arith.mulf %613, %617 : vector<4x24x16xf32>
    %619 = arith.addf %612, %618 : vector<4x24x16xf32>
    %620 = vector.extract_strided_slice %598 {offsets = [3, 0, 0], sizes = [4, 24, 16], strides = [1, 1, 1]} : vector<10x24x16xf32> to vector<4x24x16xf32>
    %c3_303 = arith.constant 3 : index
    %c4_304 = arith.constant 4 : index
    %c0_305 = arith.constant 0 : index
    %621 = vector.load %arg5[%c3_303, %c4_304, %c0_305] : memref<7x7x16xf32, #tpu.memory_space<vmem>>, vector<1x1x16xf32>
    %622 = vector.shape_cast %621 : vector<1x1x16xf32> to vector<16xf32>
    %623 = vector.shape_cast %622 : vector<16xf32> to vector<1x1x16xf32>
    %624 = vector.broadcast %623 : vector<1x1x16xf32> to vector<4x24x16xf32>
    %625 = arith.mulf %620, %624 : vector<4x24x16xf32>
    %626 = arith.addf %619, %625 : vector<4x24x16xf32>
    %627 = vector.extract_strided_slice %598 {offsets = [4, 0, 0], sizes = [4, 24, 16], strides = [1, 1, 1]} : vector<10x24x16xf32> to vector<4x24x16xf32>
    %c4_306 = arith.constant 4 : index
    %c4_307 = arith.constant 4 : index
    %c0_308 = arith.constant 0 : index
    %628 = vector.load %arg5[%c4_306, %c4_307, %c0_308] : memref<7x7x16xf32, #tpu.memory_space<vmem>>, vector<1x1x16xf32>
    %629 = vector.shape_cast %628 : vector<1x1x16xf32> to vector<16xf32>
    %630 = vector.shape_cast %629 : vector<16xf32> to vector<1x1x16xf32>
    %631 = vector.broadcast %630 : vector<1x1x16xf32> to vector<4x24x16xf32>
    %632 = arith.mulf %627, %631 : vector<4x24x16xf32>
    %633 = arith.addf %626, %632 : vector<4x24x16xf32>
    %634 = vector.extract_strided_slice %598 {offsets = [5, 0, 0], sizes = [4, 24, 16], strides = [1, 1, 1]} : vector<10x24x16xf32> to vector<4x24x16xf32>
    %c5_309 = arith.constant 5 : index
    %c4_310 = arith.constant 4 : index
    %c0_311 = arith.constant 0 : index
    %635 = vector.load %arg5[%c5_309, %c4_310, %c0_311] : memref<7x7x16xf32, #tpu.memory_space<vmem>>, vector<1x1x16xf32>
    %636 = vector.shape_cast %635 : vector<1x1x16xf32> to vector<16xf32>
    %637 = vector.shape_cast %636 : vector<16xf32> to vector<1x1x16xf32>
    %638 = vector.broadcast %637 : vector<1x1x16xf32> to vector<4x24x16xf32>
    %639 = arith.mulf %634, %638 : vector<4x24x16xf32>
    %640 = arith.addf %633, %639 : vector<4x24x16xf32>
    %641 = vector.extract_strided_slice %598 {offsets = [6, 0, 0], sizes = [4, 24, 16], strides = [1, 1, 1]} : vector<10x24x16xf32> to vector<4x24x16xf32>
    %c6_312 = arith.constant 6 : index
    %c4_313 = arith.constant 4 : index
    %c0_314 = arith.constant 0 : index
    %642 = vector.load %arg5[%c6_312, %c4_313, %c0_314] : memref<7x7x16xf32, #tpu.memory_space<vmem>>, vector<1x1x16xf32>
    %643 = vector.shape_cast %642 : vector<1x1x16xf32> to vector<16xf32>
    %644 = vector.shape_cast %643 : vector<16xf32> to vector<1x1x16xf32>
    %645 = vector.broadcast %644 : vector<1x1x16xf32> to vector<4x24x16xf32>
    %646 = arith.mulf %641, %645 : vector<4x24x16xf32>
    %647 = arith.addf %640, %646 : vector<4x24x16xf32>
    %c4_315 = arith.constant 4 : index
    %c5_316 = arith.constant 5 : index
    %c0_317 = arith.constant 0 : index
    %648 = vector.load %arg12[%c4_315, %c5_316, %c0_317] : memref<14x30x16xf32, #tpu.memory_space<vmem>>, vector<10x24x16xf32>
    %649 = vector.extract_strided_slice %648 {offsets = [0, 0, 0], sizes = [4, 24, 16], strides = [1, 1, 1]} : vector<10x24x16xf32> to vector<4x24x16xf32>
    %c0_318 = arith.constant 0 : index
    %c5_319 = arith.constant 5 : index
    %c0_320 = arith.constant 0 : index
    %650 = vector.load %arg5[%c0_318, %c5_319, %c0_320] : memref<7x7x16xf32, #tpu.memory_space<vmem>>, vector<1x1x16xf32>
    %651 = vector.shape_cast %650 : vector<1x1x16xf32> to vector<16xf32>
    %652 = vector.shape_cast %651 : vector<16xf32> to vector<1x1x16xf32>
    %653 = vector.broadcast %652 : vector<1x1x16xf32> to vector<4x24x16xf32>
    %654 = arith.mulf %649, %653 : vector<4x24x16xf32>
    %655 = arith.addf %647, %654 : vector<4x24x16xf32>
    %656 = vector.extract_strided_slice %648 {offsets = [1, 0, 0], sizes = [4, 24, 16], strides = [1, 1, 1]} : vector<10x24x16xf32> to vector<4x24x16xf32>
    %c1_321 = arith.constant 1 : index
    %c5_322 = arith.constant 5 : index
    %c0_323 = arith.constant 0 : index
    %657 = vector.load %arg5[%c1_321, %c5_322, %c0_323] : memref<7x7x16xf32, #tpu.memory_space<vmem>>, vector<1x1x16xf32>
    %658 = vector.shape_cast %657 : vector<1x1x16xf32> to vector<16xf32>
    %659 = vector.shape_cast %658 : vector<16xf32> to vector<1x1x16xf32>
    %660 = vector.broadcast %659 : vector<1x1x16xf32> to vector<4x24x16xf32>
    %661 = arith.mulf %656, %660 : vector<4x24x16xf32>
    %662 = arith.addf %655, %661 : vector<4x24x16xf32>
    %663 = vector.extract_strided_slice %648 {offsets = [2, 0, 0], sizes = [4, 24, 16], strides = [1, 1, 1]} : vector<10x24x16xf32> to vector<4x24x16xf32>
    %c2_324 = arith.constant 2 : index
    %c5_325 = arith.constant 5 : index
    %c0_326 = arith.constant 0 : index
    %664 = vector.load %arg5[%c2_324, %c5_325, %c0_326] : memref<7x7x16xf32, #tpu.memory_space<vmem>>, vector<1x1x16xf32>
    %665 = vector.shape_cast %664 : vector<1x1x16xf32> to vector<16xf32>
    %666 = vector.shape_cast %665 : vector<16xf32> to vector<1x1x16xf32>
    %667 = vector.broadcast %666 : vector<1x1x16xf32> to vector<4x24x16xf32>
    %668 = arith.mulf %663, %667 : vector<4x24x16xf32>
    %669 = arith.addf %662, %668 : vector<4x24x16xf32>
    %670 = vector.extract_strided_slice %648 {offsets = [3, 0, 0], sizes = [4, 24, 16], strides = [1, 1, 1]} : vector<10x24x16xf32> to vector<4x24x16xf32>
    %c3_327 = arith.constant 3 : index
    %c5_328 = arith.constant 5 : index
    %c0_329 = arith.constant 0 : index
    %671 = vector.load %arg5[%c3_327, %c5_328, %c0_329] : memref<7x7x16xf32, #tpu.memory_space<vmem>>, vector<1x1x16xf32>
    %672 = vector.shape_cast %671 : vector<1x1x16xf32> to vector<16xf32>
    %673 = vector.shape_cast %672 : vector<16xf32> to vector<1x1x16xf32>
    %674 = vector.broadcast %673 : vector<1x1x16xf32> to vector<4x24x16xf32>
    %675 = arith.mulf %670, %674 : vector<4x24x16xf32>
    %676 = arith.addf %669, %675 : vector<4x24x16xf32>
    %677 = vector.extract_strided_slice %648 {offsets = [4, 0, 0], sizes = [4, 24, 16], strides = [1, 1, 1]} : vector<10x24x16xf32> to vector<4x24x16xf32>
    %c4_330 = arith.constant 4 : index
    %c5_331 = arith.constant 5 : index
    %c0_332 = arith.constant 0 : index
    %678 = vector.load %arg5[%c4_330, %c5_331, %c0_332] : memref<7x7x16xf32, #tpu.memory_space<vmem>>, vector<1x1x16xf32>
    %679 = vector.shape_cast %678 : vector<1x1x16xf32> to vector<16xf32>
    %680 = vector.shape_cast %679 : vector<16xf32> to vector<1x1x16xf32>
    %681 = vector.broadcast %680 : vector<1x1x16xf32> to vector<4x24x16xf32>
    %682 = arith.mulf %677, %681 : vector<4x24x16xf32>
    %683 = arith.addf %676, %682 : vector<4x24x16xf32>
    %684 = vector.extract_strided_slice %648 {offsets = [5, 0, 0], sizes = [4, 24, 16], strides = [1, 1, 1]} : vector<10x24x16xf32> to vector<4x24x16xf32>
    %c5_333 = arith.constant 5 : index
    %c5_334 = arith.constant 5 : index
    %c0_335 = arith.constant 0 : index
    %685 = vector.load %arg5[%c5_333, %c5_334, %c0_335] : memref<7x7x16xf32, #tpu.memory_space<vmem>>, vector<1x1x16xf32>
    %686 = vector.shape_cast %685 : vector<1x1x16xf32> to vector<16xf32>
    %687 = vector.shape_cast %686 : vector<16xf32> to vector<1x1x16xf32>
    %688 = vector.broadcast %687 : vector<1x1x16xf32> to vector<4x24x16xf32>
    %689 = arith.mulf %684, %688 : vector<4x24x16xf32>
    %690 = arith.addf %683, %689 : vector<4x24x16xf32>
    %691 = vector.extract_strided_slice %648 {offsets = [6, 0, 0], sizes = [4, 24, 16], strides = [1, 1, 1]} : vector<10x24x16xf32> to vector<4x24x16xf32>
    %c6_336 = arith.constant 6 : index
    %c5_337 = arith.constant 5 : index
    %c0_338 = arith.constant 0 : index
    %692 = vector.load %arg5[%c6_336, %c5_337, %c0_338] : memref<7x7x16xf32, #tpu.memory_space<vmem>>, vector<1x1x16xf32>
    %693 = vector.shape_cast %692 : vector<1x1x16xf32> to vector<16xf32>
    %694 = vector.shape_cast %693 : vector<16xf32> to vector<1x1x16xf32>
    %695 = vector.broadcast %694 : vector<1x1x16xf32> to vector<4x24x16xf32>
    %696 = arith.mulf %691, %695 : vector<4x24x16xf32>
    %697 = arith.addf %690, %696 : vector<4x24x16xf32>
    %c4_339 = arith.constant 4 : index
    %c6_340 = arith.constant 6 : index
    %c0_341 = arith.constant 0 : index
    %698 = vector.load %arg12[%c4_339, %c6_340, %c0_341] : memref<14x30x16xf32, #tpu.memory_space<vmem>>, vector<10x24x16xf32>
    %699 = vector.extract_strided_slice %698 {offsets = [0, 0, 0], sizes = [4, 24, 16], strides = [1, 1, 1]} : vector<10x24x16xf32> to vector<4x24x16xf32>
    %c0_342 = arith.constant 0 : index
    %c6_343 = arith.constant 6 : index
    %c0_344 = arith.constant 0 : index
    %700 = vector.load %arg5[%c0_342, %c6_343, %c0_344] : memref<7x7x16xf32, #tpu.memory_space<vmem>>, vector<1x1x16xf32>
    %701 = vector.shape_cast %700 : vector<1x1x16xf32> to vector<16xf32>
    %702 = vector.shape_cast %701 : vector<16xf32> to vector<1x1x16xf32>
    %703 = vector.broadcast %702 : vector<1x1x16xf32> to vector<4x24x16xf32>
    %704 = arith.mulf %699, %703 : vector<4x24x16xf32>
    %705 = arith.addf %697, %704 : vector<4x24x16xf32>
    %706 = vector.extract_strided_slice %698 {offsets = [1, 0, 0], sizes = [4, 24, 16], strides = [1, 1, 1]} : vector<10x24x16xf32> to vector<4x24x16xf32>
    %c1_345 = arith.constant 1 : index
    %c6_346 = arith.constant 6 : index
    %c0_347 = arith.constant 0 : index
    %707 = vector.load %arg5[%c1_345, %c6_346, %c0_347] : memref<7x7x16xf32, #tpu.memory_space<vmem>>, vector<1x1x16xf32>
    %708 = vector.shape_cast %707 : vector<1x1x16xf32> to vector<16xf32>
    %709 = vector.shape_cast %708 : vector<16xf32> to vector<1x1x16xf32>
    %710 = vector.broadcast %709 : vector<1x1x16xf32> to vector<4x24x16xf32>
    %711 = arith.mulf %706, %710 : vector<4x24x16xf32>
    %712 = arith.addf %705, %711 : vector<4x24x16xf32>
    %713 = vector.extract_strided_slice %698 {offsets = [2, 0, 0], sizes = [4, 24, 16], strides = [1, 1, 1]} : vector<10x24x16xf32> to vector<4x24x16xf32>
    %c2_348 = arith.constant 2 : index
    %c6_349 = arith.constant 6 : index
    %c0_350 = arith.constant 0 : index
    %714 = vector.load %arg5[%c2_348, %c6_349, %c0_350] : memref<7x7x16xf32, #tpu.memory_space<vmem>>, vector<1x1x16xf32>
    %715 = vector.shape_cast %714 : vector<1x1x16xf32> to vector<16xf32>
    %716 = vector.shape_cast %715 : vector<16xf32> to vector<1x1x16xf32>
    %717 = vector.broadcast %716 : vector<1x1x16xf32> to vector<4x24x16xf32>
    %718 = arith.mulf %713, %717 : vector<4x24x16xf32>
    %719 = arith.addf %712, %718 : vector<4x24x16xf32>
    %720 = vector.extract_strided_slice %698 {offsets = [3, 0, 0], sizes = [4, 24, 16], strides = [1, 1, 1]} : vector<10x24x16xf32> to vector<4x24x16xf32>
    %c3_351 = arith.constant 3 : index
    %c6_352 = arith.constant 6 : index
    %c0_353 = arith.constant 0 : index
    %721 = vector.load %arg5[%c3_351, %c6_352, %c0_353] : memref<7x7x16xf32, #tpu.memory_space<vmem>>, vector<1x1x16xf32>
    %722 = vector.shape_cast %721 : vector<1x1x16xf32> to vector<16xf32>
    %723 = vector.shape_cast %722 : vector<16xf32> to vector<1x1x16xf32>
    %724 = vector.broadcast %723 : vector<1x1x16xf32> to vector<4x24x16xf32>
    %725 = arith.mulf %720, %724 : vector<4x24x16xf32>
    %726 = arith.addf %719, %725 : vector<4x24x16xf32>
    %727 = vector.extract_strided_slice %698 {offsets = [4, 0, 0], sizes = [4, 24, 16], strides = [1, 1, 1]} : vector<10x24x16xf32> to vector<4x24x16xf32>
    %c4_354 = arith.constant 4 : index
    %c6_355 = arith.constant 6 : index
    %c0_356 = arith.constant 0 : index
    %728 = vector.load %arg5[%c4_354, %c6_355, %c0_356] : memref<7x7x16xf32, #tpu.memory_space<vmem>>, vector<1x1x16xf32>
    %729 = vector.shape_cast %728 : vector<1x1x16xf32> to vector<16xf32>
    %730 = vector.shape_cast %729 : vector<16xf32> to vector<1x1x16xf32>
    %731 = vector.broadcast %730 : vector<1x1x16xf32> to vector<4x24x16xf32>
    %732 = arith.mulf %727, %731 : vector<4x24x16xf32>
    %733 = arith.addf %726, %732 : vector<4x24x16xf32>
    %734 = vector.extract_strided_slice %698 {offsets = [5, 0, 0], sizes = [4, 24, 16], strides = [1, 1, 1]} : vector<10x24x16xf32> to vector<4x24x16xf32>
    %c5_357 = arith.constant 5 : index
    %c6_358 = arith.constant 6 : index
    %c0_359 = arith.constant 0 : index
    %735 = vector.load %arg5[%c5_357, %c6_358, %c0_359] : memref<7x7x16xf32, #tpu.memory_space<vmem>>, vector<1x1x16xf32>
    %736 = vector.shape_cast %735 : vector<1x1x16xf32> to vector<16xf32>
    %737 = vector.shape_cast %736 : vector<16xf32> to vector<1x1x16xf32>
    %738 = vector.broadcast %737 : vector<1x1x16xf32> to vector<4x24x16xf32>
    %739 = arith.mulf %734, %738 : vector<4x24x16xf32>
    %740 = arith.addf %733, %739 : vector<4x24x16xf32>
    %741 = vector.extract_strided_slice %698 {offsets = [6, 0, 0], sizes = [4, 24, 16], strides = [1, 1, 1]} : vector<10x24x16xf32> to vector<4x24x16xf32>
    %c6_360 = arith.constant 6 : index
    %c6_361 = arith.constant 6 : index
    %c0_362 = arith.constant 0 : index
    %742 = vector.load %arg5[%c6_360, %c6_361, %c0_362] : memref<7x7x16xf32, #tpu.memory_space<vmem>>, vector<1x1x16xf32>
    %743 = vector.shape_cast %742 : vector<1x1x16xf32> to vector<16xf32>
    %744 = vector.shape_cast %743 : vector<16xf32> to vector<1x1x16xf32>
    %745 = vector.broadcast %744 : vector<1x1x16xf32> to vector<4x24x16xf32>
    %746 = arith.mulf %741, %745 : vector<4x24x16xf32>
    %747 = arith.addf %740, %746 : vector<4x24x16xf32>
    %c0_363 = arith.constant 0 : index
    %c0_364 = arith.constant 0 : index
    %748 = vector.load %arg6[%c0_363, %c0_364] : memref<1x16xf32, #tpu.memory_space<vmem>>, vector<1x16xf32>
    %749 = vector.shape_cast %748 : vector<1x16xf32> to vector<1x1x16xf32>
    %750 = vector.broadcast %749 : vector<1x1x16xf32> to vector<4x24x16xf32>
    %751 = arith.addf %747, %750 : vector<4x24x16xf32>
    %752 = vector.shape_cast %751 : vector<4x24x16xf32> to vector<96x16xf32>
    %c0_365 = arith.constant 0 : index
    %c0_366 = arith.constant 0 : index
    %753 = vector.load %arg7[%c0_365, %c0_366] : memref<16x32xf32, #tpu.memory_space<vmem>>, vector<16x32xf32>
    %cst_367 = arith.constant dense<0.000000e+00> : vector<96x32xf32>
    %754 = tpu.matmul %752, %753, %cst_367 {dimension_numbers = #tpu.dot_dimension_numbers<[1], [0], [0], [1], [0, 0, 1, 1], [], []>} : vector<96x16xf32>, vector<16x32xf32>, vector<96x32xf32> -> vector<96x32xf32>
    %c0_368 = arith.constant 0 : index
    %c0_369 = arith.constant 0 : index
    %755 = vector.load %arg8[%c0_368, %c0_369] : memref<1x32xf32, #tpu.memory_space<vmem>>, vector<1x32xf32>
    %756 = vector.broadcast %755 : vector<1x32xf32> to vector<96x32xf32>
    %757 = arith.addf %754, %756 : vector<96x32xf32>
    %cst_370 = arith.constant 5.000000e-01 : f32
    %758 = vector.broadcast %cst_370 : f32 to vector<96x32xf32>
    %759 = arith.mulf %758, %757 : vector<96x32xf32>
    %cst_371 = arith.constant 4.471500e-02 : f32
    %760 = vector.broadcast %cst_371 : f32 to vector<96x32xf32>
    %761 = arith.mulf %760, %757 : vector<96x32xf32>
    %762 = arith.mulf %761, %757 : vector<96x32xf32>
    %763 = arith.mulf %762, %757 : vector<96x32xf32>
    %764 = arith.addf %757, %763 : vector<96x32xf32>
    %cst_372 = arith.constant 0.797884583 : f32
    %765 = vector.broadcast %cst_372 : f32 to vector<96x32xf32>
    %766 = arith.mulf %765, %764 : vector<96x32xf32>
    %767 = math.tanh %766 : vector<96x32xf32>
    %cst_373 = arith.constant 1.000000e+00 : f32
    %768 = vector.broadcast %cst_373 : f32 to vector<96x32xf32>
    %769 = arith.addf %768, %767 : vector<96x32xf32>
    %770 = arith.mulf %759, %769 : vector<96x32xf32>
    %c0_374 = arith.constant 0 : index
    %c0_375 = arith.constant 0 : index
    %771 = vector.load %arg9[%c0_374, %c0_375] : memref<32x16xf32, #tpu.memory_space<vmem>>, vector<32x16xf32>
    %cst_376 = arith.constant dense<0.000000e+00> : vector<96x16xf32>
    %772 = tpu.matmul %770, %771, %cst_376 {dimension_numbers = #tpu.dot_dimension_numbers<[1], [0], [0], [1], [0, 0, 1, 1], [], []>} : vector<96x32xf32>, vector<32x16xf32>, vector<96x16xf32> -> vector<96x16xf32>
    %c0_377 = arith.constant 0 : index
    %c0_378 = arith.constant 0 : index
    %773 = vector.load %arg10[%c0_377, %c0_378] : memref<1x16xf32, #tpu.memory_space<vmem>>, vector<1x16xf32>
    %774 = vector.broadcast %773 : vector<1x16xf32> to vector<96x16xf32>
    %775 = arith.addf %772, %774 : vector<96x16xf32>
    %776 = vector.shape_cast %775 : vector<96x16xf32> to vector<4x24x16xf32>
    %c0_379 = arith.constant 0 : index
    %c4_380 = arith.constant 4 : index
    %c0_381 = arith.constant 0 : index
    %c0_382 = arith.constant 0 : index
    %777 = vector.load %arg11[%c0_379, %c4_380, %c0_381, %c0_382] : memref<1x8x24x16xf32, #tpu.memory_space<vmem>>, vector<1x4x24x16xf32>
    %778 = vector.shape_cast %777 : vector<1x4x24x16xf32> to vector<4x24x16xf32>
    %779 = vector.shape_cast %776 : vector<4x24x16xf32> to vector<1x4x24x16xf32>
    tpu.vector_store %arg11[%c0_379, %c4_380, %c0_381, %c0_382], %779 {strides = array<i32>} : memref<1x8x24x16xf32, #tpu.memory_space<vmem>>, vector<1x4x24x16xf32>,
    return
  }
  func.func @transform_0(%arg0: i32, %arg1: i32) -> (i32, i32, i32, i32) {
    %c0_i32 = arith.constant 0 : i32
    %c0_i32_0 = arith.constant 0 : i32
    %c0_i32_1 = arith.constant 0 : i32
    return %arg0, %arg1, %c0_i32, %c0_i32_0 : i32, i32, i32, i32
  }
  func.func @transform_1(%arg0: i32, %arg1: i32) -> (i32, i32, i32, i32) {
    %c2_i32 = arith.constant 2 : i32
    %0 = arith.muli %arg1, %c2_i32 : i32
    %c1_i32 = arith.constant 1 : i32
    %1 = arith.subi %0, %c1_i32 : i32
    %c0_i32 = arith.constant 0 : i32
    %2 = arith.maxsi %1, %c0_i32 : i32
    %c0_i32_0 = arith.constant 0 : i32
    %c0_i32_1 = arith.constant 0 : i32
    %c0_i32_2 = arith.constant 0 : i32
    return %arg0, %2, %c0_i32_0, %c0_i32_1 : i32, i32, i32, i32
  }
  func.func @transform_2(%arg0: i32, %arg1: i32) -> (i32, i32, i32, i32) {
    %c1_i32 = arith.constant 1 : i32
    %0 = arith.addi %arg1, %c1_i32 : i32
    %c2_i32 = arith.constant 2 : i32
    %1 = arith.muli %0, %c2_i32 : i32
    %c5_i32 = arith.constant 5 : i32
    %2 = arith.minsi %1, %c5_i32 : i32
    %c0_i32 = arith.constant 0 : i32
    %c0_i32_0 = arith.constant 0 : i32
    %c0_i32_1 = arith.constant 0 : i32
    return %arg0, %2, %c0_i32, %c0_i32_0 : i32, i32, i32, i32
  }
  func.func @transform_3(%arg0: i32, %arg1: i32) -> (i32, i32, i32) {
    %c0_i32 = arith.constant 0 : i32
    %c0_i32_0 = arith.constant 0 : i32
    %c0_i32_1 = arith.constant 0 : i32
    %c0_i32_2 = arith.constant 0 : i32
    return %c0_i32, %c0_i32_0, %c0_i32_1 : i32, i32, i32
  }
  func.func @transform_4(%arg0: i32, %arg1: i32) -> (i32, i32) {
    %c0_i32 = arith.constant 0 : i32
    %c0_i32_0 = arith.constant 0 : i32
    %c0_i32_1 = arith.constant 0 : i32
    return %c0_i32, %c0_i32_0 : i32, i32
  }
  func.func @transform_5(%arg0: i32, %arg1: i32) -> (i32, i32) {
    %c0_i32 = arith.constant 0 : i32
    %c0_i32_0 = arith.constant 0 : i32
    %c0_i32_1 = arith.constant 0 : i32
    return %c0_i32, %c0_i32_0 : i32, i32
  }
  func.func @transform_6(%arg0: i32, %arg1: i32) -> (i32, i32) {
    %c0_i32 = arith.constant 0 : i32
    %c0_i32_0 = arith.constant 0 : i32
    %c0_i32_1 = arith.constant 0 : i32
    return %c0_i32, %c0_i32_0 : i32, i32
  }
  func.func @transform_7(%arg0: i32, %arg1: i32) -> (i32, i32) {
    %c0_i32 = arith.constant 0 : i32
    %c0_i32_0 = arith.constant 0 : i32
    %c0_i32_1 = arith.constant 0 : i32
    return %c0_i32, %c0_i32_0 : i32, i32
  }
  func.func @transform_8(%arg0: i32, %arg1: i32) -> (i32, i32) {
    %c0_i32 = arith.constant 0 : i32
    %c0_i32_0 = arith.constant 0 : i32
    %c0_i32_1 = arith.constant 0 : i32
    return %c0_i32, %c0_i32_0 : i32, i32
  }
  func.func @transform_9(%arg0: i32, %arg1: i32) -> (i32, i32, i32, i32) {
    %c0_i32 = arith.constant 0 : i32
    %c0_i32_0 = arith.constant 0 : i32
    %c0_i32_1 = arith.constant 0 : i32
    return %arg0, %arg1, %c0_i32, %c0_i32_0 : i32, i32, i32, i32
  }
}

</mosaic_0001>

<llo_original>
// kernel: tpu_custom_call.1
$region0: #{tpu_custom_call.1}
  #allocation0 [shape = 'u32[]', space=smem, size = 0x4, offset = 0x4, fixed_abs, tag = 'smem constant byte address 0x4 - core index']
  #allocation1 [shape = 'u32[144,128]{1,0:T(1,128)}', space=vmem, size = 0x12000, scoped, tag = 'internal scratch']
  #allocation2 [shape = 'f32[14,30,16]{2,1,0:T(8,128)}', space=vmem, size = 0x38000, scoped, tag = 'scratch operand']
  %s0 = inlined_call_operand.vmem [shape: f32[2,24,24,16], index: 0, kind: input, shape index: {}]
  %s1 = inlined_call_operand.vmem [shape: f32[2,24,24,16], index: 1, kind: input, shape index: {}]
  %s2 = inlined_call_operand.vmem [shape: f32[2,24,24,16], index: 2, kind: input, shape index: {}]
  %s3 = inlined_call_operand.vmem [shape: f32[7,7,16], index: 3, kind: input, shape index: {}]
  %s4 = inlined_call_operand.vmem [shape: f32[1,16], index: 4, kind: input, shape index: {}]
  %s5 = inlined_call_operand.vmem [shape: f32[16,32], index: 5, kind: input, shape index: {}]
  %s6 = inlined_call_operand.vmem [shape: f32[1,32], index: 6, kind: input, shape index: {}]
  %s7 = inlined_call_operand.vmem [shape: f32[32,16], index: 7, kind: input, shape index: {}]
  %s8 = inlined_call_operand.vmem [shape: f32[1,16], index: 8, kind: input, shape index: {}]
  %s9 = inlined_call_operand.vmem [shape: f32[2,24,24,16], index: 9, kind: output, shape index: {}]
  %s10 = sld [smem:[#allocation0]]
  $region89: #{tpu_custom_call.1} parent=0
    _
  %s12 = ssub.s32 1, %s10
  %s13 = scalar_select 0, %s12, %s10
  loop: start=0, step=1, limit=8
  $region2: #{tpu_custom_call.1} parent=0 // loop_pre_header
    _
  $region3: #{tpu_custom_call.1} parent=0 // loop_header
    %s15 = sphi 0, %s19
    %p16 = scmp.ge.s32.totalorder %s15, 8
    %s22 = sphi 0, %s34
    %s23 = sphi 0, %s30
    %s24 = sphi 0, %s22
    %s25 = sphi 0, %s23
    %s26 = sphi 0, %s24
    %s27 = sphi 0, %s25
    %s39 = sphi 0, %s41
    %s42 = sphi 0, %s39
    %s43 = sphi 0, %s42
    %s59 = sphi 0, %s43
    %s75 = sphi 0, %s77
    %s78 = sphi 0, %s75
    %s79 = sphi 0, %s78
    %s95 = sphi 0, %s79
    %s111 = sphi 0, %s113
    %s114 = sphi 0, %s111
    %s115 = sphi 0, %s114
    %s131 = sphi 0, %s115
    %s135 = sphi 0, %s135
    %s137 = sphi 0, %s135
    %s138 = sphi 0, %s137
    %s152 = sphi 0, %s138
    %s156 = sphi 0, %s156
    %s158 = sphi 0, %s156
    %s159 = sphi 0, %s158
    %s173 = sphi 0, %s159
    %s177 = sphi 0, %s177
    %s179 = sphi 0, %s177
    %s180 = sphi 0, %s179
    %s194 = sphi 0, %s180
    %s198 = sphi 0, %s198
    %s200 = sphi 0, %s198
    %s201 = sphi 0, %s200
    %s215 = sphi 0, %s201
    %s219 = sphi 0, %s219
    %s221 = sphi 0, %s219
    %s222 = sphi 0, %s221
    %s236 = sphi 0, %s222
    %s240 = sphi 0, %s240
    %s242 = sphi 0, %s240
    %s243 = sphi 0, %s242
    %s257 = sphi 0, %s243
    %s265 = sphi 0, %s267
    %s268 = sphi 0, %s265
    %s269 = sphi 0, %s268
    %s285 = sphi 0, %s269
  $region4: #{tpu_custom_call.1} parent=0 // loop_header_branch
    %18 = sbr.rel (%p16) target = $region8
  $region5: #{tpu_custom_call.1} parent=0 // loop_body
    %s20 = ssub.s32 %s15, 1
    %s21 = ssub.s32 %s15, 2
    %s28 = sadd.s32 1, %s23
    %p29 = scmp.ge.s32.totalorder %s28, 3
    %s30 = scalar_select %p29, 0, %s28
    %s31 = sadd.s32 1, %s22
    %s32 = scalar_select %p29, %s31, %s22
    %p33 = scmp.ge.s32.totalorder %s32, 2
    %s34 = scalar_select %p33, 0, %s32
    %s35 = ssub.s32 %s22, %s34
    %s36 = ssub.s32 %s23, %s30
    %s37 = sor.u32 %s35, %s36
    %p38 = scmp.eq.s32.totalorder %s37, 0
    %s40 = sadd.s32 %s39, 1
    %s41 = scalar_select %p38, %s39, %s40
    %p44 = pneg %p38
    %p45 = scmp.eq.s32.totalorder %s15, 5
    %p46 = por %p44, %p45
    %p47 = scmp.ne.s32.totalorder %s39, %s42
    %p48 = scmp.eq.s32.totalorder %s15, 0
    %p49 = por %p47, %p48
    %p50 = scmp.ne.s32.totalorder %s39, %s42
    %p51 = scmp.eq.s32.totalorder %s20, 5
    %p52 = por %p50, %p51
    %p53 = scmp.ne.s32.totalorder %s42, %s43
    %p54 = scmp.eq.s32.totalorder %s20, 0
    %p55 = por %p53, %p54
    %p56 = scmp.ne.s32.totalorder %s42, %s43
    %p57 = scmp.eq.s32.totalorder %s21, 5
    %p58 = por %p56, %p57
    %p60 = scmp.ne.s32.totalorder %s43, %s59
    %p61 = scmp.eq.s32.totalorder %s21, 0
    %p62 = por %p60, %p61
    %s63 = smul.u32 %s23, 2
    %s64 = ssub.s32 %s63, 1
    %p65 = scmp.gt.s32.totalorder %s64, 0
    %s66 = scalar_select %p65, %s64, 0
    %s67 = smul.u32 %s30, 2
    %s68 = ssub.s32 %s67, 1
    %p69 = scmp.gt.s32.totalorder %s68, 0
    %s70 = scalar_select %p69, %s68, 0
    %s71 = ssub.s32 %s22, %s34
    %s72 = ssub.s32 %s66, %s70
    %s73 = sor.u32 %s71, %s72
    %p74 = scmp.eq.s32.totalorder %s73, 0
    %s76 = sadd.s32 %s75, 1
    %s77 = scalar_select %p74, %s75, %s76
    %p80 = pneg %p74
    %p81 = scmp.eq.s32.totalorder %s15, 5
    %p82 = por %p80, %p81
    %p83 = scmp.ne.s32.totalorder %s75, %s78
    %p84 = scmp.eq.s32.totalorder %s15, 0
    %p85 = por %p83, %p84
    %p86 = scmp.ne.s32.totalorder %s75, %s78
    %p87 = scmp.eq.s32.totalorder %s20, 5
    %p88 = por %p86, %p87
    %p89 = scmp.ne.s32.totalorder %s78, %s79
    %p90 = scmp.eq.s32.totalorder %s20, 0
    %p91 = por %p89, %p90
    %p92 = scmp.ne.s32.totalorder %s78, %s79
    %p93 = scmp.eq.s32.totalorder %s21, 5
    %p94 = por %p92, %p93
    %p96 = scmp.ne.s32.totalorder %s79, %s95
    %p97 = scmp.eq.s32.totalorder %s21, 0
    %p98 = por %p96, %p97
    %s99 = sadd.s32 %s23, 1
    %s100 = smul.u32 %s99, 2
    %p101 = scmp.lt.s32.totalorder %s100, 5
    %s102 = scalar_select %p101, %s100, 5
    %s103 = sadd.s32 %s30, 1
    %s104 = smul.u32 %s103, 2
    %p105 = scmp.lt.s32.totalorder %s104, 5
    %s106 = scalar_select %p105, %s104, 5
    %s107 = ssub.s32 %s22, %s34
    %s108 = ssub.s32 %s102, %s106
    %s109 = sor.u32 %s107, %s108
    %p110 = scmp.eq.s32.totalorder %s109, 0
    %s112 = sadd.s32 %s111, 1
    %s113 = scalar_select %p110, %s111, %s112
    %p116 = pneg %p110
    %p117 = scmp.eq.s32.totalorder %s15, 5
    %p118 = por %p116, %p117
    %p119 = scmp.ne.s32.totalorder %s111, %s114
    %p120 = scmp.eq.s32.totalorder %s15, 0
    %p121 = por %p119, %p120
    %p122 = scmp.ne.s32.totalorder %s111, %s114
    %p123 = scmp.eq.s32.totalorder %s20, 5
    %p124 = por %p122, %p123
    %p125 = scmp.ne.s32.totalorder %s114, %s115
    %p126 = scmp.eq.s32.totalorder %s20, 0
    %p127 = por %p125, %p126
    %p128 = scmp.ne.s32.totalorder %s114, %s115
    %p129 = scmp.eq.s32.totalorder %s21, 5
    %p130 = por %p128, %p129
    %p132 = scmp.ne.s32.totalorder %s115, %s131
    %p133 = scmp.eq.s32.totalorder %s21, 0
    %p134 = por %p132, %p133
    %s136 = sadd.s32 %s135, 1
    %p139 = scmp.eq.s32.totalorder %s15, 5
    %p140 = scmp.ne.s32.totalorder %s135, %s137
    %p141 = scmp.eq.s32.totalorder %s15, 0
    %p142 = por %p140, %p141
    %p143 = scmp.ne.s32.totalorder %s135, %s137
    %p144 = scmp.eq.s32.totalorder %s20, 5
    %p145 = por %p143, %p144
    %p146 = scmp.ne.s32.totalorder %s137, %s138
    %p147 = scmp.eq.s32.totalorder %s20, 0
    %p148 = por %p146, %p147
    %p149 = scmp.ne.s32.totalorder %s137, %s138
    %p150 = scmp.eq.s32.totalorder %s21, 5
    %p151 = por %p149, %p150
    %p153 = scmp.ne.s32.totalorder %s138, %s152
    %p154 = scmp.eq.s32.totalorder %s21, 0
    %p155 = por %p153, %p154
    %s157 = sadd.s32 %s156, 1
    %p160 = scmp.eq.s32.totalorder %s15, 5
    %p161 = scmp.ne.s32.totalorder %s156, %s158
    %p162 = scmp.eq.s32.totalorder %s15, 0
    %p163 = por %p161, %p162
    %p164 = scmp.ne.s32.totalorder %s156, %s158
    %p165 = scmp.eq.s32.totalorder %s20, 5
    %p166 = por %p164, %p165
    %p167 = scmp.ne.s32.totalorder %s158, %s159
    %p168 = scmp.eq.s32.totalorder %s20, 0
    %p169 = por %p167, %p168
    %p170 = scmp.ne.s32.totalorder %s158, %s159
    %p171 = scmp.eq.s32.totalorder %s21, 5
    %p172 = por %p170, %p171
    %p174 = scmp.ne.s32.totalorder %s159, %s173
    %p175 = scmp.eq.s32.totalorder %s21, 0
    %p176 = por %p174, %p175
    %s178 = sadd.s32 %s177, 1
    %p181 = scmp.eq.s32.totalorder %s15, 5
    %p182 = scmp.ne.s32.totalorder %s177, %s179
    %p183 = scmp.eq.s32.totalorder %s15, 0
    %p184 = por %p182, %p183
    %p185 = scmp.ne.s32.totalorder %s177, %s179
    %p186 = scmp.eq.s32.totalorder %s20, 5
    %p187 = por %p185, %p186
    %p188 = scmp.ne.s32.totalorder %s179, %s180
    %p189 = scmp.eq.s32.totalorder %s20, 0
    %p190 = por %p188, %p189
    %p191 = scmp.ne.s32.totalorder %s179, %s180
    %p192 = scmp.eq.s32.totalorder %s21, 5
    %p193 = por %p191, %p192
    %p195 = scmp.ne.s32.totalorder %s180, %s194
    %p196 = scmp.eq.s32.totalorder %s21, 0
    %p197 = por %p195, %p196
    %s199 = sadd.s32 %s198, 1
    %p202 = scmp.eq.s32.totalorder %s15, 5
    %p203 = scmp.ne.s32.totalorder %s198, %s200
    %p204 = scmp.eq.s32.totalorder %s15, 0
    %p205 = por %p203, %p204
    %p206 = scmp.ne.s32.totalorder %s198, %s200
    %p207 = scmp.eq.s32.totalorder %s20, 5
    %p208 = por %p206, %p207
    %p209 = scmp.ne.s32.totalorder %s200, %s201
    %p210 = scmp.eq.s32.totalorder %s20, 0
    %p211 = por %p209, %p210
    %p212 = scmp.ne.s32.totalorder %s200, %s201
    %p213 = scmp.eq.s32.totalorder %s21, 5
    %p214 = por %p212, %p213
    %p216 = scmp.ne.s32.totalorder %s201, %s215
    %p217 = scmp.eq.s32.totalorder %s21, 0
    %p218 = por %p216, %p217
    %s220 = sadd.s32 %s219, 1
    %p223 = scmp.eq.s32.totalorder %s15, 5
    %p224 = scmp.ne.s32.totalorder %s219, %s221
    %p225 = scmp.eq.s32.totalorder %s15, 0
    %p226 = por %p224, %p225
    %p227 = scmp.ne.s32.totalorder %s219, %s221
    %p228 = scmp.eq.s32.totalorder %s20, 5
    %p229 = por %p227, %p228
    %p230 = scmp.ne.s32.totalorder %s221, %s222
    %p231 = scmp.eq.s32.totalorder %s20, 0
    %p232 = por %p230, %p231
    %p233 = scmp.ne.s32.totalorder %s221, %s222
    %p234 = scmp.eq.s32.totalorder %s21, 5
    %p235 = por %p233, %p234
    %p237 = scmp.ne.s32.totalorder %s222, %s236
    %p238 = scmp.eq.s32.totalorder %s21, 0
    %p239 = por %p237, %p238
    %s241 = sadd.s32 %s240, 1
    %p244 = scmp.eq.s32.totalorder %s15, 5
    %p245 = scmp.ne.s32.totalorder %s240, %s242
    %p246 = scmp.eq.s32.totalorder %s15, 0
    %p247 = por %p245, %p246
    %p248 = scmp.ne.s32.totalorder %s240, %s242
    %p249 = scmp.eq.s32.totalorder %s20, 5
    %p250 = por %p248, %p249
    %p251 = scmp.ne.s32.totalorder %s242, %s243
    %p252 = scmp.eq.s32.totalorder %s20, 0
    %p253 = por %p251, %p252
    %p254 = scmp.ne.s32.totalorder %s242, %s243
    %p255 = scmp.eq.s32.totalorder %s21, 5
    %p256 = por %p254, %p255
    %p258 = scmp.ne.s32.totalorder %s243, %s257
    %p259 = scmp.eq.s32.totalorder %s21, 0
    %p260 = por %p258, %p259
    %s261 = ssub.s32 %s22, %s34
    %s262 = ssub.s32 %s23, %s30
    %s263 = sor.u32 %s261, %s262
    %p264 = scmp.eq.s32.totalorder %s263, 0
    %s266 = sadd.s32 %s265, 1
    %s267 = scalar_select %p264, %s265, %s266
    %p270 = pneg %p264
    %p271 = scmp.eq.s32.totalorder %s15, 5
    %p272 = por %p270, %p271
    %p273 = scmp.ne.s32.totalorder %s265, %s268
    %p274 = scmp.eq.s32.totalorder %s15, 0
    %p275 = por %p273, %p274
    %p276 = scmp.ne.s32.totalorder %s265, %s268
    %p277 = scmp.eq.s32.totalorder %s20, 5
    %p278 = por %p276, %p277
    %p279 = scmp.ne.s32.totalorder %s268, %s269
    %p280 = scmp.eq.s32.totalorder %s20, 0
    %p281 = por %p279, %p280
    %p282 = scmp.ne.s32.totalorder %s268, %s269
    %p283 = scmp.eq.s32.totalorder %s21, 5
    %p284 = por %p282, %p283
    %p286 = scmp.ne.s32.totalorder %s269, %s285
    %p287 = scmp.eq.s32.totalorder %s21, 0
    %p288 = por %p286, %p287
    %p289 = scmp.le.s32.totalorder 1, %s15
    %p290 = scmp.lt.s32.totalorder %s15, 7
    %p291 = pnand %p289, %p290
    %p292 = pneg %p291
    // Predicated region
    $region9: #{tpu_custom_call.1} parent=5 // pred_check
      _
    $region10: #{tpu_custom_call.1} parent=5 // pred_check_branch
      %294 = sbr.rel (%p291) target = $region12
    $region11: #{tpu_custom_call.1} parent=5 // pred_region
      %s295 = ssub.s32 %s15, 1
      // Predicated region
      $region13: #{tpu_custom_call.1} parent=11 // pred_check
        %p296 = pneg %p148
      $region14: #{tpu_custom_call.1} parent=11 // pred_check_branch
        %298 = sbr.rel (%p296) target = $region16
      $region15: #{tpu_custom_call.1} parent=11 // pred_region
        _
      $region16: #{tpu_custom_call.1} parent=11 // pred_fallthru
        _
      // Predicated region
      $region17: #{tpu_custom_call.1} parent=11 // pred_check
        %p299 = pneg %p169
      $region18: #{tpu_custom_call.1} parent=11 // pred_check_branch
        %301 = sbr.rel (%p299) target = $region20
      $region19: #{tpu_custom_call.1} parent=11 // pred_region
        _
      $region20: #{tpu_custom_call.1} parent=11 // pred_fallthru
        _
      // Predicated region
      $region21: #{tpu_custom_call.1} parent=11 // pred_check
        %p302 = pneg %p190
      $region22: #{tpu_custom_call.1} parent=11 // pred_check_branch
        %304 = sbr.rel (%p302) target = $region24
      $region23: #{tpu_custom_call.1} parent=11 // pred_region
        _
      $region24: #{tpu_custom_call.1} parent=11 // pred_fallthru
        _
      // Predicated region
      $region25: #{tpu_custom_call.1} parent=11 // pred_check
        %p305 = pneg %p211
      $region26: #{tpu_custom_call.1} parent=11 // pred_check_branch
        %307 = sbr.rel (%p305) target = $region28
      $region27: #{tpu_custom_call.1} parent=11 // pred_region
        _
      $region28: #{tpu_custom_call.1} parent=11 // pred_fallthru
        _
      // Predicated region
      $region29: #{tpu_custom_call.1} parent=11 // pred_check
        %p308 = pneg %p232
      $region30: #{tpu_custom_call.1} parent=11 // pred_check_branch
        %310 = sbr.rel (%p308) target = $region32
      $region31: #{tpu_custom_call.1} parent=11 // pred_region
        _
      $region32: #{tpu_custom_call.1} parent=11 // pred_fallthru
        _
      // Predicated region
      $region33: #{tpu_custom_call.1} parent=11 // pred_check
        %p311 = pneg %p253
      $region34: #{tpu_custom_call.1} parent=11 // pred_check_branch
        %313 = sbr.rel (%p311) target = $region36
      $region35: #{tpu_custom_call.1} parent=11 // pred_region
        _
      $region36: #{tpu_custom_call.1} parent=11 // pred_fallthru
        _
    $region12: #{tpu_custom_call.1} parent=5 // pred_fallthru
      _
    %p314 = scmp.lt.s32.totalorder %s15, 6
    // Predicated region
    $region37: #{tpu_custom_call.1} parent=5 // pred_check
      %p315 = pneg %p314
    $region38: #{tpu_custom_call.1} parent=5 // pred_check_branch
      %317 = sbr.rel (%p315) target = $region40
    $region39: #{tpu_custom_call.1} parent=5 // pred_region
      // Predicated region
      $region41: #{tpu_custom_call.1} parent=39 // pred_check
        %p318 = pneg %p49
      $region42: #{tpu_custom_call.1} parent=39 // pred_check_branch
        %320 = sbr.rel (%p318) target = $region44
      $region43: #{tpu_custom_call.1} parent=39 // pred_region
        %s321 = smul.u32 8, %s23
        %p322 = scmp.lt.s32.totalorder %s22, 1
        %s323 = scalar_select %p322, %s22, 1
        %p324 = scmp.lt.s32.totalorder %s321, 23
        %s325 = scalar_select %p324, %s321, 23
        %s326 = smul.addr %s325, 3
        %s327 = smul.addr %s323, 72
        %s328 = sadd.s32 %s326, %s327
        %s329 = smul.addr %s328, 8
        %s330 = scalar_lea.vmem %s0, %s329
        %s331 = smul.u32 8, %s23
      $region44: #{tpu_custom_call.1} parent=39 // pred_fallthru
        _
      // Predicated region
      $region45: #{tpu_custom_call.1} parent=39 // pred_check
        %p332 = pneg %p85
      $region46: #{tpu_custom_call.1} parent=39 // pred_check_branch
        %334 = sbr.rel (%p332) target = $region48
      $region47: #{tpu_custom_call.1} parent=39 // pred_region
        %s335 = smul.u32 %s23, 2
        %s336 = ssub.s32 %s335, 1
        %p337 = scmp.gt.s32.totalorder %s336, 0
        %s338 = scalar_select %p337, %s336, 0
        %s339 = smul.u32 4, %s338
        %p340 = scmp.lt.s32.totalorder %s22, 1
        %s341 = scalar_select %p340, %s22, 1
        %p342 = scmp.lt.s32.totalorder %s339, 23
        %s343 = scalar_select %p342, %s339, 23
        %s344 = smul.addr %s343, 3
        %s345 = smul.addr %s341, 72
        %s346 = sadd.s32 %s344, %s345
        %s347 = smul.addr %s346, 8
        %s348 = scalar_lea.vmem %s1, %s347
        %s349 = smul.u32 %s23, 2
        %s350 = ssub.s32 %s349, 1
        %p351 = scmp.gt.s32.totalorder %s350, 0
        %s352 = scalar_select %p351, %s350, 0
        %s353 = smul.u32 4, %s352
      $region48: #{tpu_custom_call.1} parent=39 // pred_fallthru
        _
      // Predicated region
      $region49: #{tpu_custom_call.1} parent=39 // pred_check
        %p354 = pneg %p121
      $region50: #{tpu_custom_call.1} parent=39 // pred_check_branch
        %356 = sbr.rel (%p354) target = $region52
      $region51: #{tpu_custom_call.1} parent=39 // pred_region
        %s357 = sadd.s32 %s23, 1
        %s358 = smul.u32 %s357, 2
        %p359 = scmp.lt.s32.totalorder %s358, 5
        %s360 = scalar_select %p359, %s358, 5
        %s361 = smul.u32 4, %s360
        %p362 = scmp.lt.s32.totalorder %s22, 1
        %s363 = scalar_select %p362, %s22, 1
        %p364 = scmp.lt.s32.totalorder %s361, 23
        %s365 = scalar_select %p364, %s361, 23
        %s366 = smul.addr %s365, 3
        %s367 = smul.addr %s363, 72
        %s368 = sadd.s32 %s366, %s367
        %s369 = smul.addr %s368, 8
        %s370 = scalar_lea.vmem %s2, %s369
        %s371 = sadd.s32 %s23, 1
        %s372 = smul.u32 %s371, 2
        %p373 = scmp.lt.s32.totalorder %s372, 5
        %s374 = scalar_select %p373, %s372, 5
        %s375 = smul.u32 4, %s374
      $region52: #{tpu_custom_call.1} parent=39 // pred_fallthru
        _
    $region40: #{tpu_custom_call.1} parent=5 // pred_fallthru
      _
    %p376 = scmp.le.s32.totalorder 1, %s15
    %p377 = scmp.lt.s32.totalorder %s15, 7
    %p378 = pnand %p376, %p377
    %p379 = pneg %p378
    // Predicated region
    $region53: #{tpu_custom_call.1} parent=5 // pred_check
      _
    $region54: #{tpu_custom_call.1} parent=5 // pred_check_branch
      %381 = sbr.rel (%p378) target = $region56
    $region55: #{tpu_custom_call.1} parent=5 // pred_region
      %s382 = ssub.s32 %s15, 1
      %s383 = smul.u32 8, %s25
      %p384 = scmp.lt.s32.totalorder %s24, 1
      %s385 = scalar_select %p384, %s24, 1
      %p386 = scmp.lt.s32.totalorder %s383, 23
      %s387 = scalar_select %p386, %s383, 23
      %s388 = smul.addr %s387, 3
      %s389 = smul.addr %s385, 72
      %s390 = sadd.s32 %s388, %s389
      %s391 = smul.addr %s390, 8
      %s392 = scalar_lea.vmem %s0, %s391
      %p393 = pneg %p55
      %p394 = pneg %p52
      %s395 = smul.u32 %s25, 2
      %s396 = ssub.s32 %s395, 1
      %p397 = scmp.gt.s32.totalorder %s396, 0
      %s398 = scalar_select %p397, %s396, 0
      %s399 = smul.u32 4, %s398
      %p400 = scmp.lt.s32.totalorder %s24, 1
      %s401 = scalar_select %p400, %s24, 1
      %p402 = scmp.lt.s32.totalorder %s399, 23
      %s403 = scalar_select %p402, %s399, 23
      %s404 = smul.addr %s403, 3
      %s405 = smul.addr %s401, 72
      %s406 = sadd.s32 %s404, %s405
      %s407 = smul.addr %s406, 8
      %s408 = scalar_lea.vmem %s1, %s407
      %p409 = pneg %p91
      %p410 = pneg %p88
      %s411 = sadd.s32 %s25, 1
      %s412 = smul.u32 %s411, 2
      %p413 = scmp.lt.s32.totalorder %s412, 5
      %s414 = scalar_select %p413, %s412, 5
      %s415 = smul.u32 4, %s414
      %p416 = scmp.lt.s32.totalorder %s24, 1
      %s417 = scalar_select %p416, %s24, 1
      %p418 = scmp.lt.s32.totalorder %s415, 23
      %s419 = scalar_select %p418, %s415, 23
      %s420 = smul.addr %s419, 3
      %s421 = smul.addr %s417, 72
      %s422 = sadd.s32 %s420, %s421
      %s423 = smul.addr %s422, 8
      %s424 = scalar_lea.vmem %s2, %s423
      %p425 = pneg %p127
      %p426 = pneg %p124
      %p427 = pneg %p148
      %p428 = pneg %p145
      %p429 = pneg %p169
      %p430 = pneg %p166
      %p431 = pneg %p190
      %p432 = pneg %p187
      %p433 = pneg %p211
      %p434 = pneg %p208
      %p435 = pneg %p232
      %p436 = pneg %p229
      %p437 = pneg %p253
      %p438 = pneg %p250
      %p439 = pneg %p281
      %p440 = pneg %p278
      %s441 = smul.u32 8, %s25
      %p442 = scmp.lt.s32.totalorder %s24, 1
      %s443 = scalar_select %p442, %s24, 1
      %p444 = scmp.lt.s32.totalorder %s441, 23
      %s445 = scalar_select %p444, %s441, 23
      %s446 = smul.addr %s445, 3
      %s447 = smul.addr %s443, 72
      %s448 = sadd.s32 %s446, %s447
      %s449 = smul.addr %s448, 8
      %s450 = scalar_lea.vmem %s9, %s449
      %s451 = smul.u32 8, %s25
      %p452 = scmp.lt.s32.totalorder %s24, 1
      %s453 = scalar_select %p452, %s24, 1
      %p454 = scmp.lt.s32.totalorder %s451, 23
      %s455 = scalar_select %p454, %s451, 23
      %s456 = smul.addr %s455, 3
      %s457 = smul.addr %s453, 72
      %s458 = sadd.s32 %s456, %s457
      %s459 = smul.addr %s458, 8
      %s460 = scalar_lea.vmem %s0, %s459
      %s461 = smul.u32 8, %s25
      %s462 = smul.u32 %s25, 2
      %s463 = ssub.s32 %s462, 1
      %p464 = scmp.gt.s32.totalorder %s463, 0
      %s465 = scalar_select %p464, %s463, 0
      %s466 = smul.u32 4, %s465
      %p467 = scmp.lt.s32.totalorder %s24, 1
      %s468 = scalar_select %p467, %s24, 1
      %p469 = scmp.lt.s32.totalorder %s466, 23
      %s470 = scalar_select %p469, %s466, 23
      %s471 = smul.addr %s470, 3
      %s472 = smul.addr %s468, 72
      %s473 = sadd.s32 %s471, %s472
      %s474 = smul.addr %s473, 8
      %s475 = scalar_lea.vmem %s1, %s474
      %s476 = smul.u32 %s25, 2
      %s477 = ssub.s32 %s476, 1
      %p478 = scmp.gt.s32.totalorder %s477, 0
      %s479 = scalar_select %p478, %s477, 0
      %s480 = smul.u32 4, %s479
      %s481 = sadd.s32 %s25, 1
      %s482 = smul.u32 %s481, 2
      %p483 = scmp.lt.s32.totalorder %s482, 5
      %s484 = scalar_select %p483, %s482, 5
      %s485 = smul.u32 4, %s484
      %p486 = scmp.lt.s32.totalorder %s24, 1
      %s487 = scalar_select %p486, %s24, 1
      %p488 = scmp.lt.s32.totalorder %s485, 23
      %s489 = scalar_select %p488, %s485, 23
      %s490 = smul.addr %s489, 3
      %s491 = smul.addr %s487, 72
      %s492 = sadd.s32 %s490, %s491
      %s493 = smul.addr %s492, 8
      %s494 = scalar_lea.vmem %s2, %s493
      %s495 = sadd.s32 %s25, 1
      %s496 = smul.u32 %s495, 2
      %p497 = scmp.lt.s32.totalorder %s496, 5
      %s498 = scalar_select %p497, %s496, 5
      %s499 = smul.u32 4, %s498
      %s500 = smul.u32 8, %s25
      %p501 = scmp.lt.s32.totalorder %s24, 1
      %s502 = scalar_select %p501, %s24, 1
      %p503 = scmp.lt.s32.totalorder %s500, 23
      %s504 = scalar_select %p503, %s500, 23
      %s505 = smul.addr %s504, 3
      %s506 = smul.addr %s502, 72
      %s507 = sadd.s32 %s505, %s506
      %s508 = smul.addr %s507, 8
      %s509 = scalar_lea.vmem %s9, %s508
      %s510 = smul.u32 8, %s25
      %p511 = scmp.eq.s32.totalorder %s25, 0
      // Predicated region
      $region57: #{tpu_custom_call.1} parent=55 // pred_check
        %p512 = pneg %p511
      $region58: #{tpu_custom_call.1} parent=55 // pred_check_branch
        %514 = sbr.rel (%p512) target = $region60
      $region59: #{tpu_custom_call.1} parent=55 // pred_region
        %vm515 = vcmask 124928
        %516 = vst.msk [vmem:[#allocation2] sm:$0x7] %vm515, 0.0
        %517 = vst.msk [vmem:[#allocation2 + $0x20] sm:$0x7] %vm515, 0.0
        %518 = vst.msk [vmem:[#allocation2 + $0x40] sm:$0x7] %vm515, 0.0
        %519 = vst.msk [vmem:[#allocation2 + $0x60] sm:$0x7] %vm515, 0.0
        %520 = vst.msk [vmem:[#allocation2 + $0x80] sm:$0x7] %vm515, 0.0
        %521 = vst.msk [vmem:[#allocation2 + $0xa0] sm:$0x7] %vm515, 0.0
        %522 = vst.msk [vmem:[#allocation2 + $0xc0] sm:$0x7] %vm515, 0.0
        %523 = vst.msk [vmem:[#allocation2 + $0xe0] sm:$0x7] %vm515, 0.0
        %524 = vst.msk [vmem:[#allocation2 + $0x100] sm:$0x7] %vm515, 0.0
        %525 = vst.msk [vmem:[#allocation2 + $0x120] sm:$0x7] %vm515, 0.0
        %526 = vst.msk [vmem:[#allocation2 + $0x140] sm:$0x7] %vm515, 0.0
        %527 = vst.msk [vmem:[#allocation2 + $0x160] sm:$0x7] %vm515, 0.0
        %528 = vst.msk [vmem:[#allocation2 + $0x180] sm:$0x7] %vm515, 0.0
        %529 = vst.msk [vmem:[#allocation2 + $0x1a0] sm:$0x7] %vm515, 0.0
        %530 = vst.msk [vmem:[#allocation2 + $0x1b] sm:$0x7] %vm515, 0.0
        %531 = vst.msk [vmem:[#allocation2 + $0x3b] sm:$0x7] %vm515, 0.0
        %532 = vst.msk [vmem:[#allocation2 + $0x5b] sm:$0x7] %vm515, 0.0
        %533 = vst.msk [vmem:[#allocation2 + $0x7b] sm:$0x7] %vm515, 0.0
        %534 = vst.msk [vmem:[#allocation2 + $0x9b] sm:$0x7] %vm515, 0.0
        %535 = vst.msk [vmem:[#allocation2 + $0xbb] sm:$0x7] %vm515, 0.0
        %536 = vst.msk [vmem:[#allocation2 + $0xdb] sm:$0x7] %vm515, 0.0
        %537 = vst.msk [vmem:[#allocation2 + $0xfb] sm:$0x7] %vm515, 0.0
        %538 = vst.msk [vmem:[#allocation2 + $0x11b] sm:$0x7] %vm515, 0.0
        %539 = vst.msk [vmem:[#allocation2 + $0x13b] sm:$0x7] %vm515, 0.0
        %540 = vst.msk [vmem:[#allocation2 + $0x15b] sm:$0x7] %vm515, 0.0
        %541 = vst.msk [vmem:[#allocation2 + $0x17b] sm:$0x7] %vm515, 0.0
        %542 = vst.msk [vmem:[#allocation2 + $0x19b] sm:$0x7] %vm515, 0.0
        %543 = vst.msk [vmem:[#allocation2 + $0x1bb] sm:$0x7] %vm515, 0.0
      $region60: #{tpu_custom_call.1} parent=55 // pred_fallthru
        _
      %v544 = vld [vmem:[%s460] sm:$0xff]
      %v545 = vld [vmem:[%s460 + $0x8] sm:$0xff]
      %v546 = vld [vmem:[%s460 + $0x10] sm:$0xff]
      %v547 = vld [vmem:[%s460 + $0x18] sm:$0xff]
      %v548 = vld [vmem:[%s460 + $0x20] sm:$0xff]
      %v549 = vld [vmem:[%s460 + $0x28] sm:$0xff]
      %v550 = vld [vmem:[%s460 + $0x30] sm:$0xff]
      %v551 = vld [vmem:[%s460 + $0x38] sm:$0xff]
      %v552 = vld [vmem:[%s460 + $0x40] sm:$0xff]
      %v553 = vld [vmem:[%s460 + $0x48] sm:$0xff]
      %v554 = vld [vmem:[%s460 + $0x50] sm:$0xff]
      %v555 = vld [vmem:[%s460 + $0x58] sm:$0xff]
      %v556 = vld [vmem:[%s460 + $0x60] sm:$0xff]
      %v557 = vld [vmem:[%s460 + $0x68] sm:$0xff]
      %v558 = vld [vmem:[%s460 + $0x70] sm:$0xff]
      %v559 = vld [vmem:[%s460 + $0x78] sm:$0xff]
      %v560 = vld [vmem:[%s460 + $0x80] sm:$0xff]
      %v561 = vld [vmem:[%s460 + $0x88] sm:$0xff]
      %v562 = vld [vmem:[%s460 + $0x90] sm:$0xff]
      %v563 = vld [vmem:[%s460 + $0x98] sm:$0xff]
      %v564 = vld [vmem:[%s460 + $0xa0] sm:$0xff]
      %v565 = vld [vmem:[%s460 + $0xa8] sm:$0xff]
      %v566 = vld [vmem:[%s460 + $0xb0] sm:$0xff]
      %v567 = vld [vmem:[%s460 + $0xb8] sm:$0xff]
      %s568 = scalar_lea.vmem [#allocation2], 96
      %vm569 = vcmask 130048
      %570 = vst.msk [vmem:[%s568 + $0x3] sm:$0xff] %vm569, %v544
      %571 = vst.msk [vmem:[%s568 + $0xb] sm:$0xff] %vm569, %v545
      %572 = vst.msk [vmem:[%s568 + $0x13] sm:$0xff] %vm569, %v546
      %573 = vst.msk [vmem:[%s568 + $0x23] sm:$0xff] %vm569, %v547
      %574 = vst.msk [vmem:[%s568 + $0x2b] sm:$0xff] %vm569, %v548
      %575 = vst.msk [vmem:[%s568 + $0x33] sm:$0xff] %vm569, %v549
      %576 = vst.msk [vmem:[%s568 + $0x43] sm:$0xff] %vm569, %v550
      %577 = vst.msk [vmem:[%s568 + $0x4b] sm:$0xff] %vm569, %v551
      %578 = vst.msk [vmem:[%s568 + $0x53] sm:$0xff] %vm569, %v552
      %579 = vst.msk [vmem:[%s568 + $0x63] sm:$0xff] %vm569, %v553
      %580 = vst.msk [vmem:[%s568 + $0x6b] sm:$0xff] %vm569, %v554
      %581 = vst.msk [vmem:[%s568 + $0x73] sm:$0xff] %vm569, %v555
      %582 = vst.msk [vmem:[%s568 + $0x83] sm:$0xff] %vm569, %v556
      %583 = vst.msk [vmem:[%s568 + $0x8b] sm:$0xff] %vm569, %v557
      %584 = vst.msk [vmem:[%s568 + $0x93] sm:$0xff] %vm569, %v558
      %585 = vst.msk [vmem:[%s568 + $0xa3] sm:$0xff] %vm569, %v559
      %586 = vst.msk [vmem:[%s568 + $0xab] sm:$0xff] %vm569, %v560
      %587 = vst.msk [vmem:[%s568 + $0xb3] sm:$0xff] %vm569, %v561
      %588 = vst.msk [vmem:[%s568 + $0xc3] sm:$0xff] %vm569, %v562
      %589 = vst.msk [vmem:[%s568 + $0xcb] sm:$0xff] %vm569, %v563
      %590 = vst.msk [vmem:[%s568 + $0xd3] sm:$0xff] %vm569, %v564
      %591 = vst.msk [vmem:[%s568 + $0xe3] sm:$0xff] %vm569, %v565
      %592 = vst.msk [vmem:[%s568 + $0xeb] sm:$0xff] %vm569, %v566
      %593 = vst.msk [vmem:[%s568 + $0xf3] sm:$0xff] %vm569, %v567
      // Predicated region
      $region61: #{tpu_custom_call.1} parent=55 // pred_check
        %p594 = pneg %p511
      $region62: #{tpu_custom_call.1} parent=55 // pred_check_branch
        %596 = sbr.rel (%p594) target = $region64
      $region63: #{tpu_custom_call.1} parent=55 // pred_region
        %597 = vst.msk [vmem:[#allocation2 + $0x3] sm:$0xff] %vm569, 0.0
        %598 = vst.msk [vmem:[#allocation2 + $0xb] sm:$0xff] %vm569, 0.0
        %599 = vst.msk [vmem:[#allocation2 + $0x13] sm:$0xff] %vm569, 0.0
        %600 = vst.msk [vmem:[#allocation2 + $0x23] sm:$0xff] %vm569, 0.0
        %601 = vst.msk [vmem:[#allocation2 + $0x2b] sm:$0xff] %vm569, 0.0
        %602 = vst.msk [vmem:[#allocation2 + $0x33] sm:$0xff] %vm569, 0.0
        %603 = vst.msk [vmem:[#allocation2 + $0x43] sm:$0xff] %vm569, 0.0
        %604 = vst.msk [vmem:[#allocation2 + $0x4b] sm:$0xff] %vm569, 0.0
        %605 = vst.msk [vmem:[#allocation2 + $0x53] sm:$0xff] %vm569, 0.0
      $region64: #{tpu_custom_call.1} parent=55 // pred_fallthru
        _
      %p606 = scmp.gt.s32.totalorder %s25, 0
      // Predicated region
      $region65: #{tpu_custom_call.1} parent=55 // pred_check
        %p607 = pneg %p606
      $region66: #{tpu_custom_call.1} parent=55 // pred_check_branch
        %609 = sbr.rel (%p607) target = $region68
      $region67: #{tpu_custom_call.1} parent=55 // pred_region
        %s610 = scalar_lea.vmem %s475, 24
        %v611 = vld [vmem:[%s610] sm:$0xff]
        %v612 = vld [vmem:[%s610 + $0x8] sm:$0xff]
        %v613 = vld [vmem:[%s610 + $0x10] sm:$0xff]
        %v614 = vld [vmem:[%s610 + $0x18] sm:$0xff]
        %v615 = vld [vmem:[%s610 + $0x20] sm:$0xff]
        %v616 = vld [vmem:[%s610 + $0x28] sm:$0xff]
        %v617 = vld [vmem:[%s610 + $0x30] sm:$0xff]
        %v618 = vld [vmem:[%s610 + $0x38] sm:$0xff]
        %v619 = vld [vmem:[%s610 + $0x40] sm:$0xff]
        %620 = vst.msk [vmem:[#allocation2 + $0x3] sm:$0xff] %vm569, %v611
        %621 = vst.msk [vmem:[#allocation2 + $0xb] sm:$0xff] %vm569, %v612
        %622 = vst.msk [vmem:[#allocation2 + $0x13] sm:$0xff] %vm569, %v613
        %623 = vst.msk [vmem:[#allocation2 + $0x23] sm:$0xff] %vm569, %v614
        %624 = vst.msk [vmem:[#allocation2 + $0x2b] sm:$0xff] %vm569, %v615
        %625 = vst.msk [vmem:[#allocation2 + $0x33] sm:$0xff] %vm569, %v616
        %626 = vst.msk [vmem:[#allocation2 + $0x43] sm:$0xff] %vm569, %v617
        %627 = vst.msk [vmem:[#allocation2 + $0x4b] sm:$0xff] %vm569, %v618
        %628 = vst.msk [vmem:[#allocation2 + $0x53] sm:$0xff] %vm569, %v619
      $region68: #{tpu_custom_call.1} parent=55 // pred_fallthru
        _
      %p629 = scmp.eq.s32.totalorder %s25, 2
      // Predicated region
      $region69: #{tpu_custom_call.1} parent=55 // pred_check
        %p630 = pneg %p629
      $region70: #{tpu_custom_call.1} parent=55 // pred_check_branch
        %632 = sbr.rel (%p630) target = $region72
      $region71: #{tpu_custom_call.1} parent=55 // pred_region
        %s633 = scalar_lea.vmem [#allocation2], 352
        %634 = vst.msk [vmem:[%s633 + $0x3] sm:$0xff] %vm569, 0.0
        %635 = vst.msk [vmem:[%s633 + $0xb] sm:$0xff] %vm569, 0.0
        %636 = vst.msk [vmem:[%s633 + $0x13] sm:$0xff] %vm569, 0.0
        %637 = vst.msk [vmem:[%s633 + $0x23] sm:$0xff] %vm569, 0.0
        %638 = vst.msk [vmem:[%s633 + $0x2b] sm:$0xff] %vm569, 0.0
        %639 = vst.msk [vmem:[%s633 + $0x33] sm:$0xff] %vm569, 0.0
        %640 = vst.msk [vmem:[%s633 + $0x43] sm:$0xff] %vm569, 0.0
        %641 = vst.msk [vmem:[%s633 + $0x4b] sm:$0xff] %vm569, 0.0
        %642 = vst.msk [vmem:[%s633 + $0x53] sm:$0xff] %vm569, 0.0
      $region72: #{tpu_custom_call.1} parent=55 // pred_fallthru
        _
      %p643 = scmp.lt.s32.totalorder %s25, 2
      // Predicated region
      $region73: #{tpu_custom_call.1} parent=55 // pred_check
        %p644 = pneg %p643
      $region74: #{tpu_custom_call.1} parent=55 // pred_check_branch
        %646 = sbr.rel (%p644) target = $region76
      $region75: #{tpu_custom_call.1} parent=55 // pred_region
        %v647 = vld [vmem:[%s494] sm:$0xff]
        %v648 = vld [vmem:[%s494 + $0x8] sm:$0xff]
        %v649 = vld [vmem:[%s494 + $0x10] sm:$0xff]
        %v650 = vld [vmem:[%s494 + $0x18] sm:$0xff]
        %v651 = vld [vmem:[%s494 + $0x20] sm:$0xff]
        %v652 = vld [vmem:[%s494 + $0x28] sm:$0xff]
        %v653 = vld [vmem:[%s494 + $0x30] sm:$0xff]
        %v654 = vld [vmem:[%s494 + $0x38] sm:$0xff]
        %v655 = vld [vmem:[%s494 + $0x40] sm:$0xff]
        %s656 = scalar_lea.vmem [#allocation2], 352
        %657 = vst.msk [vmem:[%s656 + $0x3] sm:$0xff] %vm569, %v647
        %658 = vst.msk [vmem:[%s656 + $0xb] sm:$0xff] %vm569, %v648
        %659 = vst.msk [vmem:[%s656 + $0x13] sm:$0xff] %vm569, %v649
        %660 = vst.msk [vmem:[%s656 + $0x23] sm:$0xff] %vm569, %v650
        %661 = vst.msk [vmem:[%s656 + $0x2b] sm:$0xff] %vm569, %v651
        %662 = vst.msk [vmem:[%s656 + $0x33] sm:$0xff] %vm569, %v652
        %663 = vst.msk [vmem:[%s656 + $0x43] sm:$0xff] %vm569, %v653
        %664 = vst.msk [vmem:[%s656 + $0x4b] sm:$0xff] %vm569, %v654
        %665 = vst.msk [vmem:[%s656 + $0x53] sm:$0xff] %vm569, %v655
      $region76: #{tpu_custom_call.1} parent=55 // pred_fallthru
        _
      %v666 = vld [vmem:[#allocation2] sm:$0xff]
      %v667 = vld [vmem:[#allocation2 + $0x8] sm:$0xff]
      %v668 = vld [vmem:[#allocation2 + $0x10] sm:$0xff]
      %v669 = vld [vmem:[#allocation2 + $0x20] sm:$0xff]
      %v670 = vld [vmem:[#allocation2 + $0x28] sm:$0xff]
      %v671 = vld [vmem:[#allocation2 + $0x30] sm:$0xff]
      %v672 = vld [vmem:[#allocation2 + $0x40] sm:$0xff]
      %v673 = vld [vmem:[#allocation2 + $0x48] sm:$0xff]
      %v674 = vld [vmem:[#allocation2 + $0x50] sm:$0xff]
      %v675 = vld [vmem:[#allocation2 + $0x60] sm:$0xff]
      %v676 = vld [vmem:[#allocation2 + $0x68] sm:$0xff]
      %v677 = vld [vmem:[#allocation2 + $0x70] sm:$0xff]
      %v678 = vld [vmem:[#allocation2 + $0x80] sm:$0xff]
      %v679 = vld [vmem:[#allocation2 + $0x88] sm:$0xff]
      %v680 = vld [vmem:[#allocation2 + $0x90] sm:$0xff]
      %v681 = vld [vmem:[#allocation2 + $0xa0] sm:$0xff]
      %v682 = vld [vmem:[#allocation2 + $0xa8] sm:$0xff]
      %v683 = vld [vmem:[#allocation2 + $0xb0] sm:$0xff]
      %v684 = vld [vmem:[#allocation2 + $0xc0] sm:$0xff]
      %v685 = vld [vmem:[#allocation2 + $0xc8] sm:$0xff]
      %v686 = vld [vmem:[#allocation2 + $0xd0] sm:$0xff]
      %v687 = vld [vmem:[#allocation2 + $0xe0] sm:$0xff]
      %v688 = vld [vmem:[#allocation2 + $0xe8] sm:$0xff]
      %v689 = vld [vmem:[#allocation2 + $0xf0] sm:$0xff]
      %v690 = vld [vmem:[#allocation2 + $0x100] sm:$0xff]
      %v691 = vld [vmem:[#allocation2 + $0x108] sm:$0xff]
      %v692 = vld [vmem:[#allocation2 + $0x110] sm:$0xff]
      %v693 = vld [vmem:[#allocation2 + $0x120] sm:$0xff]
      %v694 = vld [vmem:[#allocation2 + $0x128] sm:$0xff]
      %v695 = vld [vmem:[#allocation2 + $0x130] sm:$0xff]
      %v696 = vld [vmem:[%s3] sm:$0x1]
      %v697 = vlaneseq
      %v698 = vshrl.u32 %v697, 7
      %v699 = vsub.s32 0, %v698
      %v700 = vrot.slane %v696, %v699
      %v701 = vmul.f32 %v666, %v700
      %v702 = vmul.f32 %v667, %v700
      %v703 = vmul.f32 %v668, %v700
      %v704 = vmul.f32 %v669, %v700
      %v705 = vmul.f32 %v670, %v700
      %v706 = vmul.f32 %v671, %v700
      %v707 = vmul.f32 %v672, %v700
      %v708 = vmul.f32 %v673, %v700
      %v709 = vmul.f32 %v674, %v700
      %v710 = vmul.f32 %v675, %v700
      %v711 = vmul.f32 %v676, %v700
      %v712 = vmul.f32 %v677, %v700
      %s713 = scalar_lea.vmem %s3, 8
      %v714 = vld [vmem:[%s713] sm:$0x1]
      %v715 = vlaneseq
      %v716 = vshrl.u32 %v715, 7
      %v717 = vsub.s32 0, %v716
      %v718 = vrot.slane %v714, %v717
      %v719 = vmul.f32 %v669, %v718
      %v720 = vmul.f32 %v670, %v718
      %v721 = vmul.f32 %v671, %v718
      %v722 = vmul.f32 %v672, %v718
      %v723 = vmul.f32 %v673, %v718
      %v724 = vmul.f32 %v674, %v718
      %v725 = vmul.f32 %v675, %v718
      %v726 = vmul.f32 %v676, %v718
      %v727 = vmul.f32 %v677, %v718
      %v728 = vmul.f32 %v678, %v718
      %v729 = vmul.f32 %v679, %v718
      %v730 = vmul.f32 %v680, %v718
      %v731 = vadd.f32 %v701, %v719
      %v732 = vadd.f32 %v702, %v720
      %v733 = vadd.f32 %v703, %v721
      %v734 = vadd.f32 %v704, %v722
      %v735 = vadd.f32 %v705, %v723
      %v736 = vadd.f32 %v706, %v724
      %v737 = vadd.f32 %v707, %v725
      %v738 = vadd.f32 %v708, %v726
      %v739 = vadd.f32 %v709, %v727
      %v740 = vadd.f32 %v710, %v728
      %v741 = vadd.f32 %v711, %v729
      %v742 = vadd.f32 %v712, %v730
      %s743 = scalar_lea.vmem %s3, 16
      %v744 = vld [vmem:[%s743] sm:$0x1]
      %v745 = vlaneseq
      %v746 = vshrl.u32 %v745, 7
      %v747 = vsub.s32 0, %v746
      %v748 = vrot.slane %v744, %v747
      %v749 = vmul.f32 %v672, %v748
      %v750 = vmul.f32 %v673, %v748
      %v751 = vmul.f32 %v674, %v748
      %v752 = vmul.f32 %v675, %v748
      %v753 = vmul.f32 %v676, %v748
      %v754 = vmul.f32 %v677, %v748
      %v755 = vmul.f32 %v678, %v748
      %v756 = vmul.f32 %v679, %v748
      %v757 = vmul.f32 %v680, %v748
      %v758 = vmul.f32 %v681, %v748
      %v759 = vmul.f32 %v682, %v748
      %v760 = vmul.f32 %v683, %v748
      %v761 = vadd.f32 %v731, %v749
      %v762 = vadd.f32 %v732, %v750
      %v763 = vadd.f32 %v733, %v751
      %v764 = vadd.f32 %v734, %v752
      %v765 = vadd.f32 %v735, %v753
      %v766 = vadd.f32 %v736, %v754
      %v767 = vadd.f32 %v737, %v755
      %v768 = vadd.f32 %v738, %v756
      %v769 = vadd.f32 %v739, %v757
      %v770 = vadd.f32 %v740, %v758
      %v771 = vadd.f32 %v741, %v759
      %v772 = vadd.f32 %v742, %v760
      %s773 = scalar_lea.vmem %s3, 24
      %v774 = vld [vmem:[%s773] sm:$0x1]
      %v775 = vlaneseq
      %v776 = vshrl.u32 %v775, 7
      %v777 = vsub.s32 0, %v776
      %v778 = vrot.slane %v774, %v777
      %v779 = vmul.f32 %v675, %v778
      %v780 = vmul.f32 %v676, %v778
      %v781 = vmul.f32 %v677, %v778
      %v782 = vmul.f32 %v678, %v778
      %v783 = vmul.f32 %v679, %v778
      %v784 = vmul.f32 %v680, %v778
      %v785 = vmul.f32 %v681, %v778
      %v786 = vmul.f32 %v682, %v778
      %v787 = vmul.f32 %v683, %v778
      %v788 = vmul.f32 %v684, %v778
      %v789 = vmul.f32 %v685, %v778
      %v790 = vmul.f32 %v686, %v778
      %v791 = vadd.f32 %v761, %v779
      %v792 = vadd.f32 %v762, %v780
      %v793 = vadd.f32 %v763, %v781
      %v794 = vadd.f32 %v764, %v782
      %v795 = vadd.f32 %v765, %v783
      %v796 = vadd.f32 %v766, %v784
      %v797 = vadd.f32 %v767, %v785
      %v798 = vadd.f32 %v768, %v786
      %v799 = vadd.f32 %v769, %v787
      %v800 = vadd.f32 %v770, %v788
      %v801 = vadd.f32 %v771, %v789
      %v802 = vadd.f32 %v772, %v790
      %s803 = scalar_lea.vmem %s3, 32
      %v804 = vld [vmem:[%s803] sm:$0x1]
      %v805 = vlaneseq
      %v806 = vshrl.u32 %v805, 7
      %v807 = vsub.s32 0, %v806
      %v808 = vrot.slane %v804, %v807
      %v809 = vmul.f32 %v678, %v808
      %v810 = vmul.f32 %v679, %v808
      %v811 = vmul.f32 %v680, %v808
      %v812 = vmul.f32 %v681, %v808
      %v813 = vmul.f32 %v682, %v808
      %v814 = vmul.f32 %v683, %v808
      %v815 = vmul.f32 %v684, %v808
      %v816 = vmul.f32 %v685, %v808
      %v817 = vmul.f32 %v686, %v808
      %v818 = vmul.f32 %v687, %v808
      %v819 = vmul.f32 %v688, %v808
      %v820 = vmul.f32 %v689, %v808
      %v821 = vadd.f32 %v791, %v809
      %v822 = vadd.f32 %v792, %v810
      %v823 = vadd.f32 %v793, %v811
      %v824 = vadd.f32 %v794, %v812
      %v825 = vadd.f32 %v795, %v813
      %v826 = vadd.f32 %v796, %v814
      %v827 = vadd.f32 %v797, %v815
      %v828 = vadd.f32 %v798, %v816
      %v829 = vadd.f32 %v799, %v817
      %v830 = vadd.f32 %v800, %v818
      %v831 = vadd.f32 %v801, %v819
      %v832 = vadd.f32 %v802, %v820
      %s833 = scalar_lea.vmem %s3, 40
      %v834 = vld [vmem:[%s833] sm:$0x1]
      %v835 = vlaneseq
      %v836 = vshrl.u32 %v835, 7
      %v837 = vsub.s32 0, %v836
      %v838 = vrot.slane %v834, %v837
      %v839 = vmul.f32 %v681, %v838
      %v840 = vmul.f32 %v682, %v838
      %v841 = vmul.f32 %v683, %v838
      %v842 = vmul.f32 %v684, %v838
      %v843 = vmul.f32 %v685, %v838
      %v844 = vmul.f32 %v686, %v838
      %v845 = vmul.f32 %v687, %v838
      %v846 = vmul.f32 %v688, %v838
      %v847 = vmul.f32 %v689, %v838
      %v848 = vmul.f32 %v690, %v838
      %v849 = vmul.f32 %v691, %v838
      %v850 = vmul.f32 %v692, %v838
      %v851 = vadd.f32 %v821, %v839
      %v852 = vadd.f32 %v822, %v840
      %v853 = vadd.f32 %v823, %v841
      %v854 = vadd.f32 %v824, %v842
      %v855 = vadd.f32 %v825, %v843
      %v856 = vadd.f32 %v826, %v844
      %v857 = vadd.f32 %v827, %v845
      %v858 = vadd.f32 %v828, %v846
      %v859 = vadd.f32 %v829, %v847
      %v860 = vadd.f32 %v830, %v848
      %v861 = vadd.f32 %v831, %v849
      %v862 = vadd.f32 %v832, %v850
      %s863 = scalar_lea.vmem %s3, 48
      %v864 = vld [vmem:[%s863] sm:$0x1]
      %v865 = vlaneseq
      %v866 = vshrl.u32 %v865, 7
      %v867 = vsub.s32 0, %v866
      %v868 = vrot.slane %v864, %v867
      %v869 = vmul.f32 %v684, %v868
      %v870 = vmul.f32 %v685, %v868
      %v871 = vmul.f32 %v686, %v868
      %v872 = vmul.f32 %v687, %v868
      %v873 = vmul.f32 %v688, %v868
      %v874 = vmul.f32 %v689, %v868
      %v875 = vmul.f32 %v690, %v868
      %v876 = vmul.f32 %v691, %v868
      %v877 = vmul.f32 %v692, %v868
      %v878 = vmul.f32 %v693, %v868
      %v879 = vmul.f32 %v694, %v868
      %v880 = vmul.f32 %v695, %v868
      %v881 = vadd.f32 %v851, %v869
      %v882 = vadd.f32 %v852, %v870
      %v883 = vadd.f32 %v853, %v871
      %v884 = vadd.f32 %v854, %v872
      %v885 = vadd.f32 %v855, %v873
      %v886 = vadd.f32 %v856, %v874
      %v887 = vadd.f32 %v857, %v875
      %v888 = vadd.f32 %v858, %v876
      %v889 = vadd.f32 %v859, %v877
      %v890 = vadd.f32 %v860, %v878
      %v891 = vadd.f32 %v861, %v879
      %v892 = vadd.f32 %v862, %v880
      %v893 = vld [vmem:[#allocation2 + $0x1] sm:$0xff]
      %v894 = vld [vmem:[#allocation2 + $0x9] sm:$0xff]
      %v895 = vld [vmem:[#allocation2 + $0x11] sm:$0xff]
      %v896 = vld [vmem:[#allocation2 + $0x21] sm:$0xff]
      %v897 = vld [vmem:[#allocation2 + $0x29] sm:$0xff]
      %v898 = vld [vmem:[#allocation2 + $0x31] sm:$0xff]
      %v899 = vld [vmem:[#allocation2 + $0x41] sm:$0xff]
      %v900 = vld [vmem:[#allocation2 + $0x49] sm:$0xff]
      %v901 = vld [vmem:[#allocation2 + $0x51] sm:$0xff]
      %v902 = vld [vmem:[#allocation2 + $0x61] sm:$0xff]
      %v903 = vld [vmem:[#allocation2 + $0x69] sm:$0xff]
      %v904 = vld [vmem:[#allocation2 + $0x71] sm:$0xff]
      %v905 = vld [vmem:[#allocation2 + $0x81] sm:$0xff]
      %v906 = vld [vmem:[#allocation2 + $0x89] sm:$0xff]
      %v907 = vld [vmem:[#allocation2 + $0x91] sm:$0xff]
      %v908 = vld [vmem:[#allocation2 + $0xa1] sm:$0xff]
      %v909 = vld [vmem:[#allocation2 + $0xa9] sm:$0xff]
      %v910 = vld [vmem:[#allocation2 + $0xb1] sm:$0xff]
      %v911 = vld [vmem:[#allocation2 + $0xc1] sm:$0xff]
      %v912 = vld [vmem:[#allocation2 + $0xc9] sm:$0xff]
      %v913 = vld [vmem:[#allocation2 + $0xd1] sm:$0xff]
      %v914 = vld [vmem:[#allocation2 + $0xe1] sm:$0xff]
      %v915 = vld [vmem:[#allocation2 + $0xe9] sm:$0xff]
      %v916 = vld [vmem:[#allocation2 + $0xf1] sm:$0xff]
      %v917 = vld [vmem:[#allocation2 + $0x101] sm:$0xff]
      %v918 = vld [vmem:[#allocation2 + $0x109] sm:$0xff]
      %v919 = vld [vmem:[#allocation2 + $0x111] sm:$0xff]
      %v920 = vld [vmem:[#allocation2 + $0x121] sm:$0xff]
      %v921 = vld [vmem:[#allocation2 + $0x129] sm:$0xff]
      %v922 = vld [vmem:[#allocation2 + $0x131] sm:$0xff]
      %v923 = vld [vmem:[%s3 + $0x1] sm:$0x1]
      %v924 = vlaneseq
      %v925 = vshrl.u32 %v924, 7
      %v926 = vsub.s32 0, %v925
      %v927 = vrot.slane %v923, %v926
      %v928 = vmul.f32 %v893, %v927
      %v929 = vmul.f32 %v894, %v927
      %v930 = vmul.f32 %v895, %v927
      %v931 = vmul.f32 %v896, %v927
      %v932 = vmul.f32 %v897, %v927
      %v933 = vmul.f32 %v898, %v927
      %v934 = vmul.f32 %v899, %v927
      %v935 = vmul.f32 %v900, %v927
      %v936 = vmul.f32 %v901, %v927
      %v937 = vmul.f32 %v902, %v927
      %v938 = vmul.f32 %v903, %v927
      %v939 = vmul.f32 %v904, %v927
      %v940 = vadd.f32 %v881, %v928
      %v941 = vadd.f32 %v882, %v929
      %v942 = vadd.f32 %v883, %v930
      %v943 = vadd.f32 %v884, %v931
      %v944 = vadd.f32 %v885, %v932
      %v945 = vadd.f32 %v886, %v933
      %v946 = vadd.f32 %v887, %v934
      %v947 = vadd.f32 %v888, %v935
      %v948 = vadd.f32 %v889, %v936
      %v949 = vadd.f32 %v890, %v937
      %v950 = vadd.f32 %v891, %v938
      %v951 = vadd.f32 %v892, %v939
      %v952 = vld [vmem:[%s713 + $0x1] sm:$0x1]
      %v953 = vlaneseq
      %v954 = vshrl.u32 %v953, 7
      %v955 = vsub.s32 0, %v954
      %v956 = vrot.slane %v952, %v955
      %v957 = vmul.f32 %v896, %v956
      %v958 = vmul.f32 %v897, %v956
      %v959 = vmul.f32 %v898, %v956
      %v960 = vmul.f32 %v899, %v956
      %v961 = vmul.f32 %v900, %v956
      %v962 = vmul.f32 %v901, %v956
      %v963 = vmul.f32 %v902, %v956
      %v964 = vmul.f32 %v903, %v956
      %v965 = vmul.f32 %v904, %v956
      %v966 = vmul.f32 %v905, %v956
      %v967 = vmul.f32 %v906, %v956
      %v968 = vmul.f32 %v907, %v956
      %v969 = vadd.f32 %v940, %v957
      %v970 = vadd.f32 %v941, %v958
      %v971 = vadd.f32 %v942, %v959
      %v972 = vadd.f32 %v943, %v960
      %v973 = vadd.f32 %v944, %v961
      %v974 = vadd.f32 %v945, %v962
      %v975 = vadd.f32 %v946, %v963
      %v976 = vadd.f32 %v947, %v964
      %v977 = vadd.f32 %v948, %v965
      %v978 = vadd.f32 %v949, %v966
      %v979 = vadd.f32 %v950, %v967
      %v980 = vadd.f32 %v951, %v968
      %v981 = vld [vmem:[%s743 + $0x1] sm:$0x1]
      %v982 = vlaneseq
      %v983 = vshrl.u32 %v982, 7
      %v984 = vsub.s32 0, %v983
      %v985 = vrot.slane %v981, %v984
      %v986 = vmul.f32 %v899, %v985
      %v987 = vmul.f32 %v900, %v985
      %v988 = vmul.f32 %v901, %v985
      %v989 = vmul.f32 %v902, %v985
      %v990 = vmul.f32 %v903, %v985
      %v991 = vmul.f32 %v904, %v985
      %v992 = vmul.f32 %v905, %v985
      %v993 = vmul.f32 %v906, %v985
      %v994 = vmul.f32 %v907, %v985
      %v995 = vmul.f32 %v908, %v985
      %v996 = vmul.f32 %v909, %v985
      %v997 = vmul.f32 %v910, %v985
      %v998 = vadd.f32 %v969, %v986
      %v999 = vadd.f32 %v970, %v987
      %v1000 = vadd.f32 %v971, %v988
      %v1001 = vadd.f32 %v972, %v989
      %v1002 = vadd.f32 %v973, %v990
      %v1003 = vadd.f32 %v974, %v991
      %v1004 = vadd.f32 %v975, %v992
      %v1005 = vadd.f32 %v976, %v993
      %v1006 = vadd.f32 %v977, %v994
      %v1007 = vadd.f32 %v978, %v995
      %v1008 = vadd.f32 %v979, %v996
      %v1009 = vadd.f32 %v980, %v997
      %v1010 = vld [vmem:[%s773 + $0x1] sm:$0x1]
      %v1011 = vlaneseq
      %v1012 = vshrl.u32 %v1011, 7
      %v1013 = vsub.s32 0, %v1012
      %v1014 = vrot.slane %v1010, %v1013
      %v1015 = vmul.f32 %v902, %v1014
      %v1016 = vmul.f32 %v903, %v1014
      %v1017 = vmul.f32 %v904, %v1014
      %v1018 = vmul.f32 %v905, %v1014
      %v1019 = vmul.f32 %v906, %v1014
      %v1020 = vmul.f32 %v907, %v1014
      %v1021 = vmul.f32 %v908, %v1014
      %v1022 = vmul.f32 %v909, %v1014
      %v1023 = vmul.f32 %v910, %v1014
      %v1024 = vmul.f32 %v911, %v1014
      %v1025 = vmul.f32 %v912, %v1014
      %v1026 = vmul.f32 %v913, %v1014
      %v1027 = vadd.f32 %v998, %v1015
      %v1028 = vadd.f32 %v999, %v1016
      %v1029 = vadd.f32 %v1000, %v1017
      %v1030 = vadd.f32 %v1001, %v1018
      %v1031 = vadd.f32 %v1002, %v1019
      %v1032 = vadd.f32 %v1003, %v1020
      %v1033 = vadd.f32 %v1004, %v1021
      %v1034 = vadd.f32 %v1005, %v1022
      %v1035 = vadd.f32 %v1006, %v1023
      %v1036 = vadd.f32 %v1007, %v1024
      %v1037 = vadd.f32 %v1008, %v1025
      %v1038 = vadd.f32 %v1009, %v1026
      %v1039 = vld [vmem:[%s803 + $0x1] sm:$0x1]
      %v1040 = vlaneseq
      %v1041 = vshrl.u32 %v1040, 7
      %v1042 = vsub.s32 0, %v1041
      %v1043 = vrot.slane %v1039, %v1042
      %v1044 = vmul.f32 %v905, %v1043
      %v1045 = vmul.f32 %v906, %v1043
      %v1046 = vmul.f32 %v907, %v1043
      %v1047 = vmul.f32 %v908, %v1043
      %v1048 = vmul.f32 %v909, %v1043
      %v1049 = vmul.f32 %v910, %v1043
      %v1050 = vmul.f32 %v911, %v1043
      %v1051 = vmul.f32 %v912, %v1043
      %v1052 = vmul.f32 %v913, %v1043
      %v1053 = vmul.f32 %v914, %v1043
      %v1054 = vmul.f32 %v915, %v1043
      %v1055 = vmul.f32 %v916, %v1043
      %v1056 = vadd.f32 %v1027, %v1044
      %v1057 = vadd.f32 %v1028, %v1045
      %v1058 = vadd.f32 %v1029, %v1046
      %v1059 = vadd.f32 %v1030, %v1047
      %v1060 = vadd.f32 %v1031, %v1048
      %v1061 = vadd.f32 %v1032, %v1049
      %v1062 = vadd.f32 %v1033, %v1050
      %v1063 = vadd.f32 %v1034, %v1051
      %v1064 = vadd.f32 %v1035, %v1052
      %v1065 = vadd.f32 %v1036, %v1053
      %v1066 = vadd.f32 %v1037, %v1054
      %v1067 = vadd.f32 %v1038, %v1055
      %v1068 = vld [vmem:[%s833 + $0x1] sm:$0x1]
      %v1069 = vlaneseq
      %v1070 = vshrl.u32 %v1069, 7
      %v1071 = vsub.s32 0, %v1070
      %v1072 = vrot.slane %v1068, %v1071
      %v1073 = vmul.f32 %v908, %v1072
      %v1074 = vmul.f32 %v909, %v1072
      %v1075 = vmul.f32 %v910, %v1072
      %v1076 = vmul.f32 %v911, %v1072
      %v1077 = vmul.f32 %v912, %v1072
      %v1078 = vmul.f32 %v913, %v1072
      %v1079 = vmul.f32 %v914, %v1072
      %v1080 = vmul.f32 %v915, %v1072
      %v1081 = vmul.f32 %v916, %v1072
      %v1082 = vmul.f32 %v917, %v1072
      %v1083 = vmul.f32 %v918, %v1072
      %v1084 = vmul.f32 %v919, %v1072
      %v1085 = vadd.f32 %v1056, %v1073
      %v1086 = vadd.f32 %v1057, %v1074
      %v1087 = vadd.f32 %v1058, %v1075
      %v1088 = vadd.f32 %v1059, %v1076
      %v1089 = vadd.f32 %v1060, %v1077
      %v1090 = vadd.f32 %v1061, %v1078
      %v1091 = vadd.f32 %v1062, %v1079
      %v1092 = vadd.f32 %v1063, %v1080
      %v1093 = vadd.f32 %v1064, %v1081
      %v1094 = vadd.f32 %v1065, %v1082
      %v1095 = vadd.f32 %v1066, %v1083
      %v1096 = vadd.f32 %v1067, %v1084
      %v1097 = vld [vmem:[%s863 + $0x1] sm:$0x1]
      %v1098 = vlaneseq
      %v1099 = vshrl.u32 %v1098, 7
      %v1100 = vsub.s32 0, %v1099
      %v1101 = vrot.slane %v1097, %v1100
      %v1102 = vmul.f32 %v911, %v1101
      %v1103 = vmul.f32 %v912, %v1101
      %v1104 = vmul.f32 %v913, %v1101
      %v1105 = vmul.f32 %v914, %v1101
      %v1106 = vmul.f32 %v915, %v1101
      %v1107 = vmul.f32 %v916, %v1101
      %v1108 = vmul.f32 %v917, %v1101
      %v1109 = vmul.f32 %v918, %v1101
      %v1110 = vmul.f32 %v919, %v1101
      %v1111 = vmul.f32 %v920, %v1101
      %v1112 = vmul.f32 %v921, %v1101
      %v1113 = vmul.f32 %v922, %v1101
      %v1114 = vadd.f32 %v1085, %v1102
      %v1115 = vadd.f32 %v1086, %v1103
      %v1116 = vadd.f32 %v1087, %v1104
      %v1117 = vadd.f32 %v1088, %v1105
      %v1118 = vadd.f32 %v1089, %v1106
      %v1119 = vadd.f32 %v1090, %v1107
      %v1120 = vadd.f32 %v1091, %v1108
      %v1121 = vadd.f32 %v1092, %v1109
      %v1122 = vadd.f32 %v1093, %v1110
      %v1123 = vadd.f32 %v1094, %v1111
      %v1124 = vadd.f32 %v1095, %v1112
      %v1125 = vadd.f32 %v1096, %v1113
      %v1126 = vld [vmem:[#allocation2 + $0x2] sm:$0xff]
      %v1127 = vld [vmem:[#allocation2 + $0xa] sm:$0xff]
      %v1128 = vld [vmem:[#allocation2 + $0x12] sm:$0xff]
      %v1129 = vld [vmem:[#allocation2 + $0x22] sm:$0xff]
      %v1130 = vld [vmem:[#allocation2 + $0x2a] sm:$0xff]
      %v1131 = vld [vmem:[#allocation2 + $0x32] sm:$0xff]
      %v1132 = vld [vmem:[#allocation2 + $0x42] sm:$0xff]
      %v1133 = vld [vmem:[#allocation2 + $0x4a] sm:$0xff]
      %v1134 = vld [vmem:[#allocation2 + $0x52] sm:$0xff]
      %v1135 = vld [vmem:[#allocation2 + $0x62] sm:$0xff]
      %v1136 = vld [vmem:[#allocation2 + $0x6a] sm:$0xff]
      %v1137 = vld [vmem:[#allocation2 + $0x72] sm:$0xff]
      %v1138 = vld [vmem:[#allocation2 + $0x82] sm:$0xff]
      %v1139 = vld [vmem:[#allocation2 + $0x8a] sm:$0xff]
      %v1140 = vld [vmem:[#allocation2 + $0x92] sm:$0xff]
      %v1141 = vld [vmem:[#allocation2 + $0xa2] sm:$0xff]
      %v1142 = vld [vmem:[#allocation2 + $0xaa] sm:$0xff]
      %v1143 = vld [vmem:[#allocation2 + $0xb2] sm:$0xff]
      %v1144 = vld [vmem:[#allocation2 + $0xc2] sm:$0xff]
      %v1145 = vld [vmem:[#allocation2 + $0xca] sm:$0xff]
      %v1146 = vld [vmem:[#allocation2 + $0xd2] sm:$0xff]
      %v1147 = vld [vmem:[#allocation2 + $0xe2] sm:$0xff]
      %v1148 = vld [vmem:[#allocation2 + $0xea] sm:$0xff]
      %v1149 = vld [vmem:[#allocation2 + $0xf2] sm:$0xff]
      %v1150 = vld [vmem:[#allocation2 + $0x102] sm:$0xff]
      %v1151 = vld [vmem:[#allocation2 + $0x10a] sm:$0xff]
      %v1152 = vld [vmem:[#allocation2 + $0x112] sm:$0xff]
      %v1153 = vld [vmem:[#allocation2 + $0x122] sm:$0xff]
      %v1154 = vld [vmem:[#allocation2 + $0x12a] sm:$0xff]
      %v1155 = vld [vmem:[#allocation2 + $0x132] sm:$0xff]
      %v1156 = vld [vmem:[%s3 + $0x2] sm:$0x1]
      %v1157 = vlaneseq
      %v1158 = vshrl.u32 %v1157, 7
      %v1159 = vsub.s32 0, %v1158
      %v1160 = vrot.slane %v1156, %v1159
      %v1161 = vmul.f32 %v1126, %v1160
      %v1162 = vmul.f32 %v1127, %v1160
      %v1163 = vmul.f32 %v1128, %v1160
      %v1164 = vmul.f32 %v1129, %v1160
      %v1165 = vmul.f32 %v1130, %v1160
      %v1166 = vmul.f32 %v1131, %v1160
      %v1167 = vmul.f32 %v1132, %v1160
      %v1168 = vmul.f32 %v1133, %v1160
      %v1169 = vmul.f32 %v1134, %v1160
      %v1170 = vmul.f32 %v1135, %v1160
      %v1171 = vmul.f32 %v1136, %v1160
      %v1172 = vmul.f32 %v1137, %v1160
      %v1173 = vadd.f32 %v1114, %v1161
      %v1174 = vadd.f32 %v1115, %v1162
      %v1175 = vadd.f32 %v1116, %v1163
      %v1176 = vadd.f32 %v1117, %v1164
      %v1177 = vadd.f32 %v1118, %v1165
      %v1178 = vadd.f32 %v1119, %v1166
      %v1179 = vadd.f32 %v1120, %v1167
      %v1180 = vadd.f32 %v1121, %v1168
      %v1181 = vadd.f32 %v1122, %v1169
      %v1182 = vadd.f32 %v1123, %v1170
      %v1183 = vadd.f32 %v1124, %v1171
      %v1184 = vadd.f32 %v1125, %v1172
      %v1185 = vld [vmem:[%s713 + $0x2] sm:$0x1]
      %v1186 = vlaneseq
      %v1187 = vshrl.u32 %v1186, 7
      %v1188 = vsub.s32 0, %v1187
      %v1189 = vrot.slane %v1185, %v1188
      %v1190 = vmul.f32 %v1129, %v1189
      %v1191 = vmul.f32 %v1130, %v1189
      %v1192 = vmul.f32 %v1131, %v1189
      %v1193 = vmul.f32 %v1132, %v1189
      %v1194 = vmul.f32 %v1133, %v1189
      %v1195 = vmul.f32 %v1134, %v1189
      %v1196 = vmul.f32 %v1135, %v1189
      %v1197 = vmul.f32 %v1136, %v1189
      %v1198 = vmul.f32 %v1137, %v1189
      %v1199 = vmul.f32 %v1138, %v1189
      %v1200 = vmul.f32 %v1139, %v1189
      %v1201 = vmul.f32 %v1140, %v1189
      %v1202 = vadd.f32 %v1173, %v1190
      %v1203 = vadd.f32 %v1174, %v1191
      %v1204 = vadd.f32 %v1175, %v1192
      %v1205 = vadd.f32 %v1176, %v1193
      %v1206 = vadd.f32 %v1177, %v1194
      %v1207 = vadd.f32 %v1178, %v1195
      %v1208 = vadd.f32 %v1179, %v1196
      %v1209 = vadd.f32 %v1180, %v1197
      %v1210 = vadd.f32 %v1181, %v1198
      %v1211 = vadd.f32 %v1182, %v1199
      %v1212 = vadd.f32 %v1183, %v1200
      %v1213 = vadd.f32 %v1184, %v1201
      %v1214 = vld [vmem:[%s743 + $0x2] sm:$0x1]
      %v1215 = vlaneseq
      %v1216 = vshrl.u32 %v1215, 7
      %v1217 = vsub.s32 0, %v1216
      %v1218 = vrot.slane %v1214, %v1217
      %v1219 = vmul.f32 %v1132, %v1218
      %v1220 = vmul.f32 %v1133, %v1218
      %v1221 = vmul.f32 %v1134, %v1218
      %v1222 = vmul.f32 %v1135, %v1218
      %v1223 = vmul.f32 %v1136, %v1218
      %v1224 = vmul.f32 %v1137, %v1218
      %v1225 = vmul.f32 %v1138, %v1218
      %v1226 = vmul.f32 %v1139, %v1218
      %v1227 = vmul.f32 %v1140, %v1218
      %v1228 = vmul.f32 %v1141, %v1218
      %v1229 = vmul.f32 %v1142, %v1218
      %v1230 = vmul.f32 %v1143, %v1218
      %v1231 = vadd.f32 %v1202, %v1219
      %v1232 = vadd.f32 %v1203, %v1220
      %v1233 = vadd.f32 %v1204, %v1221
      %v1234 = vadd.f32 %v1205, %v1222
      %v1235 = vadd.f32 %v1206, %v1223
      %v1236 = vadd.f32 %v1207, %v1224
      %v1237 = vadd.f32 %v1208, %v1225
      %v1238 = vadd.f32 %v1209, %v1226
      %v1239 = vadd.f32 %v1210, %v1227
      %v1240 = vadd.f32 %v1211, %v1228
      %v1241 = vadd.f32 %v1212, %v1229
      %v1242 = vadd.f32 %v1213, %v1230
      %v1243 = vld [vmem:[%s773 + $0x2] sm:$0x1]
      %v1244 = vlaneseq
      %v1245 = vshrl.u32 %v1244, 7
      %v1246 = vsub.s32 0, %v1245
      %v1247 = vrot.slane %v1243, %v1246
      %v1248 = vmul.f32 %v1135, %v1247
      %v1249 = vmul.f32 %v1136, %v1247
      %v1250 = vmul.f32 %v1137, %v1247
      %v1251 = vmul.f32 %v1138, %v1247
      %v1252 = vmul.f32 %v1139, %v1247
      %v1253 = vmul.f32 %v1140, %v1247
      %v1254 = vmul.f32 %v1141, %v1247
      %v1255 = vmul.f32 %v1142, %v1247
      %v1256 = vmul.f32 %v1143, %v1247
      %v1257 = vmul.f32 %v1144, %v1247
      %v1258 = vmul.f32 %v1145, %v1247
      %v1259 = vmul.f32 %v1146, %v1247
      %v1260 = vadd.f32 %v1231, %v1248
      %v1261 = vadd.f32 %v1232, %v1249
      %v1262 = vadd.f32 %v1233, %v1250
      %v1263 = vadd.f32 %v1234, %v1251
      %v1264 = vadd.f32 %v1235, %v1252
      %v1265 = vadd.f32 %v1236, %v1253
      %v1266 = vadd.f32 %v1237, %v1254
      %v1267 = vadd.f32 %v1238, %v1255
      %v1268 = vadd.f32 %v1239, %v1256
      %v1269 = vadd.f32 %v1240, %v1257
      %v1270 = vadd.f32 %v1241, %v1258
      %v1271 = vadd.f32 %v1242, %v1259
      %v1272 = vld [vmem:[%s803 + $0x2] sm:$0x1]
      %v1273 = vlaneseq
      %v1274 = vshrl.u32 %v1273, 7
      %v1275 = vsub.s32 0, %v1274
      %v1276 = vrot.slane %v1272, %v1275
      %v1277 = vmul.f32 %v1138, %v1276
      %v1278 = vmul.f32 %v1139, %v1276
      %v1279 = vmul.f32 %v1140, %v1276
      %v1280 = vmul.f32 %v1141, %v1276
      %v1281 = vmul.f32 %v1142, %v1276
      %v1282 = vmul.f32 %v1143, %v1276
      %v1283 = vmul.f32 %v1144, %v1276
      %v1284 = vmul.f32 %v1145, %v1276
      %v1285 = vmul.f32 %v1146, %v1276
      %v1286 = vmul.f32 %v1147, %v1276
      %v1287 = vmul.f32 %v1148, %v1276
      %v1288 = vmul.f32 %v1149, %v1276
      %v1289 = vadd.f32 %v1260, %v1277
      %v1290 = vadd.f32 %v1261, %v1278
      %v1291 = vadd.f32 %v1262, %v1279
      %v1292 = vadd.f32 %v1263, %v1280
      %v1293 = vadd.f32 %v1264, %v1281
      %v1294 = vadd.f32 %v1265, %v1282
      %v1295 = vadd.f32 %v1266, %v1283
      %v1296 = vadd.f32 %v1267, %v1284
      %v1297 = vadd.f32 %v1268, %v1285
      %v1298 = vadd.f32 %v1269, %v1286
      %v1299 = vadd.f32 %v1270, %v1287
      %v1300 = vadd.f32 %v1271, %v1288
      %v1301 = vld [vmem:[%s833 + $0x2] sm:$0x1]
      %v1302 = vlaneseq
      %v1303 = vshrl.u32 %v1302, 7
      %v1304 = vsub.s32 0, %v1303
      %v1305 = vrot.slane %v1301, %v1304
      %v1306 = vmul.f32 %v1141, %v1305
      %v1307 = vmul.f32 %v1142, %v1305
      %v1308 = vmul.f32 %v1143, %v1305
      %v1309 = vmul.f32 %v1144, %v1305
      %v1310 = vmul.f32 %v1145, %v1305
      %v1311 = vmul.f32 %v1146, %v1305
      %v1312 = vmul.f32 %v1147, %v1305
      %v1313 = vmul.f32 %v1148, %v1305
      %v1314 = vmul.f32 %v1149, %v1305
      %v1315 = vmul.f32 %v1150, %v1305
      %v1316 = vmul.f32 %v1151, %v1305
      %v1317 = vmul.f32 %v1152, %v1305
      %v1318 = vadd.f32 %v1289, %v1306
      %v1319 = vadd.f32 %v1290, %v1307
      %v1320 = vadd.f32 %v1291, %v1308
      %v1321 = vadd.f32 %v1292, %v1309
      %v1322 = vadd.f32 %v1293, %v1310
      %v1323 = vadd.f32 %v1294, %v1311
      %v1324 = vadd.f32 %v1295, %v1312
      %v1325 = vadd.f32 %v1296, %v1313
      %v1326 = vadd.f32 %v1297, %v1314
      %v1327 = vadd.f32 %v1298, %v1315
      %v1328 = vadd.f32 %v1299, %v1316
      %v1329 = vadd.f32 %v1300, %v1317
      %v1330 = vld [vmem:[%s863 + $0x2] sm:$0x1]
      %v1331 = vlaneseq
      %v1332 = vshrl.u32 %v1331, 7
      %v1333 = vsub.s32 0, %v1332
      %v1334 = vrot.slane %v1330, %v1333
      %v1335 = vmul.f32 %v1144, %v1334
      %v1336 = vmul.f32 %v1145, %v1334
      %v1337 = vmul.f32 %v1146, %v1334
      %v1338 = vmul.f32 %v1147, %v1334
      %v1339 = vmul.f32 %v1148, %v1334
      %v1340 = vmul.f32 %v1149, %v1334
      %v1341 = vmul.f32 %v1150, %v1334
      %v1342 = vmul.f32 %v1151, %v1334
      %v1343 = vmul.f32 %v1152, %v1334
      %v1344 = vmul.f32 %v1153, %v1334
      %v1345 = vmul.f32 %v1154, %v1334
      %v1346 = vmul.f32 %v1155, %v1334
      %v1347 = vadd.f32 %v1318, %v1335
      %v1348 = vadd.f32 %v1319, %v1336
      %v1349 = vadd.f32 %v1320, %v1337
      %v1350 = vadd.f32 %v1321, %v1338
      %v1351 = vadd.f32 %v1322, %v1339
      %v1352 = vadd.f32 %v1323, %v1340
      %v1353 = vadd.f32 %v1324, %v1341
      %v1354 = vadd.f32 %v1325, %v1342
      %v1355 = vadd.f32 %v1326, %v1343
      %v1356 = vadd.f32 %v1327, %v1344
      %v1357 = vadd.f32 %v1328, %v1345
      %v1358 = vadd.f32 %v1329, %v1346
      %v1359 = vld [vmem:[#allocation2 + $0x3] sm:$0xff]
      %v1360 = vld [vmem:[#allocation2 + $0xb] sm:$0xff]
      %v1361 = vld [vmem:[#allocation2 + $0x13] sm:$0xff]
      %v1362 = vld [vmem:[#allocation2 + $0x23] sm:$0xff]
      %v1363 = vld [vmem:[#allocation2 + $0x2b] sm:$0xff]
      %v1364 = vld [vmem:[#allocation2 + $0x33] sm:$0xff]
      %v1365 = vld [vmem:[#allocation2 + $0x43] sm:$0xff]
      %v1366 = vld [vmem:[#allocation2 + $0x4b] sm:$0xff]
      %v1367 = vld [vmem:[#allocation2 + $0x53] sm:$0xff]
      %v1368 = vld [vmem:[#allocation2 + $0x63] sm:$0xff]
      %v1369 = vld [vmem:[#allocation2 + $0x6b] sm:$0xff]
      %v1370 = vld [vmem:[#allocation2 + $0x73] sm:$0xff]
      %v1371 = vld [vmem:[#allocation2 + $0x83] sm:$0xff]
      %v1372 = vld [vmem:[#allocation2 + $0x8b] sm:$0xff]
      %v1373 = vld [vmem:[#allocation2 + $0x93] sm:$0xff]
      %v1374 = vld [vmem:[#allocation2 + $0xa3] sm:$0xff]
      %v1375 = vld [vmem:[#allocation2 + $0xab] sm:$0xff]
      %v1376 = vld [vmem:[#allocation2 + $0xb3] sm:$0xff]
      %v1377 = vld [vmem:[#allocation2 + $0xc3] sm:$0xff]
      %v1378 = vld [vmem:[#allocation2 + $0xcb] sm:$0xff]
      %v1379 = vld [vmem:[#allocation2 + $0xd3] sm:$0xff]
      %v1380 = vld [vmem:[#allocation2 + $0xe3] sm:$0xff]
      %v1381 = vld [vmem:[#allocation2 + $0xeb] sm:$0xff]
      %v1382 = vld [vmem:[#allocation2 + $0xf3] sm:$0xff]
      %v1383 = vld [vmem:[#allocation2 + $0x103] sm:$0xff]
      %v1384 = vld [vmem:[#allocation2 + $0x10b] sm:$0xff]
      %v1385 = vld [vmem:[#allocation2 + $0x113] sm:$0xff]
      %v1386 = vld [vmem:[#allocation2 + $0x123] sm:$0xff]
      %v1387 = vld [vmem:[#allocation2 + $0x12b] sm:$0xff]
      %v1388 = vld [vmem:[#allocation2 + $0x133] sm:$0xff]
      %v1389 = vld [vmem:[%s3 + $0x3] sm:$0x1]
      %v1390 = vlaneseq
      %v1391 = vshrl.u32 %v1390, 7
      %v1392 = vsub.s32 0, %v1391
      %v1393 = vrot.slane %v1389, %v1392
      %v1394 = vmul.f32 %v1359, %v1393
      %v1395 = vmul.f32 %v1360, %v1393
      %v1396 = vmul.f32 %v1361, %v1393
      %v1397 = vmul.f32 %v1362, %v1393
      %v1398 = vmul.f32 %v1363, %v1393
      %v1399 = vmul.f32 %v1364, %v1393
      %v1400 = vmul.f32 %v1365, %v1393
      %v1401 = vmul.f32 %v1366, %v1393
      %v1402 = vmul.f32 %v1367, %v1393
      %v1403 = vmul.f32 %v1368, %v1393
      %v1404 = vmul.f32 %v1369, %v1393
      %v1405 = vmul.f32 %v1370, %v1393
      %v1406 = vadd.f32 %v1347, %v1394
      %v1407 = vadd.f32 %v1348, %v1395
      %v1408 = vadd.f32 %v1349, %v1396
      %v1409 = vadd.f32 %v1350, %v1397
      %v1410 = vadd.f32 %v1351, %v1398
      %v1411 = vadd.f32 %v1352, %v1399
      %v1412 = vadd.f32 %v1353, %v1400
      %v1413 = vadd.f32 %v1354, %v1401
      %v1414 = vadd.f32 %v1355, %v1402
      %v1415 = vadd.f32 %v1356, %v1403
      %v1416 = vadd.f32 %v1357, %v1404
      %v1417 = vadd.f32 %v1358, %v1405
      %v1418 = vld [vmem:[%s713 + $0x3] sm:$0x1]
      %v1419 = vlaneseq
      %v1420 = vshrl.u32 %v1419, 7
      %v1421 = vsub.s32 0, %v1420
      %v1422 = vrot.slane %v1418, %v1421
      %v1423 = vmul.f32 %v1362, %v1422
      %v1424 = vmul.f32 %v1363, %v1422
      %v1425 = vmul.f32 %v1364, %v1422
      %v1426 = vmul.f32 %v1365, %v1422
      %v1427 = vmul.f32 %v1366, %v1422
      %v1428 = vmul.f32 %v1367, %v1422
      %v1429 = vmul.f32 %v1368, %v1422
      %v1430 = vmul.f32 %v1369, %v1422
      %v1431 = vmul.f32 %v1370, %v1422
      %v1432 = vmul.f32 %v1371, %v1422
      %v1433 = vmul.f32 %v1372, %v1422
      %v1434 = vmul.f32 %v1373, %v1422
      %v1435 = vadd.f32 %v1406, %v1423
      %v1436 = vadd.f32 %v1407, %v1424
      %v1437 = vadd.f32 %v1408, %v1425
      %v1438 = vadd.f32 %v1409, %v1426
      %v1439 = vadd.f32 %v1410, %v1427
      %v1440 = vadd.f32 %v1411, %v1428
      %v1441 = vadd.f32 %v1412, %v1429
      %v1442 = vadd.f32 %v1413, %v1430
      %v1443 = vadd.f32 %v1414, %v1431
      %v1444 = vadd.f32 %v1415, %v1432
      %v1445 = vadd.f32 %v1416, %v1433
      %v1446 = vadd.f32 %v1417, %v1434
      %v1447 = vld [vmem:[%s743 + $0x3] sm:$0x1]
      %v1448 = vlaneseq
      %v1449 = vshrl.u32 %v1448, 7
      %v1450 = vsub.s32 0, %v1449
      %v1451 = vrot.slane %v1447, %v1450
      %v1452 = vmul.f32 %v1365, %v1451
      %v1453 = vmul.f32 %v1366, %v1451
      %v1454 = vmul.f32 %v1367, %v1451
      %v1455 = vmul.f32 %v1368, %v1451
      %v1456 = vmul.f32 %v1369, %v1451
      %v1457 = vmul.f32 %v1370, %v1451
      %v1458 = vmul.f32 %v1371, %v1451
      %v1459 = vmul.f32 %v1372, %v1451
      %v1460 = vmul.f32 %v1373, %v1451
      %v1461 = vmul.f32 %v1374, %v1451
      %v1462 = vmul.f32 %v1375, %v1451
      %v1463 = vmul.f32 %v1376, %v1451
      %v1464 = vadd.f32 %v1435, %v1452
      %v1465 = vadd.f32 %v1436, %v1453
      %v1466 = vadd.f32 %v1437, %v1454
      %v1467 = vadd.f32 %v1438, %v1455
      %v1468 = vadd.f32 %v1439, %v1456
      %v1469 = vadd.f32 %v1440, %v1457
      %v1470 = vadd.f32 %v1441, %v1458
      %v1471 = vadd.f32 %v1442, %v1459
      %v1472 = vadd.f32 %v1443, %v1460
      %v1473 = vadd.f32 %v1444, %v1461
      %v1474 = vadd.f32 %v1445, %v1462
      %v1475 = vadd.f32 %v1446, %v1463
      %v1476 = vld [vmem:[%s773 + $0x3] sm:$0x1]
      %v1477 = vlaneseq
      %v1478 = vshrl.u32 %v1477, 7
      %v1479 = vsub.s32 0, %v1478
      %v1480 = vrot.slane %v1476, %v1479
      %v1481 = vmul.f32 %v1368, %v1480
      %v1482 = vmul.f32 %v1369, %v1480
      %v1483 = vmul.f32 %v1370, %v1480
      %v1484 = vmul.f32 %v1371, %v1480
      %v1485 = vmul.f32 %v1372, %v1480
      %v1486 = vmul.f32 %v1373, %v1480
      %v1487 = vmul.f32 %v1374, %v1480
      %v1488 = vmul.f32 %v1375, %v1480
      %v1489 = vmul.f32 %v1376, %v1480
      %v1490 = vmul.f32 %v1377, %v1480
      %v1491 = vmul.f32 %v1378, %v1480
      %v1492 = vmul.f32 %v1379, %v1480
      %v1493 = vadd.f32 %v1464, %v1481
      %v1494 = vadd.f32 %v1465, %v1482
      %v1495 = vadd.f32 %v1466, %v1483
      %v1496 = vadd.f32 %v1467, %v1484
      %v1497 = vadd.f32 %v1468, %v1485
      %v1498 = vadd.f32 %v1469, %v1486
      %v1499 = vadd.f32 %v1470, %v1487
      %v1500 = vadd.f32 %v1471, %v1488
      %v1501 = vadd.f32 %v1472, %v1489
      %v1502 = vadd.f32 %v1473, %v1490
      %v1503 = vadd.f32 %v1474, %v1491
      %v1504 = vadd.f32 %v1475, %v1492
      %v1505 = vld [vmem:[%s803 + $0x3] sm:$0x1]
      %v1506 = vlaneseq
      %v1507 = vshrl.u32 %v1506, 7
      %v1508 = vsub.s32 0, %v1507
      %v1509 = vrot.slane %v1505, %v1508
      %v1510 = vmul.f32 %v1371, %v1509
      %v1511 = vmul.f32 %v1372, %v1509
      %v1512 = vmul.f32 %v1373, %v1509
      %v1513 = vmul.f32 %v1374, %v1509
      %v1514 = vmul.f32 %v1375, %v1509
      %v1515 = vmul.f32 %v1376, %v1509
      %v1516 = vmul.f32 %v1377, %v1509
      %v1517 = vmul.f32 %v1378, %v1509
      %v1518 = vmul.f32 %v1379, %v1509
      %v1519 = vmul.f32 %v1380, %v1509
      %v1520 = vmul.f32 %v1381, %v1509
      %v1521 = vmul.f32 %v1382, %v1509
      %v1522 = vadd.f32 %v1493, %v1510
      %v1523 = vadd.f32 %v1494, %v1511
      %v1524 = vadd.f32 %v1495, %v1512
      %v1525 = vadd.f32 %v1496, %v1513
      %v1526 = vadd.f32 %v1497, %v1514
      %v1527 = vadd.f32 %v1498, %v1515
      %v1528 = vadd.f32 %v1499, %v1516
      %v1529 = vadd.f32 %v1500, %v1517
      %v1530 = vadd.f32 %v1501, %v1518
      %v1531 = vadd.f32 %v1502, %v1519
      %v1532 = vadd.f32 %v1503, %v1520
      %v1533 = vadd.f32 %v1504, %v1521
      %v1534 = vld [vmem:[%s833 + $0x3] sm:$0x1]
      %v1535 = vlaneseq
      %v1536 = vshrl.u32 %v1535, 7
      %v1537 = vsub.s32 0, %v1536
      %v1538 = vrot.slane %v1534, %v1537
      %v1539 = vmul.f32 %v1374, %v1538
      %v1540 = vmul.f32 %v1375, %v1538
      %v1541 = vmul.f32 %v1376, %v1538
      %v1542 = vmul.f32 %v1377, %v1538
      %v1543 = vmul.f32 %v1378, %v1538
      %v1544 = vmul.f32 %v1379, %v1538
      %v1545 = vmul.f32 %v1380, %v1538
      %v1546 = vmul.f32 %v1381, %v1538
      %v1547 = vmul.f32 %v1382, %v1538
      %v1548 = vmul.f32 %v1383, %v1538
      %v1549 = vmul.f32 %v1384, %v1538
      %v1550 = vmul.f32 %v1385, %v1538
      %v1551 = vadd.f32 %v1522, %v1539
      %v1552 = vadd.f32 %v1523, %v1540
      %v1553 = vadd.f32 %v1524, %v1541
      %v1554 = vadd.f32 %v1525, %v1542
      %v1555 = vadd.f32 %v1526, %v1543
      %v1556 = vadd.f32 %v1527, %v1544
      %v1557 = vadd.f32 %v1528, %v1545
      %v1558 = vadd.f32 %v1529, %v1546
      %v1559 = vadd.f32 %v1530, %v1547
      %v1560 = vadd.f32 %v1531, %v1548
      %v1561 = vadd.f32 %v1532, %v1549
      %v1562 = vadd.f32 %v1533, %v1550
      %v1563 = vld [vmem:[%s863 + $0x3] sm:$0x1]
      %v1564 = vlaneseq
      %v1565 = vshrl.u32 %v1564, 7
      %v1566 = vsub.s32 0, %v1565
      %v1567 = vrot.slane %v1563, %v1566
      %v1568 = vmul.f32 %v1377, %v1567
      %v1569 = vmul.f32 %v1378, %v1567
      %v1570 = vmul.f32 %v1379, %v1567
      %v1571 = vmul.f32 %v1380, %v1567
      %v1572 = vmul.f32 %v1381, %v1567
      %v1573 = vmul.f32 %v1382, %v1567
      %v1574 = vmul.f32 %v1383, %v1567
      %v1575 = vmul.f32 %v1384, %v1567
      %v1576 = vmul.f32 %v1385, %v1567
      %v1577 = vmul.f32 %v1386, %v1567
      %v1578 = vmul.f32 %v1387, %v1567
      %v1579 = vmul.f32 %v1388, %v1567
      %v1580 = vadd.f32 %v1551, %v1568
      %v1581 = vadd.f32 %v1552, %v1569
      %v1582 = vadd.f32 %v1553, %v1570
      %v1583 = vadd.f32 %v1554, %v1571
      %v1584 = vadd.f32 %v1555, %v1572
      %v1585 = vadd.f32 %v1556, %v1573
      %v1586 = vadd.f32 %v1557, %v1574
      %v1587 = vadd.f32 %v1558, %v1575
      %v1588 = vadd.f32 %v1559, %v1576
      %v1589 = vadd.f32 %v1560, %v1577
      %v1590 = vadd.f32 %v1561, %v1578
      %v1591 = vadd.f32 %v1562, %v1579
      %v1592 = vld [vmem:[#allocation2 + $0x4] sm:$0xff]
      %v1593 = vld [vmem:[#allocation2 + $0xc] sm:$0xff]
      %v1594 = vld [vmem:[#allocation2 + $0x14] sm:$0xff]
      %v1595 = vld [vmem:[#allocation2 + $0x24] sm:$0xff]
      %v1596 = vld [vmem:[#allocation2 + $0x2c] sm:$0xff]
      %v1597 = vld [vmem:[#allocation2 + $0x34] sm:$0xff]
      %v1598 = vld [vmem:[#allocation2 + $0x44] sm:$0xff]
      %v1599 = vld [vmem:[#allocation2 + $0x4c] sm:$0xff]
      %v1600 = vld [vmem:[#allocation2 + $0x54] sm:$0xff]
      %v1601 = vld [vmem:[#allocation2 + $0x64] sm:$0xff]
      %v1602 = vld [vmem:[#allocation2 + $0x6c] sm:$0xff]
      %v1603 = vld [vmem:[#allocation2 + $0x74] sm:$0xff]
      %v1604 = vld [vmem:[#allocation2 + $0x84] sm:$0xff]
      %v1605 = vld [vmem:[#allocation2 + $0x8c] sm:$0xff]
      %v1606 = vld [vmem:[#allocation2 + $0x94] sm:$0xff]
      %v1607 = vld [vmem:[#allocation2 + $0xa4] sm:$0xff]
      %v1608 = vld [vmem:[#allocation2 + $0xac] sm:$0xff]
      %v1609 = vld [vmem:[#allocation2 + $0xb4] sm:$0xff]
      %v1610 = vld [vmem:[#allocation2 + $0xc4] sm:$0xff]
      %v1611 = vld [vmem:[#allocation2 + $0xcc] sm:$0xff]
      %v1612 = vld [vmem:[#allocation2 + $0xd4] sm:$0xff]
      %v1613 = vld [vmem:[#allocation2 + $0xe4] sm:$0xff]
      %v1614 = vld [vmem:[#allocation2 + $0xec] sm:$0xff]
      %v1615 = vld [vmem:[#allocation2 + $0xf4] sm:$0xff]
      %v1616 = vld [vmem:[#allocation2 + $0x104] sm:$0xff]
      %v1617 = vld [vmem:[#allocation2 + $0x10c] sm:$0xff]
      %v1618 = vld [vmem:[#allocation2 + $0x114] sm:$0xff]
      %v1619 = vld [vmem:[#allocation2 + $0x124] sm:$0xff]
      %v1620 = vld [vmem:[#allocation2 + $0x12c] sm:$0xff]
      %v1621 = vld [vmem:[#allocation2 + $0x134] sm:$0xff]
      %v1622 = vld [vmem:[%s3 + $0x4] sm:$0x1]
      %v1623 = vlaneseq
      %v1624 = vshrl.u32 %v1623, 7
      %v1625 = vsub.s32 0, %v1624
      %v1626 = vrot.slane %v1622, %v1625
      %v1627 = vmul.f32 %v1592, %v1626
      %v1628 = vmul.f32 %v1593, %v1626
      %v1629 = vmul.f32 %v1594, %v1626
      %v1630 = vmul.f32 %v1595, %v1626
      %v1631 = vmul.f32 %v1596, %v1626
      %v1632 = vmul.f32 %v1597, %v1626
      %v1633 = vmul.f32 %v1598, %v1626
      %v1634 = vmul.f32 %v1599, %v1626
      %v1635 = vmul.f32 %v1600, %v1626
      %v1636 = vmul.f32 %v1601, %v1626
      %v1637 = vmul.f32 %v1602, %v1626
      %v1638 = vmul.f32 %v1603, %v1626
      %v1639 = vadd.f32 %v1580, %v1627
      %v1640 = vadd.f32 %v1581, %v1628
      %v1641 = vadd.f32 %v1582, %v1629
      %v1642 = vadd.f32 %v1583, %v1630
      %v1643 = vadd.f32 %v1584, %v1631
      %v1644 = vadd.f32 %v1585, %v1632
      %v1645 = vadd.f32 %v1586, %v1633
      %v1646 = vadd.f32 %v1587, %v1634
      %v1647 = vadd.f32 %v1588, %v1635
      %v1648 = vadd.f32 %v1589, %v1636
      %v1649 = vadd.f32 %v1590, %v1637
      %v1650 = vadd.f32 %v1591, %v1638
      %v1651 = vld [vmem:[%s713 + $0x4] sm:$0x1]
      %v1652 = vlaneseq
      %v1653 = vshrl.u32 %v1652, 7
      %v1654 = vsub.s32 0, %v1653
      %v1655 = vrot.slane %v1651, %v1654
      %v1656 = vmul.f32 %v1595, %v1655
      %v1657 = vmul.f32 %v1596, %v1655
      %v1658 = vmul.f32 %v1597, %v1655
      %v1659 = vmul.f32 %v1598, %v1655
      %v1660 = vmul.f32 %v1599, %v1655
      %v1661 = vmul.f32 %v1600, %v1655
      %v1662 = vmul.f32 %v1601, %v1655
      %v1663 = vmul.f32 %v1602, %v1655
      %v1664 = vmul.f32 %v1603, %v1655
      %v1665 = vmul.f32 %v1604, %v1655
      %v1666 = vmul.f32 %v1605, %v1655
      %v1667 = vmul.f32 %v1606, %v1655
      %v1668 = vadd.f32 %v1639, %v1656
      %v1669 = vadd.f32 %v1640, %v1657
      %v1670 = vadd.f32 %v1641, %v1658
      %v1671 = vadd.f32 %v1642, %v1659
      %v1672 = vadd.f32 %v1643, %v1660
      %v1673 = vadd.f32 %v1644, %v1661
      %v1674 = vadd.f32 %v1645, %v1662
      %v1675 = vadd.f32 %v1646, %v1663
      %v1676 = vadd.f32 %v1647, %v1664
      %v1677 = vadd.f32 %v1648, %v1665
      %v1678 = vadd.f32 %v1649, %v1666
      %v1679 = vadd.f32 %v1650, %v1667
      %v1680 = vld [vmem:[%s743 + $0x4] sm:$0x1]
      %v1681 = vlaneseq
      %v1682 = vshrl.u32 %v1681, 7
      %v1683 = vsub.s32 0, %v1682
      %v1684 = vrot.slane %v1680, %v1683
      %v1685 = vmul.f32 %v1598, %v1684
      %v1686 = vmul.f32 %v1599, %v1684
      %v1687 = vmul.f32 %v1600, %v1684
      %v1688 = vmul.f32 %v1601, %v1684
      %v1689 = vmul.f32 %v1602, %v1684
      %v1690 = vmul.f32 %v1603, %v1684
      %v1691 = vmul.f32 %v1604, %v1684
      %v1692 = vmul.f32 %v1605, %v1684
      %v1693 = vmul.f32 %v1606, %v1684
      %v1694 = vmul.f32 %v1607, %v1684
      %v1695 = vmul.f32 %v1608, %v1684
      %v1696 = vmul.f32 %v1609, %v1684
      %v1697 = vadd.f32 %v1668, %v1685
      %v1698 = vadd.f32 %v1669, %v1686
      %v1699 = vadd.f32 %v1670, %v1687
      %v1700 = vadd.f32 %v1671, %v1688
      %v1701 = vadd.f32 %v1672, %v1689
      %v1702 = vadd.f32 %v1673, %v1690
      %v1703 = vadd.f32 %v1674, %v1691
      %v1704 = vadd.f32 %v1675, %v1692
      %v1705 = vadd.f32 %v1676, %v1693
      %v1706 = vadd.f32 %v1677, %v1694
      %v1707 = vadd.f32 %v1678, %v1695
      %v1708 = vadd.f32 %v1679, %v1696
      %v1709 = vld [vmem:[%s773 + $0x4] sm:$0x1]
      %v1710 = vlaneseq
      %v1711 = vshrl.u32 %v1710, 7
      %v1712 = vsub.s32 0, %v1711
      %v1713 = vrot.slane %v1709, %v1712
      %v1714 = vmul.f32 %v1601, %v1713
      %v1715 = vmul.f32 %v1602, %v1713
      %v1716 = vmul.f32 %v1603, %v1713
      %v1717 = vmul.f32 %v1604, %v1713
      %v1718 = vmul.f32 %v1605, %v1713
      %v1719 = vmul.f32 %v1606, %v1713
      %v1720 = vmul.f32 %v1607, %v1713
      %v1721 = vmul.f32 %v1608, %v1713
      %v1722 = vmul.f32 %v1609, %v1713
      %v1723 = vmul.f32 %v1610, %v1713
      %v1724 = vmul.f32 %v1611, %v1713
      %v1725 = vmul.f32 %v1612, %v1713
      %v1726 = vadd.f32 %v1697, %v1714
      %v1727 = vadd.f32 %v1698, %v1715
      %v1728 = vadd.f32 %v1699, %v1716
      %v1729 = vadd.f32 %v1700, %v1717
      %v1730 = vadd.f32 %v1701, %v1718
      %v1731 = vadd.f32 %v1702, %v1719
      %v1732 = vadd.f32 %v1703, %v1720
      %v1733 = vadd.f32 %v1704, %v1721
      %v1734 = vadd.f32 %v1705, %v1722
      %v1735 = vadd.f32 %v1706, %v1723
      %v1736 = vadd.f32 %v1707, %v1724
      %v1737 = vadd.f32 %v1708, %v1725
      %v1738 = vld [vmem:[%s803 + $0x4] sm:$0x1]
      %v1739 = vlaneseq
      %v1740 = vshrl.u32 %v1739, 7
      %v1741 = vsub.s32 0, %v1740
      %v1742 = vrot.slane %v1738, %v1741
      %v1743 = vmul.f32 %v1604, %v1742
      %v1744 = vmul.f32 %v1605, %v1742
      %v1745 = vmul.f32 %v1606, %v1742
      %v1746 = vmul.f32 %v1607, %v1742
      %v1747 = vmul.f32 %v1608, %v1742
      %v1748 = vmul.f32 %v1609, %v1742
      %v1749 = vmul.f32 %v1610, %v1742
      %v1750 = vmul.f32 %v1611, %v1742
      %v1751 = vmul.f32 %v1612, %v1742
      %v1752 = vmul.f32 %v1613, %v1742
      %v1753 = vmul.f32 %v1614, %v1742
      %v1754 = vmul.f32 %v1615, %v1742
      %v1755 = vadd.f32 %v1726, %v1743
      %v1756 = vadd.f32 %v1727, %v1744
      %v1757 = vadd.f32 %v1728, %v1745
      %v1758 = vadd.f32 %v1729, %v1746
      %v1759 = vadd.f32 %v1730, %v1747
      %v1760 = vadd.f32 %v1731, %v1748
      %v1761 = vadd.f32 %v1732, %v1749
      %v1762 = vadd.f32 %v1733, %v1750
      %v1763 = vadd.f32 %v1734, %v1751
      %v1764 = vadd.f32 %v1735, %v1752
      %v1765 = vadd.f32 %v1736, %v1753
      %v1766 = vadd.f32 %v1737, %v1754
      %v1767 = vld [vmem:[%s833 + $0x4] sm:$0x1]
      %v1768 = vlaneseq
      %v1769 = vshrl.u32 %v1768, 7
      %v1770 = vsub.s32 0, %v1769
      %v1771 = vrot.slane %v1767, %v1770
      %v1772 = vmul.f32 %v1607, %v1771
      %v1773 = vmul.f32 %v1608, %v1771
      %v1774 = vmul.f32 %v1609, %v1771
      %v1775 = vmul.f32 %v1610, %v1771
      %v1776 = vmul.f32 %v1611, %v1771
      %v1777 = vmul.f32 %v1612, %v1771
      %v1778 = vmul.f32 %v1613, %v1771
      %v1779 = vmul.f32 %v1614, %v1771
      %v1780 = vmul.f32 %v1615, %v1771
      %v1781 = vmul.f32 %v1616, %v1771
      %v1782 = vmul.f32 %v1617, %v1771
      %v1783 = vmul.f32 %v1618, %v1771
      %v1784 = vadd.f32 %v1755, %v1772
      %v1785 = vadd.f32 %v1756, %v1773
      %v1786 = vadd.f32 %v1757, %v1774
      %v1787 = vadd.f32 %v1758, %v1775
      %v1788 = vadd.f32 %v1759, %v1776
      %v1789 = vadd.f32 %v1760, %v1777
      %v1790 = vadd.f32 %v1761, %v1778
      %v1791 = vadd.f32 %v1762, %v1779
      %v1792 = vadd.f32 %v1763, %v1780
      %v1793 = vadd.f32 %v1764, %v1781
      %v1794 = vadd.f32 %v1765, %v1782
      %v1795 = vadd.f32 %v1766, %v1783
      %v1796 = vld [vmem:[%s863 + $0x4] sm:$0x1]
      %v1797 = vlaneseq
      %v1798 = vshrl.u32 %v1797, 7
      %v1799 = vsub.s32 0, %v1798
      %v1800 = vrot.slane %v1796, %v1799
      %v1801 = vmul.f32 %v1610, %v1800
      %v1802 = vmul.f32 %v1611, %v1800
      %v1803 = vmul.f32 %v1612, %v1800
      %v1804 = vmul.f32 %v1613, %v1800
      %v1805 = vmul.f32 %v1614, %v1800
      %v1806 = vmul.f32 %v1615, %v1800
      %v1807 = vmul.f32 %v1616, %v1800
      %v1808 = vmul.f32 %v1617, %v1800
      %v1809 = vmul.f32 %v1618, %v1800
      %v1810 = vmul.f32 %v1619, %v1800
      %v1811 = vmul.f32 %v1620, %v1800
      %v1812 = vmul.f32 %v1621, %v1800
      %v1813 = vadd.f32 %v1784, %v1801
      %v1814 = vadd.f32 %v1785, %v1802
      %v1815 = vadd.f32 %v1786, %v1803
      %v1816 = vadd.f32 %v1787, %v1804
      %v1817 = vadd.f32 %v1788, %v1805
      %v1818 = vadd.f32 %v1789, %v1806
      %v1819 = vadd.f32 %v1790, %v1807
      %v1820 = vadd.f32 %v1791, %v1808
      %v1821 = vadd.f32 %v1792, %v1809
      %v1822 = vadd.f32 %v1793, %v1810
      %v1823 = vadd.f32 %v1794, %v1811
      %v1824 = vadd.f32 %v1795, %v1812
      %v1825 = vld [vmem:[#allocation2 + $0x5] sm:$0xff]
      %v1826 = vld [vmem:[#allocation2 + $0xd] sm:$0xff]
      %v1827 = vld [vmem:[#allocation2 + $0x15] sm:$0xff]
      %v1828 = vld [vmem:[#allocation2 + $0x25] sm:$0xff]
      %v1829 = vld [vmem:[#allocation2 + $0x2d] sm:$0xff]
      %v1830 = vld [vmem:[#allocation2 + $0x35] sm:$0xff]
      %v1831 = vld [vmem:[#allocation2 + $0x45] sm:$0xff]
      %v1832 = vld [vmem:[#allocation2 + $0x4d] sm:$0xff]
      %v1833 = vld [vmem:[#allocation2 + $0x55] sm:$0xff]
      %v1834 = vld [vmem:[#allocation2 + $0x65] sm:$0xff]
      %v1835 = vld [vmem:[#allocation2 + $0x6d] sm:$0xff]
      %v1836 = vld [vmem:[#allocation2 + $0x75] sm:$0xff]
      %v1837 = vld [vmem:[#allocation2 + $0x85] sm:$0xff]
      %v1838 = vld [vmem:[#allocation2 + $0x8d] sm:$0xff]
      %v1839 = vld [vmem:[#allocation2 + $0x95] sm:$0xff]
      %v1840 = vld [vmem:[#allocation2 + $0xa5] sm:$0xff]
      %v1841 = vld [vmem:[#allocation2 + $0xad] sm:$0xff]
      %v1842 = vld [vmem:[#allocation2 + $0xb5] sm:$0xff]
      %v1843 = vld [vmem:[#allocation2 + $0xc5] sm:$0xff]
      %v1844 = vld [vmem:[#allocation2 + $0xcd] sm:$0xff]
      %v1845 = vld [vmem:[#allocation2 + $0xd5] sm:$0xff]
      %v1846 = vld [vmem:[#allocation2 + $0xe5] sm:$0xff]
      %v1847 = vld [vmem:[#allocation2 + $0xed] sm:$0xff]
      %v1848 = vld [vmem:[#allocation2 + $0xf5] sm:$0xff]
      %v1849 = vld [vmem:[#allocation2 + $0x105] sm:$0xff]
      %v1850 = vld [vmem:[#allocation2 + $0x10d] sm:$0xff]
      %v1851 = vld [vmem:[#allocation2 + $0x115] sm:$0xff]
      %v1852 = vld [vmem:[#allocation2 + $0x125] sm:$0xff]
      %v1853 = vld [vmem:[#allocation2 + $0x12d] sm:$0xff]
      %v1854 = vld [vmem:[#allocation2 + $0x135] sm:$0xff]
      %v1855 = vld [vmem:[%s3 + $0x5] sm:$0x1]
      %v1856 = vlaneseq
      %v1857 = vshrl.u32 %v1856, 7
      %v1858 = vsub.s32 0, %v1857
      %v1859 = vrot.slane %v1855, %v1858
      %v1860 = vmul.f32 %v1825, %v1859
      %v1861 = vmul.f32 %v1826, %v1859
      %v1862 = vmul.f32 %v1827, %v1859
      %v1863 = vmul.f32 %v1828, %v1859
      %v1864 = vmul.f32 %v1829, %v1859
      %v1865 = vmul.f32 %v1830, %v1859
      %v1866 = vmul.f32 %v1831, %v1859
      %v1867 = vmul.f32 %v1832, %v1859
      %v1868 = vmul.f32 %v1833, %v1859
      %v1869 = vmul.f32 %v1834, %v1859
      %v1870 = vmul.f32 %v1835, %v1859
      %v1871 = vmul.f32 %v1836, %v1859
      %v1872 = vadd.f32 %v1813, %v1860
      %v1873 = vadd.f32 %v1814, %v1861
      %v1874 = vadd.f32 %v1815, %v1862
      %v1875 = vadd.f32 %v1816, %v1863
      %v1876 = vadd.f32 %v1817, %v1864
      %v1877 = vadd.f32 %v1818, %v1865
      %v1878 = vadd.f32 %v1819, %v1866
      %v1879 = vadd.f32 %v1820, %v1867
      %v1880 = vadd.f32 %v1821, %v1868
      %v1881 = vadd.f32 %v1822, %v1869
      %v1882 = vadd.f32 %v1823, %v1870
      %v1883 = vadd.f32 %v1824, %v1871
      %v1884 = vld [vmem:[%s713 + $0x5] sm:$0x1]
      %v1885 = vlaneseq
      %v1886 = vshrl.u32 %v1885, 7
      %v1887 = vsub.s32 0, %v1886
      %v1888 = vrot.slane %v1884, %v1887
      %v1889 = vmul.f32 %v1828, %v1888
      %v1890 = vmul.f32 %v1829, %v1888
      %v1891 = vmul.f32 %v1830, %v1888
      %v1892 = vmul.f32 %v1831, %v1888
      %v1893 = vmul.f32 %v1832, %v1888
      %v1894 = vmul.f32 %v1833, %v1888
      %v1895 = vmul.f32 %v1834, %v1888
      %v1896 = vmul.f32 %v1835, %v1888
      %v1897 = vmul.f32 %v1836, %v1888
      %v1898 = vmul.f32 %v1837, %v1888
      %v1899 = vmul.f32 %v1838, %v1888
      %v1900 = vmul.f32 %v1839, %v1888
      %v1901 = vadd.f32 %v1872, %v1889
      %v1902 = vadd.f32 %v1873, %v1890
      %v1903 = vadd.f32 %v1874, %v1891
      %v1904 = vadd.f32 %v1875, %v1892
      %v1905 = vadd.f32 %v1876, %v1893
      %v1906 = vadd.f32 %v1877, %v1894
      %v1907 = vadd.f32 %v1878, %v1895
      %v1908 = vadd.f32 %v1879, %v1896
      %v1909 = vadd.f32 %v1880, %v1897
      %v1910 = vadd.f32 %v1881, %v1898
      %v1911 = vadd.f32 %v1882, %v1899
      %v1912 = vadd.f32 %v1883, %v1900
      %v1913 = vld [vmem:[%s743 + $0x5] sm:$0x1]
      %v1914 = vlaneseq
      %v1915 = vshrl.u32 %v1914, 7
      %v1916 = vsub.s32 0, %v1915
      %v1917 = vrot.slane %v1913, %v1916
      %v1918 = vmul.f32 %v1831, %v1917
      %v1919 = vmul.f32 %v1832, %v1917
      %v1920 = vmul.f32 %v1833, %v1917
      %v1921 = vmul.f32 %v1834, %v1917
      %v1922 = vmul.f32 %v1835, %v1917
      %v1923 = vmul.f32 %v1836, %v1917
      %v1924 = vmul.f32 %v1837, %v1917
      %v1925 = vmul.f32 %v1838, %v1917
      %v1926 = vmul.f32 %v1839, %v1917
      %v1927 = vmul.f32 %v1840, %v1917
      %v1928 = vmul.f32 %v1841, %v1917
      %v1929 = vmul.f32 %v1842, %v1917
      %v1930 = vadd.f32 %v1901, %v1918
      %v1931 = vadd.f32 %v1902, %v1919
      %v1932 = vadd.f32 %v1903, %v1920
      %v1933 = vadd.f32 %v1904, %v1921
      %v1934 = vadd.f32 %v1905, %v1922
      %v1935 = vadd.f32 %v1906, %v1923
      %v1936 = vadd.f32 %v1907, %v1924
      %v1937 = vadd.f32 %v1908, %v1925
      %v1938 = vadd.f32 %v1909, %v1926
      %v1939 = vadd.f32 %v1910, %v1927
      %v1940 = vadd.f32 %v1911, %v1928
      %v1941 = vadd.f32 %v1912, %v1929
      %v1942 = vld [vmem:[%s773 + $0x5] sm:$0x1]
      %v1943 = vlaneseq
      %v1944 = vshrl.u32 %v1943, 7
      %v1945 = vsub.s32 0, %v1944
      %v1946 = vrot.slane %v1942, %v1945
      %v1947 = vmul.f32 %v1834, %v1946
      %v1948 = vmul.f32 %v1835, %v1946
      %v1949 = vmul.f32 %v1836, %v1946
      %v1950 = vmul.f32 %v1837, %v1946
      %v1951 = vmul.f32 %v1838, %v1946
      %v1952 = vmul.f32 %v1839, %v1946
      %v1953 = vmul.f32 %v1840, %v1946
      %v1954 = vmul.f32 %v1841, %v1946
      %v1955 = vmul.f32 %v1842, %v1946
      %v1956 = vmul.f32 %v1843, %v1946
      %v1957 = vmul.f32 %v1844, %v1946
      %v1958 = vmul.f32 %v1845, %v1946
      %v1959 = vadd.f32 %v1930, %v1947
      %v1960 = vadd.f32 %v1931, %v1948
      %v1961 = vadd.f32 %v1932, %v1949
      %v1962 = vadd.f32 %v1933, %v1950
      %v1963 = vadd.f32 %v1934, %v1951
      %v1964 = vadd.f32 %v1935, %v1952
      %v1965 = vadd.f32 %v1936, %v1953
      %v1966 = vadd.f32 %v1937, %v1954
      %v1967 = vadd.f32 %v1938, %v1955
      %v1968 = vadd.f32 %v1939, %v1956
      %v1969 = vadd.f32 %v1940, %v1957
      %v1970 = vadd.f32 %v1941, %v1958
      %v1971 = vld [vmem:[%s803 + $0x5] sm:$0x1]
      %v1972 = vlaneseq
      %v1973 = vshrl.u32 %v1972, 7
      %v1974 = vsub.s32 0, %v1973
      %v1975 = vrot.slane %v1971, %v1974
      %v1976 = vmul.f32 %v1837, %v1975
      %v1977 = vmul.f32 %v1838, %v1975
      %v1978 = vmul.f32 %v1839, %v1975
      %v1979 = vmul.f32 %v1840, %v1975
      %v1980 = vmul.f32 %v1841, %v1975
      %v1981 = vmul.f32 %v1842, %v1975
      %v1982 = vmul.f32 %v1843, %v1975
      %v1983 = vmul.f32 %v1844, %v1975
      %v1984 = vmul.f32 %v1845, %v1975
      %v1985 = vmul.f32 %v1846, %v1975
      %v1986 = vmul.f32 %v1847, %v1975
      %v1987 = vmul.f32 %v1848, %v1975
      %v1988 = vadd.f32 %v1959, %v1976
      %v1989 = vadd.f32 %v1960, %v1977
      %v1990 = vadd.f32 %v1961, %v1978
      %v1991 = vadd.f32 %v1962, %v1979
      %v1992 = vadd.f32 %v1963, %v1980
      %v1993 = vadd.f32 %v1964, %v1981
      %v1994 = vadd.f32 %v1965, %v1982
      %v1995 = vadd.f32 %v1966, %v1983
      %v1996 = vadd.f32 %v1967, %v1984
      %v1997 = vadd.f32 %v1968, %v1985
      %v1998 = vadd.f32 %v1969, %v1986
      %v1999 = vadd.f32 %v1970, %v1987
      %v2000 = vld [vmem:[%s833 + $0x5] sm:$0x1]
      %v2001 = vlaneseq
      %v2002 = vshrl.u32 %v2001, 7
      %v2003 = vsub.s32 0, %v2002
      %v2004 = vrot.slane %v2000, %v2003
      %v2005 = vmul.f32 %v1840, %v2004
      %v2006 = vmul.f32 %v1841, %v2004
      %v2007 = vmul.f32 %v1842, %v2004
      %v2008 = vmul.f32 %v1843, %v2004
      %v2009 = vmul.f32 %v1844, %v2004
      %v2010 = vmul.f32 %v1845, %v2004
      %v2011 = vmul.f32 %v1846, %v2004
      %v2012 = vmul.f32 %v1847, %v2004
      %v2013 = vmul.f32 %v1848, %v2004
      %v2014 = vmul.f32 %v1849, %v2004
      %v2015 = vmul.f32 %v1850, %v2004
      %v2016 = vmul.f32 %v1851, %v2004
      %v2017 = vadd.f32 %v1988, %v2005
      %v2018 = vadd.f32 %v1989, %v2006
      %v2019 = vadd.f32 %v1990, %v2007
      %v2020 = vadd.f32 %v1991, %v2008
      %v2021 = vadd.f32 %v1992, %v2009
      %v2022 = vadd.f32 %v1993, %v2010
      %v2023 = vadd.f32 %v1994, %v2011
      %v2024 = vadd.f32 %v1995, %v2012
      %v2025 = vadd.f32 %v1996, %v2013
      %v2026 = vadd.f32 %v1997, %v2014
      %v2027 = vadd.f32 %v1998, %v2015
      %v2028 = vadd.f32 %v1999, %v2016
      %v2029 = vld [vmem:[%s863 + $0x5] sm:$0x1]
      %v2030 = vlaneseq
      %v2031 = vshrl.u32 %v2030, 7
      %v2032 = vsub.s32 0, %v2031
      %v2033 = vrot.slane %v2029, %v2032
      %v2034 = vmul.f32 %v1843, %v2033
      %v2035 = vmul.f32 %v1844, %v2033
      %v2036 = vmul.f32 %v1845, %v2033
      %v2037 = vmul.f32 %v1846, %v2033
      %v2038 = vmul.f32 %v1847, %v2033
      %v2039 = vmul.f32 %v1848, %v2033
      %v2040 = vmul.f32 %v1849, %v2033
      %v2041 = vmul.f32 %v1850, %v2033
      %v2042 = vmul.f32 %v1851, %v2033
      %v2043 = vmul.f32 %v1852, %v2033
      %v2044 = vmul.f32 %v1853, %v2033
      %v2045 = vmul.f32 %v1854, %v2033
      %v2046 = vadd.f32 %v2017, %v2034
      %v2047 = vadd.f32 %v2018, %v2035
      %v2048 = vadd.f32 %v2019, %v2036
      %v2049 = vadd.f32 %v2020, %v2037
      %v2050 = vadd.f32 %v2021, %v2038
      %v2051 = vadd.f32 %v2022, %v2039
      %v2052 = vadd.f32 %v2023, %v2040
      %v2053 = vadd.f32 %v2024, %v2041
      %v2054 = vadd.f32 %v2025, %v2042
      %v2055 = vadd.f32 %v2026, %v2043
      %v2056 = vadd.f32 %v2027, %v2044
      %v2057 = vadd.f32 %v2028, %v2045
      %v2058 = vld [vmem:[#allocation2 + $0x6] sm:$0xff]
      %v2059 = vld [vmem:[#allocation2 + $0xe] sm:$0xff]
      %v2060 = vld [vmem:[#allocation2 + $0x16] sm:$0xff]
      %v2061 = vld [vmem:[#allocation2 + $0x26] sm:$0xff]
      %v2062 = vld [vmem:[#allocation2 + $0x2e] sm:$0xff]
      %v2063 = vld [vmem:[#allocation2 + $0x36] sm:$0xff]
      %v2064 = vld [vmem:[#allocation2 + $0x46] sm:$0xff]
      %v2065 = vld [vmem:[#allocation2 + $0x4e] sm:$0xff]
      %v2066 = vld [vmem:[#allocation2 + $0x56] sm:$0xff]
      %v2067 = vld [vmem:[#allocation2 + $0x66] sm:$0xff]
      %v2068 = vld [vmem:[#allocation2 + $0x6e] sm:$0xff]
      %v2069 = vld [vmem:[#allocation2 + $0x76] sm:$0xff]
      %v2070 = vld [vmem:[#allocation2 + $0x86] sm:$0xff]
      %v2071 = vld [vmem:[#allocation2 + $0x8e] sm:$0xff]
      %v2072 = vld [vmem:[#allocation2 + $0x96] sm:$0xff]
      %v2073 = vld [vmem:[#allocation2 + $0xa6] sm:$0xff]
      %v2074 = vld [vmem:[#allocation2 + $0xae] sm:$0xff]
      %v2075 = vld [vmem:[#allocation2 + $0xb6] sm:$0xff]
      %v2076 = vld [vmem:[#allocation2 + $0xc6] sm:$0xff]
      %v2077 = vld [vmem:[#allocation2 + $0xce] sm:$0xff]
      %v2078 = vld [vmem:[#allocation2 + $0xd6] sm:$0xff]
      %v2079 = vld [vmem:[#allocation2 + $0xe6] sm:$0xff]
      %v2080 = vld [vmem:[#allocation2 + $0xee] sm:$0xff]
      %v2081 = vld [vmem:[#allocation2 + $0xf6] sm:$0xff]
      %v2082 = vld [vmem:[#allocation2 + $0x106] sm:$0xff]
      %v2083 = vld [vmem:[#allocation2 + $0x10e] sm:$0xff]
      %v2084 = vld [vmem:[#allocation2 + $0x116] sm:$0xff]
      %v2085 = vld [vmem:[#allocation2 + $0x126] sm:$0xff]
      %v2086 = vld [vmem:[#allocation2 + $0x12e] sm:$0xff]
      %v2087 = vld [vmem:[#allocation2 + $0x136] sm:$0xff]
      %v2088 = vld [vmem:[%s3 + $0x6] sm:$0x1]
      %v2089 = vlaneseq
      %v2090 = vshrl.u32 %v2089, 7
      %v2091 = vsub.s32 0, %v2090
      %v2092 = vrot.slane %v2088, %v2091
      %v2093 = vmul.f32 %v2058, %v2092
      %v2094 = vmul.f32 %v2059, %v2092
      %v2095 = vmul.f32 %v2060, %v2092
      %v2096 = vmul.f32 %v2061, %v2092
      %v2097 = vmul.f32 %v2062, %v2092
      %v2098 = vmul.f32 %v2063, %v2092
      %v2099 = vmul.f32 %v2064, %v2092
      %v2100 = vmul.f32 %v2065, %v2092
      %v2101 = vmul.f32 %v2066, %v2092
      %v2102 = vmul.f32 %v2067, %v2092
      %v2103 = vmul.f32 %v2068, %v2092
      %v2104 = vmul.f32 %v2069, %v2092
      %v2105 = vadd.f32 %v2046, %v2093
      %v2106 = vadd.f32 %v2047, %v2094
      %v2107 = vadd.f32 %v2048, %v2095
      %v2108 = vadd.f32 %v2049, %v2096
      %v2109 = vadd.f32 %v2050, %v2097
      %v2110 = vadd.f32 %v2051, %v2098
      %v2111 = vadd.f32 %v2052, %v2099
      %v2112 = vadd.f32 %v2053, %v2100
      %v2113 = vadd.f32 %v2054, %v2101
      %v2114 = vadd.f32 %v2055, %v2102
      %v2115 = vadd.f32 %v2056, %v2103
      %v2116 = vadd.f32 %v2057, %v2104
      %v2117 = vld [vmem:[%s713 + $0x6] sm:$0x1]
      %v2118 = vlaneseq
      %v2119 = vshrl.u32 %v2118, 7
      %v2120 = vsub.s32 0, %v2119
      %v2121 = vrot.slane %v2117, %v2120
      %v2122 = vmul.f32 %v2061, %v2121
      %v2123 = vmul.f32 %v2062, %v2121
      %v2124 = vmul.f32 %v2063, %v2121
      %v2125 = vmul.f32 %v2064, %v2121
      %v2126 = vmul.f32 %v2065, %v2121
      %v2127 = vmul.f32 %v2066, %v2121
      %v2128 = vmul.f32 %v2067, %v2121
      %v2129 = vmul.f32 %v2068, %v2121
      %v2130 = vmul.f32 %v2069, %v2121
      %v2131 = vmul.f32 %v2070, %v2121
      %v2132 = vmul.f32 %v2071, %v2121
      %v2133 = vmul.f32 %v2072, %v2121
      %v2134 = vadd.f32 %v2105, %v2122
      %v2135 = vadd.f32 %v2106, %v2123
      %v2136 = vadd.f32 %v2107, %v2124
      %v2137 = vadd.f32 %v2108, %v2125
      %v2138 = vadd.f32 %v2109, %v2126
      %v2139 = vadd.f32 %v2110, %v2127
      %v2140 = vadd.f32 %v2111, %v2128
      %v2141 = vadd.f32 %v2112, %v2129
      %v2142 = vadd.f32 %v2113, %v2130
      %v2143 = vadd.f32 %v2114, %v2131
      %v2144 = vadd.f32 %v2115, %v2132
      %v2145 = vadd.f32 %v2116, %v2133
      %v2146 = vld [vmem:[%s743 + $0x6] sm:$0x1]
      %v2147 = vlaneseq
      %v2148 = vshrl.u32 %v2147, 7
      %v2149 = vsub.s32 0, %v2148
      %v2150 = vrot.slane %v2146, %v2149
      %v2151 = vmul.f32 %v2064, %v2150
      %v2152 = vmul.f32 %v2065, %v2150
      %v2153 = vmul.f32 %v2066, %v2150
      %v2154 = vmul.f32 %v2067, %v2150
      %v2155 = vmul.f32 %v2068, %v2150
      %v2156 = vmul.f32 %v2069, %v2150
      %v2157 = vmul.f32 %v2070, %v2150
      %v2158 = vmul.f32 %v2071, %v2150
      %v2159 = vmul.f32 %v2072, %v2150
      %v2160 = vmul.f32 %v2073, %v2150
      %v2161 = vmul.f32 %v2074, %v2150
      %v2162 = vmul.f32 %v2075, %v2150
      %v2163 = vadd.f32 %v2134, %v2151
      %v2164 = vadd.f32 %v2135, %v2152
      %v2165 = vadd.f32 %v2136, %v2153
      %v2166 = vadd.f32 %v2137, %v2154
      %v2167 = vadd.f32 %v2138, %v2155
      %v2168 = vadd.f32 %v2139, %v2156
      %v2169 = vadd.f32 %v2140, %v2157
      %v2170 = vadd.f32 %v2141, %v2158
      %v2171 = vadd.f32 %v2142, %v2159
      %v2172 = vadd.f32 %v2143, %v2160
      %v2173 = vadd.f32 %v2144, %v2161
      %v2174 = vadd.f32 %v2145, %v2162
      %v2175 = vld [vmem:[%s773 + $0x6] sm:$0x1]
      %v2176 = vlaneseq
      %v2177 = vshrl.u32 %v2176, 7
      %v2178 = vsub.s32 0, %v2177
      %v2179 = vrot.slane %v2175, %v2178
      %v2180 = vmul.f32 %v2067, %v2179
      %v2181 = vmul.f32 %v2068, %v2179
      %v2182 = vmul.f32 %v2069, %v2179
      %v2183 = vmul.f32 %v2070, %v2179
      %v2184 = vmul.f32 %v2071, %v2179
      %v2185 = vmul.f32 %v2072, %v2179
      %v2186 = vmul.f32 %v2073, %v2179
      %v2187 = vmul.f32 %v2074, %v2179
      %v2188 = vmul.f32 %v2075, %v2179
      %v2189 = vmul.f32 %v2076, %v2179
      %v2190 = vmul.f32 %v2077, %v2179
      %v2191 = vmul.f32 %v2078, %v2179
      %v2192 = vadd.f32 %v2163, %v2180
      %v2193 = vadd.f32 %v2164, %v2181
      %v2194 = vadd.f32 %v2165, %v2182
      %v2195 = vadd.f32 %v2166, %v2183
      %v2196 = vadd.f32 %v2167, %v2184
      %v2197 = vadd.f32 %v2168, %v2185
      %v2198 = vadd.f32 %v2169, %v2186
      %v2199 = vadd.f32 %v2170, %v2187
      %v2200 = vadd.f32 %v2171, %v2188
      %v2201 = vadd.f32 %v2172, %v2189
      %v2202 = vadd.f32 %v2173, %v2190
      %v2203 = vadd.f32 %v2174, %v2191
      %v2204 = vld [vmem:[%s803 + $0x6] sm:$0x1]
      %v2205 = vlaneseq
      %v2206 = vshrl.u32 %v2205, 7
      %v2207 = vsub.s32 0, %v2206
      %v2208 = vrot.slane %v2204, %v2207
      %v2209 = vmul.f32 %v2070, %v2208
      %v2210 = vmul.f32 %v2071, %v2208
      %v2211 = vmul.f32 %v2072, %v2208
      %v2212 = vmul.f32 %v2073, %v2208
      %v2213 = vmul.f32 %v2074, %v2208
      %v2214 = vmul.f32 %v2075, %v2208
      %v2215 = vmul.f32 %v2076, %v2208
      %v2216 = vmul.f32 %v2077, %v2208
      %v2217 = vmul.f32 %v2078, %v2208
      %v2218 = vmul.f32 %v2079, %v2208
      %v2219 = vmul.f32 %v2080, %v2208
      %v2220 = vmul.f32 %v2081, %v2208
      %v2221 = vadd.f32 %v2192, %v2209
      %v2222 = vadd.f32 %v2193, %v2210
      %v2223 = vadd.f32 %v2194, %v2211
      %v2224 = vadd.f32 %v2195, %v2212
      %v2225 = vadd.f32 %v2196, %v2213
      %v2226 = vadd.f32 %v2197, %v2214
      %v2227 = vadd.f32 %v2198, %v2215
      %v2228 = vadd.f32 %v2199, %v2216
      %v2229 = vadd.f32 %v2200, %v2217
      %v2230 = vadd.f32 %v2201, %v2218
      %v2231 = vadd.f32 %v2202, %v2219
      %v2232 = vadd.f32 %v2203, %v2220
      %v2233 = vld [vmem:[%s833 + $0x6] sm:$0x1]
      %v2234 = vlaneseq
      %v2235 = vshrl.u32 %v2234, 7
      %v2236 = vsub.s32 0, %v2235
      %v2237 = vrot.slane %v2233, %v2236
      %v2238 = vmul.f32 %v2073, %v2237
      %v2239 = vmul.f32 %v2074, %v2237
      %v2240 = vmul.f32 %v2075, %v2237
      %v2241 = vmul.f32 %v2076, %v2237
      %v2242 = vmul.f32 %v2077, %v2237
      %v2243 = vmul.f32 %v2078, %v2237
      %v2244 = vmul.f32 %v2079, %v2237
      %v2245 = vmul.f32 %v2080, %v2237
      %v2246 = vmul.f32 %v2081, %v2237
      %v2247 = vmul.f32 %v2082, %v2237
      %v2248 = vmul.f32 %v2083, %v2237
      %v2249 = vmul.f32 %v2084, %v2237
      %v2250 = vadd.f32 %v2221, %v2238
      %v2251 = vadd.f32 %v2222, %v2239
      %v2252 = vadd.f32 %v2223, %v2240
      %v2253 = vadd.f32 %v2224, %v2241
      %v2254 = vadd.f32 %v2225, %v2242
      %v2255 = vadd.f32 %v2226, %v2243
      %v2256 = vadd.f32 %v2227, %v2244
      %v2257 = vadd.f32 %v2228, %v2245
      %v2258 = vadd.f32 %v2229, %v2246
      %v2259 = vadd.f32 %v2230, %v2247
      %v2260 = vadd.f32 %v2231, %v2248
      %v2261 = vadd.f32 %v2232, %v2249
      %v2262 = vld [vmem:[%s863 + $0x6] sm:$0x1]
      %v2263 = vlaneseq
      %v2264 = vshrl.u32 %v2263, 7
      %v2265 = vsub.s32 0, %v2264
      %v2266 = vrot.slane %v2262, %v2265
      %v2267 = vmul.f32 %v2076, %v2266
      %v2268 = vmul.f32 %v2077, %v2266
      %v2269 = vmul.f32 %v2078, %v2266
      %v2270 = vmul.f32 %v2079, %v2266
      %v2271 = vmul.f32 %v2080, %v2266
      %v2272 = vmul.f32 %v2081, %v2266
      %v2273 = vmul.f32 %v2082, %v2266
      %v2274 = vmul.f32 %v2083, %v2266
      %v2275 = vmul.f32 %v2084, %v2266
      %v2276 = vmul.f32 %v2085, %v2266
      %v2277 = vmul.f32 %v2086, %v2266
      %v2278 = vmul.f32 %v2087, %v2266
      %v2279 = vadd.f32 %v2250, %v2267
      %v2280 = vadd.f32 %v2251, %v2268
      %v2281 = vadd.f32 %v2252, %v2269
      %v2282 = vadd.f32 %v2253, %v2270
      %v2283 = vadd.f32 %v2254, %v2271
      %v2284 = vadd.f32 %v2255, %v2272
      %v2285 = vadd.f32 %v2256, %v2273
      %v2286 = vadd.f32 %v2257, %v2274
      %v2287 = vadd.f32 %v2258, %v2275
      %v2288 = vadd.f32 %v2259, %v2276
      %v2289 = vadd.f32 %v2260, %v2277
      %v2290 = vadd.f32 %v2261, %v2278
      %v2291 = vld [vmem:[%s4] sm:$0x1]
      %v2293 = vlaneseq
      %v2294 = vshrl.u32 %v2293, 7
      %v2295 = vsub.s32 0, %v2294
      %v2296 = vrot.slane %v2291, %v2295
      %v2298 = vadd.f32 %v2279, %v2296
      %v2299 = vadd.f32 %v2280, %v2296
      %v2300 = vadd.f32 %v2281, %v2296
      %v2301 = vadd.f32 %v2282, %v2296
      %v2302 = vadd.f32 %v2283, %v2296
      %v2303 = vadd.f32 %v2284, %v2296
      %v2304 = vadd.f32 %v2285, %v2296
      %v2305 = vadd.f32 %v2286, %v2296
      %v2306 = vadd.f32 %v2287, %v2296
      %v2307 = vadd.f32 %v2288, %v2296
      %v2308 = vadd.f32 %v2289, %v2296
      %v2309 = vadd.f32 %v2290, %v2296
      %v2310 = vld [vmem:[%s5] sm:$0xff]
      %v2311 = vld [vmem:[%s5 + $0x8] sm:$0xff]
      %v2312 = vld [vmem:[%s6] sm:$0x1]
      %v2314 = vlaneseq
      %v2315 = vshrl.u32 %v2314, 7
      %v2316 = vsub.s32 0, %v2315
      %v2317 = vrot.slane %v2312, %v2316
      %v2320 = vsel %vm569, %v2298, 0
      %v2323 = vsel %vm569, %v2299, 0
      %v2326 = vsel %vm569, %v2300, 0
      %v2329 = vsel %vm569, %v2301, 0
      %v2332 = vsel %vm569, %v2302, 0
      %v2335 = vsel %vm569, %v2303, 0
      %v2338 = vsel %vm569, %v2304, 0
      %v2341 = vsel %vm569, %v2305, 0
      %v2344 = vsel %vm569, %v2306, 0
      %v2347 = vsel %vm569, %v2307, 0
      %v2350 = vsel %vm569, %v2308, 0
      %v2353 = vsel %vm569, %v2309, 0
      %2355 = vmatprep.subr.mxu0 0.0
      %2356 = vmatpush1.msra.mxu0 0.0
      %2357 = vmatprep.subr.mxu0 0.0
      %2358 = vmatpush1.msra.mxu0 0.0
      %2359 = vmatprep.subr.mxu0 0.0
      %2360 = vmatpush1.msra.mxu0 0.0
      %2361 = vmatprep.subr.mxu0 0.0
      %2362 = vmatpush1.msra.mxu0 0.0
      %2363 = vmatprep.subr.mxu0 0.0
      %2364 = vmatpush1.msra.mxu0 0.0
      %2365 = vmatprep.subr.mxu0 0.0
      %2366 = vmatpush1.msra.mxu0 0.0
      %2367 = vmatprep.subr.mxu0 0.0
      %2368 = vmatpush1.msra.mxu0 0.0
      %2369 = vmatprep.subr.mxu0 0.0
      %2370 = vmatpush1.msra.mxu0 0.0
      %2371 = vmatprep.subr.mxu0 0.0
      %2372 = vmatpush1.msra.mxu0 0.0
      %2373 = vmatprep.subr.mxu0 0.0
      %2374 = vmatpush1.msra.mxu0 0.0
      %2375 = vmatprep.subr.mxu0 0.0
      %2376 = vmatpush1.msra.mxu0 0.0
      %2377 = vmatprep.subr.mxu0 0.0
      %2378 = vmatpush1.msra.mxu0 0.0
      %2379 = vmatprep.subr.mxu0 0.0
      %2380 = vmatpush1.msra.mxu0 0.0
      %2381 = vmatprep.subr.mxu0 0.0
      %2382 = vmatpush1.msra.mxu0 0.0
      %2383 = vmatprep.subr.mxu0 0.0
      %2384 = vmatpush1.msra.mxu0 %v2311
      %2385 = vmatprep.subr.mxu0 0.0
      %2386 = vmatpush1.msra.mxu0 %v2310
      %2387 = vmatprep.subr.mxu0 0.0
      %2388 = vmatpush2.msra.mxu0 0.0
      %2389 = vmatprep.subr.mxu0 0.0
      %2390 = vmatpush2.msra.mxu0 0.0
      %2391 = vmatprep.subr.mxu0 0.0
      %2392 = vmatpush2.msra.mxu0 0.0
      %2393 = vmatprep.subr.mxu0 0.0
      %2394 = vmatpush2.msra.mxu0 0.0
      %2395 = vmatprep.subr.mxu0 0.0
      %2396 = vmatpush2.msra.mxu0 0.0
      %2397 = vmatprep.subr.mxu0 0.0
      %2398 = vmatpush2.msra.mxu0 0.0
      %2399 = vmatprep.subr.mxu0 0.0
      %2400 = vmatpush2.msra.mxu0 0.0
      %2401 = vmatprep.subr.mxu0 0.0
      %2402 = vmatpush2.msra.mxu0 0.0
      %2403 = vmatprep.subr.mxu0 0.0
      %2404 = vmatpush2.msra.mxu0 0.0
      %2405 = vmatprep.subr.mxu0 0.0
      %2406 = vmatpush2.msra.mxu0 0.0
      %2407 = vmatprep.subr.mxu0 0.0
      %2408 = vmatpush2.msra.mxu0 0.0
      %2409 = vmatprep.subr.mxu0 0.0
      %2410 = vmatpush2.msra.mxu0 0.0
      %2411 = vmatprep.subr.mxu0 0.0
      %2412 = vmatpush2.msra.mxu0 0.0
      %2413 = vmatprep.subr.mxu0 0.0
      %2414 = vmatpush2.msra.mxu0 0.0
      %2415 = vmatprep.subr.mxu0 0.0
      %2416 = vmatpush2.msra.mxu0 0.0
      %2417 = vmatprep.subr.mxu0 0.0
      %2418 = vmatpush2.msra.mxu0 0.0
      %2419 = vmatprep.mubr.f32.mxu0 0.0
      %2420 = vmatmul.mubr.f32.gmra.mxu0 %v2320
      %v2421 = vpop.f32.mrf.mxu0
      %v2422 = vadd.f32 %v2317, %v2421
      %v2423 = vpop.f32.mrf.mxu0
      %2424 = vmatprep.mubr.f32.mxu0 0.0
      %2425 = vmatmul.mubr.f32.gmra.mxu0 %v2323
      %v2426 = vpop.f32.mrf.mxu0
      %v2427 = vadd.f32 %v2317, %v2426
      %v2428 = vpop.f32.mrf.mxu0
      %2429 = vmatprep.mubr.f32.mxu0 0.0
      %2430 = vmatmul.mubr.f32.gmra.mxu0 %v2326
      %v2431 = vpop.f32.mrf.mxu0
      %v2432 = vadd.f32 %v2317, %v2431
      %v2433 = vpop.f32.mrf.mxu0
      %2434 = vmatprep.mubr.f32.mxu0 0.0
      %2435 = vmatmul.mubr.f32.gmra.mxu0 %v2329
      %v2436 = vpop.f32.mrf.mxu0
      %v2437 = vadd.f32 %v2317, %v2436
      %v2438 = vpop.f32.mrf.mxu0
      %2439 = vmatprep.mubr.f32.mxu0 0.0
      %2440 = vmatmul.mubr.f32.gmra.mxu0 %v2332
      %v2441 = vpop.f32.mrf.mxu0
      %v2442 = vadd.f32 %v2317, %v2441
      %v2443 = vpop.f32.mrf.mxu0
      %2444 = vmatprep.mubr.f32.mxu0 0.0
      %2445 = vmatmul.mubr.f32.gmra.mxu0 %v2335
      %v2446 = vpop.f32.mrf.mxu0
      %v2447 = vadd.f32 %v2317, %v2446
      %v2448 = vpop.f32.mrf.mxu0
      %2449 = vmatprep.mubr.f32.mxu0 0.0
      %2450 = vmatmul.mubr.f32.gmra.mxu0 %v2338
      %v2451 = vpop.f32.mrf.mxu0
      %v2452 = vadd.f32 %v2317, %v2451
      %v2453 = vpop.f32.mrf.mxu0
      %2454 = vmatprep.mubr.f32.mxu0 0.0
      %2455 = vmatmul.mubr.f32.gmra.mxu0 %v2341
      %v2456 = vpop.f32.mrf.mxu0
      %v2457 = vadd.f32 %v2317, %v2456
      %v2458 = vpop.f32.mrf.mxu0
      %2459 = vmatprep.mubr.f32.mxu0 0.0
      %2460 = vmatmul.mubr.f32.gmra.mxu0 %v2344
      %v2461 = vpop.f32.mrf.mxu0
      %v2462 = vadd.f32 %v2317, %v2461
      %v2463 = vpop.f32.mrf.mxu0
      %2464 = vmatprep.mubr.f32.mxu0 0.0
      %2465 = vmatmul.mubr.f32.gmra.mxu0 %v2347
      %v2466 = vpop.f32.mrf.mxu0
      %v2467 = vadd.f32 %v2317, %v2466
      %v2468 = vpop.f32.mrf.mxu0
      %2469 = vmatprep.mubr.f32.mxu0 0.0
      %2470 = vmatmul.mubr.f32.gmra.mxu0 %v2350
      %v2471 = vpop.f32.mrf.mxu0
      %v2472 = vadd.f32 %v2317, %v2471
      %v2473 = vpop.f32.mrf.mxu0
      %2474 = vmatprep.mubr.f32.mxu0 0.0
      %2475 = vmatmul.mubr.f32.gmra.mxu0 %v2353
      %v2476 = vpop.f32.mrf.mxu0
      %v2477 = vadd.f32 %v2317, %v2476
      %v2478 = vpop.f32.mrf.mxu0
      %2479 = vdwg.mxu0
      %v2480 = vmul.f32 %v2422, 0.5
      %v2481 = vmul.f32 %v2427, 0.5
      %v2482 = vmul.f32 %v2432, 0.5
      %v2483 = vmul.f32 %v2437, 0.5
      %v2484 = vmul.f32 %v2442, 0.5
      %v2485 = vmul.f32 %v2447, 0.5
      %v2486 = vmul.f32 %v2452, 0.5
      %v2487 = vmul.f32 %v2457, 0.5
      %v2488 = vmul.f32 %v2462, 0.5
      %v2489 = vmul.f32 %v2467, 0.5
      %v2490 = vmul.f32 %v2472, 0.5
      %v2491 = vmul.f32 %v2477, 0.5
      %v2492 = vmul.f32 %v2422, 0.044715
      %v2493 = vmul.f32 %v2427, 0.044715
      %v2494 = vmul.f32 %v2432, 0.044715
      %v2495 = vmul.f32 %v2437, 0.044715
      %v2496 = vmul.f32 %v2442, 0.044715
      %v2497 = vmul.f32 %v2447, 0.044715
      %v2498 = vmul.f32 %v2452, 0.044715
      %v2499 = vmul.f32 %v2457, 0.044715
      %v2500 = vmul.f32 %v2462, 0.044715
      %v2501 = vmul.f32 %v2467, 0.044715
      %v2502 = vmul.f32 %v2472, 0.044715
      %v2503 = vmul.f32 %v2477, 0.044715
      %v2504 = vmul.f32 %v2492, %v2422
      %v2505 = vmul.f32 %v2493, %v2427
      %v2506 = vmul.f32 %v2494, %v2432
      %v2507 = vmul.f32 %v2495, %v2437
      %v2508 = vmul.f32 %v2496, %v2442
      %v2509 = vmul.f32 %v2497, %v2447
      %v2510 = vmul.f32 %v2498, %v2452
      %v2511 = vmul.f32 %v2499, %v2457
      %v2512 = vmul.f32 %v2500, %v2462
      %v2513 = vmul.f32 %v2501, %v2467
      %v2514 = vmul.f32 %v2502, %v2472
      %v2515 = vmul.f32 %v2503, %v2477
      %v2516 = vmul.f32 %v2504, %v2422
      %v2517 = vmul.f32 %v2505, %v2427
      %v2518 = vmul.f32 %v2506, %v2432
      %v2519 = vmul.f32 %v2507, %v2437
      %v2520 = vmul.f32 %v2508, %v2442
      %v2521 = vmul.f32 %v2509, %v2447
      %v2522 = vmul.f32 %v2510, %v2452
      %v2523 = vmul.f32 %v2511, %v2457
      %v2524 = vmul.f32 %v2512, %v2462
      %v2525 = vmul.f32 %v2513, %v2467
      %v2526 = vmul.f32 %v2514, %v2472
      %v2527 = vmul.f32 %v2515, %v2477
      %v2528 = vadd.f32 %v2422, %v2516
      %v2529 = vadd.f32 %v2427, %v2517
      %v2530 = vadd.f32 %v2432, %v2518
      %v2531 = vadd.f32 %v2437, %v2519
      %v2532 = vadd.f32 %v2442, %v2520
      %v2533 = vadd.f32 %v2447, %v2521
      %v2534 = vadd.f32 %v2452, %v2522
      %v2535 = vadd.f32 %v2457, %v2523
      %v2536 = vadd.f32 %v2462, %v2524
      %v2537 = vadd.f32 %v2467, %v2525
      %v2538 = vadd.f32 %v2472, %v2526
      %v2539 = vadd.f32 %v2477, %v2527
      %v2540 = vmul.f32 %v2528, 0.7978846
      %v2541 = vmul.f32 %v2529, 0.7978846
      %v2542 = vmul.f32 %v2530, 0.7978846
      %v2543 = vmul.f32 %v2531, 0.7978846
      %v2544 = vmul.f32 %v2532, 0.7978846
      %v2545 = vmul.f32 %v2533, 0.7978846
      %v2546 = vmul.f32 %v2534, 0.7978846
      %v2547 = vmul.f32 %v2535, 0.7978846
      %v2548 = vmul.f32 %v2536, 0.7978846
      %v2549 = vmul.f32 %v2537, 0.7978846
      %v2550 = vmul.f32 %v2538, 0.7978846
      %v2551 = vmul.f32 %v2539, 0.7978846
      %v2552 = vtanh.pop %v2540
      %v2553 = vtanh.pop %v2541
      %v2554 = vtanh.pop %v2542
      %v2555 = vtanh.pop %v2543
      %v2556 = vtanh.pop %v2544
      %v2557 = vtanh.pop %v2545
      %v2558 = vtanh.pop %v2546
      %v2559 = vtanh.pop %v2547
      %v2560 = vtanh.pop %v2548
      %v2561 = vtanh.pop %v2549
      %v2562 = vtanh.pop %v2550
      %v2563 = vtanh.pop %v2551
      %v2564 = vadd.f32 %v2552, 1.0
      %v2565 = vadd.f32 %v2553, 1.0
      %v2566 = vadd.f32 %v2554, 1.0
      %v2567 = vadd.f32 %v2555, 1.0
      %v2568 = vadd.f32 %v2556, 1.0
      %v2569 = vadd.f32 %v2557, 1.0
      %v2570 = vadd.f32 %v2558, 1.0
      %v2571 = vadd.f32 %v2559, 1.0
      %v2572 = vadd.f32 %v2560, 1.0
      %v2573 = vadd.f32 %v2561, 1.0
      %v2574 = vadd.f32 %v2562, 1.0
      %v2575 = vadd.f32 %v2563, 1.0
      %v2576 = vmul.f32 %v2480, %v2564
      %v2577 = vmul.f32 %v2481, %v2565
      %v2578 = vmul.f32 %v2482, %v2566
      %v2579 = vmul.f32 %v2483, %v2567
      %v2580 = vmul.f32 %v2484, %v2568
      %v2581 = vmul.f32 %v2485, %v2569
      %v2582 = vmul.f32 %v2486, %v2570
      %v2583 = vmul.f32 %v2487, %v2571
      %v2584 = vmul.f32 %v2488, %v2572
      %v2585 = vmul.f32 %v2489, %v2573
      %v2586 = vmul.f32 %v2490, %v2574
      %v2587 = vmul.f32 %v2491, %v2575
      %v2588 = vld [vmem:[%s7] sm:$0xff]
      %v2589 = vld [vmem:[%s7 + $0x8] sm:$0xff]
      %v2590 = vld [vmem:[%s7 + $0x10] sm:$0xff]
      %v2591 = vld [vmem:[%s7 + $0x18] sm:$0xff]
      %v2592 = vld [vmem:[%s8] sm:$0x1]
      %v2594 = vlaneseq
      %v2595 = vshrl.u32 %v2594, 7
      %v2596 = vsub.s32 0, %v2595
      %v2597 = vrot.slane %v2592, %v2596
      %vm2599 = vcmask 261120
      %v2601 = vsel %vm2599, %v2576, 0
      %v2604 = vsel %vm2599, %v2577, 0
      %v2607 = vsel %vm2599, %v2578, 0
      %v2610 = vsel %vm2599, %v2579, 0
      %v2613 = vsel %vm2599, %v2580, 0
      %v2616 = vsel %vm2599, %v2581, 0
      %v2619 = vsel %vm2599, %v2582, 0
      %v2622 = vsel %vm2599, %v2583, 0
      %v2625 = vsel %vm2599, %v2584, 0
      %v2628 = vsel %vm2599, %v2585, 0
      %v2631 = vsel %vm2599, %v2586, 0
      %v2634 = vsel %vm2599, %v2587, 0
      %2636 = vmatprep.subr.mxu0 0.0
      %2637 = vmatpush1.msra.mxu0 0.0
      %2638 = vmatprep.subr.mxu0 0.0
      %2639 = vmatpush1.msra.mxu0 0.0
      %2640 = vmatprep.subr.mxu0 0.0
      %2641 = vmatpush1.msra.mxu0 0.0
      %2642 = vmatprep.subr.mxu0 0.0
      %2643 = vmatpush1.msra.mxu0 0.0
      %2644 = vmatprep.subr.mxu0 0.0
      %2645 = vmatpush1.msra.mxu0 0.0
      %2646 = vmatprep.subr.mxu0 0.0
      %2647 = vmatpush1.msra.mxu0 0.0
      %2648 = vmatprep.subr.mxu0 0.0
      %2649 = vmatpush1.msra.mxu0 0.0
      %2650 = vmatprep.subr.mxu0 0.0
      %2651 = vmatpush1.msra.mxu0 0.0
      %2652 = vmatprep.subr.mxu0 0.0
      %2653 = vmatpush1.msra.mxu0 0.0
      %2654 = vmatprep.subr.mxu0 0.0
      %2655 = vmatpush1.msra.mxu0 0.0
      %2656 = vmatprep.subr.mxu0 0.0
      %2657 = vmatpush1.msra.mxu0 0.0
      %2658 = vmatprep.subr.mxu0 0.0
      %2659 = vmatpush1.msra.mxu0 0.0
      %2660 = vmatprep.subr.mxu0 0.0
      %2661 = vmatpush1.msra.mxu0 %v2591
      %2662 = vmatprep.subr.mxu0 0.0
      %2663 = vmatpush1.msra.mxu0 %v2590
      %2664 = vmatprep.subr.mxu0 0.0
      %2665 = vmatpush1.msra.mxu0 %v2589
      %2666 = vmatprep.subr.mxu0 0.0
      %2667 = vmatpush1.msra.mxu0 %v2588
      %2668 = vmatprep.subr.mxu0 0.0
      %2669 = vmatpush2.msra.mxu0 0.0
      %2670 = vmatprep.subr.mxu0 0.0
      %2671 = vmatpush2.msra.mxu0 0.0
      %2672 = vmatprep.subr.mxu0 0.0
      %2673 = vmatpush2.msra.mxu0 0.0
      %2674 = vmatprep.subr.mxu0 0.0
      %2675 = vmatpush2.msra.mxu0 0.0
      %2676 = vmatprep.subr.mxu0 0.0
      %2677 = vmatpush2.msra.mxu0 0.0
      %2678 = vmatprep.subr.mxu0 0.0
      %2679 = vmatpush2.msra.mxu0 0.0
      %2680 = vmatprep.subr.mxu0 0.0
      %2681 = vmatpush2.msra.mxu0 0.0
      %2682 = vmatprep.subr.mxu0 0.0
      %2683 = vmatpush2.msra.mxu0 0.0
      %2684 = vmatprep.subr.mxu0 0.0
      %2685 = vmatpush2.msra.mxu0 0.0
      %2686 = vmatprep.subr.mxu0 0.0
      %2687 = vmatpush2.msra.mxu0 0.0
      %2688 = vmatprep.subr.mxu0 0.0
      %2689 = vmatpush2.msra.mxu0 0.0
      %2690 = vmatprep.subr.mxu0 0.0
      %2691 = vmatpush2.msra.mxu0 0.0
      %2692 = vmatprep.subr.mxu0 0.0
      %2693 = vmatpush2.msra.mxu0 0.0
      %2694 = vmatprep.subr.mxu0 0.0
      %2695 = vmatpush2.msra.mxu0 0.0
      %2696 = vmatprep.subr.mxu0 0.0
      %2697 = vmatpush2.msra.mxu0 0.0
      %2698 = vmatprep.subr.mxu0 0.0
      %2699 = vmatpush2.msra.mxu0 0.0
      %2700 = vmatprep.mubr.f32.mxu0 0.0
      %2701 = vmatmul.mubr.f32.gmra.mxu0 %v2601
      %v2702 = vpop.f32.mrf.mxu0
      %v2703 = vadd.f32 %v2597, %v2702
      %v2704 = vpop.f32.mrf.mxu0
      %2705 = vmatprep.mubr.f32.mxu0 0.0
      %2706 = vmatmul.mubr.f32.gmra.mxu0 %v2604
      %v2707 = vpop.f32.mrf.mxu0
      %v2708 = vadd.f32 %v2597, %v2707
      %v2709 = vpop.f32.mrf.mxu0
      %2710 = vmatprep.mubr.f32.mxu0 0.0
      %2711 = vmatmul.mubr.f32.gmra.mxu0 %v2607
      %v2712 = vpop.f32.mrf.mxu0
      %v2713 = vadd.f32 %v2597, %v2712
      %v2714 = vpop.f32.mrf.mxu0
      %2715 = vmatprep.mubr.f32.mxu0 0.0
      %2716 = vmatmul.mubr.f32.gmra.mxu0 %v2610
      %v2717 = vpop.f32.mrf.mxu0
      %v2718 = vadd.f32 %v2597, %v2717
      %v2719 = vpop.f32.mrf.mxu0
      %2720 = vmatprep.mubr.f32.mxu0 0.0
      %2721 = vmatmul.mubr.f32.gmra.mxu0 %v2613
      %v2722 = vpop.f32.mrf.mxu0
      %v2723 = vadd.f32 %v2597, %v2722
      %v2724 = vpop.f32.mrf.mxu0
      %2725 = vmatprep.mubr.f32.mxu0 0.0
      %2726 = vmatmul.mubr.f32.gmra.mxu0 %v2616
      %v2727 = vpop.f32.mrf.mxu0
      %v2728 = vadd.f32 %v2597, %v2727
      %v2729 = vpop.f32.mrf.mxu0
      %2730 = vmatprep.mubr.f32.mxu0 0.0
      %2731 = vmatmul.mubr.f32.gmra.mxu0 %v2619
      %v2732 = vpop.f32.mrf.mxu0
      %v2733 = vadd.f32 %v2597, %v2732
      %v2734 = vpop.f32.mrf.mxu0
      %2735 = vmatprep.mubr.f32.mxu0 0.0
      %2736 = vmatmul.mubr.f32.gmra.mxu0 %v2622
      %v2737 = vpop.f32.mrf.mxu0
      %v2738 = vadd.f32 %v2597, %v2737
      %v2739 = vpop.f32.mrf.mxu0
      %2740 = vmatprep.mubr.f32.mxu0 0.0
      %2741 = vmatmul.mubr.f32.gmra.mxu0 %v2625
      %v2742 = vpop.f32.mrf.mxu0
      %v2743 = vadd.f32 %v2597, %v2742
      %v2744 = vpop.f32.mrf.mxu0
      %2745 = vmatprep.mubr.f32.mxu0 0.0
      %2746 = vmatmul.mubr.f32.gmra.mxu0 %v2628
      %v2747 = vpop.f32.mrf.mxu0
      %v2748 = vadd.f32 %v2597, %v2747
      %v2749 = vpop.f32.mrf.mxu0
      %2750 = vmatprep.mubr.f32.mxu0 0.0
      %2751 = vmatmul.mubr.f32.gmra.mxu0 %v2631
      %v2752 = vpop.f32.mrf.mxu0
      %v2753 = vadd.f32 %v2597, %v2752
      %v2754 = vpop.f32.mrf.mxu0
      %2755 = vmatprep.mubr.f32.mxu0 0.0
      %2756 = vmatmul.mubr.f32.gmra.mxu0 %v2634
      %v2757 = vpop.f32.mrf.mxu0
      %v2758 = vadd.f32 %v2597, %v2757
      %v2759 = vpop.f32.mrf.mxu0
      %2760 = vdwg.mxu0
      %2761 = vst.msk [vmem:[%s509] sm:$0xff] %vm569, %v2703
      %2762 = vst.msk [vmem:[%s509 + $0x8] sm:$0xff] %vm569, %v2708
      %2763 = vst.msk [vmem:[%s509 + $0x10] sm:$0xff] %vm569, %v2713
      %2764 = vst.msk [vmem:[%s509 + $0x18] sm:$0xff] %vm569, %v2718
      %2765 = vst.msk [vmem:[%s509 + $0x20] sm:$0xff] %vm569, %v2723
      %2766 = vst.msk [vmem:[%s509 + $0x28] sm:$0xff] %vm569, %v2728
      %2767 = vst.msk [vmem:[%s509 + $0x30] sm:$0xff] %vm569, %v2733
      %2768 = vst.msk [vmem:[%s509 + $0x38] sm:$0xff] %vm569, %v2738
      %2769 = vst.msk [vmem:[%s509 + $0x40] sm:$0xff] %vm569, %v2743
      %2770 = vst.msk [vmem:[%s509 + $0x48] sm:$0xff] %vm569, %v2748
      %2771 = vst.msk [vmem:[%s509 + $0x50] sm:$0xff] %vm569, %v2753
      %2772 = vst.msk [vmem:[%s509 + $0x58] sm:$0xff] %vm569, %v2758
      %s2773 = scalar_lea.vmem [#allocation2], 128
      %v2774 = vld [vmem:[%s2773] sm:$0xff]
      %v2775 = vld [vmem:[%s2773 + $0x8] sm:$0xff]
      %v2776 = vld [vmem:[%s2773 + $0x10] sm:$0xff]
      %v2777 = vld [vmem:[%s2773 + $0x20] sm:$0xff]
      %v2778 = vld [vmem:[%s2773 + $0x28] sm:$0xff]
      %v2779 = vld [vmem:[%s2773 + $0x30] sm:$0xff]
      %v2780 = vld [vmem:[%s2773 + $0x40] sm:$0xff]
      %v2781 = vld [vmem:[%s2773 + $0x48] sm:$0xff]
      %v2782 = vld [vmem:[%s2773 + $0x50] sm:$0xff]
      %v2783 = vld [vmem:[%s2773 + $0x60] sm:$0xff]
      %v2784 = vld [vmem:[%s2773 + $0x68] sm:$0xff]
      %v2785 = vld [vmem:[%s2773 + $0x70] sm:$0xff]
      %v2786 = vld [vmem:[%s2773 + $0x80] sm:$0xff]
      %v2787 = vld [vmem:[%s2773 + $0x88] sm:$0xff]
      %v2788 = vld [vmem:[%s2773 + $0x90] sm:$0xff]
      %v2789 = vld [vmem:[%s2773 + $0xa0] sm:$0xff]
      %v2790 = vld [vmem:[%s2773 + $0xa8] sm:$0xff]
      %v2791 = vld [vmem:[%s2773 + $0xb0] sm:$0xff]
      %v2792 = vld [vmem:[%s2773 + $0xc0] sm:$0xff]
      %v2793 = vld [vmem:[%s2773 + $0xc8] sm:$0xff]
      %v2794 = vld [vmem:[%s2773 + $0xd0] sm:$0xff]
      %v2795 = vld [vmem:[%s2773 + $0xe0] sm:$0xff]
      %v2796 = vld [vmem:[%s2773 + $0xe8] sm:$0xff]
      %v2797 = vld [vmem:[%s2773 + $0xf0] sm:$0xff]
      %v2798 = vld [vmem:[%s2773 + $0x100] sm:$0xff]
      %v2799 = vld [vmem:[%s2773 + $0x108] sm:$0xff]
      %v2800 = vld [vmem:[%s2773 + $0x110] sm:$0xff]
      %v2801 = vld [vmem:[%s2773 + $0x120] sm:$0xff]
      %v2802 = vld [vmem:[%s2773 + $0x128] sm:$0xff]
      %v2803 = vld [vmem:[%s2773 + $0x130] sm:$0xff]
      %v2804 = vld [vmem:[%s3] sm:$0x1]
      %v2805 = vlaneseq
      %v2806 = vshrl.u32 %v2805, 7
      %v2807 = vsub.s32 0, %v2806
      %v2808 = vrot.slane %v2804, %v2807
      %v2809 = vmul.f32 %v2774, %v2808
      %v2810 = vmul.f32 %v2775, %v2808
      %v2811 = vmul.f32 %v2776, %v2808
      %v2812 = vmul.f32 %v2777, %v2808
      %v2813 = vmul.f32 %v2778, %v2808
      %v2814 = vmul.f32 %v2779, %v2808
      %v2815 = vmul.f32 %v2780, %v2808
      %v2816 = vmul.f32 %v2781, %v2808
      %v2817 = vmul.f32 %v2782, %v2808
      %v2818 = vmul.f32 %v2783, %v2808
      %v2819 = vmul.f32 %v2784, %v2808
      %v2820 = vmul.f32 %v2785, %v2808
      %v2821 = vld [vmem:[%s713] sm:$0x1]
      %v2822 = vlaneseq
      %v2823 = vshrl.u32 %v2822, 7
      %v2824 = vsub.s32 0, %v2823
      %v2825 = vrot.slane %v2821, %v2824
      %v2826 = vmul.f32 %v2777, %v2825
      %v2827 = vmul.f32 %v2778, %v2825
      %v2828 = vmul.f32 %v2779, %v2825
      %v2829 = vmul.f32 %v2780, %v2825
      %v2830 = vmul.f32 %v2781, %v2825
      %v2831 = vmul.f32 %v2782, %v2825
      %v2832 = vmul.f32 %v2783, %v2825
      %v2833 = vmul.f32 %v2784, %v2825
      %v2834 = vmul.f32 %v2785, %v2825
      %v2835 = vmul.f32 %v2786, %v2825
      %v2836 = vmul.f32 %v2787, %v2825
      %v2837 = vmul.f32 %v2788, %v2825
      %v2838 = vadd.f32 %v2809, %v2826
      %v2839 = vadd.f32 %v2810, %v2827
      %v2840 = vadd.f32 %v2811, %v2828
      %v2841 = vadd.f32 %v2812, %v2829
      %v2842 = vadd.f32 %v2813, %v2830
      %v2843 = vadd.f32 %v2814, %v2831
      %v2844 = vadd.f32 %v2815, %v2832
      %v2845 = vadd.f32 %v2816, %v2833
      %v2846 = vadd.f32 %v2817, %v2834
      %v2847 = vadd.f32 %v2818, %v2835
      %v2848 = vadd.f32 %v2819, %v2836
      %v2849 = vadd.f32 %v2820, %v2837
      %v2850 = vld [vmem:[%s743] sm:$0x1]
      %v2851 = vlaneseq
      %v2852 = vshrl.u32 %v2851, 7
      %v2853 = vsub.s32 0, %v2852
      %v2854 = vrot.slane %v2850, %v2853
      %v2855 = vmul.f32 %v2780, %v2854
      %v2856 = vmul.f32 %v2781, %v2854
      %v2857 = vmul.f32 %v2782, %v2854
      %v2858 = vmul.f32 %v2783, %v2854
      %v2859 = vmul.f32 %v2784, %v2854
      %v2860 = vmul.f32 %v2785, %v2854
      %v2861 = vmul.f32 %v2786, %v2854
      %v2862 = vmul.f32 %v2787, %v2854
      %v2863 = vmul.f32 %v2788, %v2854
      %v2864 = vmul.f32 %v2789, %v2854
      %v2865 = vmul.f32 %v2790, %v2854
      %v2866 = vmul.f32 %v2791, %v2854
      %v2867 = vadd.f32 %v2838, %v2855
      %v2868 = vadd.f32 %v2839, %v2856
      %v2869 = vadd.f32 %v2840, %v2857
      %v2870 = vadd.f32 %v2841, %v2858
      %v2871 = vadd.f32 %v2842, %v2859
      %v2872 = vadd.f32 %v2843, %v2860
      %v2873 = vadd.f32 %v2844, %v2861
      %v2874 = vadd.f32 %v2845, %v2862
      %v2875 = vadd.f32 %v2846, %v2863
      %v2876 = vadd.f32 %v2847, %v2864
      %v2877 = vadd.f32 %v2848, %v2865
      %v2878 = vadd.f32 %v2849, %v2866
      %v2879 = vld [vmem:[%s773] sm:$0x1]
      %v2880 = vlaneseq
      %v2881 = vshrl.u32 %v2880, 7
      %v2882 = vsub.s32 0, %v2881
      %v2883 = vrot.slane %v2879, %v2882
      %v2884 = vmul.f32 %v2783, %v2883
      %v2885 = vmul.f32 %v2784, %v2883
      %v2886 = vmul.f32 %v2785, %v2883
      %v2887 = vmul.f32 %v2786, %v2883
      %v2888 = vmul.f32 %v2787, %v2883
      %v2889 = vmul.f32 %v2788, %v2883
      %v2890 = vmul.f32 %v2789, %v2883
      %v2891 = vmul.f32 %v2790, %v2883
      %v2892 = vmul.f32 %v2791, %v2883
      %v2893 = vmul.f32 %v2792, %v2883
      %v2894 = vmul.f32 %v2793, %v2883
      %v2895 = vmul.f32 %v2794, %v2883
      %v2896 = vadd.f32 %v2867, %v2884
      %v2897 = vadd.f32 %v2868, %v2885
      %v2898 = vadd.f32 %v2869, %v2886
      %v2899 = vadd.f32 %v2870, %v2887
      %v2900 = vadd.f32 %v2871, %v2888
      %v2901 = vadd.f32 %v2872, %v2889
      %v2902 = vadd.f32 %v2873, %v2890
      %v2903 = vadd.f32 %v2874, %v2891
      %v2904 = vadd.f32 %v2875, %v2892
      %v2905 = vadd.f32 %v2876, %v2893
      %v2906 = vadd.f32 %v2877, %v2894
      %v2907 = vadd.f32 %v2878, %v2895
      %v2908 = vld [vmem:[%s803] sm:$0x1]
      %v2909 = vlaneseq
      %v2910 = vshrl.u32 %v2909, 7
      %v2911 = vsub.s32 0, %v2910
      %v2912 = vrot.slane %v2908, %v2911
      %v2913 = vmul.f32 %v2786, %v2912
      %v2914 = vmul.f32 %v2787, %v2912
      %v2915 = vmul.f32 %v2788, %v2912
      %v2916 = vmul.f32 %v2789, %v2912
      %v2917 = vmul.f32 %v2790, %v2912
      %v2918 = vmul.f32 %v2791, %v2912
      %v2919 = vmul.f32 %v2792, %v2912
      %v2920 = vmul.f32 %v2793, %v2912
      %v2921 = vmul.f32 %v2794, %v2912
      %v2922 = vmul.f32 %v2795, %v2912
      %v2923 = vmul.f32 %v2796, %v2912
      %v2924 = vmul.f32 %v2797, %v2912
      %v2925 = vadd.f32 %v2896, %v2913
      %v2926 = vadd.f32 %v2897, %v2914
      %v2927 = vadd.f32 %v2898, %v2915
      %v2928 = vadd.f32 %v2899, %v2916
      %v2929 = vadd.f32 %v2900, %v2917
      %v2930 = vadd.f32 %v2901, %v2918
      %v2931 = vadd.f32 %v2902, %v2919
      %v2932 = vadd.f32 %v2903, %v2920
      %v2933 = vadd.f32 %v2904, %v2921
      %v2934 = vadd.f32 %v2905, %v2922
      %v2935 = vadd.f32 %v2906, %v2923
      %v2936 = vadd.f32 %v2907, %v2924
      %v2937 = vld [vmem:[%s833] sm:$0x1]
      %v2938 = vlaneseq
      %v2939 = vshrl.u32 %v2938, 7
      %v2940 = vsub.s32 0, %v2939
      %v2941 = vrot.slane %v2937, %v2940
      %v2942 = vmul.f32 %v2789, %v2941
      %v2943 = vmul.f32 %v2790, %v2941
      %v2944 = vmul.f32 %v2791, %v2941
      %v2945 = vmul.f32 %v2792, %v2941
      %v2946 = vmul.f32 %v2793, %v2941
      %v2947 = vmul.f32 %v2794, %v2941
      %v2948 = vmul.f32 %v2795, %v2941
      %v2949 = vmul.f32 %v2796, %v2941
      %v2950 = vmul.f32 %v2797, %v2941
      %v2951 = vmul.f32 %v2798, %v2941
      %v2952 = vmul.f32 %v2799, %v2941
      %v2953 = vmul.f32 %v2800, %v2941
      %v2954 = vadd.f32 %v2925, %v2942
      %v2955 = vadd.f32 %v2926, %v2943
      %v2956 = vadd.f32 %v2927, %v2944
      %v2957 = vadd.f32 %v2928, %v2945
      %v2958 = vadd.f32 %v2929, %v2946
      %v2959 = vadd.f32 %v2930, %v2947
      %v2960 = vadd.f32 %v2931, %v2948
      %v2961 = vadd.f32 %v2932, %v2949
      %v2962 = vadd.f32 %v2933, %v2950
      %v2963 = vadd.f32 %v2934, %v2951
      %v2964 = vadd.f32 %v2935, %v2952
      %v2965 = vadd.f32 %v2936, %v2953
      %v2966 = vld [vmem:[%s863] sm:$0x1]
      %v2967 = vlaneseq
      %v2968 = vshrl.u32 %v2967, 7
      %v2969 = vsub.s32 0, %v2968
      %v2970 = vrot.slane %v2966, %v2969
      %v2971 = vmul.f32 %v2792, %v2970
      %v2972 = vmul.f32 %v2793, %v2970
      %v2973 = vmul.f32 %v2794, %v2970
      %v2974 = vmul.f32 %v2795, %v2970
      %v2975 = vmul.f32 %v2796, %v2970
      %v2976 = vmul.f32 %v2797, %v2970
      %v2977 = vmul.f32 %v2798, %v2970
      %v2978 = vmul.f32 %v2799, %v2970
      %v2979 = vmul.f32 %v2800, %v2970
      %v2980 = vmul.f32 %v2801, %v2970
      %v2981 = vmul.f32 %v2802, %v2970
      %v2982 = vmul.f32 %v2803, %v2970
      %v2983 = vadd.f32 %v2954, %v2971
      %v2984 = vadd.f32 %v2955, %v2972
      %v2985 = vadd.f32 %v2956, %v2973
      %v2986 = vadd.f32 %v2957, %v2974
      %v2987 = vadd.f32 %v2958, %v2975
      %v2988 = vadd.f32 %v2959, %v2976
      %v2989 = vadd.f32 %v2960, %v2977
      %v2990 = vadd.f32 %v2961, %v2978
      %v2991 = vadd.f32 %v2962, %v2979
      %v2992 = vadd.f32 %v2963, %v2980
      %v2993 = vadd.f32 %v2964, %v2981
      %v2994 = vadd.f32 %v2965, %v2982
      %v2995 = vld [vmem:[%s2773 + $0x1] sm:$0xff]
      %v2996 = vld [vmem:[%s2773 + $0x9] sm:$0xff]
      %v2997 = vld [vmem:[%s2773 + $0x11] sm:$0xff]
      %v2998 = vld [vmem:[%s2773 + $0x21] sm:$0xff]
      %v2999 = vld [vmem:[%s2773 + $0x29] sm:$0xff]
      %v3000 = vld [vmem:[%s2773 + $0x31] sm:$0xff]
      %v3001 = vld [vmem:[%s2773 + $0x41] sm:$0xff]
      %v3002 = vld [vmem:[%s2773 + $0x49] sm:$0xff]
      %v3003 = vld [vmem:[%s2773 + $0x51] sm:$0xff]
      %v3004 = vld [vmem:[%s2773 + $0x61] sm:$0xff]
      %v3005 = vld [vmem:[%s2773 + $0x69] sm:$0xff]
      %v3006 = vld [vmem:[%s2773 + $0x71] sm:$0xff]
      %v3007 = vld [vmem:[%s2773 + $0x81] sm:$0xff]
      %v3008 = vld [vmem:[%s2773 + $0x89] sm:$0xff]
      %v3009 = vld [vmem:[%s2773 + $0x91] sm:$0xff]
      %v3010 = vld [vmem:[%s2773 + $0xa1] sm:$0xff]
      %v3011 = vld [vmem:[%s2773 + $0xa9] sm:$0xff]
      %v3012 = vld [vmem:[%s2773 + $0xb1] sm:$0xff]
      %v3013 = vld [vmem:[%s2773 + $0xc1] sm:$0xff]
      %v3014 = vld [vmem:[%s2773 + $0xc9] sm:$0xff]
      %v3015 = vld [vmem:[%s2773 + $0xd1] sm:$0xff]
      %v3016 = vld [vmem:[%s2773 + $0xe1] sm:$0xff]
      %v3017 = vld [vmem:[%s2773 + $0xe9] sm:$0xff]
      %v3018 = vld [vmem:[%s2773 + $0xf1] sm:$0xff]
      %v3019 = vld [vmem:[%s2773 + $0x101] sm:$0xff]
      %v3020 = vld [vmem:[%s2773 + $0x109] sm:$0xff]
      %v3021 = vld [vmem:[%s2773 + $0x111] sm:$0xff]
      %v3022 = vld [vmem:[%s2773 + $0x121] sm:$0xff]
      %v3023 = vld [vmem:[%s2773 + $0x129] sm:$0xff]
      %v3024 = vld [vmem:[%s2773 + $0x131] sm:$0xff]
      %v3025 = vld [vmem:[%s3 + $0x1] sm:$0x1]
      %v3026 = vlaneseq
      %v3027 = vshrl.u32 %v3026, 7
      %v3028 = vsub.s32 0, %v3027
      %v3029 = vrot.slane %v3025, %v3028
      %v3030 = vmul.f32 %v2995, %v3029
      %v3031 = vmul.f32 %v2996, %v3029
      %v3032 = vmul.f32 %v2997, %v3029
      %v3033 = vmul.f32 %v2998, %v3029
      %v3034 = vmul.f32 %v2999, %v3029
      %v3035 = vmul.f32 %v3000, %v3029
      %v3036 = vmul.f32 %v3001, %v3029
      %v3037 = vmul.f32 %v3002, %v3029
      %v3038 = vmul.f32 %v3003, %v3029
      %v3039 = vmul.f32 %v3004, %v3029
      %v3040 = vmul.f32 %v3005, %v3029
      %v3041 = vmul.f32 %v3006, %v3029
      %v3042 = vadd.f32 %v2983, %v3030
      %v3043 = vadd.f32 %v2984, %v3031
      %v3044 = vadd.f32 %v2985, %v3032
      %v3045 = vadd.f32 %v2986, %v3033
      %v3046 = vadd.f32 %v2987, %v3034
      %v3047 = vadd.f32 %v2988, %v3035
      %v3048 = vadd.f32 %v2989, %v3036
      %v3049 = vadd.f32 %v2990, %v3037
      %v3050 = vadd.f32 %v2991, %v3038
      %v3051 = vadd.f32 %v2992, %v3039
      %v3052 = vadd.f32 %v2993, %v3040
      %v3053 = vadd.f32 %v2994, %v3041
      %v3054 = vld [vmem:[%s713 + $0x1] sm:$0x1]
      %v3055 = vlaneseq
      %v3056 = vshrl.u32 %v3055, 7
      %v3057 = vsub.s32 0, %v3056
      %v3058 = vrot.slane %v3054, %v3057
      %v3059 = vmul.f32 %v2998, %v3058
      %v3060 = vmul.f32 %v2999, %v3058
      %v3061 = vmul.f32 %v3000, %v3058
      %v3062 = vmul.f32 %v3001, %v3058
      %v3063 = vmul.f32 %v3002, %v3058
      %v3064 = vmul.f32 %v3003, %v3058
      %v3065 = vmul.f32 %v3004, %v3058
      %v3066 = vmul.f32 %v3005, %v3058
      %v3067 = vmul.f32 %v3006, %v3058
      %v3068 = vmul.f32 %v3007, %v3058
      %v3069 = vmul.f32 %v3008, %v3058
      %v3070 = vmul.f32 %v3009, %v3058
      %v3071 = vadd.f32 %v3042, %v3059
      %v3072 = vadd.f32 %v3043, %v3060
      %v3073 = vadd.f32 %v3044, %v3061
      %v3074 = vadd.f32 %v3045, %v3062
      %v3075 = vadd.f32 %v3046, %v3063
      %v3076 = vadd.f32 %v3047, %v3064
      %v3077 = vadd.f32 %v3048, %v3065
      %v3078 = vadd.f32 %v3049, %v3066
      %v3079 = vadd.f32 %v3050, %v3067
      %v3080 = vadd.f32 %v3051, %v3068
      %v3081 = vadd.f32 %v3052, %v3069
      %v3082 = vadd.f32 %v3053, %v3070
      %v3083 = vld [vmem:[%s743 + $0x1] sm:$0x1]
      %v3084 = vlaneseq
      %v3085 = vshrl.u32 %v3084, 7
      %v3086 = vsub.s32 0, %v3085
      %v3087 = vrot.slane %v3083, %v3086
      %v3088 = vmul.f32 %v3001, %v3087
      %v3089 = vmul.f32 %v3002, %v3087
      %v3090 = vmul.f32 %v3003, %v3087
      %v3091 = vmul.f32 %v3004, %v3087
      %v3092 = vmul.f32 %v3005, %v3087
      %v3093 = vmul.f32 %v3006, %v3087
      %v3094 = vmul.f32 %v3007, %v3087
      %v3095 = vmul.f32 %v3008, %v3087
      %v3096 = vmul.f32 %v3009, %v3087
      %v3097 = vmul.f32 %v3010, %v3087
      %v3098 = vmul.f32 %v3011, %v3087
      %v3099 = vmul.f32 %v3012, %v3087
      %v3100 = vadd.f32 %v3071, %v3088
      %v3101 = vadd.f32 %v3072, %v3089
      %v3102 = vadd.f32 %v3073, %v3090
      %v3103 = vadd.f32 %v3074, %v3091
      %v3104 = vadd.f32 %v3075, %v3092
      %v3105 = vadd.f32 %v3076, %v3093
      %v3106 = vadd.f32 %v3077, %v3094
      %v3107 = vadd.f32 %v3078, %v3095
      %v3108 = vadd.f32 %v3079, %v3096
      %v3109 = vadd.f32 %v3080, %v3097
      %v3110 = vadd.f32 %v3081, %v3098
      %v3111 = vadd.f32 %v3082, %v3099
      %v3112 = vld [vmem:[%s773 + $0x1] sm:$0x1]
      %v3113 = vlaneseq
      %v3114 = vshrl.u32 %v3113, 7
      %v3115 = vsub.s32 0, %v3114
      %v3116 = vrot.slane %v3112, %v3115
      %v3117 = vmul.f32 %v3004, %v3116
      %v3118 = vmul.f32 %v3005, %v3116
      %v3119 = vmul.f32 %v3006, %v3116
      %v3120 = vmul.f32 %v3007, %v3116
      %v3121 = vmul.f32 %v3008, %v3116
      %v3122 = vmul.f32 %v3009, %v3116
      %v3123 = vmul.f32 %v3010, %v3116
      %v3124 = vmul.f32 %v3011, %v3116
      %v3125 = vmul.f32 %v3012, %v3116
      %v3126 = vmul.f32 %v3013, %v3116
      %v3127 = vmul.f32 %v3014, %v3116
      %v3128 = vmul.f32 %v3015, %v3116
      %v3129 = vadd.f32 %v3100, %v3117
      %v3130 = vadd.f32 %v3101, %v3118
      %v3131 = vadd.f32 %v3102, %v3119
      %v3132 = vadd.f32 %v3103, %v3120
      %v3133 = vadd.f32 %v3104, %v3121
      %v3134 = vadd.f32 %v3105, %v3122
      %v3135 = vadd.f32 %v3106, %v3123
      %v3136 = vadd.f32 %v3107, %v3124
      %v3137 = vadd.f32 %v3108, %v3125
      %v3138 = vadd.f32 %v3109, %v3126
      %v3139 = vadd.f32 %v3110, %v3127
      %v3140 = vadd.f32 %v3111, %v3128
      %v3141 = vld [vmem:[%s803 + $0x1] sm:$0x1]
      %v3142 = vlaneseq
      %v3143 = vshrl.u32 %v3142, 7
      %v3144 = vsub.s32 0, %v3143
      %v3145 = vrot.slane %v3141, %v3144
      %v3146 = vmul.f32 %v3007, %v3145
      %v3147 = vmul.f32 %v3008, %v3145
      %v3148 = vmul.f32 %v3009, %v3145
      %v3149 = vmul.f32 %v3010, %v3145
      %v3150 = vmul.f32 %v3011, %v3145
      %v3151 = vmul.f32 %v3012, %v3145
      %v3152 = vmul.f32 %v3013, %v3145
      %v3153 = vmul.f32 %v3014, %v3145
      %v3154 = vmul.f32 %v3015, %v3145
      %v3155 = vmul.f32 %v3016, %v3145
      %v3156 = vmul.f32 %v3017, %v3145
      %v3157 = vmul.f32 %v3018, %v3145
      %v3158 = vadd.f32 %v3129, %v3146
      %v3159 = vadd.f32 %v3130, %v3147
      %v3160 = vadd.f32 %v3131, %v3148
      %v3161 = vadd.f32 %v3132, %v3149
      %v3162 = vadd.f32 %v3133, %v3150
      %v3163 = vadd.f32 %v3134, %v3151
      %v3164 = vadd.f32 %v3135, %v3152
      %v3165 = vadd.f32 %v3136, %v3153
      %v3166 = vadd.f32 %v3137, %v3154
      %v3167 = vadd.f32 %v3138, %v3155
      %v3168 = vadd.f32 %v3139, %v3156
      %v3169 = vadd.f32 %v3140, %v3157
      %v3170 = vld [vmem:[%s833 + $0x1] sm:$0x1]
      %v3171 = vlaneseq
      %v3172 = vshrl.u32 %v3171, 7
      %v3173 = vsub.s32 0, %v3172
      %v3174 = vrot.slane %v3170, %v3173
      %v3175 = vmul.f32 %v3010, %v3174
      %v3176 = vmul.f32 %v3011, %v3174
      %v3177 = vmul.f32 %v3012, %v3174
      %v3178 = vmul.f32 %v3013, %v3174
      %v3179 = vmul.f32 %v3014, %v3174
      %v3180 = vmul.f32 %v3015, %v3174
      %v3181 = vmul.f32 %v3016, %v3174
      %v3182 = vmul.f32 %v3017, %v3174
      %v3183 = vmul.f32 %v3018, %v3174
      %v3184 = vmul.f32 %v3019, %v3174
      %v3185 = vmul.f32 %v3020, %v3174
      %v3186 = vmul.f32 %v3021, %v3174
      %v3187 = vadd.f32 %v3158, %v3175
      %v3188 = vadd.f32 %v3159, %v3176
      %v3189 = vadd.f32 %v3160, %v3177
      %v3190 = vadd.f32 %v3161, %v3178
      %v3191 = vadd.f32 %v3162, %v3179
      %v3192 = vadd.f32 %v3163, %v3180
      %v3193 = vadd.f32 %v3164, %v3181
      %v3194 = vadd.f32 %v3165, %v3182
      %v3195 = vadd.f32 %v3166, %v3183
      %v3196 = vadd.f32 %v3167, %v3184
      %v3197 = vadd.f32 %v3168, %v3185
      %v3198 = vadd.f32 %v3169, %v3186
      %v3199 = vld [vmem:[%s863 + $0x1] sm:$0x1]
      %v3200 = vlaneseq
      %v3201 = vshrl.u32 %v3200, 7
      %v3202 = vsub.s32 0, %v3201
      %v3203 = vrot.slane %v3199, %v3202
      %v3204 = vmul.f32 %v3013, %v3203
      %v3205 = vmul.f32 %v3014, %v3203
      %v3206 = vmul.f32 %v3015, %v3203
      %v3207 = vmul.f32 %v3016, %v3203
      %v3208 = vmul.f32 %v3017, %v3203
      %v3209 = vmul.f32 %v3018, %v3203
      %v3210 = vmul.f32 %v3019, %v3203
      %v3211 = vmul.f32 %v3020, %v3203
      %v3212 = vmul.f32 %v3021, %v3203
      %v3213 = vmul.f32 %v3022, %v3203
      %v3214 = vmul.f32 %v3023, %v3203
      %v3215 = vmul.f32 %v3024, %v3203
      %v3216 = vadd.f32 %v3187, %v3204
      %v3217 = vadd.f32 %v3188, %v3205
      %v3218 = vadd.f32 %v3189, %v3206
      %v3219 = vadd.f32 %v3190, %v3207
      %v3220 = vadd.f32 %v3191, %v3208
      %v3221 = vadd.f32 %v3192, %v3209
      %v3222 = vadd.f32 %v3193, %v3210
      %v3223 = vadd.f32 %v3194, %v3211
      %v3224 = vadd.f32 %v3195, %v3212
      %v3225 = vadd.f32 %v3196, %v3213
      %v3226 = vadd.f32 %v3197, %v3214
      %v3227 = vadd.f32 %v3198, %v3215
      %v3228 = vld [vmem:[%s2773 + $0x2] sm:$0xff]
      %v3229 = vld [vmem:[%s2773 + $0xa] sm:$0xff]
      %v3230 = vld [vmem:[%s2773 + $0x12] sm:$0xff]
      %v3231 = vld [vmem:[%s2773 + $0x22] sm:$0xff]
      %v3232 = vld [vmem:[%s2773 + $0x2a] sm:$0xff]
      %v3233 = vld [vmem:[%s2773 + $0x32] sm:$0xff]
      %v3234 = vld [vmem:[%s2773 + $0x42] sm:$0xff]
      %v3235 = vld [vmem:[%s2773 + $0x4a] sm:$0xff]
      %v3236 = vld [vmem:[%s2773 + $0x52] sm:$0xff]
      %v3237 = vld [vmem:[%s2773 + $0x62] sm:$0xff]
      %v3238 = vld [vmem:[%s2773 + $0x6a] sm:$0xff]
      %v3239 = vld [vmem:[%s2773 + $0x72] sm:$0xff]
      %v3240 = vld [vmem:[%s2773 + $0x82] sm:$0xff]
      %v3241 = vld [vmem:[%s2773 + $0x8a] sm:$0xff]
      %v3242 = vld [vmem:[%s2773 + $0x92] sm:$0xff]
      %v3243 = vld [vmem:[%s2773 + $0xa2] sm:$0xff]
      %v3244 = vld [vmem:[%s2773 + $0xaa] sm:$0xff]
      %v3245 = vld [vmem:[%s2773 + $0xb2] sm:$0xff]
      %v3246 = vld [vmem:[%s2773 + $0xc2] sm:$0xff]
      %v3247 = vld [vmem:[%s2773 + $0xca] sm:$0xff]
      %v3248 = vld [vmem:[%s2773 + $0xd2] sm:$0xff]
      %v3249 = vld [vmem:[%s2773 + $0xe2] sm:$0xff]
      %v3250 = vld [vmem:[%s2773 + $0xea] sm:$0xff]
      %v3251 = vld [vmem:[%s2773 + $0xf2] sm:$0xff]
      %v3252 = vld [vmem:[%s2773 + $0x102] sm:$0xff]
      %v3253 = vld [vmem:[%s2773 + $0x10a] sm:$0xff]
      %v3254 = vld [vmem:[%s2773 + $0x112] sm:$0xff]
      %v3255 = vld [vmem:[%s2773 + $0x122] sm:$0xff]
      %v3256 = vld [vmem:[%s2773 + $0x12a] sm:$0xff]
      %v3257 = vld [vmem:[%s2773 + $0x132] sm:$0xff]
      %v3258 = vld [vmem:[%s3 + $0x2] sm:$0x1]
      %v3259 = vlaneseq
      %v3260 = vshrl.u32 %v3259, 7
      %v3261 = vsub.s32 0, %v3260
      %v3262 = vrot.slane %v3258, %v3261
      %v3263 = vmul.f32 %v3228, %v3262
      %v3264 = vmul.f32 %v3229, %v3262
      %v3265 = vmul.f32 %v3230, %v3262
      %v3266 = vmul.f32 %v3231, %v3262
      %v3267 = vmul.f32 %v3232, %v3262
      %v3268 = vmul.f32 %v3233, %v3262
      %v3269 = vmul.f32 %v3234, %v3262
      %v3270 = vmul.f32 %v3235, %v3262
      %v3271 = vmul.f32 %v3236, %v3262
      %v3272 = vmul.f32 %v3237, %v3262
      %v3273 = vmul.f32 %v3238, %v3262
      %v3274 = vmul.f32 %v3239, %v3262
      %v3275 = vadd.f32 %v3216, %v3263
      %v3276 = vadd.f32 %v3217, %v3264
      %v3277 = vadd.f32 %v3218, %v3265
      %v3278 = vadd.f32 %v3219, %v3266
      %v3279 = vadd.f32 %v3220, %v3267
      %v3280 = vadd.f32 %v3221, %v3268
      %v3281 = vadd.f32 %v3222, %v3269
      %v3282 = vadd.f32 %v3223, %v3270
      %v3283 = vadd.f32 %v3224, %v3271
      %v3284 = vadd.f32 %v3225, %v3272
      %v3285 = vadd.f32 %v3226, %v3273
      %v3286 = vadd.f32 %v3227, %v3274
      %v3287 = vld [vmem:[%s713 + $0x2] sm:$0x1]
      %v3288 = vlaneseq
      %v3289 = vshrl.u32 %v3288, 7
      %v3290 = vsub.s32 0, %v3289
      %v3291 = vrot.slane %v3287, %v3290
      %v3292 = vmul.f32 %v3231, %v3291
      %v3293 = vmul.f32 %v3232, %v3291
      %v3294 = vmul.f32 %v3233, %v3291
      %v3295 = vmul.f32 %v3234, %v3291
      %v3296 = vmul.f32 %v3235, %v3291
      %v3297 = vmul.f32 %v3236, %v3291
      %v3298 = vmul.f32 %v3237, %v3291
      %v3299 = vmul.f32 %v3238, %v3291
      %v3300 = vmul.f32 %v3239, %v3291
      %v3301 = vmul.f32 %v3240, %v3291
      %v3302 = vmul.f32 %v3241, %v3291
      %v3303 = vmul.f32 %v3242, %v3291
      %v3304 = vadd.f32 %v3275, %v3292
      %v3305 = vadd.f32 %v3276, %v3293
      %v3306 = vadd.f32 %v3277, %v3294
      %v3307 = vadd.f32 %v3278, %v3295
      %v3308 = vadd.f32 %v3279, %v3296
      %v3309 = vadd.f32 %v3280, %v3297
      %v3310 = vadd.f32 %v3281, %v3298
      %v3311 = vadd.f32 %v3282, %v3299
      %v3312 = vadd.f32 %v3283, %v3300
      %v3313 = vadd.f32 %v3284, %v3301
      %v3314 = vadd.f32 %v3285, %v3302
      %v3315 = vadd.f32 %v3286, %v3303
      %v3316 = vld [vmem:[%s743 + $0x2] sm:$0x1]
      %v3317 = vlaneseq
      %v3318 = vshrl.u32 %v3317, 7
      %v3319 = vsub.s32 0, %v3318
      %v3320 = vrot.slane %v3316, %v3319
      %v3321 = vmul.f32 %v3234, %v3320
      %v3322 = vmul.f32 %v3235, %v3320
      %v3323 = vmul.f32 %v3236, %v3320
      %v3324 = vmul.f32 %v3237, %v3320
      %v3325 = vmul.f32 %v3238, %v3320
      %v3326 = vmul.f32 %v3239, %v3320
      %v3327 = vmul.f32 %v3240, %v3320
      %v3328 = vmul.f32 %v3241, %v3320
      %v3329 = vmul.f32 %v3242, %v3320
      %v3330 = vmul.f32 %v3243, %v3320
      %v3331 = vmul.f32 %v3244, %v3320
      %v3332 = vmul.f32 %v3245, %v3320
      %v3333 = vadd.f32 %v3304, %v3321
      %v3334 = vadd.f32 %v3305, %v3322
      %v3335 = vadd.f32 %v3306, %v3323
      %v3336 = vadd.f32 %v3307, %v3324
      %v3337 = vadd.f32 %v3308, %v3325
      %v3338 = vadd.f32 %v3309, %v3326
      %v3339 = vadd.f32 %v3310, %v3327
      %v3340 = vadd.f32 %v3311, %v3328
      %v3341 = vadd.f32 %v3312, %v3329
      %v3342 = vadd.f32 %v3313, %v3330
      %v3343 = vadd.f32 %v3314, %v3331
      %v3344 = vadd.f32 %v3315, %v3332
      %v3345 = vld [vmem:[%s773 + $0x2] sm:$0x1]
      %v3346 = vlaneseq
      %v3347 = vshrl.u32 %v3346, 7
      %v3348 = vsub.s32 0, %v3347
      %v3349 = vrot.slane %v3345, %v3348
      %v3350 = vmul.f32 %v3237, %v3349
      %v3351 = vmul.f32 %v3238, %v3349
      %v3352 = vmul.f32 %v3239, %v3349
      %v3353 = vmul.f32 %v3240, %v3349
      %v3354 = vmul.f32 %v3241, %v3349
      %v3355 = vmul.f32 %v3242, %v3349
      %v3356 = vmul.f32 %v3243, %v3349
      %v3357 = vmul.f32 %v3244, %v3349
      %v3358 = vmul.f32 %v3245, %v3349
      %v3359 = vmul.f32 %v3246, %v3349
      %v3360 = vmul.f32 %v3247, %v3349
      %v3361 = vmul.f32 %v3248, %v3349
      %v3362 = vadd.f32 %v3333, %v3350
      %v3363 = vadd.f32 %v3334, %v3351
      %v3364 = vadd.f32 %v3335, %v3352
      %v3365 = vadd.f32 %v3336, %v3353
      %v3366 = vadd.f32 %v3337, %v3354
      %v3367 = vadd.f32 %v3338, %v3355
      %v3368 = vadd.f32 %v3339, %v3356
      %v3369 = vadd.f32 %v3340, %v3357
      %v3370 = vadd.f32 %v3341, %v3358
      %v3371 = vadd.f32 %v3342, %v3359
      %v3372 = vadd.f32 %v3343, %v3360
      %v3373 = vadd.f32 %v3344, %v3361
      %v3374 = vld [vmem:[%s803 + $0x2] sm:$0x1]
      %v3375 = vlaneseq
      %v3376 = vshrl.u32 %v3375, 7
      %v3377 = vsub.s32 0, %v3376
      %v3378 = vrot.slane %v3374, %v3377
      %v3379 = vmul.f32 %v3240, %v3378
      %v3380 = vmul.f32 %v3241, %v3378
      %v3381 = vmul.f32 %v3242, %v3378
      %v3382 = vmul.f32 %v3243, %v3378
      %v3383 = vmul.f32 %v3244, %v3378
      %v3384 = vmul.f32 %v3245, %v3378
      %v3385 = vmul.f32 %v3246, %v3378
      %v3386 = vmul.f32 %v3247, %v3378
      %v3387 = vmul.f32 %v3248, %v3378
      %v3388 = vmul.f32 %v3249, %v3378
      %v3389 = vmul.f32 %v3250, %v3378
      %v3390 = vmul.f32 %v3251, %v3378
      %v3391 = vadd.f32 %v3362, %v3379
      %v3392 = vadd.f32 %v3363, %v3380
      %v3393 = vadd.f32 %v3364, %v3381
      %v3394 = vadd.f32 %v3365, %v3382
      %v3395 = vadd.f32 %v3366, %v3383
      %v3396 = vadd.f32 %v3367, %v3384
      %v3397 = vadd.f32 %v3368, %v3385
      %v3398 = vadd.f32 %v3369, %v3386
      %v3399 = vadd.f32 %v3370, %v3387
      %v3400 = vadd.f32 %v3371, %v3388
      %v3401 = vadd.f32 %v3372, %v3389
      %v3402 = vadd.f32 %v3373, %v3390
      %v3403 = vld [vmem:[%s833 + $0x2] sm:$0x1]
      %v3404 = vlaneseq
      %v3405 = vshrl.u32 %v3404, 7
      %v3406 = vsub.s32 0, %v3405
      %v3407 = vrot.slane %v3403, %v3406
      %v3408 = vmul.f32 %v3243, %v3407
      %v3409 = vmul.f32 %v3244, %v3407
      %v3410 = vmul.f32 %v3245, %v3407
      %v3411 = vmul.f32 %v3246, %v3407
      %v3412 = vmul.f32 %v3247, %v3407
      %v3413 = vmul.f32 %v3248, %v3407
      %v3414 = vmul.f32 %v3249, %v3407
      %v3415 = vmul.f32 %v3250, %v3407
      %v3416 = vmul.f32 %v3251, %v3407
      %v3417 = vmul.f32 %v3252, %v3407
      %v3418 = vmul.f32 %v3253, %v3407
      %v3419 = vmul.f32 %v3254, %v3407
      %v3420 = vadd.f32 %v3391, %v3408
      %v3421 = vadd.f32 %v3392, %v3409
      %v3422 = vadd.f32 %v3393, %v3410
      %v3423 = vadd.f32 %v3394, %v3411
      %v3424 = vadd.f32 %v3395, %v3412
      %v3425 = vadd.f32 %v3396, %v3413
      %v3426 = vadd.f32 %v3397, %v3414
      %v3427 = vadd.f32 %v3398, %v3415
      %v3428 = vadd.f32 %v3399, %v3416
      %v3429 = vadd.f32 %v3400, %v3417
      %v3430 = vadd.f32 %v3401, %v3418
      %v3431 = vadd.f32 %v3402, %v3419
      %v3432 = vld [vmem:[%s863 + $0x2] sm:$0x1]
      %v3433 = vlaneseq
      %v3434 = vshrl.u32 %v3433, 7
      %v3435 = vsub.s32 0, %v3434
      %v3436 = vrot.slane %v3432, %v3435
      %v3437 = vmul.f32 %v3246, %v3436
      %v3438 = vmul.f32 %v3247, %v3436
      %v3439 = vmul.f32 %v3248, %v3436
      %v3440 = vmul.f32 %v3249, %v3436
      %v3441 = vmul.f32 %v3250, %v3436
      %v3442 = vmul.f32 %v3251, %v3436
      %v3443 = vmul.f32 %v3252, %v3436
      %v3444 = vmul.f32 %v3253, %v3436
      %v3445 = vmul.f32 %v3254, %v3436
      %v3446 = vmul.f32 %v3255, %v3436
      %v3447 = vmul.f32 %v3256, %v3436
      %v3448 = vmul.f32 %v3257, %v3436
      %v3449 = vadd.f32 %v3420, %v3437
      %v3450 = vadd.f32 %v3421, %v3438
      %v3451 = vadd.f32 %v3422, %v3439
      %v3452 = vadd.f32 %v3423, %v3440
      %v3453 = vadd.f32 %v3424, %v3441
      %v3454 = vadd.f32 %v3425, %v3442
      %v3455 = vadd.f32 %v3426, %v3443
      %v3456 = vadd.f32 %v3427, %v3444
      %v3457 = vadd.f32 %v3428, %v3445
      %v3458 = vadd.f32 %v3429, %v3446
      %v3459 = vadd.f32 %v3430, %v3447
      %v3460 = vadd.f32 %v3431, %v3448
      %v3461 = vld [vmem:[%s2773 + $0x3] sm:$0xff]
      %v3462 = vld [vmem:[%s2773 + $0xb] sm:$0xff]
      %v3463 = vld [vmem:[%s2773 + $0x13] sm:$0xff]
      %v3464 = vld [vmem:[%s2773 + $0x23] sm:$0xff]
      %v3465 = vld [vmem:[%s2773 + $0x2b] sm:$0xff]
      %v3466 = vld [vmem:[%s2773 + $0x33] sm:$0xff]
      %v3467 = vld [vmem:[%s2773 + $0x43] sm:$0xff]
      %v3468 = vld [vmem:[%s2773 + $0x4b] sm:$0xff]
      %v3469 = vld [vmem:[%s2773 + $0x53] sm:$0xff]
      %v3470 = vld [vmem:[%s2773 + $0x63] sm:$0xff]
      %v3471 = vld [vmem:[%s2773 + $0x6b] sm:$0xff]
      %v3472 = vld [vmem:[%s2773 + $0x73] sm:$0xff]
      %v3473 = vld [vmem:[%s2773 + $0x83] sm:$0xff]
      %v3474 = vld [vmem:[%s2773 + $0x8b] sm:$0xff]
      %v3475 = vld [vmem:[%s2773 + $0x93] sm:$0xff]
      %v3476 = vld [vmem:[%s2773 + $0xa3] sm:$0xff]
      %v3477 = vld [vmem:[%s2773 + $0xab] sm:$0xff]
      %v3478 = vld [vmem:[%s2773 + $0xb3] sm:$0xff]
      %v3479 = vld [vmem:[%s2773 + $0xc3] sm:$0xff]
      %v3480 = vld [vmem:[%s2773 + $0xcb] sm:$0xff]
      %v3481 = vld [vmem:[%s2773 + $0xd3] sm:$0xff]
      %v3482 = vld [vmem:[%s2773 + $0xe3] sm:$0xff]
      %v3483 = vld [vmem:[%s2773 + $0xeb] sm:$0xff]
      %v3484 = vld [vmem:[%s2773 + $0xf3] sm:$0xff]
      %v3485 = vld [vmem:[%s2773 + $0x103] sm:$0xff]
      %v3486 = vld [vmem:[%s2773 + $0x10b] sm:$0xff]
      %v3487 = vld [vmem:[%s2773 + $0x113] sm:$0xff]
      %v3488 = vld [vmem:[%s2773 + $0x123] sm:$0xff]
      %v3489 = vld [vmem:[%s2773 + $0x12b] sm:$0xff]
      %v3490 = vld [vmem:[%s2773 + $0x133] sm:$0xff]
      %v3491 = vld [vmem:[%s3 + $0x3] sm:$0x1]
      %v3492 = vlaneseq
      %v3493 = vshrl.u32 %v3492, 7
      %v3494 = vsub.s32 0, %v3493
      %v3495 = vrot.slane %v3491, %v3494
      %v3496 = vmul.f32 %v3461, %v3495
      %v3497 = vmul.f32 %v3462, %v3495
      %v3498 = vmul.f32 %v3463, %v3495
      %v3499 = vmul.f32 %v3464, %v3495
      %v3500 = vmul.f32 %v3465, %v3495
      %v3501 = vmul.f32 %v3466, %v3495
      %v3502 = vmul.f32 %v3467, %v3495
      %v3503 = vmul.f32 %v3468, %v3495
      %v3504 = vmul.f32 %v3469, %v3495
      %v3505 = vmul.f32 %v3470, %v3495
      %v3506 = vmul.f32 %v3471, %v3495
      %v3507 = vmul.f32 %v3472, %v3495
      %v3508 = vadd.f32 %v3449, %v3496
      %v3509 = vadd.f32 %v3450, %v3497
      %v3510 = vadd.f32 %v3451, %v3498
      %v3511 = vadd.f32 %v3452, %v3499
      %v3512 = vadd.f32 %v3453, %v3500
      %v3513 = vadd.f32 %v3454, %v3501
      %v3514 = vadd.f32 %v3455, %v3502
      %v3515 = vadd.f32 %v3456, %v3503
      %v3516 = vadd.f32 %v3457, %v3504
      %v3517 = vadd.f32 %v3458, %v3505
      %v3518 = vadd.f32 %v3459, %v3506
      %v3519 = vadd.f32 %v3460, %v3507
      %v3520 = vld [vmem:[%s713 + $0x3] sm:$0x1]
      %v3521 = vlaneseq
      %v3522 = vshrl.u32 %v3521, 7
      %v3523 = vsub.s32 0, %v3522
      %v3524 = vrot.slane %v3520, %v3523
      %v3525 = vmul.f32 %v3464, %v3524
      %v3526 = vmul.f32 %v3465, %v3524
      %v3527 = vmul.f32 %v3466, %v3524
      %v3528 = vmul.f32 %v3467, %v3524
      %v3529 = vmul.f32 %v3468, %v3524
      %v3530 = vmul.f32 %v3469, %v3524
      %v3531 = vmul.f32 %v3470, %v3524
      %v3532 = vmul.f32 %v3471, %v3524
      %v3533 = vmul.f32 %v3472, %v3524
      %v3534 = vmul.f32 %v3473, %v3524
      %v3535 = vmul.f32 %v3474, %v3524
      %v3536 = vmul.f32 %v3475, %v3524
      %v3537 = vadd.f32 %v3508, %v3525
      %v3538 = vadd.f32 %v3509, %v3526
      %v3539 = vadd.f32 %v3510, %v3527
      %v3540 = vadd.f32 %v3511, %v3528
      %v3541 = vadd.f32 %v3512, %v3529
      %v3542 = vadd.f32 %v3513, %v3530
      %v3543 = vadd.f32 %v3514, %v3531
      %v3544 = vadd.f32 %v3515, %v3532
      %v3545 = vadd.f32 %v3516, %v3533
      %v3546 = vadd.f32 %v3517, %v3534
      %v3547 = vadd.f32 %v3518, %v3535
      %v3548 = vadd.f32 %v3519, %v3536
      %v3549 = vld [vmem:[%s743 + $0x3] sm:$0x1]
      %v3550 = vlaneseq
      %v3551 = vshrl.u32 %v3550, 7
      %v3552 = vsub.s32 0, %v3551
      %v3553 = vrot.slane %v3549, %v3552
      %v3554 = vmul.f32 %v3467, %v3553
      %v3555 = vmul.f32 %v3468, %v3553
      %v3556 = vmul.f32 %v3469, %v3553
      %v3557 = vmul.f32 %v3470, %v3553
      %v3558 = vmul.f32 %v3471, %v3553
      %v3559 = vmul.f32 %v3472, %v3553
      %v3560 = vmul.f32 %v3473, %v3553
      %v3561 = vmul.f32 %v3474, %v3553
      %v3562 = vmul.f32 %v3475, %v3553
      %v3563 = vmul.f32 %v3476, %v3553
      %v3564 = vmul.f32 %v3477, %v3553
      %v3565 = vmul.f32 %v3478, %v3553
      %v3566 = vadd.f32 %v3537, %v3554
      %v3567 = vadd.f32 %v3538, %v3555
      %v3568 = vadd.f32 %v3539, %v3556
      %v3569 = vadd.f32 %v3540, %v3557
      %v3570 = vadd.f32 %v3541, %v3558
      %v3571 = vadd.f32 %v3542, %v3559
      %v3572 = vadd.f32 %v3543, %v3560
      %v3573 = vadd.f32 %v3544, %v3561
      %v3574 = vadd.f32 %v3545, %v3562
      %v3575 = vadd.f32 %v3546, %v3563
      %v3576 = vadd.f32 %v3547, %v3564
      %v3577 = vadd.f32 %v3548, %v3565
      %v3578 = vld [vmem:[%s773 + $0x3] sm:$0x1]
      %v3579 = vlaneseq
      %v3580 = vshrl.u32 %v3579, 7
      %v3581 = vsub.s32 0, %v3580
      %v3582 = vrot.slane %v3578, %v3581
      %v3583 = vmul.f32 %v3470, %v3582
      %v3584 = vmul.f32 %v3471, %v3582
      %v3585 = vmul.f32 %v3472, %v3582
      %v3586 = vmul.f32 %v3473, %v3582
      %v3587 = vmul.f32 %v3474, %v3582
      %v3588 = vmul.f32 %v3475, %v3582
      %v3589 = vmul.f32 %v3476, %v3582
      %v3590 = vmul.f32 %v3477, %v3582
      %v3591 = vmul.f32 %v3478, %v3582
      %v3592 = vmul.f32 %v3479, %v3582
      %v3593 = vmul.f32 %v3480, %v3582
      %v3594 = vmul.f32 %v3481, %v3582
      %v3595 = vadd.f32 %v3566, %v3583
      %v3596 = vadd.f32 %v3567, %v3584
      %v3597 = vadd.f32 %v3568, %v3585
      %v3598 = vadd.f32 %v3569, %v3586
      %v3599 = vadd.f32 %v3570, %v3587
      %v3600 = vadd.f32 %v3571, %v3588
      %v3601 = vadd.f32 %v3572, %v3589
      %v3602 = vadd.f32 %v3573, %v3590
      %v3603 = vadd.f32 %v3574, %v3591
      %v3604 = vadd.f32 %v3575, %v3592
      %v3605 = vadd.f32 %v3576, %v3593
      %v3606 = vadd.f32 %v3577, %v3594
      %v3607 = vld [vmem:[%s803 + $0x3] sm:$0x1]
      %v3608 = vlaneseq
      %v3609 = vshrl.u32 %v3608, 7
      %v3610 = vsub.s32 0, %v3609
      %v3611 = vrot.slane %v3607, %v3610
      %v3612 = vmul.f32 %v3473, %v3611
      %v3613 = vmul.f32 %v3474, %v3611
      %v3614 = vmul.f32 %v3475, %v3611
      %v3615 = vmul.f32 %v3476, %v3611
      %v3616 = vmul.f32 %v3477, %v3611
      %v3617 = vmul.f32 %v3478, %v3611
      %v3618 = vmul.f32 %v3479, %v3611
      %v3619 = vmul.f32 %v3480, %v3611
      %v3620 = vmul.f32 %v3481, %v3611
      %v3621 = vmul.f32 %v3482, %v3611
      %v3622 = vmul.f32 %v3483, %v3611
      %v3623 = vmul.f32 %v3484, %v3611
      %v3624 = vadd.f32 %v3595, %v3612
      %v3625 = vadd.f32 %v3596, %v3613
      %v3626 = vadd.f32 %v3597, %v3614
      %v3627 = vadd.f32 %v3598, %v3615
      %v3628 = vadd.f32 %v3599, %v3616
      %v3629 = vadd.f32 %v3600, %v3617
      %v3630 = vadd.f32 %v3601, %v3618
      %v3631 = vadd.f32 %v3602, %v3619
      %v3632 = vadd.f32 %v3603, %v3620
      %v3633 = vadd.f32 %v3604, %v3621
      %v3634 = vadd.f32 %v3605, %v3622
      %v3635 = vadd.f32 %v3606, %v3623
      %v3636 = vld [vmem:[%s833 + $0x3] sm:$0x1]
      %v3637 = vlaneseq
      %v3638 = vshrl.u32 %v3637, 7
      %v3639 = vsub.s32 0, %v3638
      %v3640 = vrot.slane %v3636, %v3639
      %v3641 = vmul.f32 %v3476, %v3640
      %v3642 = vmul.f32 %v3477, %v3640
      %v3643 = vmul.f32 %v3478, %v3640
      %v3644 = vmul.f32 %v3479, %v3640
      %v3645 = vmul.f32 %v3480, %v3640
      %v3646 = vmul.f32 %v3481, %v3640
      %v3647 = vmul.f32 %v3482, %v3640
      %v3648 = vmul.f32 %v3483, %v3640
      %v3649 = vmul.f32 %v3484, %v3640
      %v3650 = vmul.f32 %v3485, %v3640
      %v3651 = vmul.f32 %v3486, %v3640
      %v3652 = vmul.f32 %v3487, %v3640
      %v3653 = vadd.f32 %v3624, %v3641
      %v3654 = vadd.f32 %v3625, %v3642
      %v3655 = vadd.f32 %v3626, %v3643
      %v3656 = vadd.f32 %v3627, %v3644
      %v3657 = vadd.f32 %v3628, %v3645
      %v3658 = vadd.f32 %v3629, %v3646
      %v3659 = vadd.f32 %v3630, %v3647
      %v3660 = vadd.f32 %v3631, %v3648
      %v3661 = vadd.f32 %v3632, %v3649
      %v3662 = vadd.f32 %v3633, %v3650
      %v3663 = vadd.f32 %v3634, %v3651
      %v3664 = vadd.f32 %v3635, %v3652
      %v3665 = vld [vmem:[%s863 + $0x3] sm:$0x1]
      %v3666 = vlaneseq
      %v3667 = vshrl.u32 %v3666, 7
      %v3668 = vsub.s32 0, %v3667
      %v3669 = vrot.slane %v3665, %v3668
      %v3670 = vmul.f32 %v3479, %v3669
      %v3671 = vmul.f32 %v3480, %v3669
      %v3672 = vmul.f32 %v3481, %v3669
      %v3673 = vmul.f32 %v3482, %v3669
      %v3674 = vmul.f32 %v3483, %v3669
      %v3675 = vmul.f32 %v3484, %v3669
      %v3676 = vmul.f32 %v3485, %v3669
      %v3677 = vmul.f32 %v3486, %v3669
      %v3678 = vmul.f32 %v3487, %v3669
      %v3679 = vmul.f32 %v3488, %v3669
      %v3680 = vmul.f32 %v3489, %v3669
      %v3681 = vmul.f32 %v3490, %v3669
      %v3682 = vadd.f32 %v3653, %v3670
      %v3683 = vadd.f32 %v3654, %v3671
      %v3684 = vadd.f32 %v3655, %v3672
      %v3685 = vadd.f32 %v3656, %v3673
      %v3686 = vadd.f32 %v3657, %v3674
      %v3687 = vadd.f32 %v3658, %v3675
      %v3688 = vadd.f32 %v3659, %v3676
      %v3689 = vadd.f32 %v3660, %v3677
      %v3690 = vadd.f32 %v3661, %v3678
      %v3691 = vadd.f32 %v3662, %v3679
      %v3692 = vadd.f32 %v3663, %v3680
      %v3693 = vadd.f32 %v3664, %v3681
      %v3694 = vld [vmem:[%s2773 + $0x4] sm:$0xff]
      %v3695 = vld [vmem:[%s2773 + $0xc] sm:$0xff]
      %v3696 = vld [vmem:[%s2773 + $0x14] sm:$0xff]
      %v3697 = vld [vmem:[%s2773 + $0x24] sm:$0xff]
      %v3698 = vld [vmem:[%s2773 + $0x2c] sm:$0xff]
      %v3699 = vld [vmem:[%s2773 + $0x34] sm:$0xff]
      %v3700 = vld [vmem:[%s2773 + $0x44] sm:$0xff]
      %v3701 = vld [vmem:[%s2773 + $0x4c] sm:$0xff]
      %v3702 = vld [vmem:[%s2773 + $0x54] sm:$0xff]
      %v3703 = vld [vmem:[%s2773 + $0x64] sm:$0xff]
      %v3704 = vld [vmem:[%s2773 + $0x6c] sm:$0xff]
      %v3705 = vld [vmem:[%s2773 + $0x74] sm:$0xff]
      %v3706 = vld [vmem:[%s2773 + $0x84] sm:$0xff]
      %v3707 = vld [vmem:[%s2773 + $0x8c] sm:$0xff]
      %v3708 = vld [vmem:[%s2773 + $0x94] sm:$0xff]
      %v3709 = vld [vmem:[%s2773 + $0xa4] sm:$0xff]
      %v3710 = vld [vmem:[%s2773 + $0xac] sm:$0xff]
      %v3711 = vld [vmem:[%s2773 + $0xb4] sm:$0xff]
      %v3712 = vld [vmem:[%s2773 + $0xc4] sm:$0xff]
      %v3713 = vld [vmem:[%s2773 + $0xcc] sm:$0xff]
      %v3714 = vld [vmem:[%s2773 + $0xd4] sm:$0xff]
      %v3715 = vld [vmem:[%s2773 + $0xe4] sm:$0xff]
      %v3716 = vld [vmem:[%s2773 + $0xec] sm:$0xff]
      %v3717 = vld [vmem:[%s2773 + $0xf4] sm:$0xff]
      %v3718 = vld [vmem:[%s2773 + $0x104] sm:$0xff]
      %v3719 = vld [vmem:[%s2773 + $0x10c] sm:$0xff]
      %v3720 = vld [vmem:[%s2773 + $0x114] sm:$0xff]
      %v3721 = vld [vmem:[%s2773 + $0x124] sm:$0xff]
      %v3722 = vld [vmem:[%s2773 + $0x12c] sm:$0xff]
      %v3723 = vld [vmem:[%s2773 + $0x134] sm:$0xff]
      %v3724 = vld [vmem:[%s3 + $0x4] sm:$0x1]
      %v3725 = vlaneseq
      %v3726 = vshrl.u32 %v3725, 7
      %v3727 = vsub.s32 0, %v3726
      %v3728 = vrot.slane %v3724, %v3727
      %v3729 = vmul.f32 %v3694, %v3728
      %v3730 = vmul.f32 %v3695, %v3728
      %v3731 = vmul.f32 %v3696, %v3728
      %v3732 = vmul.f32 %v3697, %v3728
      %v3733 = vmul.f32 %v3698, %v3728
      %v3734 = vmul.f32 %v3699, %v3728
      %v3735 = vmul.f32 %v3700, %v3728
      %v3736 = vmul.f32 %v3701, %v3728
      %v3737 = vmul.f32 %v3702, %v3728
      %v3738 = vmul.f32 %v3703, %v3728
      %v3739 = vmul.f32 %v3704, %v3728
      %v3740 = vmul.f32 %v3705, %v3728
      %v3741 = vadd.f32 %v3682, %v3729
      %v3742 = vadd.f32 %v3683, %v3730
      %v3743 = vadd.f32 %v3684, %v3731
      %v3744 = vadd.f32 %v3685, %v3732
      %v3745 = vadd.f32 %v3686, %v3733
      %v3746 = vadd.f32 %v3687, %v3734
      %v3747 = vadd.f32 %v3688, %v3735
      %v3748 = vadd.f32 %v3689, %v3736
      %v3749 = vadd.f32 %v3690, %v3737
      %v3750 = vadd.f32 %v3691, %v3738
      %v3751 = vadd.f32 %v3692, %v3739
      %v3752 = vadd.f32 %v3693, %v3740
      %v3753 = vld [vmem:[%s713 + $0x4] sm:$0x1]
      %v3754 = vlaneseq
      %v3755 = vshrl.u32 %v3754, 7
      %v3756 = vsub.s32 0, %v3755
      %v3757 = vrot.slane %v3753, %v3756
      %v3758 = vmul.f32 %v3697, %v3757
      %v3759 = vmul.f32 %v3698, %v3757
      %v3760 = vmul.f32 %v3699, %v3757
      %v3761 = vmul.f32 %v3700, %v3757
      %v3762 = vmul.f32 %v3701, %v3757
      %v3763 = vmul.f32 %v3702, %v3757
      %v3764 = vmul.f32 %v3703, %v3757
      %v3765 = vmul.f32 %v3704, %v3757
      %v3766 = vmul.f32 %v3705, %v3757
      %v3767 = vmul.f32 %v3706, %v3757
      %v3768 = vmul.f32 %v3707, %v3757
      %v3769 = vmul.f32 %v3708, %v3757
      %v3770 = vadd.f32 %v3741, %v3758
      %v3771 = vadd.f32 %v3742, %v3759
      %v3772 = vadd.f32 %v3743, %v3760
      %v3773 = vadd.f32 %v3744, %v3761
      %v3774 = vadd.f32 %v3745, %v3762
      %v3775 = vadd.f32 %v3746, %v3763
      %v3776 = vadd.f32 %v3747, %v3764
      %v3777 = vadd.f32 %v3748, %v3765
      %v3778 = vadd.f32 %v3749, %v3766
      %v3779 = vadd.f32 %v3750, %v3767
      %v3780 = vadd.f32 %v3751, %v3768
      %v3781 = vadd.f32 %v3752, %v3769
      %v3782 = vld [vmem:[%s743 + $0x4] sm:$0x1]
      %v3783 = vlaneseq
      %v3784 = vshrl.u32 %v3783, 7
      %v3785 = vsub.s32 0, %v3784
      %v3786 = vrot.slane %v3782, %v3785
      %v3787 = vmul.f32 %v3700, %v3786
      %v3788 = vmul.f32 %v3701, %v3786
      %v3789 = vmul.f32 %v3702, %v3786
      %v3790 = vmul.f32 %v3703, %v3786
      %v3791 = vmul.f32 %v3704, %v3786
      %v3792 = vmul.f32 %v3705, %v3786
      %v3793 = vmul.f32 %v3706, %v3786
      %v3794 = vmul.f32 %v3707, %v3786
      %v3795 = vmul.f32 %v3708, %v3786
      %v3796 = vmul.f32 %v3709, %v3786
      %v3797 = vmul.f32 %v3710, %v3786
      %v3798 = vmul.f32 %v3711, %v3786
      %v3799 = vadd.f32 %v3770, %v3787
      %v3800 = vadd.f32 %v3771, %v3788
      %v3801 = vadd.f32 %v3772, %v3789
      %v3802 = vadd.f32 %v3773, %v3790
      %v3803 = vadd.f32 %v3774, %v3791
      %v3804 = vadd.f32 %v3775, %v3792
      %v3805 = vadd.f32 %v3776, %v3793
      %v3806 = vadd.f32 %v3777, %v3794
      %v3807 = vadd.f32 %v3778, %v3795
      %v3808 = vadd.f32 %v3779, %v3796
      %v3809 = vadd.f32 %v3780, %v3797
      %v3810 = vadd.f32 %v3781, %v3798
      %v3811 = vld [vmem:[%s773 + $0x4] sm:$0x1]
      %v3812 = vlaneseq
      %v3813 = vshrl.u32 %v3812, 7
      %v3814 = vsub.s32 0, %v3813
      %v3815 = vrot.slane %v3811, %v3814
      %v3816 = vmul.f32 %v3703, %v3815
      %v3817 = vmul.f32 %v3704, %v3815
      %v3818 = vmul.f32 %v3705, %v3815
      %v3819 = vmul.f32 %v3706, %v3815
      %v3820 = vmul.f32 %v3707, %v3815
      %v3821 = vmul.f32 %v3708, %v3815
      %v3822 = vmul.f32 %v3709, %v3815
      %v3823 = vmul.f32 %v3710, %v3815
      %v3824 = vmul.f32 %v3711, %v3815
      %v3825 = vmul.f32 %v3712, %v3815
      %v3826 = vmul.f32 %v3713, %v3815
      %v3827 = vmul.f32 %v3714, %v3815
      %v3828 = vadd.f32 %v3799, %v3816
      %v3829 = vadd.f32 %v3800, %v3817
      %v3830 = vadd.f32 %v3801, %v3818
      %v3831 = vadd.f32 %v3802, %v3819
      %v3832 = vadd.f32 %v3803, %v3820
      %v3833 = vadd.f32 %v3804, %v3821
      %v3834 = vadd.f32 %v3805, %v3822
      %v3835 = vadd.f32 %v3806, %v3823
      %v3836 = vadd.f32 %v3807, %v3824
      %v3837 = vadd.f32 %v3808, %v3825
      %v3838 = vadd.f32 %v3809, %v3826
      %v3839 = vadd.f32 %v3810, %v3827
      %v3840 = vld [vmem:[%s803 + $0x4] sm:$0x1]
      %v3841 = vlaneseq
      %v3842 = vshrl.u32 %v3841, 7
      %v3843 = vsub.s32 0, %v3842
      %v3844 = vrot.slane %v3840, %v3843
      %v3845 = vmul.f32 %v3706, %v3844
      %v3846 = vmul.f32 %v3707, %v3844
      %v3847 = vmul.f32 %v3708, %v3844
      %v3848 = vmul.f32 %v3709, %v3844
      %v3849 = vmul.f32 %v3710, %v3844
      %v3850 = vmul.f32 %v3711, %v3844
      %v3851 = vmul.f32 %v3712, %v3844
      %v3852 = vmul.f32 %v3713, %v3844
      %v3853 = vmul.f32 %v3714, %v3844
      %v3854 = vmul.f32 %v3715, %v3844
      %v3855 = vmul.f32 %v3716, %v3844
      %v3856 = vmul.f32 %v3717, %v3844
      %v3857 = vadd.f32 %v3828, %v3845
      %v3858 = vadd.f32 %v3829, %v3846
      %v3859 = vadd.f32 %v3830, %v3847
      %v3860 = vadd.f32 %v3831, %v3848
      %v3861 = vadd.f32 %v3832, %v3849
      %v3862 = vadd.f32 %v3833, %v3850
      %v3863 = vadd.f32 %v3834, %v3851
      %v3864 = vadd.f32 %v3835, %v3852
      %v3865 = vadd.f32 %v3836, %v3853
      %v3866 = vadd.f32 %v3837, %v3854
      %v3867 = vadd.f32 %v3838, %v3855
      %v3868 = vadd.f32 %v3839, %v3856
      %v3869 = vld [vmem:[%s833 + $0x4] sm:$0x1]
      %v3870 = vlaneseq
      %v3871 = vshrl.u32 %v3870, 7
      %v3872 = vsub.s32 0, %v3871
      %v3873 = vrot.slane %v3869, %v3872
      %v3874 = vmul.f32 %v3709, %v3873
      %v3875 = vmul.f32 %v3710, %v3873
      %v3876 = vmul.f32 %v3711, %v3873
      %v3877 = vmul.f32 %v3712, %v3873
      %v3878 = vmul.f32 %v3713, %v3873
      %v3879 = vmul.f32 %v3714, %v3873
      %v3880 = vmul.f32 %v3715, %v3873
      %v3881 = vmul.f32 %v3716, %v3873
      %v3882 = vmul.f32 %v3717, %v3873
      %v3883 = vmul.f32 %v3718, %v3873
      %v3884 = vmul.f32 %v3719, %v3873
      %v3885 = vmul.f32 %v3720, %v3873
      %v3886 = vadd.f32 %v3857, %v3874
      %v3887 = vadd.f32 %v3858, %v3875
      %v3888 = vadd.f32 %v3859, %v3876
      %v3889 = vadd.f32 %v3860, %v3877
      %v3890 = vadd.f32 %v3861, %v3878
      %v3891 = vadd.f32 %v3862, %v3879
      %v3892 = vadd.f32 %v3863, %v3880
      %v3893 = vadd.f32 %v3864, %v3881
      %v3894 = vadd.f32 %v3865, %v3882
      %v3895 = vadd.f32 %v3866, %v3883
      %v3896 = vadd.f32 %v3867, %v3884
      %v3897 = vadd.f32 %v3868, %v3885
      %v3898 = vld [vmem:[%s863 + $0x4] sm:$0x1]
      %v3899 = vlaneseq
      %v3900 = vshrl.u32 %v3899, 7
      %v3901 = vsub.s32 0, %v3900
      %v3902 = vrot.slane %v3898, %v3901
      %v3903 = vmul.f32 %v3712, %v3902
      %v3904 = vmul.f32 %v3713, %v3902
      %v3905 = vmul.f32 %v3714, %v3902
      %v3906 = vmul.f32 %v3715, %v3902
      %v3907 = vmul.f32 %v3716, %v3902
      %v3908 = vmul.f32 %v3717, %v3902
      %v3909 = vmul.f32 %v3718, %v3902
      %v3910 = vmul.f32 %v3719, %v3902
      %v3911 = vmul.f32 %v3720, %v3902
      %v3912 = vmul.f32 %v3721, %v3902
      %v3913 = vmul.f32 %v3722, %v3902
      %v3914 = vmul.f32 %v3723, %v3902
      %v3915 = vadd.f32 %v3886, %v3903
      %v3916 = vadd.f32 %v3887, %v3904
      %v3917 = vadd.f32 %v3888, %v3905
      %v3918 = vadd.f32 %v3889, %v3906
      %v3919 = vadd.f32 %v3890, %v3907
      %v3920 = vadd.f32 %v3891, %v3908
      %v3921 = vadd.f32 %v3892, %v3909
      %v3922 = vadd.f32 %v3893, %v3910
      %v3923 = vadd.f32 %v3894, %v3911
      %v3924 = vadd.f32 %v3895, %v3912
      %v3925 = vadd.f32 %v3896, %v3913
      %v3926 = vadd.f32 %v3897, %v3914
      %v3927 = vld [vmem:[%s2773 + $0x5] sm:$0xff]
      %v3928 = vld [vmem:[%s2773 + $0xd] sm:$0xff]
      %v3929 = vld [vmem:[%s2773 + $0x15] sm:$0xff]
      %v3930 = vld [vmem:[%s2773 + $0x25] sm:$0xff]
      %v3931 = vld [vmem:[%s2773 + $0x2d] sm:$0xff]
      %v3932 = vld [vmem:[%s2773 + $0x35] sm:$0xff]
      %v3933 = vld [vmem:[%s2773 + $0x45] sm:$0xff]
      %v3934 = vld [vmem:[%s2773 + $0x4d] sm:$0xff]
      %v3935 = vld [vmem:[%s2773 + $0x55] sm:$0xff]
      %v3936 = vld [vmem:[%s2773 + $0x65] sm:$0xff]
      %v3937 = vld [vmem:[%s2773 + $0x6d] sm:$0xff]
      %v3938 = vld [vmem:[%s2773 + $0x75] sm:$0xff]
      %v3939 = vld [vmem:[%s2773 + $0x85] sm:$0xff]
      %v3940 = vld [vmem:[%s2773 + $0x8d] sm:$0xff]
      %v3941 = vld [vmem:[%s2773 + $0x95] sm:$0xff]
      %v3942 = vld [vmem:[%s2773 + $0xa5] sm:$0xff]
      %v3943 = vld [vmem:[%s2773 + $0xad] sm:$0xff]
      %v3944 = vld [vmem:[%s2773 + $0xb5] sm:$0xff]
      %v3945 = vld [vmem:[%s2773 + $0xc5] sm:$0xff]
      %v3946 = vld [vmem:[%s2773 + $0xcd] sm:$0xff]
      %v3947 = vld [vmem:[%s2773 + $0xd5] sm:$0xff]
      %v3948 = vld [vmem:[%s2773 + $0xe5] sm:$0xff]
      %v3949 = vld [vmem:[%s2773 + $0xed] sm:$0xff]
      %v3950 = vld [vmem:[%s2773 + $0xf5] sm:$0xff]
      %v3951 = vld [vmem:[%s2773 + $0x105] sm:$0xff]
      %v3952 = vld [vmem:[%s2773 + $0x10d] sm:$0xff]
      %v3953 = vld [vmem:[%s2773 + $0x115] sm:$0xff]
      %v3954 = vld [vmem:[%s2773 + $0x125] sm:$0xff]
      %v3955 = vld [vmem:[%s2773 + $0x12d] sm:$0xff]
      %v3956 = vld [vmem:[%s2773 + $0x135] sm:$0xff]
      %v3957 = vld [vmem:[%s3 + $0x5] sm:$0x1]
      %v3958 = vlaneseq
      %v3959 = vshrl.u32 %v3958, 7
      %v3960 = vsub.s32 0, %v3959
      %v3961 = vrot.slane %v3957, %v3960
      %v3962 = vmul.f32 %v3927, %v3961
      %v3963 = vmul.f32 %v3928, %v3961
      %v3964 = vmul.f32 %v3929, %v3961
      %v3965 = vmul.f32 %v3930, %v3961
      %v3966 = vmul.f32 %v3931, %v3961
      %v3967 = vmul.f32 %v3932, %v3961
      %v3968 = vmul.f32 %v3933, %v3961
      %v3969 = vmul.f32 %v3934, %v3961
      %v3970 = vmul.f32 %v3935, %v3961
      %v3971 = vmul.f32 %v3936, %v3961
      %v3972 = vmul.f32 %v3937, %v3961
      %v3973 = vmul.f32 %v3938, %v3961
      %v3974 = vadd.f32 %v3915, %v3962
      %v3975 = vadd.f32 %v3916, %v3963
      %v3976 = vadd.f32 %v3917, %v3964
      %v3977 = vadd.f32 %v3918, %v3965
      %v3978 = vadd.f32 %v3919, %v3966
      %v3979 = vadd.f32 %v3920, %v3967
      %v3980 = vadd.f32 %v3921, %v3968
      %v3981 = vadd.f32 %v3922, %v3969
      %v3982 = vadd.f32 %v3923, %v3970
      %v3983 = vadd.f32 %v3924, %v3971
      %v3984 = vadd.f32 %v3925, %v3972
      %v3985 = vadd.f32 %v3926, %v3973
      %v3986 = vld [vmem:[%s713 + $0x5] sm:$0x1]
      %v3987 = vlaneseq
      %v3988 = vshrl.u32 %v3987, 7
      %v3989 = vsub.s32 0, %v3988
      %v3990 = vrot.slane %v3986, %v3989
      %v3991 = vmul.f32 %v3930, %v3990
      %v3992 = vmul.f32 %v3931, %v3990
      %v3993 = vmul.f32 %v3932, %v3990
      %v3994 = vmul.f32 %v3933, %v3990
      %v3995 = vmul.f32 %v3934, %v3990
      %v3996 = vmul.f32 %v3935, %v3990
      %v3997 = vmul.f32 %v3936, %v3990
      %v3998 = vmul.f32 %v3937, %v3990
      %v3999 = vmul.f32 %v3938, %v3990
      %v4000 = vmul.f32 %v3939, %v3990
      %v4001 = vmul.f32 %v3940, %v3990
      %v4002 = vmul.f32 %v3941, %v3990
      %v4003 = vadd.f32 %v3974, %v3991
      %v4004 = vadd.f32 %v3975, %v3992
      %v4005 = vadd.f32 %v3976, %v3993
      %v4006 = vadd.f32 %v3977, %v3994
      %v4007 = vadd.f32 %v3978, %v3995
      %v4008 = vadd.f32 %v3979, %v3996
      %v4009 = vadd.f32 %v3980, %v3997
      %v4010 = vadd.f32 %v3981, %v3998
      %v4011 = vadd.f32 %v3982, %v3999
      %v4012 = vadd.f32 %v3983, %v4000
      %v4013 = vadd.f32 %v3984, %v4001
      %v4014 = vadd.f32 %v3985, %v4002
      %v4015 = vld [vmem:[%s743 + $0x5] sm:$0x1]
      %v4016 = vlaneseq
      %v4017 = vshrl.u32 %v4016, 7
      %v4018 = vsub.s32 0, %v4017
      %v4019 = vrot.slane %v4015, %v4018
      %v4020 = vmul.f32 %v3933, %v4019
      %v4021 = vmul.f32 %v3934, %v4019
      %v4022 = vmul.f32 %v3935, %v4019
      %v4023 = vmul.f32 %v3936, %v4019
      %v4024 = vmul.f32 %v3937, %v4019
      %v4025 = vmul.f32 %v3938, %v4019
      %v4026 = vmul.f32 %v3939, %v4019
      %v4027 = vmul.f32 %v3940, %v4019
      %v4028 = vmul.f32 %v3941, %v4019
      %v4029 = vmul.f32 %v3942, %v4019
      %v4030 = vmul.f32 %v3943, %v4019
      %v4031 = vmul.f32 %v3944, %v4019
      %v4032 = vadd.f32 %v4003, %v4020
      %v4033 = vadd.f32 %v4004, %v4021
      %v4034 = vadd.f32 %v4005, %v4022
      %v4035 = vadd.f32 %v4006, %v4023
      %v4036 = vadd.f32 %v4007, %v4024
      %v4037 = vadd.f32 %v4008, %v4025
      %v4038 = vadd.f32 %v4009, %v4026
      %v4039 = vadd.f32 %v4010, %v4027
      %v4040 = vadd.f32 %v4011, %v4028
      %v4041 = vadd.f32 %v4012, %v4029
      %v4042 = vadd.f32 %v4013, %v4030
      %v4043 = vadd.f32 %v4014, %v4031
      %v4044 = vld [vmem:[%s773 + $0x5] sm:$0x1]
      %v4045 = vlaneseq
      %v4046 = vshrl.u32 %v4045, 7
      %v4047 = vsub.s32 0, %v4046
      %v4048 = vrot.slane %v4044, %v4047
      %v4049 = vmul.f32 %v3936, %v4048
      %v4050 = vmul.f32 %v3937, %v4048
      %v4051 = vmul.f32 %v3938, %v4048
      %v4052 = vmul.f32 %v3939, %v4048
      %v4053 = vmul.f32 %v3940, %v4048
      %v4054 = vmul.f32 %v3941, %v4048
      %v4055 = vmul.f32 %v3942, %v4048
      %v4056 = vmul.f32 %v3943, %v4048
      %v4057 = vmul.f32 %v3944, %v4048
      %v4058 = vmul.f32 %v3945, %v4048
      %v4059 = vmul.f32 %v3946, %v4048
      %v4060 = vmul.f32 %v3947, %v4048
      %v4061 = vadd.f32 %v4032, %v4049
      %v4062 = vadd.f32 %v4033, %v4050
      %v4063 = vadd.f32 %v4034, %v4051
      %v4064 = vadd.f32 %v4035, %v4052
      %v4065 = vadd.f32 %v4036, %v4053
      %v4066 = vadd.f32 %v4037, %v4054
      %v4067 = vadd.f32 %v4038, %v4055
      %v4068 = vadd.f32 %v4039, %v4056
      %v4069 = vadd.f32 %v4040, %v4057
      %v4070 = vadd.f32 %v4041, %v4058
      %v4071 = vadd.f32 %v4042, %v4059
      %v4072 = vadd.f32 %v4043, %v4060
      %v4073 = vld [vmem:[%s803 + $0x5] sm:$0x1]
      %v4074 = vlaneseq
      %v4075 = vshrl.u32 %v4074, 7
      %v4076 = vsub.s32 0, %v4075
      %v4077 = vrot.slane %v4073, %v4076
      %v4078 = vmul.f32 %v3939, %v4077
      %v4079 = vmul.f32 %v3940, %v4077
      %v4080 = vmul.f32 %v3941, %v4077
      %v4081 = vmul.f32 %v3942, %v4077
      %v4082 = vmul.f32 %v3943, %v4077
      %v4083 = vmul.f32 %v3944, %v4077
      %v4084 = vmul.f32 %v3945, %v4077
      %v4085 = vmul.f32 %v3946, %v4077
      %v4086 = vmul.f32 %v3947, %v4077
      %v4087 = vmul.f32 %v3948, %v4077
      %v4088 = vmul.f32 %v3949, %v4077
      %v4089 = vmul.f32 %v3950, %v4077
      %v4090 = vadd.f32 %v4061, %v4078
      %v4091 = vadd.f32 %v4062, %v4079
      %v4092 = vadd.f32 %v4063, %v4080
      %v4093 = vadd.f32 %v4064, %v4081
      %v4094 = vadd.f32 %v4065, %v4082
      %v4095 = vadd.f32 %v4066, %v4083
      %v4096 = vadd.f32 %v4067, %v4084
      %v4097 = vadd.f32 %v4068, %v4085
      %v4098 = vadd.f32 %v4069, %v4086
      %v4099 = vadd.f32 %v4070, %v4087
      %v4100 = vadd.f32 %v4071, %v4088
      %v4101 = vadd.f32 %v4072, %v4089
      %v4102 = vld [vmem:[%s833 + $0x5] sm:$0x1]
      %v4103 = vlaneseq
      %v4104 = vshrl.u32 %v4103, 7
      %v4105 = vsub.s32 0, %v4104
      %v4106 = vrot.slane %v4102, %v4105
      %v4107 = vmul.f32 %v3942, %v4106
      %v4108 = vmul.f32 %v3943, %v4106
      %v4109 = vmul.f32 %v3944, %v4106
      %v4110 = vmul.f32 %v3945, %v4106
      %v4111 = vmul.f32 %v3946, %v4106
      %v4112 = vmul.f32 %v3947, %v4106
      %v4113 = vmul.f32 %v3948, %v4106
      %v4114 = vmul.f32 %v3949, %v4106
      %v4115 = vmul.f32 %v3950, %v4106
      %v4116 = vmul.f32 %v3951, %v4106
      %v4117 = vmul.f32 %v3952, %v4106
      %v4118 = vmul.f32 %v3953, %v4106
      %v4119 = vadd.f32 %v4090, %v4107
      %v4120 = vadd.f32 %v4091, %v4108
      %v4121 = vadd.f32 %v4092, %v4109
      %v4122 = vadd.f32 %v4093, %v4110
      %v4123 = vadd.f32 %v4094, %v4111
      %v4124 = vadd.f32 %v4095, %v4112
      %v4125 = vadd.f32 %v4096, %v4113
      %v4126 = vadd.f32 %v4097, %v4114
      %v4127 = vadd.f32 %v4098, %v4115
      %v4128 = vadd.f32 %v4099, %v4116
      %v4129 = vadd.f32 %v4100, %v4117
      %v4130 = vadd.f32 %v4101, %v4118
      %v4131 = vld [vmem:[%s863 + $0x5] sm:$0x1]
      %v4132 = vlaneseq
      %v4133 = vshrl.u32 %v4132, 7
      %v4134 = vsub.s32 0, %v4133
      %v4135 = vrot.slane %v4131, %v4134
      %v4136 = vmul.f32 %v3945, %v4135
      %v4137 = vmul.f32 %v3946, %v4135
      %v4138 = vmul.f32 %v3947, %v4135
      %v4139 = vmul.f32 %v3948, %v4135
      %v4140 = vmul.f32 %v3949, %v4135
      %v4141 = vmul.f32 %v3950, %v4135
      %v4142 = vmul.f32 %v3951, %v4135
      %v4143 = vmul.f32 %v3952, %v4135
      %v4144 = vmul.f32 %v3953, %v4135
      %v4145 = vmul.f32 %v3954, %v4135
      %v4146 = vmul.f32 %v3955, %v4135
      %v4147 = vmul.f32 %v3956, %v4135
      %v4148 = vadd.f32 %v4119, %v4136
      %v4149 = vadd.f32 %v4120, %v4137
      %v4150 = vadd.f32 %v4121, %v4138
      %v4151 = vadd.f32 %v4122, %v4139
      %v4152 = vadd.f32 %v4123, %v4140
      %v4153 = vadd.f32 %v4124, %v4141
      %v4154 = vadd.f32 %v4125, %v4142
      %v4155 = vadd.f32 %v4126, %v4143
      %v4156 = vadd.f32 %v4127, %v4144
      %v4157 = vadd.f32 %v4128, %v4145
      %v4158 = vadd.f32 %v4129, %v4146
      %v4159 = vadd.f32 %v4130, %v4147
      %v4160 = vld [vmem:[%s2773 + $0x6] sm:$0xff]
      %v4161 = vld [vmem:[%s2773 + $0xe] sm:$0xff]
      %v4162 = vld [vmem:[%s2773 + $0x16] sm:$0xff]
      %v4163 = vld [vmem:[%s2773 + $0x26] sm:$0xff]
      %v4164 = vld [vmem:[%s2773 + $0x2e] sm:$0xff]
      %v4165 = vld [vmem:[%s2773 + $0x36] sm:$0xff]
      %v4166 = vld [vmem:[%s2773 + $0x46] sm:$0xff]
      %v4167 = vld [vmem:[%s2773 + $0x4e] sm:$0xff]
      %v4168 = vld [vmem:[%s2773 + $0x56] sm:$0xff]
      %v4169 = vld [vmem:[%s2773 + $0x66] sm:$0xff]
      %v4170 = vld [vmem:[%s2773 + $0x6e] sm:$0xff]
      %v4171 = vld [vmem:[%s2773 + $0x76] sm:$0xff]
      %v4172 = vld [vmem:[%s2773 + $0x86] sm:$0xff]
      %v4173 = vld [vmem:[%s2773 + $0x8e] sm:$0xff]
      %v4174 = vld [vmem:[%s2773 + $0x96] sm:$0xff]
      %v4175 = vld [vmem:[%s2773 + $0xa6] sm:$0xff]
      %v4176 = vld [vmem:[%s2773 + $0xae] sm:$0xff]
      %v4177 = vld [vmem:[%s2773 + $0xb6] sm:$0xff]
      %v4178 = vld [vmem:[%s2773 + $0xc6] sm:$0xff]
      %v4179 = vld [vmem:[%s2773 + $0xce] sm:$0xff]
      %v4180 = vld [vmem:[%s2773 + $0xd6] sm:$0xff]
      %v4181 = vld [vmem:[%s2773 + $0xe6] sm:$0xff]
      %v4182 = vld [vmem:[%s2773 + $0xee] sm:$0xff]
      %v4183 = vld [vmem:[%s2773 + $0xf6] sm:$0xff]
      %v4184 = vld [vmem:[%s2773 + $0x106] sm:$0xff]
      %v4185 = vld [vmem:[%s2773 + $0x10e] sm:$0xff]
      %v4186 = vld [vmem:[%s2773 + $0x116] sm:$0xff]
      %v4187 = vld [vmem:[%s2773 + $0x126] sm:$0xff]
      %v4188 = vld [vmem:[%s2773 + $0x12e] sm:$0xff]
      %v4189 = vld [vmem:[%s2773 + $0x136] sm:$0xff]
      %v4190 = vld [vmem:[%s3 + $0x6] sm:$0x1]
      %v4191 = vlaneseq
      %v4192 = vshrl.u32 %v4191, 7
      %v4193 = vsub.s32 0, %v4192
      %v4194 = vrot.slane %v4190, %v4193
      %v4195 = vmul.f32 %v4160, %v4194
      %v4196 = vmul.f32 %v4161, %v4194
      %v4197 = vmul.f32 %v4162, %v4194
      %v4198 = vmul.f32 %v4163, %v4194
      %v4199 = vmul.f32 %v4164, %v4194
      %v4200 = vmul.f32 %v4165, %v4194
      %v4201 = vmul.f32 %v4166, %v4194
      %v4202 = vmul.f32 %v4167, %v4194
      %v4203 = vmul.f32 %v4168, %v4194
      %v4204 = vmul.f32 %v4169, %v4194
      %v4205 = vmul.f32 %v4170, %v4194
      %v4206 = vmul.f32 %v4171, %v4194
      %v4207 = vadd.f32 %v4148, %v4195
      %v4208 = vadd.f32 %v4149, %v4196
      %v4209 = vadd.f32 %v4150, %v4197
      %v4210 = vadd.f32 %v4151, %v4198
      %v4211 = vadd.f32 %v4152, %v4199
      %v4212 = vadd.f32 %v4153, %v4200
      %v4213 = vadd.f32 %v4154, %v4201
      %v4214 = vadd.f32 %v4155, %v4202
      %v4215 = vadd.f32 %v4156, %v4203
      %v4216 = vadd.f32 %v4157, %v4204
      %v4217 = vadd.f32 %v4158, %v4205
      %v4218 = vadd.f32 %v4159, %v4206
      %v4219 = vld [vmem:[%s713 + $0x6] sm:$0x1]
      %v4220 = vlaneseq
      %v4221 = vshrl.u32 %v4220, 7
      %v4222 = vsub.s32 0, %v4221
      %v4223 = vrot.slane %v4219, %v4222
      %v4224 = vmul.f32 %v4163, %v4223
      %v4225 = vmul.f32 %v4164, %v4223
      %v4226 = vmul.f32 %v4165, %v4223
      %v4227 = vmul.f32 %v4166, %v4223
      %v4228 = vmul.f32 %v4167, %v4223
      %v4229 = vmul.f32 %v4168, %v4223
      %v4230 = vmul.f32 %v4169, %v4223
      %v4231 = vmul.f32 %v4170, %v4223
      %v4232 = vmul.f32 %v4171, %v4223
      %v4233 = vmul.f32 %v4172, %v4223
      %v4234 = vmul.f32 %v4173, %v4223
      %v4235 = vmul.f32 %v4174, %v4223
      %v4236 = vadd.f32 %v4207, %v4224
      %v4237 = vadd.f32 %v4208, %v4225
      %v4238 = vadd.f32 %v4209, %v4226
      %v4239 = vadd.f32 %v4210, %v4227
      %v4240 = vadd.f32 %v4211, %v4228
      %v4241 = vadd.f32 %v4212, %v4229
      %v4242 = vadd.f32 %v4213, %v4230
      %v4243 = vadd.f32 %v4214, %v4231
      %v4244 = vadd.f32 %v4215, %v4232
      %v4245 = vadd.f32 %v4216, %v4233
      %v4246 = vadd.f32 %v4217, %v4234
      %v4247 = vadd.f32 %v4218, %v4235
      %v4248 = vld [vmem:[%s743 + $0x6] sm:$0x1]
      %v4249 = vlaneseq
      %v4250 = vshrl.u32 %v4249, 7
      %v4251 = vsub.s32 0, %v4250
      %v4252 = vrot.slane %v4248, %v4251
      %v4253 = vmul.f32 %v4166, %v4252
      %v4254 = vmul.f32 %v4167, %v4252
      %v4255 = vmul.f32 %v4168, %v4252
      %v4256 = vmul.f32 %v4169, %v4252
      %v4257 = vmul.f32 %v4170, %v4252
      %v4258 = vmul.f32 %v4171, %v4252
      %v4259 = vmul.f32 %v4172, %v4252
      %v4260 = vmul.f32 %v4173, %v4252
      %v4261 = vmul.f32 %v4174, %v4252
      %v4262 = vmul.f32 %v4175, %v4252
      %v4263 = vmul.f32 %v4176, %v4252
      %v4264 = vmul.f32 %v4177, %v4252
      %v4265 = vadd.f32 %v4236, %v4253
      %v4266 = vadd.f32 %v4237, %v4254
      %v4267 = vadd.f32 %v4238, %v4255
      %v4268 = vadd.f32 %v4239, %v4256
      %v4269 = vadd.f32 %v4240, %v4257
      %v4270 = vadd.f32 %v4241, %v4258
      %v4271 = vadd.f32 %v4242, %v4259
      %v4272 = vadd.f32 %v4243, %v4260
      %v4273 = vadd.f32 %v4244, %v4261
      %v4274 = vadd.f32 %v4245, %v4262
      %v4275 = vadd.f32 %v4246, %v4263
      %v4276 = vadd.f32 %v4247, %v4264
      %v4277 = vld [vmem:[%s773 + $0x6] sm:$0x1]
      %v4278 = vlaneseq
      %v4279 = vshrl.u32 %v4278, 7
      %v4280 = vsub.s32 0, %v4279
      %v4281 = vrot.slane %v4277, %v4280
      %v4282 = vmul.f32 %v4169, %v4281
      %v4283 = vmul.f32 %v4170, %v4281
      %v4284 = vmul.f32 %v4171, %v4281
      %v4285 = vmul.f32 %v4172, %v4281
      %v4286 = vmul.f32 %v4173, %v4281
      %v4287 = vmul.f32 %v4174, %v4281
      %v4288 = vmul.f32 %v4175, %v4281
      %v4289 = vmul.f32 %v4176, %v4281
      %v4290 = vmul.f32 %v4177, %v4281
      %v4291 = vmul.f32 %v4178, %v4281
      %v4292 = vmul.f32 %v4179, %v4281
      %v4293 = vmul.f32 %v4180, %v4281
      %v4294 = vadd.f32 %v4265, %v4282
      %v4295 = vadd.f32 %v4266, %v4283
      %v4296 = vadd.f32 %v4267, %v4284
      %v4297 = vadd.f32 %v4268, %v4285
      %v4298 = vadd.f32 %v4269, %v4286
      %v4299 = vadd.f32 %v4270, %v4287
      %v4300 = vadd.f32 %v4271, %v4288
      %v4301 = vadd.f32 %v4272, %v4289
      %v4302 = vadd.f32 %v4273, %v4290
      %v4303 = vadd.f32 %v4274, %v4291
      %v4304 = vadd.f32 %v4275, %v4292
      %v4305 = vadd.f32 %v4276, %v4293
      %v4306 = vld [vmem:[%s803 + $0x6] sm:$0x1]
      %v4307 = vlaneseq
      %v4308 = vshrl.u32 %v4307, 7
      %v4309 = vsub.s32 0, %v4308
      %v4310 = vrot.slane %v4306, %v4309
      %v4311 = vmul.f32 %v4172, %v4310
      %v4312 = vmul.f32 %v4173, %v4310
      %v4313 = vmul.f32 %v4174, %v4310
      %v4314 = vmul.f32 %v4175, %v4310
      %v4315 = vmul.f32 %v4176, %v4310
      %v4316 = vmul.f32 %v4177, %v4310
      %v4317 = vmul.f32 %v4178, %v4310
      %v4318 = vmul.f32 %v4179, %v4310
      %v4319 = vmul.f32 %v4180, %v4310
      %v4320 = vmul.f32 %v4181, %v4310
      %v4321 = vmul.f32 %v4182, %v4310
      %v4322 = vmul.f32 %v4183, %v4310
      %v4323 = vadd.f32 %v4294, %v4311
      %v4324 = vadd.f32 %v4295, %v4312
      %v4325 = vadd.f32 %v4296, %v4313
      %v4326 = vadd.f32 %v4297, %v4314
      %v4327 = vadd.f32 %v4298, %v4315
      %v4328 = vadd.f32 %v4299, %v4316
      %v4329 = vadd.f32 %v4300, %v4317
      %v4330 = vadd.f32 %v4301, %v4318
      %v4331 = vadd.f32 %v4302, %v4319
      %v4332 = vadd.f32 %v4303, %v4320
      %v4333 = vadd.f32 %v4304, %v4321
      %v4334 = vadd.f32 %v4305, %v4322
      %v4335 = vld [vmem:[%s833 + $0x6] sm:$0x1]
      %v4336 = vlaneseq
      %v4337 = vshrl.u32 %v4336, 7
      %v4338 = vsub.s32 0, %v4337
      %v4339 = vrot.slane %v4335, %v4338
      %v4340 = vmul.f32 %v4175, %v4339
      %v4341 = vmul.f32 %v4176, %v4339
      %v4342 = vmul.f32 %v4177, %v4339
      %v4343 = vmul.f32 %v4178, %v4339
      %v4344 = vmul.f32 %v4179, %v4339
      %v4345 = vmul.f32 %v4180, %v4339
      %v4346 = vmul.f32 %v4181, %v4339
      %v4347 = vmul.f32 %v4182, %v4339
      %v4348 = vmul.f32 %v4183, %v4339
      %v4349 = vmul.f32 %v4184, %v4339
      %v4350 = vmul.f32 %v4185, %v4339
      %v4351 = vmul.f32 %v4186, %v4339
      %v4352 = vadd.f32 %v4323, %v4340
      %v4353 = vadd.f32 %v4324, %v4341
      %v4354 = vadd.f32 %v4325, %v4342
      %v4355 = vadd.f32 %v4326, %v4343
      %v4356 = vadd.f32 %v4327, %v4344
      %v4357 = vadd.f32 %v4328, %v4345
      %v4358 = vadd.f32 %v4329, %v4346
      %v4359 = vadd.f32 %v4330, %v4347
      %v4360 = vadd.f32 %v4331, %v4348
      %v4361 = vadd.f32 %v4332, %v4349
      %v4362 = vadd.f32 %v4333, %v4350
      %v4363 = vadd.f32 %v4334, %v4351
      %v4364 = vld [vmem:[%s863 + $0x6] sm:$0x1]
      %v4365 = vlaneseq
      %v4366 = vshrl.u32 %v4365, 7
      %v4367 = vsub.s32 0, %v4366
      %v4368 = vrot.slane %v4364, %v4367
      %v4369 = vmul.f32 %v4178, %v4368
      %v4370 = vmul.f32 %v4179, %v4368
      %v4371 = vmul.f32 %v4180, %v4368
      %v4372 = vmul.f32 %v4181, %v4368
      %v4373 = vmul.f32 %v4182, %v4368
      %v4374 = vmul.f32 %v4183, %v4368
      %v4375 = vmul.f32 %v4184, %v4368
      %v4376 = vmul.f32 %v4185, %v4368
      %v4377 = vmul.f32 %v4186, %v4368
      %v4378 = vmul.f32 %v4187, %v4368
      %v4379 = vmul.f32 %v4188, %v4368
      %v4380 = vmul.f32 %v4189, %v4368
      %v4381 = vadd.f32 %v4352, %v4369
      %v4382 = vadd.f32 %v4353, %v4370
      %v4383 = vadd.f32 %v4354, %v4371
      %v4384 = vadd.f32 %v4355, %v4372
      %v4385 = vadd.f32 %v4356, %v4373
      %v4386 = vadd.f32 %v4357, %v4374
      %v4387 = vadd.f32 %v4358, %v4375
      %v4388 = vadd.f32 %v4359, %v4376
      %v4389 = vadd.f32 %v4360, %v4377
      %v4390 = vadd.f32 %v4361, %v4378
      %v4391 = vadd.f32 %v4362, %v4379
      %v4392 = vadd.f32 %v4363, %v4380
      %v4393 = vld [vmem:[%s4] sm:$0x1]
      %v4395 = vlaneseq
      %v4396 = vshrl.u32 %v4395, 7
      %v4397 = vsub.s32 0, %v4396
      %v4398 = vrot.slane %v4393, %v4397
      %v4400 = vadd.f32 %v4381, %v4398
      %v4401 = vadd.f32 %v4382, %v4398
      %v4402 = vadd.f32 %v4383, %v4398
      %v4403 = vadd.f32 %v4384, %v4398
      %v4404 = vadd.f32 %v4385, %v4398
      %v4405 = vadd.f32 %v4386, %v4398
      %v4406 = vadd.f32 %v4387, %v4398
      %v4407 = vadd.f32 %v4388, %v4398
      %v4408 = vadd.f32 %v4389, %v4398
      %v4409 = vadd.f32 %v4390, %v4398
      %v4410 = vadd.f32 %v4391, %v4398
      %v4411 = vadd.f32 %v4392, %v4398
      %v4412 = vld [vmem:[%s5] sm:$0xff]
      %v4413 = vld [vmem:[%s5 + $0x8] sm:$0xff]
      %v4414 = vld [vmem:[%s6] sm:$0x1]
      %v4416 = vlaneseq
      %v4417 = vshrl.u32 %v4416, 7
      %v4418 = vsub.s32 0, %v4417
      %v4419 = vrot.slane %v4414, %v4418
      %v4422 = vsel %vm569, %v4400, 0
      %v4425 = vsel %vm569, %v4401, 0
      %v4428 = vsel %vm569, %v4402, 0
      %v4431 = vsel %vm569, %v4403, 0
      %v4434 = vsel %vm569, %v4404, 0
      %v4437 = vsel %vm569, %v4405, 0
      %v4440 = vsel %vm569, %v4406, 0
      %v4443 = vsel %vm569, %v4407, 0
      %v4446 = vsel %vm569, %v4408, 0
      %v4449 = vsel %vm569, %v4409, 0
      %v4452 = vsel %vm569, %v4410, 0
      %v4455 = vsel %vm569, %v4411, 0
      %4457 = vmatprep.subr.mxu0 0.0
      %4458 = vmatpush1.msra.mxu0 0.0
      %4459 = vmatprep.subr.mxu0 0.0
      %4460 = vmatpush1.msra.mxu0 0.0
      %4461 = vmatprep.subr.mxu0 0.0
      %4462 = vmatpush1.msra.mxu0 0.0
      %4463 = vmatprep.subr.mxu0 0.0
      %4464 = vmatpush1.msra.mxu0 0.0
      %4465 = vmatprep.subr.mxu0 0.0
      %4466 = vmatpush1.msra.mxu0 0.0
      %4467 = vmatprep.subr.mxu0 0.0
      %4468 = vmatpush1.msra.mxu0 0.0
      %4469 = vmatprep.subr.mxu0 0.0
      %4470 = vmatpush1.msra.mxu0 0.0
      %4471 = vmatprep.subr.mxu0 0.0
      %4472 = vmatpush1.msra.mxu0 0.0
      %4473 = vmatprep.subr.mxu0 0.0
      %4474 = vmatpush1.msra.mxu0 0.0
      %4475 = vmatprep.subr.mxu0 0.0
      %4476 = vmatpush1.msra.mxu0 0.0
      %4477 = vmatprep.subr.mxu0 0.0
      %4478 = vmatpush1.msra.mxu0 0.0
      %4479 = vmatprep.subr.mxu0 0.0
      %4480 = vmatpush1.msra.mxu0 0.0
      %4481 = vmatprep.subr.mxu0 0.0
      %4482 = vmatpush1.msra.mxu0 0.0
      %4483 = vmatprep.subr.mxu0 0.0
      %4484 = vmatpush1.msra.mxu0 0.0
      %4485 = vmatprep.subr.mxu0 0.0
      %4486 = vmatpush1.msra.mxu0 %v4413
      %4487 = vmatprep.subr.mxu0 0.0
      %4488 = vmatpush1.msra.mxu0 %v4412
      %4489 = vmatprep.subr.mxu0 0.0
      %4490 = vmatpush2.msra.mxu0 0.0
      %4491 = vmatprep.subr.mxu0 0.0
      %4492 = vmatpush2.msra.mxu0 0.0
      %4493 = vmatprep.subr.mxu0 0.0
      %4494 = vmatpush2.msra.mxu0 0.0
      %4495 = vmatprep.subr.mxu0 0.0
      %4496 = vmatpush2.msra.mxu0 0.0
      %4497 = vmatprep.subr.mxu0 0.0
      %4498 = vmatpush2.msra.mxu0 0.0
      %4499 = vmatprep.subr.mxu0 0.0
      %4500 = vmatpush2.msra.mxu0 0.0
      %4501 = vmatprep.subr.mxu0 0.0
      %4502 = vmatpush2.msra.mxu0 0.0
      %4503 = vmatprep.subr.mxu0 0.0
      %4504 = vmatpush2.msra.mxu0 0.0
      %4505 = vmatprep.subr.mxu0 0.0
      %4506 = vmatpush2.msra.mxu0 0.0
      %4507 = vmatprep.subr.mxu0 0.0
      %4508 = vmatpush2.msra.mxu0 0.0
      %4509 = vmatprep.subr.mxu0 0.0
      %4510 = vmatpush2.msra.mxu0 0.0
      %4511 = vmatprep.subr.mxu0 0.0
      %4512 = vmatpush2.msra.mxu0 0.0
      %4513 = vmatprep.subr.mxu0 0.0
      %4514 = vmatpush2.msra.mxu0 0.0
      %4515 = vmatprep.subr.mxu0 0.0
      %4516 = vmatpush2.msra.mxu0 0.0
      %4517 = vmatprep.subr.mxu0 0.0
      %4518 = vmatpush2.msra.mxu0 0.0
      %4519 = vmatprep.subr.mxu0 0.0
      %4520 = vmatpush2.msra.mxu0 0.0
      %4521 = vmatprep.mubr.f32.mxu0 0.0
      %4522 = vmatmul.mubr.f32.gmra.mxu0 %v4422
      %v4523 = vpop.f32.mrf.mxu0
      %v4524 = vadd.f32 %v4419, %v4523
      %v4525 = vpop.f32.mrf.mxu0
      %4526 = vmatprep.mubr.f32.mxu0 0.0
      %4527 = vmatmul.mubr.f32.gmra.mxu0 %v4425
      %v4528 = vpop.f32.mrf.mxu0
      %v4529 = vadd.f32 %v4419, %v4528
      %v4530 = vpop.f32.mrf.mxu0
      %4531 = vmatprep.mubr.f32.mxu0 0.0
      %4532 = vmatmul.mubr.f32.gmra.mxu0 %v4428
      %v4533 = vpop.f32.mrf.mxu0
      %v4534 = vadd.f32 %v4419, %v4533
      %v4535 = vpop.f32.mrf.mxu0
      %4536 = vmatprep.mubr.f32.mxu0 0.0
      %4537 = vmatmul.mubr.f32.gmra.mxu0 %v4431
      %v4538 = vpop.f32.mrf.mxu0
      %v4539 = vadd.f32 %v4419, %v4538
      %v4540 = vpop.f32.mrf.mxu0
      %4541 = vmatprep.mubr.f32.mxu0 0.0
      %4542 = vmatmul.mubr.f32.gmra.mxu0 %v4434
      %v4543 = vpop.f32.mrf.mxu0
      %v4544 = vadd.f32 %v4419, %v4543
      %v4545 = vpop.f32.mrf.mxu0
      %4546 = vmatprep.mubr.f32.mxu0 0.0
      %4547 = vmatmul.mubr.f32.gmra.mxu0 %v4437
      %v4548 = vpop.f32.mrf.mxu0
      %v4549 = vadd.f32 %v4419, %v4548
      %v4550 = vpop.f32.mrf.mxu0
      %4551 = vmatprep.mubr.f32.mxu0 0.0
      %4552 = vmatmul.mubr.f32.gmra.mxu0 %v4440
      %v4553 = vpop.f32.mrf.mxu0
      %v4554 = vadd.f32 %v4419, %v4553
      %v4555 = vpop.f32.mrf.mxu0
      %4556 = vmatprep.mubr.f32.mxu0 0.0
      %4557 = vmatmul.mubr.f32.gmra.mxu0 %v4443
      %v4558 = vpop.f32.mrf.mxu0
      %v4559 = vadd.f32 %v4419, %v4558
      %v4560 = vpop.f32.mrf.mxu0
      %4561 = vmatprep.mubr.f32.mxu0 0.0
      %4562 = vmatmul.mubr.f32.gmra.mxu0 %v4446
      %v4563 = vpop.f32.mrf.mxu0
      %v4564 = vadd.f32 %v4419, %v4563
      %v4565 = vpop.f32.mrf.mxu0
      %4566 = vmatprep.mubr.f32.mxu0 0.0
      %4567 = vmatmul.mubr.f32.gmra.mxu0 %v4449
      %v4568 = vpop.f32.mrf.mxu0
      %v4569 = vadd.f32 %v4419, %v4568
      %v4570 = vpop.f32.mrf.mxu0
      %4571 = vmatprep.mubr.f32.mxu0 0.0
      %4572 = vmatmul.mubr.f32.gmra.mxu0 %v4452
      %v4573 = vpop.f32.mrf.mxu0
      %v4574 = vadd.f32 %v4419, %v4573
      %v4575 = vpop.f32.mrf.mxu0
      %4576 = vmatprep.mubr.f32.mxu0 0.0
      %4577 = vmatmul.mubr.f32.gmra.mxu0 %v4455
      %v4578 = vpop.f32.mrf.mxu0
      %v4579 = vadd.f32 %v4419, %v4578
      %v4580 = vpop.f32.mrf.mxu0
      %4581 = vdwg.mxu0
      %v4582 = vmul.f32 %v4524, 0.5
      %v4583 = vmul.f32 %v4529, 0.5
      %v4584 = vmul.f32 %v4534, 0.5
      %v4585 = vmul.f32 %v4539, 0.5
      %v4586 = vmul.f32 %v4544, 0.5
      %v4587 = vmul.f32 %v4549, 0.5
      %v4588 = vmul.f32 %v4554, 0.5
      %v4589 = vmul.f32 %v4559, 0.5
      %v4590 = vmul.f32 %v4564, 0.5
      %v4591 = vmul.f32 %v4569, 0.5
      %v4592 = vmul.f32 %v4574, 0.5
      %v4593 = vmul.f32 %v4579, 0.5
      %v4594 = vmul.f32 %v4524, 0.044715
      %v4595 = vmul.f32 %v4529, 0.044715
      %v4596 = vmul.f32 %v4534, 0.044715
      %v4597 = vmul.f32 %v4539, 0.044715
      %v4598 = vmul.f32 %v4544, 0.044715
      %v4599 = vmul.f32 %v4549, 0.044715
      %v4600 = vmul.f32 %v4554, 0.044715
      %v4601 = vmul.f32 %v4559, 0.044715
      %v4602 = vmul.f32 %v4564, 0.044715
      %v4603 = vmul.f32 %v4569, 0.044715
      %v4604 = vmul.f32 %v4574, 0.044715
      %v4605 = vmul.f32 %v4579, 0.044715
      %v4606 = vmul.f32 %v4594, %v4524
      %v4607 = vmul.f32 %v4595, %v4529
      %v4608 = vmul.f32 %v4596, %v4534
      %v4609 = vmul.f32 %v4597, %v4539
      %v4610 = vmul.f32 %v4598, %v4544
      %v4611 = vmul.f32 %v4599, %v4549
      %v4612 = vmul.f32 %v4600, %v4554
      %v4613 = vmul.f32 %v4601, %v4559
      %v4614 = vmul.f32 %v4602, %v4564
      %v4615 = vmul.f32 %v4603, %v4569
      %v4616 = vmul.f32 %v4604, %v4574
      %v4617 = vmul.f32 %v4605, %v4579
      %v4618 = vmul.f32 %v4606, %v4524
      %v4619 = vmul.f32 %v4607, %v4529
      %v4620 = vmul.f32 %v4608, %v4534
      %v4621 = vmul.f32 %v4609, %v4539
      %v4622 = vmul.f32 %v4610, %v4544
      %v4623 = vmul.f32 %v4611, %v4549
      %v4624 = vmul.f32 %v4612, %v4554
      %v4625 = vmul.f32 %v4613, %v4559
      %v4626 = vmul.f32 %v4614, %v4564
      %v4627 = vmul.f32 %v4615, %v4569
      %v4628 = vmul.f32 %v4616, %v4574
      %v4629 = vmul.f32 %v4617, %v4579
      %v4630 = vadd.f32 %v4524, %v4618
      %v4631 = vadd.f32 %v4529, %v4619
      %v4632 = vadd.f32 %v4534, %v4620
      %v4633 = vadd.f32 %v4539, %v4621
      %v4634 = vadd.f32 %v4544, %v4622
      %v4635 = vadd.f32 %v4549, %v4623
      %v4636 = vadd.f32 %v4554, %v4624
      %v4637 = vadd.f32 %v4559, %v4625
      %v4638 = vadd.f32 %v4564, %v4626
      %v4639 = vadd.f32 %v4569, %v4627
      %v4640 = vadd.f32 %v4574, %v4628
      %v4641 = vadd.f32 %v4579, %v4629
      %v4642 = vmul.f32 %v4630, 0.7978846
      %v4643 = vmul.f32 %v4631, 0.7978846
      %v4644 = vmul.f32 %v4632, 0.7978846
      %v4645 = vmul.f32 %v4633, 0.7978846
      %v4646 = vmul.f32 %v4634, 0.7978846
      %v4647 = vmul.f32 %v4635, 0.7978846
      %v4648 = vmul.f32 %v4636, 0.7978846
      %v4649 = vmul.f32 %v4637, 0.7978846
      %v4650 = vmul.f32 %v4638, 0.7978846
      %v4651 = vmul.f32 %v4639, 0.7978846
      %v4652 = vmul.f32 %v4640, 0.7978846
      %v4653 = vmul.f32 %v4641, 0.7978846
      %v4654 = vtanh.pop %v4642
      %v4655 = vtanh.pop %v4643
      %v4656 = vtanh.pop %v4644
      %v4657 = vtanh.pop %v4645
      %v4658 = vtanh.pop %v4646
      %v4659 = vtanh.pop %v4647
      %v4660 = vtanh.pop %v4648
      %v4661 = vtanh.pop %v4649
      %v4662 = vtanh.pop %v4650
      %v4663 = vtanh.pop %v4651
      %v4664 = vtanh.pop %v4652
      %v4665 = vtanh.pop %v4653
      %v4666 = vadd.f32 %v4654, 1.0
      %v4667 = vadd.f32 %v4655, 1.0
      %v4668 = vadd.f32 %v4656, 1.0
      %v4669 = vadd.f32 %v4657, 1.0
      %v4670 = vadd.f32 %v4658, 1.0
      %v4671 = vadd.f32 %v4659, 1.0
      %v4672 = vadd.f32 %v4660, 1.0
      %v4673 = vadd.f32 %v4661, 1.0
      %v4674 = vadd.f32 %v4662, 1.0
      %v4675 = vadd.f32 %v4663, 1.0
      %v4676 = vadd.f32 %v4664, 1.0
      %v4677 = vadd.f32 %v4665, 1.0
      %v4678 = vmul.f32 %v4582, %v4666
      %v4679 = vmul.f32 %v4583, %v4667
      %v4680 = vmul.f32 %v4584, %v4668
      %v4681 = vmul.f32 %v4585, %v4669
      %v4682 = vmul.f32 %v4586, %v4670
      %v4683 = vmul.f32 %v4587, %v4671
      %v4684 = vmul.f32 %v4588, %v4672
      %v4685 = vmul.f32 %v4589, %v4673
      %v4686 = vmul.f32 %v4590, %v4674
      %v4687 = vmul.f32 %v4591, %v4675
      %v4688 = vmul.f32 %v4592, %v4676
      %v4689 = vmul.f32 %v4593, %v4677
      %v4690 = vld [vmem:[%s7] sm:$0xff]
      %v4691 = vld [vmem:[%s7 + $0x8] sm:$0xff]
      %v4692 = vld [vmem:[%s7 + $0x10] sm:$0xff]
      %v4693 = vld [vmem:[%s7 + $0x18] sm:$0xff]
      %v4694 = vld [vmem:[%s8] sm:$0x1]
      %v4696 = vlaneseq
      %v4697 = vshrl.u32 %v4696, 7
      %v4698 = vsub.s32 0, %v4697
      %v4699 = vrot.slane %v4694, %v4698
      %v4702 = vsel %vm2599, %v4678, 0
      %v4705 = vsel %vm2599, %v4679, 0
      %v4708 = vsel %vm2599, %v4680, 0
      %v4711 = vsel %vm2599, %v4681, 0
      %v4714 = vsel %vm2599, %v4682, 0
      %v4717 = vsel %vm2599, %v4683, 0
      %v4720 = vsel %vm2599, %v4684, 0
      %v4723 = vsel %vm2599, %v4685, 0
      %v4726 = vsel %vm2599, %v4686, 0
      %v4729 = vsel %vm2599, %v4687, 0
      %v4732 = vsel %vm2599, %v4688, 0
      %v4735 = vsel %vm2599, %v4689, 0
      %4737 = vmatprep.subr.mxu0 0.0
      %4738 = vmatpush1.msra.mxu0 0.0
      %4739 = vmatprep.subr.mxu0 0.0
      %4740 = vmatpush1.msra.mxu0 0.0
      %4741 = vmatprep.subr.mxu0 0.0
      %4742 = vmatpush1.msra.mxu0 0.0
      %4743 = vmatprep.subr.mxu0 0.0
      %4744 = vmatpush1.msra.mxu0 0.0
      %4745 = vmatprep.subr.mxu0 0.0
      %4746 = vmatpush1.msra.mxu0 0.0
      %4747 = vmatprep.subr.mxu0 0.0
      %4748 = vmatpush1.msra.mxu0 0.0
      %4749 = vmatprep.subr.mxu0 0.0
      %4750 = vmatpush1.msra.mxu0 0.0
      %4751 = vmatprep.subr.mxu0 0.0
      %4752 = vmatpush1.msra.mxu0 0.0
      %4753 = vmatprep.subr.mxu0 0.0
      %4754 = vmatpush1.msra.mxu0 0.0
      %4755 = vmatprep.subr.mxu0 0.0
      %4756 = vmatpush1.msra.mxu0 0.0
      %4757 = vmatprep.subr.mxu0 0.0
      %4758 = vmatpush1.msra.mxu0 0.0
      %4759 = vmatprep.subr.mxu0 0.0
      %4760 = vmatpush1.msra.mxu0 0.0
      %4761 = vmatprep.subr.mxu0 0.0
      %4762 = vmatpush1.msra.mxu0 %v4693
      %4763 = vmatprep.subr.mxu0 0.0
      %4764 = vmatpush1.msra.mxu0 %v4692
      %4765 = vmatprep.subr.mxu0 0.0
      %4766 = vmatpush1.msra.mxu0 %v4691
      %4767 = vmatprep.subr.mxu0 0.0
      %4768 = vmatpush1.msra.mxu0 %v4690
      %4769 = vmatprep.subr.mxu0 0.0
      %4770 = vmatpush2.msra.mxu0 0.0
      %4771 = vmatprep.subr.mxu0 0.0
      %4772 = vmatpush2.msra.mxu0 0.0
      %4773 = vmatprep.subr.mxu0 0.0
      %4774 = vmatpush2.msra.mxu0 0.0
      %4775 = vmatprep.subr.mxu0 0.0
      %4776 = vmatpush2.msra.mxu0 0.0
      %4777 = vmatprep.subr.mxu0 0.0
      %4778 = vmatpush2.msra.mxu0 0.0
      %4779 = vmatprep.subr.mxu0 0.0
      %4780 = vmatpush2.msra.mxu0 0.0
      %4781 = vmatprep.subr.mxu0 0.0
      %4782 = vmatpush2.msra.mxu0 0.0
      %4783 = vmatprep.subr.mxu0 0.0
      %4784 = vmatpush2.msra.mxu0 0.0
      %4785 = vmatprep.subr.mxu0 0.0
      %4786 = vmatpush2.msra.mxu0 0.0
      %4787 = vmatprep.subr.mxu0 0.0
      %4788 = vmatpush2.msra.mxu0 0.0
      %4789 = vmatprep.subr.mxu0 0.0
      %4790 = vmatpush2.msra.mxu0 0.0
      %4791 = vmatprep.subr.mxu0 0.0
      %4792 = vmatpush2.msra.mxu0 0.0
      %4793 = vmatprep.subr.mxu0 0.0
      %4794 = vmatpush2.msra.mxu0 0.0
      %4795 = vmatprep.subr.mxu0 0.0
      %4796 = vmatpush2.msra.mxu0 0.0
      %4797 = vmatprep.subr.mxu0 0.0
      %4798 = vmatpush2.msra.mxu0 0.0
      %4799 = vmatprep.subr.mxu0 0.0
      %4800 = vmatpush2.msra.mxu0 0.0
      %4801 = vmatprep.mubr.f32.mxu0 0.0
      %4802 = vmatmul.mubr.f32.gmra.mxu0 %v4702
      %v4803 = vpop.f32.mrf.mxu0
      %v4804 = vadd.f32 %v4699, %v4803
      %v4805 = vpop.f32.mrf.mxu0
      %4806 = vmatprep.mubr.f32.mxu0 0.0
      %4807 = vmatmul.mubr.f32.gmra.mxu0 %v4705
      %v4808 = vpop.f32.mrf.mxu0
      %v4809 = vadd.f32 %v4699, %v4808
      %v4810 = vpop.f32.mrf.mxu0
      %4811 = vmatprep.mubr.f32.mxu0 0.0
      %4812 = vmatmul.mubr.f32.gmra.mxu0 %v4708
      %v4813 = vpop.f32.mrf.mxu0
      %v4814 = vadd.f32 %v4699, %v4813
      %v4815 = vpop.f32.mrf.mxu0
      %4816 = vmatprep.mubr.f32.mxu0 0.0
      %4817 = vmatmul.mubr.f32.gmra.mxu0 %v4711
      %v4818 = vpop.f32.mrf.mxu0
      %v4819 = vadd.f32 %v4699, %v4818
      %v4820 = vpop.f32.mrf.mxu0
      %4821 = vmatprep.mubr.f32.mxu0 0.0
      %4822 = vmatmul.mubr.f32.gmra.mxu0 %v4714
      %v4823 = vpop.f32.mrf.mxu0
      %v4824 = vadd.f32 %v4699, %v4823
      %v4825 = vpop.f32.mrf.mxu0
      %4826 = vmatprep.mubr.f32.mxu0 0.0
      %4827 = vmatmul.mubr.f32.gmra.mxu0 %v4717
      %v4828 = vpop.f32.mrf.mxu0
      %v4829 = vadd.f32 %v4699, %v4828
      %v4830 = vpop.f32.mrf.mxu0
      %4831 = vmatprep.mubr.f32.mxu0 0.0
      %4832 = vmatmul.mubr.f32.gmra.mxu0 %v4720
      %v4833 = vpop.f32.mrf.mxu0
      %v4834 = vadd.f32 %v4699, %v4833
      %v4835 = vpop.f32.mrf.mxu0
      %4836 = vmatprep.mubr.f32.mxu0 0.0
      %4837 = vmatmul.mubr.f32.gmra.mxu0 %v4723
      %v4838 = vpop.f32.mrf.mxu0
      %v4839 = vadd.f32 %v4699, %v4838
      %v4840 = vpop.f32.mrf.mxu0
      %4841 = vmatprep.mubr.f32.mxu0 0.0
      %4842 = vmatmul.mubr.f32.gmra.mxu0 %v4726
      %v4843 = vpop.f32.mrf.mxu0
      %v4844 = vadd.f32 %v4699, %v4843
      %v4845 = vpop.f32.mrf.mxu0
      %4846 = vmatprep.mubr.f32.mxu0 0.0
      %4847 = vmatmul.mubr.f32.gmra.mxu0 %v4729
      %v4848 = vpop.f32.mrf.mxu0
      %v4849 = vadd.f32 %v4699, %v4848
      %v4850 = vpop.f32.mrf.mxu0
      %4851 = vmatprep.mubr.f32.mxu0 0.0
      %4852 = vmatmul.mubr.f32.gmra.mxu0 %v4732
      %v4853 = vpop.f32.mrf.mxu0
      %v4854 = vadd.f32 %v4699, %v4853
      %v4855 = vpop.f32.mrf.mxu0
      %4856 = vmatprep.mubr.f32.mxu0 0.0
      %4857 = vmatmul.mubr.f32.gmra.mxu0 %v4735
      %v4858 = vpop.f32.mrf.mxu0
      %v4859 = vadd.f32 %v4699, %v4858
      %v4860 = vpop.f32.mrf.mxu0
      %4861 = vdwg.mxu0
      %s4862 = scalar_lea.vmem %s509, 96
      %4863 = vst.msk [vmem:[%s4862] sm:$0xff] %vm569, %v4804
      %4864 = vst.msk [vmem:[%s4862 + $0x8] sm:$0xff] %vm569, %v4809
      %4865 = vst.msk [vmem:[%s4862 + $0x10] sm:$0xff] %vm569, %v4814
      %4866 = vst.msk [vmem:[%s4862 + $0x18] sm:$0xff] %vm569, %v4819
      %4867 = vst.msk [vmem:[%s4862 + $0x20] sm:$0xff] %vm569, %v4824
      %4868 = vst.msk [vmem:[%s4862 + $0x28] sm:$0xff] %vm569, %v4829
      %4869 = vst.msk [vmem:[%s4862 + $0x30] sm:$0xff] %vm569, %v4834
      %4870 = vst.msk [vmem:[%s4862 + $0x38] sm:$0xff] %vm569, %v4839
      %4871 = vst.msk [vmem:[%s4862 + $0x40] sm:$0xff] %vm569, %v4844
      %4872 = vst.msk [vmem:[%s4862 + $0x48] sm:$0xff] %vm569, %v4849
      %4873 = vst.msk [vmem:[%s4862 + $0x50] sm:$0xff] %vm569, %v4854
      %4874 = vst.msk [vmem:[%s4862 + $0x58] sm:$0xff] %vm569, %v4859
      %s4875 = smul.u32 8, %s25
      %p4876 = scmp.lt.s32.totalorder %s24, 1
      %s4877 = scalar_select %p4876, %s24, 1
      %p4878 = scmp.lt.s32.totalorder %s4875, 23
      %s4879 = scalar_select %p4878, %s4875, 23
      %s4880 = smul.addr %s4879, 3
      %s4881 = smul.addr %s4877, 72
      %s4882 = sadd.s32 %s4880, %s4881
      %s4883 = smul.addr %s4882, 8
      %s4884 = scalar_lea.vmem %s9, %s4883
      // Predicated region
      $region77: #{tpu_custom_call.1} parent=55 // pred_check
        %p4885 = pneg %p278
      $region78: #{tpu_custom_call.1} parent=55 // pred_check_branch
        %4887 = sbr.rel (%p4885) target = $region80
      $region79: #{tpu_custom_call.1} parent=55 // pred_region
        %s4888 = smul.u32 8, %s25
      $region80: #{tpu_custom_call.1} parent=55 // pred_fallthru
        _
    $region56: #{tpu_custom_call.1} parent=5 // pred_fallthru
      _
    %p4889 = scmp.le.s32.totalorder 2, %s15
    // Predicated region
    $region81: #{tpu_custom_call.1} parent=5 // pred_check
      %p4890 = pneg %p4889
    $region82: #{tpu_custom_call.1} parent=5 // pred_check_branch
      %4892 = sbr.rel (%p4890) target = $region84
    $region83: #{tpu_custom_call.1} parent=5 // pred_region
      %s4893 = ssub.s32 %s15, 2
      // Predicated region
      $region85: #{tpu_custom_call.1} parent=83 // pred_check
        %p4894 = pneg %p284
      $region86: #{tpu_custom_call.1} parent=83 // pred_check_branch
        %4896 = sbr.rel (%p4894) target = $region88
      $region87: #{tpu_custom_call.1} parent=83 // pred_region
        %s4897 = smul.u32 8, %s27
        %p4898 = scmp.lt.s32.totalorder %s26, 1
        %s4899 = scalar_select %p4898, %s26, 1
        %p4900 = scmp.lt.s32.totalorder %s4897, 23
        %s4901 = scalar_select %p4900, %s4897, 23
        %s4902 = smul.addr %s4901, 3
        %s4903 = smul.addr %s4899, 72
        %s4904 = sadd.s32 %s4902, %s4903
        %s4905 = smul.addr %s4904, 8
        %s4906 = scalar_lea.vmem %s9, %s4905
      $region88: #{tpu_custom_call.1} parent=83 // pred_fallthru
        _
    $region84: #{tpu_custom_call.1} parent=5 // pred_fallthru
      _
  $region6: #{tpu_custom_call.1} parent=0 // loop_footer
    %s19 = sadd.s32 1, %s15
  $region7: #{tpu_custom_call.1} parent=0 // loop_footer_branch
    %14 = sbr.rel target = $region3
  $region8: #{tpu_custom_call.1} parent=0 // loop_exit
    _

</llo_original>
